<compile_context>
chip_gen: v7x
topology: tpu7x:2x2x1
jax: 0.10.0
libtpu: 0.0.40
codegen_flags: <defaults>
</compile_context>

<pallas_src>
import functools

import jax
import jax.numpy as jnp
from jax.experimental import pallas as pl
from jax.experimental.pallas import tpu as pltpu

_EPS = 1e-5


def _basic_block_kernel(with_ibn, H, W, C, half,
                        x_ref, w1_ref, w2_ref, vec_ref,
                        out_ref, pad_ref):
    HW = H * W
    f32 = jnp.float32
    bf16 = jnp.bfloat16

    vec = vec_ref[...]                       # (4, C) f32: [in_gamma, in_beta, bn1_shift, bn2_shift]
    in_g = vec[0:1, :]
    in_b = vec[1:2, :]
    bn1b = vec[2:3, :]
    bn2b = vec[3:4, :]

    # Padded conv-input scratch (bf16).  Only the top/bottom halo rows are zeroed; the
    # side halo columns are written as part of the dense full-width interior store below.
    # Re-zeroed every step so it stays correct if the batch axis is sharded across cores.
    zrow = jnp.zeros((1, W + 2, C), bf16)
    pad_ref[0:1, :, :] = zrow
    pad_ref[H + 1:H + 2, :, :] = zrow
    zcol = jnp.zeros((H, 1, C), bf16)

    def store_padded(v_hwc_bf16):
        # (H, W, C) -> (H, W+2, C) with zero side columns folded into one dense store.
        pad_ref[1:H + 1, :, :] = jnp.concatenate([zcol, v_hwc_bf16, zcol], axis=1)

    def conv3x3(w_ref):
        # Shift-and-accumulate 3x3 conv: 9 bf16 (HW,C)x(C,C) MXU matmuls with f32
        # accumulation.  Avoids materializing the (HW, 9C) im2col buffer (the
        # load/store-slot hot spot); K=C fills the 128-deep v5e MXU and C>=256 fills
        # the 256-deep v6e/v7x MXU; on v7x the MRB accumulates partials in-place.
        acc = None
        for dy in range(3):
            for dx in range(3):
                patch = pad_ref[dy:dy + H, dx:dx + W, :].reshape(HW, C)
                part = jnp.dot(patch, w_ref[dy * 3 + dx], preferred_element_type=f32)
                acc = part if acc is None else acc + part
        return acc                                            # (HW, C) f32

    # ---- conv1 (3x3, pad 1, stride 1); BN-half of bn1 scale pre-folded into w1 ------
    store_padded(x_ref[0])                                    # x block is bf16 already
    o1 = conv3x3(w1_ref)

    # ---- bn1: fused IBN / BN epilogue -> one FMA + ReLU pass over (HW, C) -----------
    if with_ibn:
        inv_hw = 1.0 / HW
        s = jnp.sum(o1, axis=0, keepdims=True)                # (1, C)
        ss = jnp.sum(o1 * o1, axis=0, keepdims=True)
        mu = s * inv_hw
        var = jnp.maximum(ss * inv_hw - mu * mu, 0.0)         # clamp cancellation
        sc_in = in_g * jax.lax.rsqrt(var + _EPS)              # per-sample biased IN stats
        ch = jax.lax.broadcasted_iota(jnp.int32, (1, C), 1)
        is_in = ch < half
        scale = jnp.where(is_in, sc_in, 1.0)                  # BN scale already in w1 cols
        shift = jnp.where(is_in, in_b - mu * sc_in, bn1b)
        h1 = jnp.maximum(o1 * scale + shift, 0.0)
    else:
        h1 = jnp.maximum(o1 + bn1b, 0.0)                      # BN scale folded into w1

    # ---- conv2 + bn2 shift (scale folded into w2); se = Identity --------------------
    store_padded(h1.reshape(H, W, C).astype(bf16))
    o2 = conv3x3(w2_ref) + bn2b

    # ---- downsample = None -> residual add (re-read x, no live f32 copy) + ReLU -----
    ident = x_ref[0].astype(f32).reshape(HW, C)
    out = jnp.maximum(o2 + ident, 0.0)
    out_ref[0] = out.reshape(H, W, C).astype(out_ref.dtype)


def _round_up(v, m):
    return (v + m - 1) // m * m


def _bn_scale_shift(gamma, beta, mean, var):
    scale = gamma / jnp.sqrt(var + _EPS)
    return scale, beta - mean * scale


def basic_block_forward(x_nchw, params, *, with_ibn=True):
    """x_nchw: (N, Cin, H, W) float32; Cin must equal planes (stride=1, downsample=None)."""
    N, Cin, H, W = x_nchw.shape
    planes = params["conv1"].shape[0]
    assert Cin == planes, "stride=1 & downsample=None requires inplanes == planes"

    C = _round_up(max(planes, 128), 128)          # lane-dense channel padding
    half = planes // 2

    def pad_c(v, fill=0.0):
        return jnp.pad(v, (0, C - v.shape[0]), constant_values=fill)

    # ---- BN scale/shift; fold scales into conv weight output columns ----------------
    s2, b2 = _bn_scale_shift(*params["bn2"])
    s1, b1 = _bn_scale_shift(*params["bn1"])
    if with_ibn:
        # IN half keeps scale 1 (normalization applied in-kernel); BN half folded into w1.
        scale1 = jnp.concatenate([jnp.ones((half,), jnp.float32), s1])
        shift1 = jnp.concatenate([jnp.zeros((half,), jnp.float32), b1])
        in_g = pad_c(params["in_gamma"], 1.0)
        in_b = pad_c(params["in_beta"])
    else:
        scale1, shift1 = s1, b1
        in_g = jnp.ones((C,), jnp.float32)        # unused dummies
        in_b = jnp.zeros((C,), jnp.float32)
    vec = jnp.stack([in_g, in_b, pad_c(shift1), pad_c(b2)])   # (4, C) f32

    def prep_w(w_oihw, cout_scale):
        # OIHW -> (ky, kx, cin, cout), fold per-output-channel BN scale, zero-pad
        # cin/cout to C, reshape to per-tap (9, C, C), cast to bf16 for the MXU.
        co, ci = w_oihw.shape[0], w_oihw.shape[1]
        w = jnp.transpose(w_oihw, (2, 3, 1, 0)) * cout_scale[None, None, None, :]
        w = jnp.pad(w, ((0, 0), (0, 0), (0, C - ci), (0, C - co)))
        return w.reshape(9, C, C).astype(jnp.bfloat16)

    w1 = prep_w(params["conv1"], scale1)
    w2 = prep_w(params["conv2"], s2)

    # NCHW -> NHWC (channels on lanes), zero-pad channels to C, stream as bf16.
    x = jnp.transpose(x_nchw, (0, 2, 3, 1))
    x = jnp.pad(x, ((0, 0), (0, 0), (0, 0), (0, C - planes))).astype(jnp.bfloat16)

    # VMEM budget from the actual per-step footprint (+ headroom), clamped for v7x (64 MiB).
    act_blk = H * W * C * 2                       # bf16 activation block
    need = (4 * act_blk                           # x/out blocks, double-buffered
            + 2 * 9 * C * C * 2                   # both weight stacks (single-buffered)
            + 4 * C * 4                           # merged shift vector
            + (H + 2) * (W + 2) * C * 2           # bf16 padded scratch
            + 4 * H * W * C * 4)                  # f32 o1/o2/h1 temporaries
    vmem_limit = min(max(2 * need + (4 << 20), 16 << 20), 48 << 20)

    cost = pl.CostEstimate(
        flops=4 * N * H * W * 9 * C * C,
        transcendentals=N * C,
        bytes_accessed=2 * N * H * W * C * 2 + 2 * 9 * C * C * 2 + 4 * C * 4,
    )

    # Whole-array VMEM specs: constant-index operands (weights, shift vector) live in VMEM
    # once for the entire grid -> no per-step double-buffered windows for them.
    resident = pl.BlockSpec(memory_space=pltpu.MemorySpace.VMEM)

    out_nhwc = pl.pallas_call(
        functools.partial(_basic_block_kernel, with_ibn, H, W, C, half),
        out_shape=jax.ShapeDtypeStruct((N, H, W, C), jnp.bfloat16),
        grid=(N,),
        in_specs=[
            pl.BlockSpec((1, H, W, C), lambda b: (b, 0, 0, 0)),   # x (bf16)
            resident,                                             # w1 (9, C, C) bf16
            resident,                                             # w2 (9, C, C) bf16
            resident,                                             # vec (4, C) f32
        ],
        out_specs=pl.BlockSpec((1, H, W, C), lambda b: (b, 0, 0, 0)),
        scratch_shapes=[pltpu.VMEM((H + 2, W + 2, C), jnp.bfloat16)],
        compiler_params=pltpu.CompilerParams(
            dimension_semantics=("parallel",),    # batch images are independent (megacore)
            vmem_limit_bytes=vmem_limit),
        cost_estimate=cost,
    )(x, w1, w2, vec)

    out = out_nhwc[..., :planes].astype(jnp.float32)
    return jnp.transpose(out, (0, 3, 1, 2))       # back to NCHW, f32 interface


# ---------------- pure-JAX f32 reference (for correctness check) ----------------
def _ref_forward(x, params, *, with_ibn=True):
    def conv(x, w, pad=1):
        return jax.lax.conv_general_dilated(
            x, w, (1, 1), [(pad, pad), (pad, pad)],
            dimension_numbers=("NCHW", "OIHW", "NCHW"))

    def bn(y, p):
        g, b, m, v = p
        sc = (g / jnp.sqrt(v + _EPS))[None, :, None, None]
        return (y - m[None, :, None, None]) * sc + b[None, :, None, None]

    out = conv(x, params["conv1"])
    if with_ibn:
        half = out.shape[1] // 2
        a, rest = out[:, :half], out[:, half:]
        mu = a.mean(axis=(2, 3), keepdims=True)
        var = ((a - mu) ** 2).mean(axis=(2, 3), keepdims=True)
        a = (a - mu) / jnp.sqrt(var + _EPS)
        a = a * params["in_gamma"][None, :, None, None] + params["in_beta"][None, :, None, None]
        out = jnp.concatenate([a, bn(rest, params["bn1"])], axis=1)
    else:
        out = bn(out, params["bn1"])
    out = jax.nn.relu(out)
    out = bn(conv(out, params["conv2"]), params["bn2"])
    # se = Identity, downsample = None
    return jax.nn.relu(out + x)


def _make_params(key, planes, with_ibn=True):
    ks = jax.random.split(key, 6)
    half = planes // 2

    def bn_params(k, c):
        kg, kb, km, kv = jax.random.split(k, 4)
        return (1.0 + 0.1 * jax.random.normal(kg, (c,), jnp.float32),
                0.1 * jax.random.normal(kb, (c,), jnp.float32),
                0.1 * jax.random.normal(km, (c,), jnp.float32),
                1.0 + 0.1 * jax.random.uniform(kv, (c,), jnp.float32))

    return {
        "conv1": 0.1 * jax.random.normal(ks[0], (planes, planes, 3, 3), jnp.float32),
        "conv2": 0.1 * jax.random.normal(ks[1], (planes, planes, 3, 3), jnp.float32),
        "in_gamma": 1.0 + 0.1 * jax.random.normal(ks[2], (half,), jnp.float32),
        "in_beta": 0.1 * jax.random.normal(ks[3], (half,), jnp.float32),
        "bn1": bn_params(ks[4], planes - half if with_ibn else planes),
        "bn2": bn_params(ks[5], planes),
    }


if __name__ == "__main__":
    key = jax.random.PRNGKey(0)
    kx, kp = jax.random.split(key)

    N, planes, H, W = 2, 16, 16, 16          # inplanes == planes (stride=1, downsample=None)
    x = jax.random.normal(kx, (N, planes, H, W), jnp.float32)

    for with_ibn in (True, False):
        params = _make_params(kp, planes, with_ibn=with_ibn)
        out = jax.block_until_ready(basic_block_forward(x, params, with_ibn=with_ibn))
        ref = jax.block_until_ready(_ref_forward(x, params, with_ibn=with_ibn))
        assert out.shape == (N, planes, H, W)
        err = float(jnp.max(jnp.abs(out - ref)))
        # bf16 MXU operands + bf16 activation streaming vs. f32 reference -> relaxed tol.
        assert jnp.allclose(out, ref, atol=5e-2, rtol=5e-2), err

    print("KERNEL_OK")
</pallas_src>

<mosaic_0001>
module attributes {stable_mosaic.version = 11 : i64} {
  func.func @_basic_block_kernel(%arg0: i32, %arg1: memref<1x16x16x128xbf16, #tpu.memory_space<vmem>>, %arg2: memref<9x128x128xbf16, #tpu.memory_space<vmem>>, %arg3: memref<9x128x128xbf16, #tpu.memory_space<vmem>>, %arg4: memref<4x128xf32, #tpu.memory_space<vmem>>, %arg5: memref<1x16x16x128xbf16, #tpu.memory_space<vmem>>, %arg6: memref<18x18x128xbf16, #tpu.memory_space<vmem>>) attributes {dimension_semantics = [#tpu.dimension_semantics<parallel>], iteration_bounds = array<i64: 2>, scalar_prefetch = 0 : i64, scratch_operands = 1 : i64, tpu.core_type = #tpu.core_type<tc>, window_params = [{transform_indices = @transform_0, window_bounds = array<i64: 1, 16, 16, 128>}, {pipeline_mode = #tpu.pipeline_mode<synchronous>, transform_indices = @transform_1, window_bounds = array<i64: 9, 128, 128>}, {pipeline_mode = #tpu.pipeline_mode<synchronous>, transform_indices = @transform_2, window_bounds = array<i64: 9, 128, 128>}, {pipeline_mode = #tpu.pipeline_mode<synchronous>, transform_indices = @transform_3, window_bounds = array<i64: 4, 128>}, {transform_indices = @transform_4, window_bounds = array<i64: 1, 16, 16, 128>}]} {
    %c0 = arith.constant 0 : index
    %c0_0 = arith.constant 0 : index
    %0 = vector.load %arg4[%c0, %c0_0] : memref<4x128xf32, #tpu.memory_space<vmem>>, vector<4x128xf32>
    %1 = vector.extract_strided_slice %0 {offsets = [0, 0], sizes = [1, 128], strides = [1, 1]} : vector<4x128xf32> to vector<1x128xf32>
    %2 = vector.extract_strided_slice %0 {offsets = [1, 0], sizes = [1, 128], strides = [1, 1]} : vector<4x128xf32> to vector<1x128xf32>
    %3 = vector.extract_strided_slice %0 {offsets = [2, 0], sizes = [1, 128], strides = [1, 1]} : vector<4x128xf32> to vector<1x128xf32>
    %4 = vector.extract_strided_slice %0 {offsets = [3, 0], sizes = [1, 128], strides = [1, 1]} : vector<4x128xf32> to vector<1x128xf32>
    %cst = arith.constant 0.000000e+00 : bf16
    %5 = vector.broadcast %cst : bf16 to vector<1x18x128xbf16>
    %c0_1 = arith.constant 0 : index
    %c0_2 = arith.constant 0 : index
    %c0_3 = arith.constant 0 : index
    %6 = vector.load %arg6[%c0_1, %c0_2, %c0_3] : memref<18x18x128xbf16, #tpu.memory_space<vmem>>, vector<1x18x128xbf16>
    tpu.vector_store %arg6[%c0_1, %c0_2, %c0_3], %5 {strides = array<i32>} : memref<18x18x128xbf16, #tpu.memory_space<vmem>>, vector<1x18x128xbf16>,
    %c17 = arith.constant 17 : index
    %c0_4 = arith.constant 0 : index
    %c0_5 = arith.constant 0 : index
    %7 = vector.load %arg6[%c17, %c0_4, %c0_5] : memref<18x18x128xbf16, #tpu.memory_space<vmem>>, vector<1x18x128xbf16>
    tpu.vector_store %arg6[%c17, %c0_4, %c0_5], %5 {strides = array<i32>} : memref<18x18x128xbf16, #tpu.memory_space<vmem>>, vector<1x18x128xbf16>,
    %cst_6 = arith.constant 0.000000e+00 : bf16
    %8 = vector.broadcast %cst_6 : bf16 to vector<16x1x128xbf16>
    %c0_7 = arith.constant 0 : index
    %c0_8 = arith.constant 0 : index
    %c0_9 = arith.constant 0 : index
    %c0_10 = arith.constant 0 : index
    %9 = vector.load %arg1[%c0_7, %c0_8, %c0_9, %c0_10] : memref<1x16x16x128xbf16, #tpu.memory_space<vmem>>, vector<1x16x16x128xbf16>
    %10 = vector.shape_cast %9 : vector<1x16x16x128xbf16> to vector<16x16x128xbf16>
    %11 = tpu.concatenate %8, %10, %8 in 1 : vector<16x1x128xbf16>, vector<16x16x128xbf16>, vector<16x1x128xbf16> -> vector<16x18x128xbf16>
    %c1 = arith.constant 1 : index
    %c0_11 = arith.constant 0 : index
    %c0_12 = arith.constant 0 : index
    %12 = vector.load %arg6[%c1, %c0_11, %c0_12] : memref<18x18x128xbf16, #tpu.memory_space<vmem>>, vector<16x18x128xbf16>
    tpu.vector_store %arg6[%c1, %c0_11, %c0_12], %11 {strides = array<i32>} : memref<18x18x128xbf16, #tpu.memory_space<vmem>>, vector<16x18x128xbf16>,
    %c0_13 = arith.constant 0 : index
    %c0_14 = arith.constant 0 : index
    %c0_15 = arith.constant 0 : index
    %13 = vector.load %arg6[%c0_13, %c0_14, %c0_15] : memref<18x18x128xbf16, #tpu.memory_space<vmem>>, vector<16x16x128xbf16>
    %14 = vector.shape_cast %13 : vector<16x16x128xbf16> to vector<256x128xbf16>
    %c0_16 = arith.constant 0 : index
    %c0_17 = arith.constant 0 : index
    %c0_18 = arith.constant 0 : index
    %15 = vector.load %arg2[%c0_16, %c0_17, %c0_18] : memref<9x128x128xbf16, #tpu.memory_space<vmem>>, vector<1x128x128xbf16>
    %16 = vector.shape_cast %15 : vector<1x128x128xbf16> to vector<128x128xbf16>
    %cst_19 = arith.constant dense<0.000000e+00> : vector<256x128xf32>
    %17 = tpu.matmul %14, %16, %cst_19 {dimension_numbers = #tpu.dot_dimension_numbers<[1], [0], [0], [1], [0, 0, 1, 1], [], []>} : vector<256x128xbf16>, vector<128x128xbf16>, vector<256x128xf32> -> vector<256x128xf32>
    %c0_20 = arith.constant 0 : index
    %c1_21 = arith.constant 1 : index
    %c0_22 = arith.constant 0 : index
    %18 = vector.load %arg6[%c0_20, %c1_21, %c0_22] : memref<18x18x128xbf16, #tpu.memory_space<vmem>>, vector<16x16x128xbf16>
    %19 = vector.shape_cast %18 : vector<16x16x128xbf16> to vector<256x128xbf16>
    %c1_23 = arith.constant 1 : index
    %c0_24 = arith.constant 0 : index
    %c0_25 = arith.constant 0 : index
    %20 = vector.load %arg2[%c1_23, %c0_24, %c0_25] : memref<9x128x128xbf16, #tpu.memory_space<vmem>>, vector<1x128x128xbf16>
    %21 = vector.shape_cast %20 : vector<1x128x128xbf16> to vector<128x128xbf16>
    %cst_26 = arith.constant dense<0.000000e+00> : vector<256x128xf32>
    %22 = tpu.matmul %19, %21, %cst_26 {dimension_numbers = #tpu.dot_dimension_numbers<[1], [0], [0], [1], [0, 0, 1, 1], [], []>} : vector<256x128xbf16>, vector<128x128xbf16>, vector<256x128xf32> -> vector<256x128xf32>
    %23 = arith.addf %17, %22 : vector<256x128xf32>
    %c0_27 = arith.constant 0 : index
    %c2 = arith.constant 2 : index
    %c0_28 = arith.constant 0 : index
    %24 = vector.load %arg6[%c0_27, %c2, %c0_28] : memref<18x18x128xbf16, #tpu.memory_space<vmem>>, vector<16x16x128xbf16>
    %25 = vector.shape_cast %24 : vector<16x16x128xbf16> to vector<256x128xbf16>
    %c2_29 = arith.constant 2 : index
    %c0_30 = arith.constant 0 : index
    %c0_31 = arith.constant 0 : index
    %26 = vector.load %arg2[%c2_29, %c0_30, %c0_31] : memref<9x128x128xbf16, #tpu.memory_space<vmem>>, vector<1x128x128xbf16>
    %27 = vector.shape_cast %26 : vector<1x128x128xbf16> to vector<128x128xbf16>
    %cst_32 = arith.constant dense<0.000000e+00> : vector<256x128xf32>
    %28 = tpu.matmul %25, %27, %cst_32 {dimension_numbers = #tpu.dot_dimension_numbers<[1], [0], [0], [1], [0, 0, 1, 1], [], []>} : vector<256x128xbf16>, vector<128x128xbf16>, vector<256x128xf32> -> vector<256x128xf32>
    %29 = arith.addf %23, %28 : vector<256x128xf32>
    %c1_33 = arith.constant 1 : index
    %c0_34 = arith.constant 0 : index
    %c0_35 = arith.constant 0 : index
    %30 = vector.load %arg6[%c1_33, %c0_34, %c0_35] : memref<18x18x128xbf16, #tpu.memory_space<vmem>>, vector<16x16x128xbf16>
    %31 = vector.shape_cast %30 : vector<16x16x128xbf16> to vector<256x128xbf16>
    %c3 = arith.constant 3 : index
    %c0_36 = arith.constant 0 : index
    %c0_37 = arith.constant 0 : index
    %32 = vector.load %arg2[%c3, %c0_36, %c0_37] : memref<9x128x128xbf16, #tpu.memory_space<vmem>>, vector<1x128x128xbf16>
    %33 = vector.shape_cast %32 : vector<1x128x128xbf16> to vector<128x128xbf16>
    %cst_38 = arith.constant dense<0.000000e+00> : vector<256x128xf32>
    %34 = tpu.matmul %31, %33, %cst_38 {dimension_numbers = #tpu.dot_dimension_numbers<[1], [0], [0], [1], [0, 0, 1, 1], [], []>} : vector<256x128xbf16>, vector<128x128xbf16>, vector<256x128xf32> -> vector<256x128xf32>
    %35 = arith.addf %29, %34 : vector<256x128xf32>
    %c1_39 = arith.constant 1 : index
    %c1_40 = arith.constant 1 : index
    %c0_41 = arith.constant 0 : index
    %36 = vector.load %arg6[%c1_39, %c1_40, %c0_41] : memref<18x18x128xbf16, #tpu.memory_space<vmem>>, vector<16x16x128xbf16>
    %37 = vector.shape_cast %36 : vector<16x16x128xbf16> to vector<256x128xbf16>
    %c4 = arith.constant 4 : index
    %c0_42 = arith.constant 0 : index
    %c0_43 = arith.constant 0 : index
    %38 = vector.load %arg2[%c4, %c0_42, %c0_43] : memref<9x128x128xbf16, #tpu.memory_space<vmem>>, vector<1x128x128xbf16>
    %39 = vector.shape_cast %38 : vector<1x128x128xbf16> to vector<128x128xbf16>
    %cst_44 = arith.constant dense<0.000000e+00> : vector<256x128xf32>
    %40 = tpu.matmul %37, %39, %cst_44 {dimension_numbers = #tpu.dot_dimension_numbers<[1], [0], [0], [1], [0, 0, 1, 1], [], []>} : vector<256x128xbf16>, vector<128x128xbf16>, vector<256x128xf32> -> vector<256x128xf32>
    %41 = arith.addf %35, %40 : vector<256x128xf32>
    %c1_45 = arith.constant 1 : index
    %c2_46 = arith.constant 2 : index
    %c0_47 = arith.constant 0 : index
    %42 = vector.load %arg6[%c1_45, %c2_46, %c0_47] : memref<18x18x128xbf16, #tpu.memory_space<vmem>>, vector<16x16x128xbf16>
    %43 = vector.shape_cast %42 : vector<16x16x128xbf16> to vector<256x128xbf16>
    %c5 = arith.constant 5 : index
    %c0_48 = arith.constant 0 : index
    %c0_49 = arith.constant 0 : index
    %44 = vector.load %arg2[%c5, %c0_48, %c0_49] : memref<9x128x128xbf16, #tpu.memory_space<vmem>>, vector<1x128x128xbf16>
    %45 = vector.shape_cast %44 : vector<1x128x128xbf16> to vector<128x128xbf16>
    %cst_50 = arith.constant dense<0.000000e+00> : vector<256x128xf32>
    %46 = tpu.matmul %43, %45, %cst_50 {dimension_numbers = #tpu.dot_dimension_numbers<[1], [0], [0], [1], [0, 0, 1, 1], [], []>} : vector<256x128xbf16>, vector<128x128xbf16>, vector<256x128xf32> -> vector<256x128xf32>
    %47 = arith.addf %41, %46 : vector<256x128xf32>
    %c2_51 = arith.constant 2 : index
    %c0_52 = arith.constant 0 : index
    %c0_53 = arith.constant 0 : index
    %48 = vector.load %arg6[%c2_51, %c0_52, %c0_53] : memref<18x18x128xbf16, #tpu.memory_space<vmem>>, vector<16x16x128xbf16>
    %49 = vector.shape_cast %48 : vector<16x16x128xbf16> to vector<256x128xbf16>
    %c6 = arith.constant 6 : index
    %c0_54 = arith.constant 0 : index
    %c0_55 = arith.constant 0 : index
    %50 = vector.load %arg2[%c6, %c0_54, %c0_55] : memref<9x128x128xbf16, #tpu.memory_space<vmem>>, vector<1x128x128xbf16>
    %51 = vector.shape_cast %50 : vector<1x128x128xbf16> to vector<128x128xbf16>
    %cst_56 = arith.constant dense<0.000000e+00> : vector<256x128xf32>
    %52 = tpu.matmul %49, %51, %cst_56 {dimension_numbers = #tpu.dot_dimension_numbers<[1], [0], [0], [1], [0, 0, 1, 1], [], []>} : vector<256x128xbf16>, vector<128x128xbf16>, vector<256x128xf32> -> vector<256x128xf32>
    %53 = arith.addf %47, %52 : vector<256x128xf32>
    %c2_57 = arith.constant 2 : index
    %c1_58 = arith.constant 1 : index
    %c0_59 = arith.constant 0 : index
    %54 = vector.load %arg6[%c2_57, %c1_58, %c0_59] : memref<18x18x128xbf16, #tpu.memory_space<vmem>>, vector<16x16x128xbf16>
    %55 = vector.shape_cast %54 : vector<16x16x128xbf16> to vector<256x128xbf16>
    %c7 = arith.constant 7 : index
    %c0_60 = arith.constant 0 : index
    %c0_61 = arith.constant 0 : index
    %56 = vector.load %arg2[%c7, %c0_60, %c0_61] : memref<9x128x128xbf16, #tpu.memory_space<vmem>>, vector<1x128x128xbf16>
    %57 = vector.shape_cast %56 : vector<1x128x128xbf16> to vector<128x128xbf16>
    %cst_62 = arith.constant dense<0.000000e+00> : vector<256x128xf32>
    %58 = tpu.matmul %55, %57, %cst_62 {dimension_numbers = #tpu.dot_dimension_numbers<[1], [0], [0], [1], [0, 0, 1, 1], [], []>} : vector<256x128xbf16>, vector<128x128xbf16>, vector<256x128xf32> -> vector<256x128xf32>
    %59 = arith.addf %53, %58 : vector<256x128xf32>
    %c2_63 = arith.constant 2 : index
    %c2_64 = arith.constant 2 : index
    %c0_65 = arith.constant 0 : index
    %60 = vector.load %arg6[%c2_63, %c2_64, %c0_65] : memref<18x18x128xbf16, #tpu.memory_space<vmem>>, vector<16x16x128xbf16>
    %61 = vector.shape_cast %60 : vector<16x16x128xbf16> to vector<256x128xbf16>
    %c8 = arith.constant 8 : index
    %c0_66 = arith.constant 0 : index
    %c0_67 = arith.constant 0 : index
    %62 = vector.load %arg2[%c8, %c0_66, %c0_67] : memref<9x128x128xbf16, #tpu.memory_space<vmem>>, vector<1x128x128xbf16>
    %63 = vector.shape_cast %62 : vector<1x128x128xbf16> to vector<128x128xbf16>
    %cst_68 = arith.constant dense<0.000000e+00> : vector<256x128xf32>
    %64 = tpu.matmul %61, %63, %cst_68 {dimension_numbers = #tpu.dot_dimension_numbers<[1], [0], [0], [1], [0, 0, 1, 1], [], []>} : vector<256x128xbf16>, vector<128x128xbf16>, vector<256x128xf32> -> vector<256x128xf32>
    %65 = arith.addf %59, %64 : vector<256x128xf32>
    %cst_69 = arith.constant dense<0.000000e+00> : vector<128xf32>
    %66 = vector.multi_reduction <add>, %65, %cst_69 [0] : vector<256x128xf32> to vector<128xf32>
    %67 = vector.shape_cast %66 : vector<128xf32> to vector<1x128xf32>
    %68 = arith.mulf %65, %65 : vector<256x128xf32>
    %cst_70 = arith.constant dense<0.000000e+00> : vector<128xf32>
    %69 = vector.multi_reduction <add>, %68, %cst_70 [0] : vector<256x128xf32> to vector<128xf32>
    %70 = vector.shape_cast %69 : vector<128xf32> to vector<1x128xf32>
    %cst_71 = arith.constant 3.906250e-03 : f32
    %71 = vector.broadcast %cst_71 : f32 to vector<1x128xf32>
    %72 = arith.mulf %67, %71 : vector<1x128xf32>
    %cst_72 = arith.constant 3.906250e-03 : f32
    %73 = vector.broadcast %cst_72 : f32 to vector<1x128xf32>
    %74 = arith.mulf %70, %73 : vector<1x128xf32>
    %75 = arith.mulf %72, %72 : vector<1x128xf32>
    %76 = arith.subf %74, %75 : vector<1x128xf32>
    %cst_73 = arith.constant 0.000000e+00 : f32
    %77 = vector.broadcast %cst_73 : f32 to vector<1x128xf32>
    %78 = arith.maximumf %76, %77 : vector<1x128xf32>
    %cst_74 = arith.constant 9.99999974E-6 : f32
    %79 = vector.broadcast %cst_74 : f32 to vector<1x128xf32>
    %80 = arith.addf %78, %79 : vector<1x128xf32>
    %81 = math.rsqrt %80 : vector<1x128xf32>
    %82 = arith.mulf %1, %81 : vector<1x128xf32>
    %83 = tpu.iota {dimensions = array<i32: 1>} : vector<1x128xi32>
    %c8_i32 = arith.constant 8 : i32
    %84 = vector.broadcast %c8_i32 : i32 to vector<1x128xi32>
    %85 = arith.cmpi slt, %83, %84 : vector<1x128xi32>
    %cst_75 = arith.constant 1.000000e+00 : f32
    %86 = vector.broadcast %cst_75 : f32 to vector<1x128xf32>
    %87 = arith.select %85, %82, %86 : vector<1x128xi1>, vector<1x128xf32>
    %88 = arith.mulf %72, %82 : vector<1x128xf32>
    %89 = arith.subf %2, %88 : vector<1x128xf32>
    %90 = arith.select %85, %89, %3 : vector<1x128xi1>, vector<1x128xf32>
    %91 = vector.broadcast %87 : vector<1x128xf32> to vector<256x128xf32>
    %92 = arith.mulf %65, %91 : vector<256x128xf32>
    %93 = vector.broadcast %90 : vector<1x128xf32> to vector<256x128xf32>
    %94 = arith.addf %92, %93 : vector<256x128xf32>
    %cst_76 = arith.constant 0.000000e+00 : f32
    %95 = vector.broadcast %cst_76 : f32 to vector<256x128xf32>
    %96 = arith.maximumf %94, %95 : vector<256x128xf32>
    %97 = vector.shape_cast %96 : vector<256x128xf32> to vector<16x16x128xf32>
    %98 = arith.truncf %97 : vector<16x16x128xf32> to vector<16x16x128xbf16>
    %99 = tpu.concatenate %8, %98, %8 in 1 : vector<16x1x128xbf16>, vector<16x16x128xbf16>, vector<16x1x128xbf16> -> vector<16x18x128xbf16>
    %c1_77 = arith.constant 1 : index
    %c0_78 = arith.constant 0 : index
    %c0_79 = arith.constant 0 : index
    %100 = vector.load %arg6[%c1_77, %c0_78, %c0_79] : memref<18x18x128xbf16, #tpu.memory_space<vmem>>, vector<16x18x128xbf16>
    tpu.vector_store %arg6[%c1_77, %c0_78, %c0_79], %99 {strides = array<i32>} : memref<18x18x128xbf16, #tpu.memory_space<vmem>>, vector<16x18x128xbf16>,
    %c0_80 = arith.constant 0 : index
    %c0_81 = arith.constant 0 : index
    %c0_82 = arith.constant 0 : index
    %101 = vector.load %arg6[%c0_80, %c0_81, %c0_82] : memref<18x18x128xbf16, #tpu.memory_space<vmem>>, vector<16x16x128xbf16>
    %102 = vector.shape_cast %101 : vector<16x16x128xbf16> to vector<256x128xbf16>
    %c0_83 = arith.constant 0 : index
    %c0_84 = arith.constant 0 : index
    %c0_85 = arith.constant 0 : index
    %103 = vector.load %arg3[%c0_83, %c0_84, %c0_85] : memref<9x128x128xbf16, #tpu.memory_space<vmem>>, vector<1x128x128xbf16>
    %104 = vector.shape_cast %103 : vector<1x128x128xbf16> to vector<128x128xbf16>
    %cst_86 = arith.constant dense<0.000000e+00> : vector<256x128xf32>
    %105 = tpu.matmul %102, %104, %cst_86 {dimension_numbers = #tpu.dot_dimension_numbers<[1], [0], [0], [1], [0, 0, 1, 1], [], []>} : vector<256x128xbf16>, vector<128x128xbf16>, vector<256x128xf32> -> vector<256x128xf32>
    %c0_87 = arith.constant 0 : index
    %c1_88 = arith.constant 1 : index
    %c0_89 = arith.constant 0 : index
    %106 = vector.load %arg6[%c0_87, %c1_88, %c0_89] : memref<18x18x128xbf16, #tpu.memory_space<vmem>>, vector<16x16x128xbf16>
    %107 = vector.shape_cast %106 : vector<16x16x128xbf16> to vector<256x128xbf16>
    %c1_90 = arith.constant 1 : index
    %c0_91 = arith.constant 0 : index
    %c0_92 = arith.constant 0 : index
    %108 = vector.load %arg3[%c1_90, %c0_91, %c0_92] : memref<9x128x128xbf16, #tpu.memory_space<vmem>>, vector<1x128x128xbf16>
    %109 = vector.shape_cast %108 : vector<1x128x128xbf16> to vector<128x128xbf16>
    %cst_93 = arith.constant dense<0.000000e+00> : vector<256x128xf32>
    %110 = tpu.matmul %107, %109, %cst_93 {dimension_numbers = #tpu.dot_dimension_numbers<[1], [0], [0], [1], [0, 0, 1, 1], [], []>} : vector<256x128xbf16>, vector<128x128xbf16>, vector<256x128xf32> -> vector<256x128xf32>
    %111 = arith.addf %105, %110 : vector<256x128xf32>
    %c0_94 = arith.constant 0 : index
    %c2_95 = arith.constant 2 : index
    %c0_96 = arith.constant 0 : index
    %112 = vector.load %arg6[%c0_94, %c2_95, %c0_96] : memref<18x18x128xbf16, #tpu.memory_space<vmem>>, vector<16x16x128xbf16>
    %113 = vector.shape_cast %112 : vector<16x16x128xbf16> to vector<256x128xbf16>
    %c2_97 = arith.constant 2 : index
    %c0_98 = arith.constant 0 : index
    %c0_99 = arith.constant 0 : index
    %114 = vector.load %arg3[%c2_97, %c0_98, %c0_99] : memref<9x128x128xbf16, #tpu.memory_space<vmem>>, vector<1x128x128xbf16>
    %115 = vector.shape_cast %114 : vector<1x128x128xbf16> to vector<128x128xbf16>
    %cst_100 = arith.constant dense<0.000000e+00> : vector<256x128xf32>
    %116 = tpu.matmul %113, %115, %cst_100 {dimension_numbers = #tpu.dot_dimension_numbers<[1], [0], [0], [1], [0, 0, 1, 1], [], []>} : vector<256x128xbf16>, vector<128x128xbf16>, vector<256x128xf32> -> vector<256x128xf32>
    %117 = arith.addf %111, %116 : vector<256x128xf32>
    %c1_101 = arith.constant 1 : index
    %c0_102 = arith.constant 0 : index
    %c0_103 = arith.constant 0 : index
    %118 = vector.load %arg6[%c1_101, %c0_102, %c0_103] : memref<18x18x128xbf16, #tpu.memory_space<vmem>>, vector<16x16x128xbf16>
    %119 = vector.shape_cast %118 : vector<16x16x128xbf16> to vector<256x128xbf16>
    %c3_104 = arith.constant 3 : index
    %c0_105 = arith.constant 0 : index
    %c0_106 = arith.constant 0 : index
    %120 = vector.load %arg3[%c3_104, %c0_105, %c0_106] : memref<9x128x128xbf16, #tpu.memory_space<vmem>>, vector<1x128x128xbf16>
    %121 = vector.shape_cast %120 : vector<1x128x128xbf16> to vector<128x128xbf16>
    %cst_107 = arith.constant dense<0.000000e+00> : vector<256x128xf32>
    %122 = tpu.matmul %119, %121, %cst_107 {dimension_numbers = #tpu.dot_dimension_numbers<[1], [0], [0], [1], [0, 0, 1, 1], [], []>} : vector<256x128xbf16>, vector<128x128xbf16>, vector<256x128xf32> -> vector<256x128xf32>
    %123 = arith.addf %117, %122 : vector<256x128xf32>
    %c1_108 = arith.constant 1 : index
    %c1_109 = arith.constant 1 : index
    %c0_110 = arith.constant 0 : index
    %124 = vector.load %arg6[%c1_108, %c1_109, %c0_110] : memref<18x18x128xbf16, #tpu.memory_space<vmem>>, vector<16x16x128xbf16>
    %125 = vector.shape_cast %124 : vector<16x16x128xbf16> to vector<256x128xbf16>
    %c4_111 = arith.constant 4 : index
    %c0_112 = arith.constant 0 : index
    %c0_113 = arith.constant 0 : index
    %126 = vector.load %arg3[%c4_111, %c0_112, %c0_113] : memref<9x128x128xbf16, #tpu.memory_space<vmem>>, vector<1x128x128xbf16>
    %127 = vector.shape_cast %126 : vector<1x128x128xbf16> to vector<128x128xbf16>
    %cst_114 = arith.constant dense<0.000000e+00> : vector<256x128xf32>
    %128 = tpu.matmul %125, %127, %cst_114 {dimension_numbers = #tpu.dot_dimension_numbers<[1], [0], [0], [1], [0, 0, 1, 1], [], []>} : vector<256x128xbf16>, vector<128x128xbf16>, vector<256x128xf32> -> vector<256x128xf32>
    %129 = arith.addf %123, %128 : vector<256x128xf32>
    %c1_115 = arith.constant 1 : index
    %c2_116 = arith.constant 2 : index
    %c0_117 = arith.constant 0 : index
    %130 = vector.load %arg6[%c1_115, %c2_116, %c0_117] : memref<18x18x128xbf16, #tpu.memory_space<vmem>>, vector<16x16x128xbf16>
    %131 = vector.shape_cast %130 : vector<16x16x128xbf16> to vector<256x128xbf16>
    %c5_118 = arith.constant 5 : index
    %c0_119 = arith.constant 0 : index
    %c0_120 = arith.constant 0 : index
    %132 = vector.load %arg3[%c5_118, %c0_119, %c0_120] : memref<9x128x128xbf16, #tpu.memory_space<vmem>>, vector<1x128x128xbf16>
    %133 = vector.shape_cast %132 : vector<1x128x128xbf16> to vector<128x128xbf16>
    %cst_121 = arith.constant dense<0.000000e+00> : vector<256x128xf32>
    %134 = tpu.matmul %131, %133, %cst_121 {dimension_numbers = #tpu.dot_dimension_numbers<[1], [0], [0], [1], [0, 0, 1, 1], [], []>} : vector<256x128xbf16>, vector<128x128xbf16>, vector<256x128xf32> -> vector<256x128xf32>
    %135 = arith.addf %129, %134 : vector<256x128xf32>
    %c2_122 = arith.constant 2 : index
    %c0_123 = arith.constant 0 : index
    %c0_124 = arith.constant 0 : index
    %136 = vector.load %arg6[%c2_122, %c0_123, %c0_124] : memref<18x18x128xbf16, #tpu.memory_space<vmem>>, vector<16x16x128xbf16>
    %137 = vector.shape_cast %136 : vector<16x16x128xbf16> to vector<256x128xbf16>
    %c6_125 = arith.constant 6 : index
    %c0_126 = arith.constant 0 : index
    %c0_127 = arith.constant 0 : index
    %138 = vector.load %arg3[%c6_125, %c0_126, %c0_127] : memref<9x128x128xbf16, #tpu.memory_space<vmem>>, vector<1x128x128xbf16>
    %139 = vector.shape_cast %138 : vector<1x128x128xbf16> to vector<128x128xbf16>
    %cst_128 = arith.constant dense<0.000000e+00> : vector<256x128xf32>
    %140 = tpu.matmul %137, %139, %cst_128 {dimension_numbers = #tpu.dot_dimension_numbers<[1], [0], [0], [1], [0, 0, 1, 1], [], []>} : vector<256x128xbf16>, vector<128x128xbf16>, vector<256x128xf32> -> vector<256x128xf32>
    %141 = arith.addf %135, %140 : vector<256x128xf32>
    %c2_129 = arith.constant 2 : index
    %c1_130 = arith.constant 1 : index
    %c0_131 = arith.constant 0 : index
    %142 = vector.load %arg6[%c2_129, %c1_130, %c0_131] : memref<18x18x128xbf16, #tpu.memory_space<vmem>>, vector<16x16x128xbf16>
    %143 = vector.shape_cast %142 : vector<16x16x128xbf16> to vector<256x128xbf16>
    %c7_132 = arith.constant 7 : index
    %c0_133 = arith.constant 0 : index
    %c0_134 = arith.constant 0 : index
    %144 = vector.load %arg3[%c7_132, %c0_133, %c0_134] : memref<9x128x128xbf16, #tpu.memory_space<vmem>>, vector<1x128x128xbf16>
    %145 = vector.shape_cast %144 : vector<1x128x128xbf16> to vector<128x128xbf16>
    %cst_135 = arith.constant dense<0.000000e+00> : vector<256x128xf32>
    %146 = tpu.matmul %143, %145, %cst_135 {dimension_numbers = #tpu.dot_dimension_numbers<[1], [0], [0], [1], [0, 0, 1, 1], [], []>} : vector<256x128xbf16>, vector<128x128xbf16>, vector<256x128xf32> -> vector<256x128xf32>
    %147 = arith.addf %141, %146 : vector<256x128xf32>
    %c2_136 = arith.constant 2 : index
    %c2_137 = arith.constant 2 : index
    %c0_138 = arith.constant 0 : index
    %148 = vector.load %arg6[%c2_136, %c2_137, %c0_138] : memref<18x18x128xbf16, #tpu.memory_space<vmem>>, vector<16x16x128xbf16>
    %149 = vector.shape_cast %148 : vector<16x16x128xbf16> to vector<256x128xbf16>
    %c8_139 = arith.constant 8 : index
    %c0_140 = arith.constant 0 : index
    %c0_141 = arith.constant 0 : index
    %150 = vector.load %arg3[%c8_139, %c0_140, %c0_141] : memref<9x128x128xbf16, #tpu.memory_space<vmem>>, vector<1x128x128xbf16>
    %151 = vector.shape_cast %150 : vector<1x128x128xbf16> to vector<128x128xbf16>
    %cst_142 = arith.constant dense<0.000000e+00> : vector<256x128xf32>
    %152 = tpu.matmul %149, %151, %cst_142 {dimension_numbers = #tpu.dot_dimension_numbers<[1], [0], [0], [1], [0, 0, 1, 1], [], []>} : vector<256x128xbf16>, vector<128x128xbf16>, vector<256x128xf32> -> vector<256x128xf32>
    %153 = arith.addf %147, %152 : vector<256x128xf32>
    %154 = vector.broadcast %4 : vector<1x128xf32> to vector<256x128xf32>
    %155 = arith.addf %153, %154 : vector<256x128xf32>
    %c0_143 = arith.constant 0 : index
    %c0_144 = arith.constant 0 : index
    %c0_145 = arith.constant 0 : index
    %c0_146 = arith.constant 0 : index
    %156 = vector.load %arg1[%c0_143, %c0_144, %c0_145, %c0_146] : memref<1x16x16x128xbf16, #tpu.memory_space<vmem>>, vector<1x16x16x128xbf16>
    %157 = vector.shape_cast %156 : vector<1x16x16x128xbf16> to vector<16x16x128xbf16>
    %158 = arith.extf %157 : vector<16x16x128xbf16> to vector<16x16x128xf32>
    %159 = vector.shape_cast %158 : vector<16x16x128xf32> to vector<256x128xf32>
    %160 = arith.addf %155, %159 : vector<256x128xf32>
    %cst_147 = arith.constant 0.000000e+00 : f32
    %161 = vector.broadcast %cst_147 : f32 to vector<256x128xf32>
    %162 = arith.maximumf %160, %161 : vector<256x128xf32>
    %163 = vector.shape_cast %162 : vector<256x128xf32> to vector<16x16x128xf32>
    %164 = arith.truncf %163 : vector<16x16x128xf32> to vector<16x16x128xbf16>
    %c0_148 = arith.constant 0 : index
    %c0_149 = arith.constant 0 : index
    %c0_150 = arith.constant 0 : index
    %c0_151 = arith.constant 0 : index
    %165 = vector.load %arg5[%c0_148, %c0_149, %c0_150, %c0_151] : memref<1x16x16x128xbf16, #tpu.memory_space<vmem>>, vector<1x16x16x128xbf16>
    %166 = vector.shape_cast %165 : vector<1x16x16x128xbf16> to vector<16x16x128xbf16>
    %167 = vector.shape_cast %164 : vector<16x16x128xbf16> to vector<1x16x16x128xbf16>
    tpu.vector_store %arg5[%c0_148, %c0_149, %c0_150, %c0_151], %167 {strides = array<i32>} : memref<1x16x16x128xbf16, #tpu.memory_space<vmem>>, vector<1x16x16x128xbf16>,
    return
  }
  func.func @transform_0(%arg0: i32) -> (i32, i32, i32, i32) {
    %c0_i32 = arith.constant 0 : i32
    %c0_i32_0 = arith.constant 0 : i32
    %c0_i32_1 = arith.constant 0 : i32
    %c0_i32_2 = arith.constant 0 : i32
    return %arg0, %c0_i32, %c0_i32_0, %c0_i32_1 : i32, i32, i32, i32
  }
  func.func @transform_1(%arg0: i32) -> (i32, i32, i32) {
    %c0_i32 = arith.constant 0 : i32
    %c0_i32_0 = arith.constant 0 : i32
    %c0_i32_1 = arith.constant 0 : i32
    %c0_i32_2 = arith.constant 0 : i32
    return %c0_i32, %c0_i32_0, %c0_i32_1 : i32, i32, i32
  }
  func.func @transform_2(%arg0: i32) -> (i32, i32, i32) {
    %c0_i32 = arith.constant 0 : i32
    %c0_i32_0 = arith.constant 0 : i32
    %c0_i32_1 = arith.constant 0 : i32
    %c0_i32_2 = arith.constant 0 : i32
    return %c0_i32, %c0_i32_0, %c0_i32_1 : i32, i32, i32
  }
  func.func @transform_3(%arg0: i32) -> (i32, i32) {
    %c0_i32 = arith.constant 0 : i32
    %c0_i32_0 = arith.constant 0 : i32
    %c0_i32_1 = arith.constant 0 : i32
    return %c0_i32, %c0_i32_0 : i32, i32
  }
  func.func @transform_4(%arg0: i32) -> (i32, i32, i32, i32) {
    %c0_i32 = arith.constant 0 : i32
    %c0_i32_0 = arith.constant 0 : i32
    %c0_i32_1 = arith.constant 0 : i32
    %c0_i32_2 = arith.constant 0 : i32
    return %arg0, %c0_i32, %c0_i32_0, %c0_i32_1 : i32, i32, i32, i32
  }
}

</mosaic_0001>

<llo_original>
// kernel: tpu_custom_call.1
$region0: #{tpu_custom_call.1}
  #allocation0 [shape = 'u32[]', space=smem, size = 0x4, offset = 0x4, fixed_abs, tag = 'smem constant byte address 0x4 - core index']
  #allocation1 [shape = 'u32[144,128]{1,0:T(1,128)}', space=vmem, size = 0x12000, scoped, tag = 'internal scratch']
  #allocation2 [shape = 'bf16[18,18,128]{2,1,0:T(8,128)(2,1)}', space=vmem, size = 0x1b000, scoped, tag = 'scratch operand']
  %s0 = inlined_call_operand.hbm [shape: bf16[2,16,16,128], index: 0, kind: input, shape index: {}]
  %s1 = inlined_call_operand.hbm [shape: bf16[9,128,128], index: 1, kind: input, shape index: {}]
  %s2 = inlined_call_operand.hbm [shape: bf16[9,128,128], index: 2, kind: input, shape index: {}]
  %s3 = inlined_call_operand.vmem [shape: f32[4,128], index: 3, kind: input, shape index: {}]
  %s4 = inlined_call_operand.hbm [shape: bf16[2,16,16,128], index: 4, kind: output, shape index: {}]
  %s5 = sld [smem:[#allocation0]]
  $region61: #{tpu_custom_call.1} parent=0
    _
  %s7 = ssub.s32 1, %s5
  %s8 = scalar_select 0, %s7, %s5
  $region1: #{tpu_custom_call.1} parent=0
    #allocation3 [shape = 'u8[131072]{0}', space=vmem, size = 0x20000, scoped, tag = 'input window, operand 0']
    #allocation4 [shape = 's32[2]{0}', space=sflag, size = 0x8, scoped, tag = 'scoped memory for tpu_custom_call.1']
    #allocation5 [shape = 's32[2]{0}', space=sflag, size = 0x8, scoped, tag = 'scoped memory for tpu_custom_call.1']
    #allocation6 [shape = 'u8[294912]{0}', space=vmem, size = 0x48000, scoped, tag = 'input window, operand 1, single buffered']
    #allocation7 [shape = 's32[1]{0}', space=sflag, size = 0x4, scoped, tag = 'scoped memory for tpu_custom_call.1']
    #allocation8 [shape = 'u8[294912]{0}', space=vmem, size = 0x48000, scoped, tag = 'input window, operand 2, single buffered']
    #allocation9 [shape = 'u8[131072]{0}', space=vmem, size = 0x20000, scoped, tag = 'output window, operand 0']
    %9 = vsyncpa [#allocation4], 0
    %s10 = scalar_lea.sflag [#allocation4], 1
    %11 = vsyncpa %s10, 0
    %12 = vsyncpa [#allocation7], 0
    %13 = vsyncpa [#allocation5], 0
    %s14 = scalar_lea.sflag [#allocation5], 1
    %15 = vsyncpa %s14, 0
    loop: start=0, step=1, limit=4
    $region2: #{tpu_custom_call.1} parent=1 // loop_pre_header
      _
    $region3: #{tpu_custom_call.1} parent=1 // loop_header
      %s17 = sphi 0, %s21
      %p18 = scmp.ge.s32.totalorder %s17, 4
      %s27 = sphi 0, %s29
      %s30 = sphi 0, %s27
      %s31 = sphi 0, %s30
      %s47 = sphi 0, %s31
      %s51 = sphi 0, %s51
      %s53 = sphi 0, %s51
      %s54 = sphi 0, %s53
      %s68 = sphi 0, %s54
      %s72 = sphi 0, %s72
      %s74 = sphi 0, %s72
      %s75 = sphi 0, %s74
      %s89 = sphi 0, %s75
      %s93 = sphi 0, %s93
      %s95 = sphi 0, %s93
      %s96 = sphi 0, %s95
      %s110 = sphi 0, %s96
      %s116 = sphi 0, %s118
      %s119 = sphi 0, %s116
      %s120 = sphi 0, %s119
      %s136 = sphi 0, %s120
    $region4: #{tpu_custom_call.1} parent=1 // loop_header_branch
      %20 = sbr.rel (%p18) target = $region8
    $region5: #{tpu_custom_call.1} parent=1 // loop_body
      %s22 = ssub.s32 %s17, 1
      %s23 = ssub.s32 %s17, 2
      %s24 = sadd.s32 %s17, 1
      %s25 = ssub.s32 %s17, %s24
      %p26 = scmp.eq.s32.totalorder %s25, 0
      %s28 = sadd.s32 %s27, 1
      %s29 = scalar_select %p26, %s27, %s28
      %p32 = pneg %p26
      %p33 = scmp.eq.s32.totalorder %s17, 1
      %p34 = por %p32, %p33
      %p35 = scmp.ne.s32.totalorder %s27, %s30
      %p36 = scmp.eq.s32.totalorder %s17, 0
      %p37 = por %p35, %p36
      %p38 = scmp.ne.s32.totalorder %s27, %s30
      %p39 = scmp.eq.s32.totalorder %s22, 1
      %p40 = por %p38, %p39
      %p41 = scmp.ne.s32.totalorder %s30, %s31
      %p42 = scmp.eq.s32.totalorder %s22, 0
      %p43 = por %p41, %p42
      %p44 = scmp.ne.s32.totalorder %s30, %s31
      %p45 = scmp.eq.s32.totalorder %s23, 1
      %p46 = por %p44, %p45
      %p48 = scmp.ne.s32.totalorder %s31, %s47
      %p49 = scmp.eq.s32.totalorder %s23, 0
      %p50 = por %p48, %p49
      %s52 = sadd.s32 %s51, 1
      %p55 = scmp.eq.s32.totalorder %s17, 1
      %p56 = scmp.ne.s32.totalorder %s51, %s53
      %p57 = scmp.eq.s32.totalorder %s17, 0
      %p58 = por %p56, %p57
      %p59 = scmp.ne.s32.totalorder %s51, %s53
      %p60 = scmp.eq.s32.totalorder %s22, 1
      %p61 = por %p59, %p60
      %p62 = scmp.ne.s32.totalorder %s53, %s54
      %p63 = scmp.eq.s32.totalorder %s22, 0
      %p64 = por %p62, %p63
      %p65 = scmp.ne.s32.totalorder %s53, %s54
      %p66 = scmp.eq.s32.totalorder %s23, 1
      %p67 = por %p65, %p66
      %p69 = scmp.ne.s32.totalorder %s54, %s68
      %p70 = scmp.eq.s32.totalorder %s23, 0
      %p71 = por %p69, %p70
      %s73 = sadd.s32 %s72, 1
      %p76 = scmp.eq.s32.totalorder %s17, 1
      %p77 = scmp.ne.s32.totalorder %s72, %s74
      %p78 = scmp.eq.s32.totalorder %s17, 0
      %p79 = por %p77, %p78
      %p80 = scmp.ne.s32.totalorder %s72, %s74
      %p81 = scmp.eq.s32.totalorder %s22, 1
      %p82 = por %p80, %p81
      %p83 = scmp.ne.s32.totalorder %s74, %s75
      %p84 = scmp.eq.s32.totalorder %s22, 0
      %p85 = por %p83, %p84
      %p86 = scmp.ne.s32.totalorder %s74, %s75
      %p87 = scmp.eq.s32.totalorder %s23, 1
      %p88 = por %p86, %p87
      %p90 = scmp.ne.s32.totalorder %s75, %s89
      %p91 = scmp.eq.s32.totalorder %s23, 0
      %p92 = por %p90, %p91
      %s94 = sadd.s32 %s93, 1
      %p97 = scmp.eq.s32.totalorder %s17, 1
      %p98 = scmp.ne.s32.totalorder %s93, %s95
      %p99 = scmp.eq.s32.totalorder %s17, 0
      %p100 = por %p98, %p99
      %p101 = scmp.ne.s32.totalorder %s93, %s95
      %p102 = scmp.eq.s32.totalorder %s22, 1
      %p103 = por %p101, %p102
      %p104 = scmp.ne.s32.totalorder %s95, %s96
      %p105 = scmp.eq.s32.totalorder %s22, 0
      %p106 = por %p104, %p105
      %p107 = scmp.ne.s32.totalorder %s95, %s96
      %p108 = scmp.eq.s32.totalorder %s23, 1
      %p109 = por %p107, %p108
      %p111 = scmp.ne.s32.totalorder %s96, %s110
      %p112 = scmp.eq.s32.totalorder %s23, 0
      %p113 = por %p111, %p112
      %s114 = ssub.s32 %s17, %s24
      %p115 = scmp.eq.s32.totalorder %s114, 0
      %s117 = sadd.s32 %s116, 1
      %s118 = scalar_select %p115, %s116, %s117
      %p121 = pneg %p115
      %p122 = scmp.eq.s32.totalorder %s17, 1
      %p123 = por %p121, %p122
      %p124 = scmp.ne.s32.totalorder %s116, %s119
      %p125 = scmp.eq.s32.totalorder %s17, 0
      %p126 = por %p124, %p125
      %p127 = scmp.ne.s32.totalorder %s116, %s119
      %p128 = scmp.eq.s32.totalorder %s22, 1
      %p129 = por %p127, %p128
      %p130 = scmp.ne.s32.totalorder %s119, %s120
      %p131 = scmp.eq.s32.totalorder %s22, 0
      %p132 = por %p130, %p131
      %p133 = scmp.ne.s32.totalorder %s119, %s120
      %p134 = scmp.eq.s32.totalorder %s23, 1
      %p135 = por %p133, %p134
      %p137 = scmp.ne.s32.totalorder %s120, %s136
      %p138 = scmp.eq.s32.totalorder %s23, 0
      %p139 = por %p137, %p138
      %p140 = scmp.le.s32.totalorder 1, %s17
      %p141 = scmp.lt.s32.totalorder %s17, 3
      %p142 = pnand %p140, %p141
      %p143 = pneg %p142
      // Predicated region
      $region9: #{tpu_custom_call.1} parent=5 // pred_check
        _
      $region10: #{tpu_custom_call.1} parent=5 // pred_check_branch
        %145 = sbr.rel (%p142) target = $region12
      $region11: #{tpu_custom_call.1} parent=5 // pred_region
        %s146 = ssub.s32 %s17, 1
        // Predicated region
        $region13: #{tpu_custom_call.1} parent=11 // pred_check
          %p147 = pneg %p64
        $region14: #{tpu_custom_call.1} parent=11 // pred_check_branch
          %149 = sbr.rel (%p147) target = $region16
        $region15: #{tpu_custom_call.1} parent=11 // pred_region
          %s151 = ssub.s32 9216, 9216
          %152 = vsyncadd [#allocation7], %s151
          %s153 = sshll.u32 [#allocation6], 4
          %s154 = int_to_ptr.vmem [resolvable:$true] %s153
          %159 = dma.hbm_to_vmem [thread:$0]  %s1, 9216, %s154, [#allocation7], 64, 64, 4
        $region16: #{tpu_custom_call.1} parent=11 // pred_fallthru
          _
        // Predicated region
        $region17: #{tpu_custom_call.1} parent=11 // pred_check
          %p160 = pneg %p85
        $region18: #{tpu_custom_call.1} parent=11 // pred_check_branch
          %162 = sbr.rel (%p160) target = $region20
        $region19: #{tpu_custom_call.1} parent=11 // pred_region
          %s164 = ssub.s32 9216, 9216
          %165 = vsyncadd [#allocation7], %s164
          %s166 = sshll.u32 [#allocation8], 4
          %s167 = int_to_ptr.vmem [resolvable:$true] %s166
          %172 = dma.hbm_to_vmem [thread:$0]  %s2, 9216, %s167, [#allocation7], 64, 64, 4
        $region20: #{tpu_custom_call.1} parent=11 // pred_fallthru
          _
        // Predicated region
        $region21: #{tpu_custom_call.1} parent=11 // pred_check
          %p173 = pneg %p106
        $region22: #{tpu_custom_call.1} parent=11 // pred_check_branch
          %175 = sbr.rel (%p173) target = $region24
        $region23: #{tpu_custom_call.1} parent=11 // pred_region
          _
        $region24: #{tpu_custom_call.1} parent=11 // pred_fallthru
          _
      $region12: #{tpu_custom_call.1} parent=5 // pred_fallthru
        _
      %p176 = scmp.lt.s32.totalorder %s17, 2
      // Predicated region
      $region25: #{tpu_custom_call.1} parent=5 // pred_check
        %p177 = pneg %p176
      $region26: #{tpu_custom_call.1} parent=5 // pred_check_branch
        %179 = sbr.rel (%p177) target = $region28
      $region27: #{tpu_custom_call.1} parent=5 // pred_region
        // Predicated region
        $region29: #{tpu_custom_call.1} parent=27 // pred_check
          %p180 = pneg %p37
        $region30: #{tpu_custom_call.1} parent=27 // pred_check_branch
          %182 = sbr.rel (%p180) target = $region32
        $region31: #{tpu_custom_call.1} parent=27 // pred_region
          %s183 = sand.u32 %s27, 1
          %s184 = scalar_lea.sflag [#allocation4], %s183
          %s185 = sand.u32 %s27, 1
          %s186 = smul.addr %s185, 128
          %s187 = scalar_lea.vmem [#allocation3], %s186
          %s189 = ssub.s32 2048, 2048
          %190 = vsyncadd %s184, %s189
          %s191 = smul.addr %s17, 32
          %s192 = smul.addr %s191, 64
          %s193 = scalar_lea.hbm %s0, %s192
          %s194 = sshll.u32 %s187, 4
          %s195 = int_to_ptr.vmem [resolvable:$true] %s194
          %200 = dma.hbm_to_vmem [thread:$0]  %s193, 2048, %s195, %s184, 64, 64, 4
        $region32: #{tpu_custom_call.1} parent=27 // pred_fallthru
          _
      $region28: #{tpu_custom_call.1} parent=5 // pred_fallthru
        _
      %p201 = scmp.le.s32.totalorder 1, %s17
      %p202 = scmp.lt.s32.totalorder %s17, 3
      %p203 = pnand %p201, %p202
      %p204 = pneg %p203
      // Predicated region
      $region33: #{tpu_custom_call.1} parent=5 // pred_check
        _
      $region34: #{tpu_custom_call.1} parent=5 // pred_check_branch
        %206 = sbr.rel (%p203) target = $region36
      $region35: #{tpu_custom_call.1} parent=5 // pred_region
        %s207 = ssub.s32 %s17, 1
        %s208 = sand.u32 %s30, 1
        %s209 = scalar_lea.sflag [#allocation4], %s208
        %s210 = sand.u32 %s30, 1
        %s211 = smul.addr %s210, 128
        %s212 = scalar_lea.vmem [#allocation3], %s211
        // Predicated region
        $region37: #{tpu_custom_call.1} parent=35 // pred_check
          %p213 = pneg %p43
        $region38: #{tpu_custom_call.1} parent=35 // pred_check_branch
          %215 = sbr.rel (%p213) target = $region40
        $region39: #{tpu_custom_call.1} parent=35 // pred_region
          %216 = dma.done %s209, 2048
        $region40: #{tpu_custom_call.1} parent=35 // pred_fallthru
          _
        // Predicated region
        $region41: #{tpu_custom_call.1} parent=35 // pred_check
          %p217 = pneg %p64
        $region42: #{tpu_custom_call.1} parent=35 // pred_check_branch
          %219 = sbr.rel (%p217) target = $region44
        $region43: #{tpu_custom_call.1} parent=35 // pred_region
          %220 = dma.done [#allocation7], 9216
        $region44: #{tpu_custom_call.1} parent=35 // pred_fallthru
          _
        // Predicated region
        $region45: #{tpu_custom_call.1} parent=35 // pred_check
          %p221 = pneg %p85
        $region46: #{tpu_custom_call.1} parent=35 // pred_check_branch
          %223 = sbr.rel (%p221) target = $region48
        $region47: #{tpu_custom_call.1} parent=35 // pred_region
          %224 = dma.done [#allocation7], 9216
        $region48: #{tpu_custom_call.1} parent=35 // pred_fallthru
          _
        %s225 = sand.u32 %s30, 1
        %s226 = scalar_lea.sflag [#allocation4], %s225
        %s227 = sand.u32 %s30, 1
        %s228 = smul.addr %s227, 128
        %s229 = scalar_lea.vmem [#allocation3], %s228
        %p230 = pneg %p43
        %p231 = pneg %p40
        %p232 = pneg %p64
        %p233 = pneg %p61
        %p234 = pneg %p85
        %p235 = pneg %p82
        %p236 = pneg %p106
        %p237 = pneg %p103
        %p238 = pneg %p132
        %p239 = pneg %p129
        %s240 = sand.u32 %s119, 1
        %s241 = scalar_lea.sflag [#allocation5], %s240
        %s242 = sand.u32 %s119, 1
        %s243 = smul.addr %s242, 128
        %s244 = scalar_lea.vmem [#allocation9], %s243
        %v246 = vld [vmem:[%s3] sm:$0xf]
        %247 = vst [vmem:[#allocation2] sm:$0xf] 0
        %248 = vst [vmem:[#allocation2 + $0x4] sm:$0xf] 0
        %249 = vst [vmem:[#allocation2 + $0x8] sm:$0x1] 0
        %s250 = scalar_lea.vmem [#allocation2], 204
        %251 = vst [vmem:[%s250] sm:$0xf] 0
        %252 = vst [vmem:[%s250 + $0x4] sm:$0xf] 0
        %253 = vst [vmem:[%s250 + $0x8] sm:$0x1] 0
        %v254 = vld [vmem:[%s212] sm:$0xf]
        %v255 = vld [vmem:[%s212 + $0x4] sm:$0xf]
        %v256 = vld [vmem:[%s212 + $0x8] sm:$0xf]
        %v257 = vld [vmem:[%s212 + $0xc] sm:$0xf]
        %v258 = vld [vmem:[%s212 + $0x10] sm:$0xf]
        %v259 = vld [vmem:[%s212 + $0x14] sm:$0xf]
        %v260 = vld [vmem:[%s212 + $0x18] sm:$0xf]
        %v261 = vld [vmem:[%s212 + $0x1c] sm:$0xf]
        %v262 = vld [vmem:[%s212 + $0x20] sm:$0xf]
        %v263 = vld [vmem:[%s212 + $0x24] sm:$0xf]
        %v264 = vld [vmem:[%s212 + $0x28] sm:$0xf]
        %v265 = vld [vmem:[%s212 + $0x2c] sm:$0xf]
        %v266 = vld [vmem:[%s212 + $0x30] sm:$0xf]
        %v267 = vld [vmem:[%s212 + $0x34] sm:$0xf]
        %v268 = vld [vmem:[%s212 + $0x38] sm:$0xf]
        %v269 = vld [vmem:[%s212 + $0x3c] sm:$0xf]
        %v270 = vld [vmem:[%s212 + $0x40] sm:$0xf]
        %v271 = vld [vmem:[%s212 + $0x44] sm:$0xf]
        %v272 = vld [vmem:[%s212 + $0x48] sm:$0xf]
        %v273 = vld [vmem:[%s212 + $0x4c] sm:$0xf]
        %v274 = vld [vmem:[%s212 + $0x50] sm:$0xf]
        %v275 = vld [vmem:[%s212 + $0x54] sm:$0xf]
        %v276 = vld [vmem:[%s212 + $0x58] sm:$0xf]
        %v277 = vld [vmem:[%s212 + $0x5c] sm:$0xf]
        %v278 = vld [vmem:[%s212 + $0x60] sm:$0xf]
        %v279 = vld [vmem:[%s212 + $0x64] sm:$0xf]
        %v280 = vld [vmem:[%s212 + $0x68] sm:$0xf]
        %v281 = vld [vmem:[%s212 + $0x6c] sm:$0xf]
        %v282 = vld [vmem:[%s212 + $0x70] sm:$0xf]
        %v283 = vld [vmem:[%s212 + $0x74] sm:$0xf]
        %v284 = vld [vmem:[%s212 + $0x78] sm:$0xf]
        %v285 = vld [vmem:[%s212 + $0x7c] sm:$0xf]
        %v318 = vunpack.c.l.b16 %v254
        %v319 = vunpack.c.l.b16 %v255
        %v320 = vunpack.c.l.b16 %v256
        %v321 = vunpack.c.l.b16 %v257
        %v322 = vunpack.c.l.b16 %v258
        %v323 = vunpack.c.l.b16 %v259
        %v324 = vunpack.c.l.b16 %v260
        %v325 = vunpack.c.l.b16 %v261
        %v326 = vunpack.c.l.b16 %v262
        %v327 = vunpack.c.l.b16 %v263
        %v328 = vunpack.c.l.b16 %v264
        %v329 = vunpack.c.l.b16 %v265
        %v330 = vunpack.c.l.b16 %v266
        %v331 = vunpack.c.l.b16 %v267
        %v332 = vunpack.c.l.b16 %v268
        %v333 = vunpack.c.l.b16 %v269
        %v334 = vunpack.c.l.b16 %v270
        %v335 = vunpack.c.l.b16 %v271
        %v336 = vunpack.c.l.b16 %v272
        %v337 = vunpack.c.l.b16 %v273
        %v338 = vunpack.c.l.b16 %v274
        %v339 = vunpack.c.l.b16 %v275
        %v340 = vunpack.c.l.b16 %v276
        %v341 = vunpack.c.l.b16 %v277
        %v342 = vunpack.c.l.b16 %v278
        %v343 = vunpack.c.l.b16 %v279
        %v344 = vunpack.c.l.b16 %v280
        %v345 = vunpack.c.l.b16 %v281
        %v346 = vunpack.c.l.b16 %v282
        %v347 = vunpack.c.l.b16 %v283
        %v348 = vunpack.c.l.b16 %v284
        %v349 = vunpack.c.l.b16 %v285
        %v350 = vpack.c.b16 %v319, %v318
        %v351 = vpack.c.b16 %v321, %v320
        %v352 = vpack.c.b16 %v323, %v322
        %v353 = vpack.c.b16 %v325, %v324
        %v354 = vpack.c.b16 %v327, %v326
        %v355 = vpack.c.b16 %v329, %v328
        %v356 = vpack.c.b16 %v331, %v330
        %v357 = vpack.c.b16 %v333, %v332
        %v358 = vpack.c.b16 %v335, %v334
        %v359 = vpack.c.b16 %v337, %v336
        %v360 = vpack.c.b16 %v339, %v338
        %v361 = vpack.c.b16 %v341, %v340
        %v362 = vpack.c.b16 %v343, %v342
        %v363 = vpack.c.b16 %v345, %v344
        %v364 = vpack.c.b16 %v347, %v346
        %v365 = vpack.c.b16 %v349, %v348
        %v367 = vshrl.u32 %v350, 16
        %v369 = vrot.slane %v367, 7
        %v370 = vshll.u32 %v350, 16
        %v372 = vor.u32 %v369, %v370
        %v374 = vshrl.u32 %v351, 16
        %v376 = vrot.slane %v374, 7
        %v377 = vshll.u32 %v351, 16
        %v379 = vor.u32 %v376, %v377
        %v381 = vshrl.u32 %v352, 16
        %v383 = vrot.slane %v381, 7
        %v384 = vshll.u32 %v352, 16
        %v386 = vor.u32 %v383, %v384
        %v388 = vshrl.u32 %v353, 16
        %v390 = vrot.slane %v388, 7
        %v391 = vshll.u32 %v353, 16
        %v393 = vor.u32 %v390, %v391
        %v395 = vshrl.u32 %v354, 16
        %v397 = vrot.slane %v395, 7
        %v398 = vshll.u32 %v354, 16
        %v400 = vor.u32 %v397, %v398
        %v402 = vshrl.u32 %v355, 16
        %v404 = vrot.slane %v402, 7
        %v405 = vshll.u32 %v355, 16
        %v407 = vor.u32 %v404, %v405
        %v409 = vshrl.u32 %v356, 16
        %v411 = vrot.slane %v409, 7
        %v412 = vshll.u32 %v356, 16
        %v414 = vor.u32 %v411, %v412
        %v416 = vshrl.u32 %v357, 16
        %v418 = vrot.slane %v416, 7
        %v419 = vshll.u32 %v357, 16
        %v421 = vor.u32 %v418, %v419
        %v423 = vshrl.u32 %v358, 16
        %v425 = vrot.slane %v423, 7
        %v426 = vshll.u32 %v358, 16
        %v428 = vor.u32 %v425, %v426
        %v430 = vshrl.u32 %v359, 16
        %v432 = vrot.slane %v430, 7
        %v433 = vshll.u32 %v359, 16
        %v435 = vor.u32 %v432, %v433
        %v437 = vshrl.u32 %v360, 16
        %v439 = vrot.slane %v437, 7
        %v440 = vshll.u32 %v360, 16
        %v442 = vor.u32 %v439, %v440
        %v444 = vshrl.u32 %v361, 16
        %v446 = vrot.slane %v444, 7
        %v447 = vshll.u32 %v361, 16
        %v449 = vor.u32 %v446, %v447
        %v451 = vshrl.u32 %v362, 16
        %v453 = vrot.slane %v451, 7
        %v454 = vshll.u32 %v362, 16
        %v456 = vor.u32 %v453, %v454
        %v458 = vshrl.u32 %v363, 16
        %v460 = vrot.slane %v458, 7
        %v461 = vshll.u32 %v363, 16
        %v463 = vor.u32 %v460, %v461
        %v465 = vshrl.u32 %v364, 16
        %v467 = vrot.slane %v465, 7
        %v468 = vshll.u32 %v364, 16
        %v470 = vor.u32 %v467, %v468
        %v472 = vshrl.u32 %v365, 16
        %v474 = vrot.slane %v472, 7
        %v475 = vshll.u32 %v365, 16
        %v477 = vor.u32 %v474, %v475
        %vm510 = vcmask 1040384
        %vm511 = vsmask.f32 256
        %vm512 = vmand %vm510, %vm511
        %v513 = vsel %vm512, 0, %v372
        %v514 = vsel %vm512, 0, %v379
        %v515 = vsel %vm512, 0, %v386
        %v516 = vsel %vm512, 0, %v393
        %v517 = vsel %vm512, 0, %v400
        %v518 = vsel %vm512, 0, %v407
        %v519 = vsel %vm512, 0, %v414
        %v520 = vsel %vm512, 0, %v421
        %v521 = vsel %vm512, 0, %v428
        %v522 = vsel %vm512, 0, %v435
        %v523 = vsel %vm512, 0, %v442
        %v524 = vsel %vm512, 0, %v449
        %v525 = vsel %vm512, 0, %v456
        %v526 = vsel %vm512, 0, %v463
        %v527 = vsel %vm512, 0, %v470
        %v528 = vsel %vm512, 0, %v477
        %v529 = vsel %vm512, %v369, 0
        %v530 = vsel %vm512, %v376, 0
        %v531 = vsel %vm512, %v383, 0
        %v532 = vsel %vm512, %v390, 0
        %v533 = vsel %vm512, %v397, 0
        %v534 = vsel %vm512, %v404, 0
        %v535 = vsel %vm512, %v411, 0
        %v536 = vsel %vm512, %v418, 0
        %v537 = vsel %vm512, %v425, 0
        %v538 = vsel %vm512, %v432, 0
        %v539 = vsel %vm512, %v439, 0
        %v540 = vsel %vm512, %v446, 0
        %v541 = vsel %vm512, %v453, 0
        %v542 = vsel %vm512, %v460, 0
        %v543 = vsel %vm512, %v467, 0
        %v544 = vsel %vm512, %v474, 0
        %v577 = vunpack.c.l.b16 %v513
        %v578 = vunpack.c.h.b16 %v513
        %v579 = vunpack.c.l.b16 %v529
        %v580 = vunpack.c.l.b16 %v514
        %v581 = vunpack.c.h.b16 %v514
        %v582 = vunpack.c.l.b16 %v530
        %v583 = vunpack.c.l.b16 %v515
        %v584 = vunpack.c.h.b16 %v515
        %v585 = vunpack.c.l.b16 %v531
        %v586 = vunpack.c.l.b16 %v516
        %v587 = vunpack.c.h.b16 %v516
        %v588 = vunpack.c.l.b16 %v532
        %v589 = vunpack.c.l.b16 %v517
        %v590 = vunpack.c.h.b16 %v517
        %v591 = vunpack.c.l.b16 %v533
        %v592 = vunpack.c.l.b16 %v518
        %v593 = vunpack.c.h.b16 %v518
        %v594 = vunpack.c.l.b16 %v534
        %v595 = vunpack.c.l.b16 %v519
        %v596 = vunpack.c.h.b16 %v519
        %v597 = vunpack.c.l.b16 %v535
        %v598 = vunpack.c.l.b16 %v520
        %v599 = vunpack.c.h.b16 %v520
        %v600 = vunpack.c.l.b16 %v536
        %v601 = vunpack.c.l.b16 %v521
        %v602 = vunpack.c.h.b16 %v521
        %v603 = vunpack.c.l.b16 %v537
        %v604 = vunpack.c.l.b16 %v522
        %v605 = vunpack.c.h.b16 %v522
        %v606 = vunpack.c.l.b16 %v538
        %v607 = vunpack.c.l.b16 %v523
        %v608 = vunpack.c.h.b16 %v523
        %v609 = vunpack.c.l.b16 %v539
        %v610 = vunpack.c.l.b16 %v524
        %v611 = vunpack.c.h.b16 %v524
        %v612 = vunpack.c.l.b16 %v540
        %v613 = vunpack.c.l.b16 %v525
        %v614 = vunpack.c.h.b16 %v525
        %v615 = vunpack.c.l.b16 %v541
        %v616 = vunpack.c.l.b16 %v526
        %v617 = vunpack.c.h.b16 %v526
        %v618 = vunpack.c.l.b16 %v542
        %v619 = vunpack.c.l.b16 %v527
        %v620 = vunpack.c.h.b16 %v527
        %v621 = vunpack.c.l.b16 %v543
        %v622 = vunpack.c.l.b16 %v528
        %v623 = vunpack.c.h.b16 %v528
        %v624 = vunpack.c.l.b16 %v544
        %v625 = vpack.c.b16 %v577, %v577
        %v626 = vpack.c.b16 %v578, %v578
        %v627 = vpack.c.b16 %v579, %v579
        %v628 = vpack.c.b16 %v580, %v580
        %v629 = vpack.c.b16 %v581, %v581
        %v630 = vpack.c.b16 %v582, %v582
        %v631 = vpack.c.b16 %v583, %v583
        %v632 = vpack.c.b16 %v584, %v584
        %v633 = vpack.c.b16 %v585, %v585
        %v634 = vpack.c.b16 %v586, %v586
        %v635 = vpack.c.b16 %v587, %v587
        %v636 = vpack.c.b16 %v588, %v588
        %v637 = vpack.c.b16 %v589, %v589
        %v638 = vpack.c.b16 %v590, %v590
        %v639 = vpack.c.b16 %v591, %v591
        %v640 = vpack.c.b16 %v592, %v592
        %v641 = vpack.c.b16 %v593, %v593
        %v642 = vpack.c.b16 %v594, %v594
        %v643 = vpack.c.b16 %v595, %v595
        %v644 = vpack.c.b16 %v596, %v596
        %v645 = vpack.c.b16 %v597, %v597
        %v646 = vpack.c.b16 %v598, %v598
        %v647 = vpack.c.b16 %v599, %v599
        %v648 = vpack.c.b16 %v600, %v600
        %v649 = vpack.c.b16 %v601, %v601
        %v650 = vpack.c.b16 %v602, %v602
        %v651 = vpack.c.b16 %v603, %v603
        %v652 = vpack.c.b16 %v604, %v604
        %v653 = vpack.c.b16 %v605, %v605
        %v654 = vpack.c.b16 %v606, %v606
        %v655 = vpack.c.b16 %v607, %v607
        %v656 = vpack.c.b16 %v608, %v608
        %v657 = vpack.c.b16 %v609, %v609
        %v658 = vpack.c.b16 %v610, %v610
        %v659 = vpack.c.b16 %v611, %v611
        %v660 = vpack.c.b16 %v612, %v612
        %v661 = vpack.c.b16 %v613, %v613
        %v662 = vpack.c.b16 %v614, %v614
        %v663 = vpack.c.b16 %v615, %v615
        %v664 = vpack.c.b16 %v616, %v616
        %v665 = vpack.c.b16 %v617, %v617
        %v666 = vpack.c.b16 %v618, %v618
        %v667 = vpack.c.b16 %v619, %v619
        %v668 = vpack.c.b16 %v620, %v620
        %v669 = vpack.c.b16 %v621, %v621
        %v670 = vpack.c.b16 %v622, %v622
        %v671 = vpack.c.b16 %v623, %v623
        %v672 = vpack.c.b16 %v624, %v624
        %s721 = scalar_lea.vmem [#allocation2], 12
        %722 = vst [vmem:[%s721] sm:$0xf] %v625
        %723 = vst [vmem:[%s721 + $0x4] sm:$0xf] %v626
        %724 = vst [vmem:[%s721 + $0x8] sm:$0x1] %v627
        %725 = vst [vmem:[%s721 + $0xc] sm:$0xf] %v628
        %726 = vst [vmem:[%s721 + $0x10] sm:$0xf] %v629
        %727 = vst [vmem:[%s721 + $0x14] sm:$0x1] %v630
        %728 = vst [vmem:[%s721 + $0x18] sm:$0xf] %v631
        %729 = vst [vmem:[%s721 + $0x1c] sm:$0xf] %v632
        %730 = vst [vmem:[%s721 + $0x20] sm:$0x1] %v633
        %731 = vst [vmem:[%s721 + $0x24] sm:$0xf] %v634
        %732 = vst [vmem:[%s721 + $0x28] sm:$0xf] %v635
        %733 = vst [vmem:[%s721 + $0x2c] sm:$0x1] %v636
        %734 = vst [vmem:[%s721 + $0x30] sm:$0xf] %v637
        %735 = vst [vmem:[%s721 + $0x34] sm:$0xf] %v638
        %736 = vst [vmem:[%s721 + $0x38] sm:$0x1] %v639
        %737 = vst [vmem:[%s721 + $0x3c] sm:$0xf] %v640
        %738 = vst [vmem:[%s721 + $0x40] sm:$0xf] %v641
        %739 = vst [vmem:[%s721 + $0x44] sm:$0x1] %v642
        %740 = vst [vmem:[%s721 + $0x48] sm:$0xf] %v643
        %741 = vst [vmem:[%s721 + $0x4c] sm:$0xf] %v644
        %742 = vst [vmem:[%s721 + $0x50] sm:$0x1] %v645
        %743 = vst [vmem:[%s721 + $0x54] sm:$0xf] %v646
        %744 = vst [vmem:[%s721 + $0x58] sm:$0xf] %v647
        %745 = vst [vmem:[%s721 + $0x5c] sm:$0x1] %v648
        %746 = vst [vmem:[%s721 + $0x60] sm:$0xf] %v649
        %747 = vst [vmem:[%s721 + $0x64] sm:$0xf] %v650
        %748 = vst [vmem:[%s721 + $0x68] sm:$0x1] %v651
        %749 = vst [vmem:[%s721 + $0x6c] sm:$0xf] %v652
        %750 = vst [vmem:[%s721 + $0x70] sm:$0xf] %v653
        %751 = vst [vmem:[%s721 + $0x74] sm:$0x1] %v654
        %752 = vst [vmem:[%s721 + $0x78] sm:$0xf] %v655
        %753 = vst [vmem:[%s721 + $0x7c] sm:$0xf] %v656
        %754 = vst [vmem:[%s721 + $0x80] sm:$0x1] %v657
        %755 = vst [vmem:[%s721 + $0x84] sm:$0xf] %v658
        %756 = vst [vmem:[%s721 + $0x88] sm:$0xf] %v659
        %757 = vst [vmem:[%s721 + $0x8c] sm:$0x1] %v660
        %758 = vst [vmem:[%s721 + $0x90] sm:$0xf] %v661
        %759 = vst [vmem:[%s721 + $0x94] sm:$0xf] %v662
        %760 = vst [vmem:[%s721 + $0x98] sm:$0x1] %v663
        %761 = vst [vmem:[%s721 + $0x9c] sm:$0xf] %v664
        %762 = vst [vmem:[%s721 + $0xa0] sm:$0xf] %v665
        %763 = vst [vmem:[%s721 + $0xa4] sm:$0x1] %v666
        %764 = vst [vmem:[%s721 + $0xa8] sm:$0xf] %v667
        %765 = vst [vmem:[%s721 + $0xac] sm:$0xf] %v668
        %766 = vst [vmem:[%s721 + $0xb0] sm:$0x1] %v669
        %767 = vst [vmem:[%s721 + $0xb4] sm:$0xf] %v670
        %768 = vst [vmem:[%s721 + $0xb8] sm:$0xf] %v671
        %769 = vst [vmem:[%s721 + $0xbc] sm:$0x1] %v672
        %v770 = vld [vmem:[#allocation2] sm:$0xf]
        %v771 = vld [vmem:[#allocation2 + $0x4] sm:$0xf]
        %v772 = vld [vmem:[#allocation2 + $0xc] sm:$0xf]
        %v773 = vld [vmem:[#allocation2 + $0x10] sm:$0xf]
        %v774 = vld [vmem:[#allocation2 + $0x18] sm:$0xf]
        %v775 = vld [vmem:[#allocation2 + $0x1c] sm:$0xf]
        %v776 = vld [vmem:[#allocation2 + $0x24] sm:$0xf]
        %v777 = vld [vmem:[#allocation2 + $0x28] sm:$0xf]
        %v778 = vld [vmem:[#allocation2 + $0x30] sm:$0xf]
        %v779 = vld [vmem:[#allocation2 + $0x34] sm:$0xf]
        %v780 = vld [vmem:[#allocation2 + $0x3c] sm:$0xf]
        %v781 = vld [vmem:[#allocation2 + $0x40] sm:$0xf]
        %v782 = vld [vmem:[#allocation2 + $0x48] sm:$0xf]
        %v783 = vld [vmem:[#allocation2 + $0x4c] sm:$0xf]
        %v784 = vld [vmem:[#allocation2 + $0x54] sm:$0xf]
        %v785 = vld [vmem:[#allocation2 + $0x58] sm:$0xf]
        %v786 = vld [vmem:[#allocation2 + $0x60] sm:$0xf]
        %v787 = vld [vmem:[#allocation2 + $0x64] sm:$0xf]
        %v788 = vld [vmem:[#allocation2 + $0x6c] sm:$0xf]
        %v789 = vld [vmem:[#allocation2 + $0x70] sm:$0xf]
        %v790 = vld [vmem:[#allocation2 + $0x78] sm:$0xf]
        %v791 = vld [vmem:[#allocation2 + $0x7c] sm:$0xf]
        %v792 = vld [vmem:[#allocation2 + $0x84] sm:$0xf]
        %v793 = vld [vmem:[#allocation2 + $0x88] sm:$0xf]
        %v794 = vld [vmem:[#allocation2 + $0x90] sm:$0xf]
        %v795 = vld [vmem:[#allocation2 + $0x94] sm:$0xf]
        %v796 = vld [vmem:[#allocation2 + $0x9c] sm:$0xf]
        %v797 = vld [vmem:[#allocation2 + $0xa0] sm:$0xf]
        %v798 = vld [vmem:[#allocation2 + $0xa8] sm:$0xf]
        %v799 = vld [vmem:[#allocation2 + $0xac] sm:$0xf]
        %v800 = vld [vmem:[#allocation2 + $0xb4] sm:$0xf]
        %v801 = vld [vmem:[#allocation2 + $0xb8] sm:$0xf]
        %v802 = vld [vmem:[#allocation6] sm:$0xf]
        %v803 = vld [vmem:[#allocation6 + $0x4] sm:$0xf]
        %v804 = vld [vmem:[#allocation6 + $0x8] sm:$0xf]
        %v805 = vld [vmem:[#allocation6 + $0xc] sm:$0xf]
        %v806 = vld [vmem:[#allocation6 + $0x10] sm:$0xf]
        %v807 = vld [vmem:[#allocation6 + $0x14] sm:$0xf]
        %v808 = vld [vmem:[#allocation6 + $0x18] sm:$0xf]
        %v809 = vld [vmem:[#allocation6 + $0x1c] sm:$0xf]
        %v810 = vld [vmem:[#allocation6 + $0x20] sm:$0xf]
        %v811 = vld [vmem:[#allocation6 + $0x24] sm:$0xf]
        %v812 = vld [vmem:[#allocation6 + $0x28] sm:$0xf]
        %v813 = vld [vmem:[#allocation6 + $0x2c] sm:$0xf]
        %v814 = vld [vmem:[#allocation6 + $0x30] sm:$0xf]
        %v815 = vld [vmem:[#allocation6 + $0x34] sm:$0xf]
        %v816 = vld [vmem:[#allocation6 + $0x38] sm:$0xf]
        %v817 = vld [vmem:[#allocation6 + $0x3c] sm:$0xf]
        %v818 = vld [vmem:[#allocation2 + $0x8] sm:$0x1]
        %v819 = vld [vmem:[#allocation2 + $0x14] sm:$0x1]
        %v820 = vld [vmem:[#allocation2 + $0x20] sm:$0x1]
        %v821 = vld [vmem:[#allocation2 + $0x2c] sm:$0x1]
        %v822 = vld [vmem:[#allocation2 + $0x38] sm:$0x1]
        %v823 = vld [vmem:[#allocation2 + $0x44] sm:$0x1]
        %v824 = vld [vmem:[#allocation2 + $0x50] sm:$0x1]
        %v825 = vld [vmem:[#allocation2 + $0x5c] sm:$0x1]
        %v826 = vld [vmem:[#allocation2 + $0x68] sm:$0x1]
        %v827 = vld [vmem:[#allocation2 + $0x74] sm:$0x1]
        %v828 = vld [vmem:[#allocation2 + $0x80] sm:$0x1]
        %v829 = vld [vmem:[#allocation2 + $0x8c] sm:$0x1]
        %v830 = vld [vmem:[#allocation2 + $0x98] sm:$0x1]
        %v831 = vld [vmem:[#allocation2 + $0xa4] sm:$0x1]
        %v832 = vld [vmem:[#allocation2 + $0xb0] sm:$0x1]
        %v833 = vld [vmem:[#allocation2 + $0xbc] sm:$0x1]
        %vm834 = vsmask.f32 3328
        %vm835 = vsmask.f32 7440
        %vm836 = vmor %vm834, %vm835
        %v838 = vshrl.u32 %v770, 16
        %v840 = vrot.slane %v838, 4
        %v841 = vshll.u32 %v770, 16
        %v843 = vrot.slane %v841, 5
        %v844 = vor.u32 %v840, %v843
        %v845 = vrot.slane %v844, 4
        %v847 = vshll.u32 %v771, 16
        %v849 = vrot.slane %v847, 5
        %v850 = vsel %vm836, %v845, %v849
        %v851 = vshrl.u32 %v771, 16
        %v853 = vrot.slane %v851, 4
        %v854 = vor.u32 %v853, %v849
        %v855 = vrot.slane %v854, 4
        %v857 = vshll.u32 %v818, 16
        %v859 = vrot.slane %v857, 5
        %v860 = vsel %vm836, %v855, %v859
        %v862 = vshrl.u32 %v772, 16
        %v864 = vrot.slane %v862, 4
        %v865 = vshll.u32 %v772, 16
        %v867 = vrot.slane %v865, 5
        %v868 = vor.u32 %v864, %v867
        %v869 = vrot.slane %v868, 4
        %v871 = vshll.u32 %v773, 16
        %v873 = vrot.slane %v871, 5
        %v874 = vsel %vm836, %v869, %v873
        %v875 = vshrl.u32 %v773, 16
        %v877 = vrot.slane %v875, 4
        %v878 = vor.u32 %v877, %v873
        %v879 = vrot.slane %v878, 4
        %v881 = vshll.u32 %v819, 16
        %v883 = vrot.slane %v881, 5
        %v884 = vsel %vm836, %v879, %v883
        %v886 = vshrl.u32 %v774, 16
        %v888 = vrot.slane %v886, 4
        %v889 = vshll.u32 %v774, 16
        %v891 = vrot.slane %v889, 5
        %v892 = vor.u32 %v888, %v891
        %v893 = vrot.slane %v892, 4
        %v895 = vshll.u32 %v775, 16
        %v897 = vrot.slane %v895, 5
        %v898 = vsel %vm836, %v893, %v897
        %v899 = vshrl.u32 %v775, 16
        %v901 = vrot.slane %v899, 4
        %v902 = vor.u32 %v901, %v897
        %v903 = vrot.slane %v902, 4
        %v905 = vshll.u32 %v820, 16
        %v907 = vrot.slane %v905, 5
        %v908 = vsel %vm836, %v903, %v907
        %v910 = vshrl.u32 %v776, 16
        %v912 = vrot.slane %v910, 4
        %v913 = vshll.u32 %v776, 16
        %v915 = vrot.slane %v913, 5
        %v916 = vor.u32 %v912, %v915
        %v917 = vrot.slane %v916, 4
        %v919 = vshll.u32 %v777, 16
        %v921 = vrot.slane %v919, 5
        %v922 = vsel %vm836, %v917, %v921
        %v923 = vshrl.u32 %v777, 16
        %v925 = vrot.slane %v923, 4
        %v926 = vor.u32 %v925, %v921
        %v927 = vrot.slane %v926, 4
        %v929 = vshll.u32 %v821, 16
        %v931 = vrot.slane %v929, 5
        %v932 = vsel %vm836, %v927, %v931
        %v934 = vshrl.u32 %v778, 16
        %v936 = vrot.slane %v934, 4
        %v937 = vshll.u32 %v778, 16
        %v939 = vrot.slane %v937, 5
        %v940 = vor.u32 %v936, %v939
        %v941 = vrot.slane %v940, 4
        %v943 = vshll.u32 %v779, 16
        %v945 = vrot.slane %v943, 5
        %v946 = vsel %vm836, %v941, %v945
        %v947 = vshrl.u32 %v779, 16
        %v949 = vrot.slane %v947, 4
        %v950 = vor.u32 %v949, %v945
        %v951 = vrot.slane %v950, 4
        %v953 = vshll.u32 %v822, 16
        %v955 = vrot.slane %v953, 5
        %v956 = vsel %vm836, %v951, %v955
        %v958 = vshrl.u32 %v780, 16
        %v960 = vrot.slane %v958, 4
        %v961 = vshll.u32 %v780, 16
        %v963 = vrot.slane %v961, 5
        %v964 = vor.u32 %v960, %v963
        %v965 = vrot.slane %v964, 4
        %v967 = vshll.u32 %v781, 16
        %v969 = vrot.slane %v967, 5
        %v970 = vsel %vm836, %v965, %v969
        %v971 = vshrl.u32 %v781, 16
        %v973 = vrot.slane %v971, 4
        %v974 = vor.u32 %v973, %v969
        %v975 = vrot.slane %v974, 4
        %v977 = vshll.u32 %v823, 16
        %v979 = vrot.slane %v977, 5
        %v980 = vsel %vm836, %v975, %v979
        %v982 = vshrl.u32 %v782, 16
        %v984 = vrot.slane %v982, 4
        %v985 = vshll.u32 %v782, 16
        %v987 = vrot.slane %v985, 5
        %v988 = vor.u32 %v984, %v987
        %v989 = vrot.slane %v988, 4
        %v991 = vshll.u32 %v783, 16
        %v993 = vrot.slane %v991, 5
        %v994 = vsel %vm836, %v989, %v993
        %v995 = vshrl.u32 %v783, 16
        %v997 = vrot.slane %v995, 4
        %v998 = vor.u32 %v997, %v993
        %v999 = vrot.slane %v998, 4
        %v1001 = vshll.u32 %v824, 16
        %v1003 = vrot.slane %v1001, 5
        %v1004 = vsel %vm836, %v999, %v1003
        %v1006 = vshrl.u32 %v784, 16
        %v1008 = vrot.slane %v1006, 4
        %v1009 = vshll.u32 %v784, 16
        %v1011 = vrot.slane %v1009, 5
        %v1012 = vor.u32 %v1008, %v1011
        %v1013 = vrot.slane %v1012, 4
        %v1015 = vshll.u32 %v785, 16
        %v1017 = vrot.slane %v1015, 5
        %v1018 = vsel %vm836, %v1013, %v1017
        %v1019 = vshrl.u32 %v785, 16
        %v1021 = vrot.slane %v1019, 4
        %v1022 = vor.u32 %v1021, %v1017
        %v1023 = vrot.slane %v1022, 4
        %v1025 = vshll.u32 %v825, 16
        %v1027 = vrot.slane %v1025, 5
        %v1028 = vsel %vm836, %v1023, %v1027
        %v1030 = vshrl.u32 %v786, 16
        %v1032 = vrot.slane %v1030, 4
        %v1033 = vshll.u32 %v786, 16
        %v1035 = vrot.slane %v1033, 5
        %v1036 = vor.u32 %v1032, %v1035
        %v1037 = vrot.slane %v1036, 4
        %v1039 = vshll.u32 %v787, 16
        %v1041 = vrot.slane %v1039, 5
        %v1042 = vsel %vm836, %v1037, %v1041
        %v1043 = vshrl.u32 %v787, 16
        %v1045 = vrot.slane %v1043, 4
        %v1046 = vor.u32 %v1045, %v1041
        %v1047 = vrot.slane %v1046, 4
        %v1049 = vshll.u32 %v826, 16
        %v1051 = vrot.slane %v1049, 5
        %v1052 = vsel %vm836, %v1047, %v1051
        %v1054 = vshrl.u32 %v788, 16
        %v1056 = vrot.slane %v1054, 4
        %v1057 = vshll.u32 %v788, 16
        %v1059 = vrot.slane %v1057, 5
        %v1060 = vor.u32 %v1056, %v1059
        %v1061 = vrot.slane %v1060, 4
        %v1063 = vshll.u32 %v789, 16
        %v1065 = vrot.slane %v1063, 5
        %v1066 = vsel %vm836, %v1061, %v1065
        %v1067 = vshrl.u32 %v789, 16
        %v1069 = vrot.slane %v1067, 4
        %v1070 = vor.u32 %v1069, %v1065
        %v1071 = vrot.slane %v1070, 4
        %v1073 = vshll.u32 %v827, 16
        %v1075 = vrot.slane %v1073, 5
        %v1076 = vsel %vm836, %v1071, %v1075
        %v1078 = vshrl.u32 %v790, 16
        %v1080 = vrot.slane %v1078, 4
        %v1081 = vshll.u32 %v790, 16
        %v1083 = vrot.slane %v1081, 5
        %v1084 = vor.u32 %v1080, %v1083
        %v1085 = vrot.slane %v1084, 4
        %v1087 = vshll.u32 %v791, 16
        %v1089 = vrot.slane %v1087, 5
        %v1090 = vsel %vm836, %v1085, %v1089
        %v1091 = vshrl.u32 %v791, 16
        %v1093 = vrot.slane %v1091, 4
        %v1094 = vor.u32 %v1093, %v1089
        %v1095 = vrot.slane %v1094, 4
        %v1097 = vshll.u32 %v828, 16
        %v1099 = vrot.slane %v1097, 5
        %v1100 = vsel %vm836, %v1095, %v1099
        %v1102 = vshrl.u32 %v792, 16
        %v1104 = vrot.slane %v1102, 4
        %v1105 = vshll.u32 %v792, 16
        %v1107 = vrot.slane %v1105, 5
        %v1108 = vor.u32 %v1104, %v1107
        %v1109 = vrot.slane %v1108, 4
        %v1111 = vshll.u32 %v793, 16
        %v1113 = vrot.slane %v1111, 5
        %v1114 = vsel %vm836, %v1109, %v1113
        %v1115 = vshrl.u32 %v793, 16
        %v1117 = vrot.slane %v1115, 4
        %v1118 = vor.u32 %v1117, %v1113
        %v1119 = vrot.slane %v1118, 4
        %v1121 = vshll.u32 %v829, 16
        %v1123 = vrot.slane %v1121, 5
        %v1124 = vsel %vm836, %v1119, %v1123
        %v1126 = vshrl.u32 %v794, 16
        %v1128 = vrot.slane %v1126, 4
        %v1129 = vshll.u32 %v794, 16
        %v1131 = vrot.slane %v1129, 5
        %v1132 = vor.u32 %v1128, %v1131
        %v1133 = vrot.slane %v1132, 4
        %v1135 = vshll.u32 %v795, 16
        %v1137 = vrot.slane %v1135, 5
        %v1138 = vsel %vm836, %v1133, %v1137
        %v1139 = vshrl.u32 %v795, 16
        %v1141 = vrot.slane %v1139, 4
        %v1142 = vor.u32 %v1141, %v1137
        %v1143 = vrot.slane %v1142, 4
        %v1145 = vshll.u32 %v830, 16
        %v1147 = vrot.slane %v1145, 5
        %v1148 = vsel %vm836, %v1143, %v1147
        %v1150 = vshrl.u32 %v796, 16
        %v1152 = vrot.slane %v1150, 4
        %v1153 = vshll.u32 %v796, 16
        %v1155 = vrot.slane %v1153, 5
        %v1156 = vor.u32 %v1152, %v1155
        %v1157 = vrot.slane %v1156, 4
        %v1159 = vshll.u32 %v797, 16
        %v1161 = vrot.slane %v1159, 5
        %v1162 = vsel %vm836, %v1157, %v1161
        %v1163 = vshrl.u32 %v797, 16
        %v1165 = vrot.slane %v1163, 4
        %v1166 = vor.u32 %v1165, %v1161
        %v1167 = vrot.slane %v1166, 4
        %v1169 = vshll.u32 %v831, 16
        %v1171 = vrot.slane %v1169, 5
        %v1172 = vsel %vm836, %v1167, %v1171
        %v1174 = vshrl.u32 %v798, 16
        %v1176 = vrot.slane %v1174, 4
        %v1177 = vshll.u32 %v798, 16
        %v1179 = vrot.slane %v1177, 5
        %v1180 = vor.u32 %v1176, %v1179
        %v1181 = vrot.slane %v1180, 4
        %v1183 = vshll.u32 %v799, 16
        %v1185 = vrot.slane %v1183, 5
        %v1186 = vsel %vm836, %v1181, %v1185
        %v1187 = vshrl.u32 %v799, 16
        %v1189 = vrot.slane %v1187, 4
        %v1190 = vor.u32 %v1189, %v1185
        %v1191 = vrot.slane %v1190, 4
        %v1193 = vshll.u32 %v832, 16
        %v1195 = vrot.slane %v1193, 5
        %v1196 = vsel %vm836, %v1191, %v1195
        %v1198 = vshrl.u32 %v800, 16
        %v1200 = vrot.slane %v1198, 4
        %v1201 = vshll.u32 %v800, 16
        %v1203 = vrot.slane %v1201, 5
        %v1204 = vor.u32 %v1200, %v1203
        %v1205 = vrot.slane %v1204, 4
        %v1207 = vshll.u32 %v801, 16
        %v1209 = vrot.slane %v1207, 5
        %v1210 = vsel %vm836, %v1205, %v1209
        %v1211 = vshrl.u32 %v801, 16
        %v1213 = vrot.slane %v1211, 4
        %v1214 = vor.u32 %v1213, %v1209
        %v1215 = vrot.slane %v1214, 4
        %v1217 = vshll.u32 %v833, 16
        %v1219 = vrot.slane %v1217, 5
        %v1220 = vsel %vm836, %v1215, %v1219
        %s1221 = scalar_lea.vmem [#allocation6], 64
        %v1222 = vld [vmem:[%s1221] sm:$0xf]
        %v1223 = vld [vmem:[%s1221 + $0x4] sm:$0xf]
        %v1224 = vld [vmem:[%s1221 + $0x8] sm:$0xf]
        %v1225 = vld [vmem:[%s1221 + $0xc] sm:$0xf]
        %v1226 = vld [vmem:[%s1221 + $0x10] sm:$0xf]
        %v1227 = vld [vmem:[%s1221 + $0x14] sm:$0xf]
        %v1228 = vld [vmem:[%s1221 + $0x18] sm:$0xf]
        %v1229 = vld [vmem:[%s1221 + $0x1c] sm:$0xf]
        %v1230 = vld [vmem:[%s1221 + $0x20] sm:$0xf]
        %v1231 = vld [vmem:[%s1221 + $0x24] sm:$0xf]
        %v1232 = vld [vmem:[%s1221 + $0x28] sm:$0xf]
        %v1233 = vld [vmem:[%s1221 + $0x2c] sm:$0xf]
        %v1234 = vld [vmem:[%s1221 + $0x30] sm:$0xf]
        %v1235 = vld [vmem:[%s1221 + $0x34] sm:$0xf]
        %v1236 = vld [vmem:[%s1221 + $0x38] sm:$0xf]
        %v1237 = vld [vmem:[%s1221 + $0x3c] sm:$0xf]
        %v1238 = vunpack.c.l.b16 %v850
        %v1239 = vunpack.c.l.b16 %v860
        %v1240 = vunpack.c.l.b16 %v874
        %v1241 = vunpack.c.l.b16 %v884
        %v1242 = vunpack.c.l.b16 %v898
        %v1243 = vunpack.c.l.b16 %v908
        %v1244 = vunpack.c.l.b16 %v922
        %v1245 = vunpack.c.l.b16 %v932
        %v1246 = vunpack.c.l.b16 %v946
        %v1247 = vunpack.c.l.b16 %v956
        %v1248 = vunpack.c.l.b16 %v970
        %v1249 = vunpack.c.l.b16 %v980
        %v1250 = vunpack.c.l.b16 %v994
        %v1251 = vunpack.c.l.b16 %v1004
        %v1252 = vunpack.c.l.b16 %v1018
        %v1253 = vunpack.c.l.b16 %v1028
        %v1254 = vunpack.c.l.b16 %v1042
        %v1255 = vunpack.c.l.b16 %v1052
        %v1256 = vunpack.c.l.b16 %v1066
        %v1257 = vunpack.c.l.b16 %v1076
        %v1258 = vunpack.c.l.b16 %v1090
        %v1259 = vunpack.c.l.b16 %v1100
        %v1260 = vunpack.c.l.b16 %v1114
        %v1261 = vunpack.c.l.b16 %v1124
        %v1262 = vunpack.c.l.b16 %v1138
        %v1263 = vunpack.c.l.b16 %v1148
        %v1264 = vunpack.c.l.b16 %v1162
        %v1265 = vunpack.c.l.b16 %v1172
        %v1266 = vunpack.c.l.b16 %v1186
        %v1267 = vunpack.c.l.b16 %v1196
        %v1268 = vunpack.c.l.b16 %v1210
        %v1269 = vunpack.c.l.b16 %v1220
        %v1270 = vpack.c.b16 %v1239, %v1238
        %v1271 = vpack.c.b16 %v1241, %v1240
        %v1272 = vpack.c.b16 %v1243, %v1242
        %v1273 = vpack.c.b16 %v1245, %v1244
        %v1274 = vpack.c.b16 %v1247, %v1246
        %v1275 = vpack.c.b16 %v1249, %v1248
        %v1276 = vpack.c.b16 %v1251, %v1250
        %v1277 = vpack.c.b16 %v1253, %v1252
        %v1278 = vpack.c.b16 %v1255, %v1254
        %v1279 = vpack.c.b16 %v1257, %v1256
        %v1280 = vpack.c.b16 %v1259, %v1258
        %v1281 = vpack.c.b16 %v1261, %v1260
        %v1282 = vpack.c.b16 %v1263, %v1262
        %v1283 = vpack.c.b16 %v1265, %v1264
        %v1284 = vpack.c.b16 %v1267, %v1266
        %v1285 = vpack.c.b16 %v1269, %v1268
        %v1318 = vunpack.c.l.b16 %v1222
        %v1319 = vunpack.c.l.b16 %v1223
        %v1320 = vunpack.c.l.b16 %v1224
        %v1321 = vunpack.c.l.b16 %v1225
        %v1322 = vunpack.c.l.b16 %v1226
        %v1323 = vunpack.c.l.b16 %v1227
        %v1324 = vunpack.c.l.b16 %v1228
        %v1325 = vunpack.c.l.b16 %v1229
        %v1326 = vunpack.c.l.b16 %v1230
        %v1327 = vunpack.c.l.b16 %v1231
        %v1328 = vunpack.c.l.b16 %v1232
        %v1329 = vunpack.c.l.b16 %v1233
        %v1330 = vunpack.c.l.b16 %v1234
        %v1331 = vunpack.c.l.b16 %v1235
        %v1332 = vunpack.c.l.b16 %v1236
        %v1333 = vunpack.c.l.b16 %v1237
        %v1334 = vpack.c.b16 %v1319, %v1318
        %v1335 = vpack.c.b16 %v1321, %v1320
        %v1336 = vpack.c.b16 %v1323, %v1322
        %v1337 = vpack.c.b16 %v1325, %v1324
        %v1338 = vpack.c.b16 %v1327, %v1326
        %v1339 = vpack.c.b16 %v1329, %v1328
        %v1340 = vpack.c.b16 %v1331, %v1330
        %v1341 = vpack.c.b16 %v1333, %v1332
        %1350 = vmatprep.subr.bf16.mxu0 0
        %1351 = vmatpush1.bf16.msra.mxu0 %v1334
        %1352 = vmatprep.subr.bf16.mxu0 0
        %1353 = vmatpush1.bf16.msra.mxu0 %v1335
        %1354 = vmatprep.subr.bf16.mxu0 0
        %1355 = vmatpush1.bf16.msra.mxu0 %v1336
        %1356 = vmatprep.subr.bf16.mxu0 0
        %1357 = vmatpush1.bf16.msra.mxu0 %v1337
        %1358 = vmatprep.subr.bf16.mxu0 0
        %1359 = vmatpush1.bf16.msra.mxu0 %v1338
        %1360 = vmatprep.subr.bf16.mxu0 0
        %1361 = vmatpush1.bf16.msra.mxu0 %v1339
        %1362 = vmatprep.subr.bf16.mxu0 0
        %1363 = vmatpush1.bf16.msra.mxu0 %v1340
        %1364 = vmatprep.subr.bf16.mxu0 0
        %1365 = vmatpush1.bf16.msra.mxu0 %v1341
        %1366 = vmatprep.subr.bf16.mxu0 0
        %1367 = vmatpush1.bf16.msra.mxu0 0
        %1368 = vmatprep.subr.bf16.mxu0 0
        %1369 = vmatpush1.bf16.msra.mxu0 0
        %1370 = vmatprep.subr.bf16.mxu0 0
        %1371 = vmatpush1.bf16.msra.mxu0 0
        %1372 = vmatprep.subr.bf16.mxu0 0
        %1373 = vmatpush1.bf16.msra.mxu0 0
        %1374 = vmatprep.subr.bf16.mxu0 0
        %1375 = vmatpush1.bf16.msra.mxu0 0
        %1376 = vmatprep.subr.bf16.mxu0 0
        %1377 = vmatpush1.bf16.msra.mxu0 0
        %1378 = vmatprep.subr.bf16.mxu0 0
        %1379 = vmatpush1.bf16.msra.mxu0 0
        %1380 = vmatprep.subr.bf16.mxu0 0
        %1381 = vmatpush1.bf16.msra.mxu0 0
        %1382 = vmatprep.mubr.bf16.mxu0 0
        %1383 = vmatmul.mubr.bf16.gmra.mrb[0].mxu0 %v1270
        %v1384 = vpop.f32.mrb[0].mxu0
        %v1385 = vadd.f32 0.0, %v1384
        %v1386 = vpop.f32.mrb[0].mxu0
        %v1387 = vpop.f32.mrb[0].mxu0
        %v1388 = vadd.f32 0.0, %v1387
        %v1389 = vpop.f32.mrb[0].mxu0
        %1390 = vmatprep.mubr.bf16.mxu0 0
        %1391 = vmatmul.mubr.bf16.gmra.mrb[0].mxu0 %v1271
        %v1392 = vpop.f32.mrb[0].mxu0
        %v1393 = vadd.f32 0.0, %v1392
        %v1394 = vpop.f32.mrb[0].mxu0
        %v1395 = vpop.f32.mrb[0].mxu0
        %v1396 = vadd.f32 0.0, %v1395
        %v1397 = vpop.f32.mrb[0].mxu0
        %1398 = vmatprep.mubr.bf16.mxu0 0
        %1399 = vmatmul.mubr.bf16.gmra.mrb[0].mxu0 %v1272
        %v1400 = vpop.f32.mrb[0].mxu0
        %v1401 = vadd.f32 0.0, %v1400
        %v1402 = vpop.f32.mrb[0].mxu0
        %v1403 = vpop.f32.mrb[0].mxu0
        %v1404 = vadd.f32 0.0, %v1403
        %v1405 = vpop.f32.mrb[0].mxu0
        %1406 = vmatprep.mubr.bf16.mxu0 0
        %1407 = vmatmul.mubr.bf16.gmra.mrb[0].mxu0 %v1273
        %v1408 = vpop.f32.mrb[0].mxu0
        %v1409 = vadd.f32 0.0, %v1408
        %v1410 = vpop.f32.mrb[0].mxu0
        %v1411 = vpop.f32.mrb[0].mxu0
        %v1412 = vadd.f32 0.0, %v1411
        %v1413 = vpop.f32.mrb[0].mxu0
        %1414 = vmatprep.mubr.bf16.mxu0 0
        %1415 = vmatmul.mubr.bf16.gmra.mrb[0].mxu0 %v1274
        %v1416 = vpop.f32.mrb[0].mxu0
        %v1417 = vadd.f32 0.0, %v1416
        %v1418 = vpop.f32.mrb[0].mxu0
        %v1419 = vpop.f32.mrb[0].mxu0
        %v1420 = vadd.f32 0.0, %v1419
        %v1421 = vpop.f32.mrb[0].mxu0
        %1422 = vmatprep.mubr.bf16.mxu0 0
        %1423 = vmatmul.mubr.bf16.gmra.mrb[0].mxu0 %v1275
        %v1424 = vpop.f32.mrb[0].mxu0
        %v1425 = vadd.f32 0.0, %v1424
        %v1426 = vpop.f32.mrb[0].mxu0
        %v1427 = vpop.f32.mrb[0].mxu0
        %v1428 = vadd.f32 0.0, %v1427
        %v1429 = vpop.f32.mrb[0].mxu0
        %1430 = vmatprep.mubr.bf16.mxu0 0
        %1431 = vmatmul.mubr.bf16.gmra.mrb[0].mxu0 %v1276
        %v1432 = vpop.f32.mrb[0].mxu0
        %v1433 = vadd.f32 0.0, %v1432
        %v1434 = vpop.f32.mrb[0].mxu0
        %v1435 = vpop.f32.mrb[0].mxu0
        %v1436 = vadd.f32 0.0, %v1435
        %v1437 = vpop.f32.mrb[0].mxu0
        %1438 = vmatprep.mubr.bf16.mxu0 0
        %1439 = vmatmul.mubr.bf16.gmra.mrb[0].mxu0 %v1277
        %v1440 = vpop.f32.mrb[0].mxu0
        %v1441 = vadd.f32 0.0, %v1440
        %v1442 = vpop.f32.mrb[0].mxu0
        %v1443 = vpop.f32.mrb[0].mxu0
        %v1444 = vadd.f32 0.0, %v1443
        %v1445 = vpop.f32.mrb[0].mxu0
        %1446 = vmatprep.mubr.bf16.mxu0 0
        %1447 = vmatmul.mubr.bf16.gmra.mrb[0].mxu0 %v1278
        %v1448 = vpop.f32.mrb[0].mxu0
        %v1449 = vadd.f32 0.0, %v1448
        %v1450 = vpop.f32.mrb[0].mxu0
        %v1451 = vpop.f32.mrb[0].mxu0
        %v1452 = vadd.f32 0.0, %v1451
        %v1453 = vpop.f32.mrb[0].mxu0
        %1454 = vmatprep.mubr.bf16.mxu0 0
        %1455 = vmatmul.mubr.bf16.gmra.mrb[0].mxu0 %v1279
        %v1456 = vpop.f32.mrb[0].mxu0
        %v1457 = vadd.f32 0.0, %v1456
        %v1458 = vpop.f32.mrb[0].mxu0
        %v1459 = vpop.f32.mrb[0].mxu0
        %v1460 = vadd.f32 0.0, %v1459
        %v1461 = vpop.f32.mrb[0].mxu0
        %1462 = vmatprep.mubr.bf16.mxu0 0
        %1463 = vmatmul.mubr.bf16.gmra.mrb[0].mxu0 %v1280
        %v1464 = vpop.f32.mrb[0].mxu0
        %v1465 = vadd.f32 0.0, %v1464
        %v1466 = vpop.f32.mrb[0].mxu0
        %v1467 = vpop.f32.mrb[0].mxu0
        %v1468 = vadd.f32 0.0, %v1467
        %v1469 = vpop.f32.mrb[0].mxu0
        %1470 = vmatprep.mubr.bf16.mxu0 0
        %1471 = vmatmul.mubr.bf16.gmra.mrb[0].mxu0 %v1281
        %v1472 = vpop.f32.mrb[0].mxu0
        %v1473 = vadd.f32 0.0, %v1472
        %v1474 = vpop.f32.mrb[0].mxu0
        %v1475 = vpop.f32.mrb[0].mxu0
        %v1476 = vadd.f32 0.0, %v1475
        %v1477 = vpop.f32.mrb[0].mxu0
        %1478 = vmatprep.mubr.bf16.mxu0 0
        %1479 = vmatmul.mubr.bf16.gmra.mrb[0].mxu0 %v1282
        %v1480 = vpop.f32.mrb[0].mxu0
        %v1481 = vadd.f32 0.0, %v1480
        %v1482 = vpop.f32.mrb[0].mxu0
        %v1483 = vpop.f32.mrb[0].mxu0
        %v1484 = vadd.f32 0.0, %v1483
        %v1485 = vpop.f32.mrb[0].mxu0
        %1486 = vmatprep.mubr.bf16.mxu0 0
        %1487 = vmatmul.mubr.bf16.gmra.mrb[0].mxu0 %v1283
        %v1488 = vpop.f32.mrb[0].mxu0
        %v1489 = vadd.f32 0.0, %v1488
        %v1490 = vpop.f32.mrb[0].mxu0
        %v1491 = vpop.f32.mrb[0].mxu0
        %v1492 = vadd.f32 0.0, %v1491
        %v1493 = vpop.f32.mrb[0].mxu0
        %1494 = vmatprep.mubr.bf16.mxu0 0
        %1495 = vmatmul.mubr.bf16.gmra.mrb[0].mxu0 %v1284
        %v1496 = vpop.f32.mrb[0].mxu0
        %v1497 = vadd.f32 0.0, %v1496
        %v1498 = vpop.f32.mrb[0].mxu0
        %v1499 = vpop.f32.mrb[0].mxu0
        %v1500 = vadd.f32 0.0, %v1499
        %v1501 = vpop.f32.mrb[0].mxu0
        %1502 = vmatprep.mubr.bf16.mxu0 0
        %1503 = vmatmul.mubr.bf16.gmra.mrb[0].mxu0 %v1285
        %v1504 = vpop.f32.mrb[0].mxu0
        %v1505 = vadd.f32 0.0, %v1504
        %v1506 = vpop.f32.mrb[0].mxu0
        %v1507 = vpop.f32.mrb[0].mxu0
        %v1508 = vadd.f32 0.0, %v1507
        %v1509 = vpop.f32.mrb[0].mxu0
        %1510 = vdwg.mxu0
        %v1543 = vunpack.c.l.b16 %v770
        %v1544 = vunpack.c.l.b16 %v771
        %v1545 = vunpack.c.l.b16 %v772
        %v1546 = vunpack.c.l.b16 %v773
        %v1547 = vunpack.c.l.b16 %v774
        %v1548 = vunpack.c.l.b16 %v775
        %v1549 = vunpack.c.l.b16 %v776
        %v1550 = vunpack.c.l.b16 %v777
        %v1551 = vunpack.c.l.b16 %v778
        %v1552 = vunpack.c.l.b16 %v779
        %v1553 = vunpack.c.l.b16 %v780
        %v1554 = vunpack.c.l.b16 %v781
        %v1555 = vunpack.c.l.b16 %v782
        %v1556 = vunpack.c.l.b16 %v783
        %v1557 = vunpack.c.l.b16 %v784
        %v1558 = vunpack.c.l.b16 %v785
        %v1559 = vunpack.c.l.b16 %v786
        %v1560 = vunpack.c.l.b16 %v787
        %v1561 = vunpack.c.l.b16 %v788
        %v1562 = vunpack.c.l.b16 %v789
        %v1563 = vunpack.c.l.b16 %v790
        %v1564 = vunpack.c.l.b16 %v791
        %v1565 = vunpack.c.l.b16 %v792
        %v1566 = vunpack.c.l.b16 %v793
        %v1567 = vunpack.c.l.b16 %v794
        %v1568 = vunpack.c.l.b16 %v795
        %v1569 = vunpack.c.l.b16 %v796
        %v1570 = vunpack.c.l.b16 %v797
        %v1571 = vunpack.c.l.b16 %v798
        %v1572 = vunpack.c.l.b16 %v799
        %v1573 = vunpack.c.l.b16 %v800
        %v1574 = vunpack.c.l.b16 %v801
        %v1575 = vpack.c.b16 %v1544, %v1543
        %v1576 = vpack.c.b16 %v1546, %v1545
        %v1577 = vpack.c.b16 %v1548, %v1547
        %v1578 = vpack.c.b16 %v1550, %v1549
        %v1579 = vpack.c.b16 %v1552, %v1551
        %v1580 = vpack.c.b16 %v1554, %v1553
        %v1581 = vpack.c.b16 %v1556, %v1555
        %v1582 = vpack.c.b16 %v1558, %v1557
        %v1583 = vpack.c.b16 %v1560, %v1559
        %v1584 = vpack.c.b16 %v1562, %v1561
        %v1585 = vpack.c.b16 %v1564, %v1563
        %v1586 = vpack.c.b16 %v1566, %v1565
        %v1587 = vpack.c.b16 %v1568, %v1567
        %v1588 = vpack.c.b16 %v1570, %v1569
        %v1589 = vpack.c.b16 %v1572, %v1571
        %v1590 = vpack.c.b16 %v1574, %v1573
        %v1623 = vunpack.c.l.b16 %v802
        %v1624 = vunpack.c.l.b16 %v803
        %v1625 = vunpack.c.l.b16 %v804
        %v1626 = vunpack.c.l.b16 %v805
        %v1627 = vunpack.c.l.b16 %v806
        %v1628 = vunpack.c.l.b16 %v807
        %v1629 = vunpack.c.l.b16 %v808
        %v1630 = vunpack.c.l.b16 %v809
        %v1631 = vunpack.c.l.b16 %v810
        %v1632 = vunpack.c.l.b16 %v811
        %v1633 = vunpack.c.l.b16 %v812
        %v1634 = vunpack.c.l.b16 %v813
        %v1635 = vunpack.c.l.b16 %v814
        %v1636 = vunpack.c.l.b16 %v815
        %v1637 = vunpack.c.l.b16 %v816
        %v1638 = vunpack.c.l.b16 %v817
        %v1639 = vpack.c.b16 %v1624, %v1623
        %v1640 = vpack.c.b16 %v1626, %v1625
        %v1641 = vpack.c.b16 %v1628, %v1627
        %v1642 = vpack.c.b16 %v1630, %v1629
        %v1643 = vpack.c.b16 %v1632, %v1631
        %v1644 = vpack.c.b16 %v1634, %v1633
        %v1645 = vpack.c.b16 %v1636, %v1635
        %v1646 = vpack.c.b16 %v1638, %v1637
        %1655 = vmatprep.subr.bf16.mxu0 0
        %1656 = vmatpush1.bf16.msra.mxu0 %v1639
        %1657 = vmatprep.subr.bf16.mxu0 0
        %1658 = vmatpush1.bf16.msra.mxu0 %v1640
        %1659 = vmatprep.subr.bf16.mxu0 0
        %1660 = vmatpush1.bf16.msra.mxu0 %v1641
        %1661 = vmatprep.subr.bf16.mxu0 0
        %1662 = vmatpush1.bf16.msra.mxu0 %v1642
        %1663 = vmatprep.subr.bf16.mxu0 0
        %1664 = vmatpush1.bf16.msra.mxu0 %v1643
        %1665 = vmatprep.subr.bf16.mxu0 0
        %1666 = vmatpush1.bf16.msra.mxu0 %v1644
        %1667 = vmatprep.subr.bf16.mxu0 0
        %1668 = vmatpush1.bf16.msra.mxu0 %v1645
        %1669 = vmatprep.subr.bf16.mxu0 0
        %1670 = vmatpush1.bf16.msra.mxu0 %v1646
        %1671 = vmatprep.subr.bf16.mxu0 0
        %1672 = vmatpush1.bf16.msra.mxu0 0
        %1673 = vmatprep.subr.bf16.mxu0 0
        %1674 = vmatpush1.bf16.msra.mxu0 0
        %1675 = vmatprep.subr.bf16.mxu0 0
        %1676 = vmatpush1.bf16.msra.mxu0 0
        %1677 = vmatprep.subr.bf16.mxu0 0
        %1678 = vmatpush1.bf16.msra.mxu0 0
        %1679 = vmatprep.subr.bf16.mxu0 0
        %1680 = vmatpush1.bf16.msra.mxu0 0
        %1681 = vmatprep.subr.bf16.mxu0 0
        %1682 = vmatpush1.bf16.msra.mxu0 0
        %1683 = vmatprep.subr.bf16.mxu0 0
        %1684 = vmatpush1.bf16.msra.mxu0 0
        %1685 = vmatprep.subr.bf16.mxu0 0
        %1686 = vmatpush1.bf16.msra.mxu0 0
        %1687 = vmatprep.mubr.bf16.mxu0 0
        %1688 = vmatmul.mubr.bf16.gmra.mrb[0].mxu0 %v1575
        %v1689 = vpop.f32.mrb[0].mxu0
        %v1690 = vadd.f32 %v1385, %v1689
        %v1691 = vpop.f32.mrb[0].mxu0
        %v1692 = vpop.f32.mrb[0].mxu0
        %v1693 = vadd.f32 %v1388, %v1692
        %v1694 = vpop.f32.mrb[0].mxu0
        %1695 = vmatprep.mubr.bf16.mxu0 0
        %1696 = vmatmul.mubr.bf16.gmra.mrb[0].mxu0 %v1576
        %v1697 = vpop.f32.mrb[0].mxu0
        %v1698 = vadd.f32 %v1393, %v1697
        %v1699 = vpop.f32.mrb[0].mxu0
        %v1700 = vpop.f32.mrb[0].mxu0
        %v1701 = vadd.f32 %v1396, %v1700
        %v1702 = vpop.f32.mrb[0].mxu0
        %1703 = vmatprep.mubr.bf16.mxu0 0
        %1704 = vmatmul.mubr.bf16.gmra.mrb[0].mxu0 %v1577
        %v1705 = vpop.f32.mrb[0].mxu0
        %v1706 = vadd.f32 %v1401, %v1705
        %v1707 = vpop.f32.mrb[0].mxu0
        %v1708 = vpop.f32.mrb[0].mxu0
        %v1709 = vadd.f32 %v1404, %v1708
        %v1710 = vpop.f32.mrb[0].mxu0
        %1711 = vmatprep.mubr.bf16.mxu0 0
        %1712 = vmatmul.mubr.bf16.gmra.mrb[0].mxu0 %v1578
        %v1713 = vpop.f32.mrb[0].mxu0
        %v1714 = vadd.f32 %v1409, %v1713
        %v1715 = vpop.f32.mrb[0].mxu0
        %v1716 = vpop.f32.mrb[0].mxu0
        %v1717 = vadd.f32 %v1412, %v1716
        %v1718 = vpop.f32.mrb[0].mxu0
        %1719 = vmatprep.mubr.bf16.mxu0 0
        %1720 = vmatmul.mubr.bf16.gmra.mrb[0].mxu0 %v1579
        %v1721 = vpop.f32.mrb[0].mxu0
        %v1722 = vadd.f32 %v1417, %v1721
        %v1723 = vpop.f32.mrb[0].mxu0
        %v1724 = vpop.f32.mrb[0].mxu0
        %v1725 = vadd.f32 %v1420, %v1724
        %v1726 = vpop.f32.mrb[0].mxu0
        %1727 = vmatprep.mubr.bf16.mxu0 0
        %1728 = vmatmul.mubr.bf16.gmra.mrb[0].mxu0 %v1580
        %v1729 = vpop.f32.mrb[0].mxu0
        %v1730 = vadd.f32 %v1425, %v1729
        %v1731 = vpop.f32.mrb[0].mxu0
        %v1732 = vpop.f32.mrb[0].mxu0
        %v1733 = vadd.f32 %v1428, %v1732
        %v1734 = vpop.f32.mrb[0].mxu0
        %1735 = vmatprep.mubr.bf16.mxu0 0
        %1736 = vmatmul.mubr.bf16.gmra.mrb[0].mxu0 %v1581
        %v1737 = vpop.f32.mrb[0].mxu0
        %v1738 = vadd.f32 %v1433, %v1737
        %v1739 = vpop.f32.mrb[0].mxu0
        %v1740 = vpop.f32.mrb[0].mxu0
        %v1741 = vadd.f32 %v1436, %v1740
        %v1742 = vpop.f32.mrb[0].mxu0
        %1743 = vmatprep.mubr.bf16.mxu0 0
        %1744 = vmatmul.mubr.bf16.gmra.mrb[0].mxu0 %v1582
        %v1745 = vpop.f32.mrb[0].mxu0
        %v1746 = vadd.f32 %v1441, %v1745
        %v1747 = vpop.f32.mrb[0].mxu0
        %v1748 = vpop.f32.mrb[0].mxu0
        %v1749 = vadd.f32 %v1444, %v1748
        %v1750 = vpop.f32.mrb[0].mxu0
        %1751 = vmatprep.mubr.bf16.mxu0 0
        %1752 = vmatmul.mubr.bf16.gmra.mrb[0].mxu0 %v1583
        %v1753 = vpop.f32.mrb[0].mxu0
        %v1754 = vadd.f32 %v1449, %v1753
        %v1755 = vpop.f32.mrb[0].mxu0
        %v1756 = vpop.f32.mrb[0].mxu0
        %v1757 = vadd.f32 %v1452, %v1756
        %v1758 = vpop.f32.mrb[0].mxu0
        %1759 = vmatprep.mubr.bf16.mxu0 0
        %1760 = vmatmul.mubr.bf16.gmra.mrb[0].mxu0 %v1584
        %v1761 = vpop.f32.mrb[0].mxu0
        %v1762 = vadd.f32 %v1457, %v1761
        %v1763 = vpop.f32.mrb[0].mxu0
        %v1764 = vpop.f32.mrb[0].mxu0
        %v1765 = vadd.f32 %v1460, %v1764
        %v1766 = vpop.f32.mrb[0].mxu0
        %1767 = vmatprep.mubr.bf16.mxu0 0
        %1768 = vmatmul.mubr.bf16.gmra.mrb[0].mxu0 %v1585
        %v1769 = vpop.f32.mrb[0].mxu0
        %v1770 = vadd.f32 %v1465, %v1769
        %v1771 = vpop.f32.mrb[0].mxu0
        %v1772 = vpop.f32.mrb[0].mxu0
        %v1773 = vadd.f32 %v1468, %v1772
        %v1774 = vpop.f32.mrb[0].mxu0
        %1775 = vmatprep.mubr.bf16.mxu0 0
        %1776 = vmatmul.mubr.bf16.gmra.mrb[0].mxu0 %v1586
        %v1777 = vpop.f32.mrb[0].mxu0
        %v1778 = vadd.f32 %v1473, %v1777
        %v1779 = vpop.f32.mrb[0].mxu0
        %v1780 = vpop.f32.mrb[0].mxu0
        %v1781 = vadd.f32 %v1476, %v1780
        %v1782 = vpop.f32.mrb[0].mxu0
        %1783 = vmatprep.mubr.bf16.mxu0 0
        %1784 = vmatmul.mubr.bf16.gmra.mrb[0].mxu0 %v1587
        %v1785 = vpop.f32.mrb[0].mxu0
        %v1786 = vadd.f32 %v1481, %v1785
        %v1787 = vpop.f32.mrb[0].mxu0
        %v1788 = vpop.f32.mrb[0].mxu0
        %v1789 = vadd.f32 %v1484, %v1788
        %v1790 = vpop.f32.mrb[0].mxu0
        %1791 = vmatprep.mubr.bf16.mxu0 0
        %1792 = vmatmul.mubr.bf16.gmra.mrb[0].mxu0 %v1588
        %v1793 = vpop.f32.mrb[0].mxu0
        %v1794 = vadd.f32 %v1489, %v1793
        %v1795 = vpop.f32.mrb[0].mxu0
        %v1796 = vpop.f32.mrb[0].mxu0
        %v1797 = vadd.f32 %v1492, %v1796
        %v1798 = vpop.f32.mrb[0].mxu0
        %1799 = vmatprep.mubr.bf16.mxu0 0
        %1800 = vmatmul.mubr.bf16.gmra.mrb[0].mxu0 %v1589
        %v1801 = vpop.f32.mrb[0].mxu0
        %v1802 = vadd.f32 %v1497, %v1801
        %v1803 = vpop.f32.mrb[0].mxu0
        %v1804 = vpop.f32.mrb[0].mxu0
        %v1805 = vadd.f32 %v1500, %v1804
        %v1806 = vpop.f32.mrb[0].mxu0
        %1807 = vmatprep.mubr.bf16.mxu0 0
        %1808 = vmatmul.mubr.bf16.gmra.mrb[0].mxu0 %v1590
        %v1809 = vpop.f32.mrb[0].mxu0
        %v1810 = vadd.f32 %v1505, %v1809
        %v1811 = vpop.f32.mrb[0].mxu0
        %v1812 = vpop.f32.mrb[0].mxu0
        %v1813 = vadd.f32 %v1508, %v1812
        %v1814 = vpop.f32.mrb[0].mxu0
        %1815 = vdwg.mxu0
        %v1816 = vld [vmem:[#allocation2] sm:$0xe]
        %v1817 = vld [vmem:[#allocation2 + $0xc] sm:$0xe]
        %v1818 = vld [vmem:[#allocation2 + $0x18] sm:$0xe]
        %v1819 = vld [vmem:[#allocation2 + $0x24] sm:$0xe]
        %v1820 = vld [vmem:[#allocation2 + $0x30] sm:$0xe]
        %v1821 = vld [vmem:[#allocation2 + $0x3c] sm:$0xe]
        %v1822 = vld [vmem:[#allocation2 + $0x48] sm:$0xe]
        %v1823 = vld [vmem:[#allocation2 + $0x54] sm:$0xe]
        %v1824 = vld [vmem:[#allocation2 + $0x60] sm:$0xe]
        %v1825 = vld [vmem:[#allocation2 + $0x6c] sm:$0xe]
        %v1826 = vld [vmem:[#allocation2 + $0x78] sm:$0xe]
        %v1827 = vld [vmem:[#allocation2 + $0x84] sm:$0xe]
        %v1828 = vld [vmem:[#allocation2 + $0x90] sm:$0xe]
        %v1829 = vld [vmem:[#allocation2 + $0x9c] sm:$0xe]
        %v1830 = vld [vmem:[#allocation2 + $0xa8] sm:$0xe]
        %v1831 = vld [vmem:[#allocation2 + $0xb4] sm:$0xe]
        %vm1864 = vcmask 1042432
        %vm1865 = vcmask 1046532
        %vm1866 = vmor %vm1864, %vm1865
        %v1867 = vrot.slane %v1816, 5
        %v1868 = vrot.slane %v1867, 4
        %v1869 = vrot.slane %v771, 5
        %v1870 = vsel %vm1866, %v1868, %v1869
        %v1871 = vrot.slane %v1869, 4
        %v1872 = vrot.slane %v818, 5
        %v1873 = vsel %vm1866, %v1871, %v1872
        %v1874 = vrot.slane %v1817, 5
        %v1875 = vrot.slane %v1874, 4
        %v1876 = vrot.slane %v773, 5
        %v1877 = vsel %vm1866, %v1875, %v1876
        %v1878 = vrot.slane %v1876, 4
        %v1879 = vrot.slane %v819, 5
        %v1880 = vsel %vm1866, %v1878, %v1879
        %v1881 = vrot.slane %v1818, 5
        %v1882 = vrot.slane %v1881, 4
        %v1883 = vrot.slane %v775, 5
        %v1884 = vsel %vm1866, %v1882, %v1883
        %v1885 = vrot.slane %v1883, 4
        %v1886 = vrot.slane %v820, 5
        %v1887 = vsel %vm1866, %v1885, %v1886
        %v1888 = vrot.slane %v1819, 5
        %v1889 = vrot.slane %v1888, 4
        %v1890 = vrot.slane %v777, 5
        %v1891 = vsel %vm1866, %v1889, %v1890
        %v1892 = vrot.slane %v1890, 4
        %v1893 = vrot.slane %v821, 5
        %v1894 = vsel %vm1866, %v1892, %v1893
        %v1895 = vrot.slane %v1820, 5
        %v1896 = vrot.slane %v1895, 4
        %v1897 = vrot.slane %v779, 5
        %v1898 = vsel %vm1866, %v1896, %v1897
        %v1899 = vrot.slane %v1897, 4
        %v1900 = vrot.slane %v822, 5
        %v1901 = vsel %vm1866, %v1899, %v1900
        %v1902 = vrot.slane %v1821, 5
        %v1903 = vrot.slane %v1902, 4
        %v1904 = vrot.slane %v781, 5
        %v1905 = vsel %vm1866, %v1903, %v1904
        %v1906 = vrot.slane %v1904, 4
        %v1907 = vrot.slane %v823, 5
        %v1908 = vsel %vm1866, %v1906, %v1907
        %v1909 = vrot.slane %v1822, 5
        %v1910 = vrot.slane %v1909, 4
        %v1911 = vrot.slane %v783, 5
        %v1912 = vsel %vm1866, %v1910, %v1911
        %v1913 = vrot.slane %v1911, 4
        %v1914 = vrot.slane %v824, 5
        %v1915 = vsel %vm1866, %v1913, %v1914
        %v1916 = vrot.slane %v1823, 5
        %v1917 = vrot.slane %v1916, 4
        %v1918 = vrot.slane %v785, 5
        %v1919 = vsel %vm1866, %v1917, %v1918
        %v1920 = vrot.slane %v1918, 4
        %v1921 = vrot.slane %v825, 5
        %v1922 = vsel %vm1866, %v1920, %v1921
        %v1923 = vrot.slane %v1824, 5
        %v1924 = vrot.slane %v1923, 4
        %v1925 = vrot.slane %v787, 5
        %v1926 = vsel %vm1866, %v1924, %v1925
        %v1927 = vrot.slane %v1925, 4
        %v1928 = vrot.slane %v826, 5
        %v1929 = vsel %vm1866, %v1927, %v1928
        %v1930 = vrot.slane %v1825, 5
        %v1931 = vrot.slane %v1930, 4
        %v1932 = vrot.slane %v789, 5
        %v1933 = vsel %vm1866, %v1931, %v1932
        %v1934 = vrot.slane %v1932, 4
        %v1935 = vrot.slane %v827, 5
        %v1936 = vsel %vm1866, %v1934, %v1935
        %v1937 = vrot.slane %v1826, 5
        %v1938 = vrot.slane %v1937, 4
        %v1939 = vrot.slane %v791, 5
        %v1940 = vsel %vm1866, %v1938, %v1939
        %v1941 = vrot.slane %v1939, 4
        %v1942 = vrot.slane %v828, 5
        %v1943 = vsel %vm1866, %v1941, %v1942
        %v1944 = vrot.slane %v1827, 5
        %v1945 = vrot.slane %v1944, 4
        %v1946 = vrot.slane %v793, 5
        %v1947 = vsel %vm1866, %v1945, %v1946
        %v1948 = vrot.slane %v1946, 4
        %v1949 = vrot.slane %v829, 5
        %v1950 = vsel %vm1866, %v1948, %v1949
        %v1951 = vrot.slane %v1828, 5
        %v1952 = vrot.slane %v1951, 4
        %v1953 = vrot.slane %v795, 5
        %v1954 = vsel %vm1866, %v1952, %v1953
        %v1955 = vrot.slane %v1953, 4
        %v1956 = vrot.slane %v830, 5
        %v1957 = vsel %vm1866, %v1955, %v1956
        %v1958 = vrot.slane %v1829, 5
        %v1959 = vrot.slane %v1958, 4
        %v1960 = vrot.slane %v797, 5
        %v1961 = vsel %vm1866, %v1959, %v1960
        %v1962 = vrot.slane %v1960, 4
        %v1963 = vrot.slane %v831, 5
        %v1964 = vsel %vm1866, %v1962, %v1963
        %v1965 = vrot.slane %v1830, 5
        %v1966 = vrot.slane %v1965, 4
        %v1967 = vrot.slane %v799, 5
        %v1968 = vsel %vm1866, %v1966, %v1967
        %v1969 = vrot.slane %v1967, 4
        %v1970 = vrot.slane %v832, 5
        %v1971 = vsel %vm1866, %v1969, %v1970
        %v1972 = vrot.slane %v1831, 5
        %v1973 = vrot.slane %v1972, 4
        %v1974 = vrot.slane %v801, 5
        %v1975 = vsel %vm1866, %v1973, %v1974
        %v1976 = vrot.slane %v1974, 4
        %v1977 = vrot.slane %v833, 5
        %v1978 = vsel %vm1866, %v1976, %v1977
        %s1979 = scalar_lea.vmem [#allocation6], 128
        %v1980 = vld [vmem:[%s1979] sm:$0xf]
        %v1981 = vld [vmem:[%s1979 + $0x4] sm:$0xf]
        %v1982 = vld [vmem:[%s1979 + $0x8] sm:$0xf]
        %v1983 = vld [vmem:[%s1979 + $0xc] sm:$0xf]
        %v1984 = vld [vmem:[%s1979 + $0x10] sm:$0xf]
        %v1985 = vld [vmem:[%s1979 + $0x14] sm:$0xf]
        %v1986 = vld [vmem:[%s1979 + $0x18] sm:$0xf]
        %v1987 = vld [vmem:[%s1979 + $0x1c] sm:$0xf]
        %v1988 = vld [vmem:[%s1979 + $0x20] sm:$0xf]
        %v1989 = vld [vmem:[%s1979 + $0x24] sm:$0xf]
        %v1990 = vld [vmem:[%s1979 + $0x28] sm:$0xf]
        %v1991 = vld [vmem:[%s1979 + $0x2c] sm:$0xf]
        %v1992 = vld [vmem:[%s1979 + $0x30] sm:$0xf]
        %v1993 = vld [vmem:[%s1979 + $0x34] sm:$0xf]
        %v1994 = vld [vmem:[%s1979 + $0x38] sm:$0xf]
        %v1995 = vld [vmem:[%s1979 + $0x3c] sm:$0xf]
        %v1996 = vunpack.c.l.b16 %v1870
        %v1997 = vunpack.c.l.b16 %v1873
        %v1998 = vunpack.c.l.b16 %v1877
        %v1999 = vunpack.c.l.b16 %v1880
        %v2000 = vunpack.c.l.b16 %v1884
        %v2001 = vunpack.c.l.b16 %v1887
        %v2002 = vunpack.c.l.b16 %v1891
        %v2003 = vunpack.c.l.b16 %v1894
        %v2004 = vunpack.c.l.b16 %v1898
        %v2005 = vunpack.c.l.b16 %v1901
        %v2006 = vunpack.c.l.b16 %v1905
        %v2007 = vunpack.c.l.b16 %v1908
        %v2008 = vunpack.c.l.b16 %v1912
        %v2009 = vunpack.c.l.b16 %v1915
        %v2010 = vunpack.c.l.b16 %v1919
        %v2011 = vunpack.c.l.b16 %v1922
        %v2012 = vunpack.c.l.b16 %v1926
        %v2013 = vunpack.c.l.b16 %v1929
        %v2014 = vunpack.c.l.b16 %v1933
        %v2015 = vunpack.c.l.b16 %v1936
        %v2016 = vunpack.c.l.b16 %v1940
        %v2017 = vunpack.c.l.b16 %v1943
        %v2018 = vunpack.c.l.b16 %v1947
        %v2019 = vunpack.c.l.b16 %v1950
        %v2020 = vunpack.c.l.b16 %v1954
        %v2021 = vunpack.c.l.b16 %v1957
        %v2022 = vunpack.c.l.b16 %v1961
        %v2023 = vunpack.c.l.b16 %v1964
        %v2024 = vunpack.c.l.b16 %v1968
        %v2025 = vunpack.c.l.b16 %v1971
        %v2026 = vunpack.c.l.b16 %v1975
        %v2027 = vunpack.c.l.b16 %v1978
        %v2028 = vpack.c.b16 %v1997, %v1996
        %v2029 = vpack.c.b16 %v1999, %v1998
        %v2030 = vpack.c.b16 %v2001, %v2000
        %v2031 = vpack.c.b16 %v2003, %v2002
        %v2032 = vpack.c.b16 %v2005, %v2004
        %v2033 = vpack.c.b16 %v2007, %v2006
        %v2034 = vpack.c.b16 %v2009, %v2008
        %v2035 = vpack.c.b16 %v2011, %v2010
        %v2036 = vpack.c.b16 %v2013, %v2012
        %v2037 = vpack.c.b16 %v2015, %v2014
        %v2038 = vpack.c.b16 %v2017, %v2016
        %v2039 = vpack.c.b16 %v2019, %v2018
        %v2040 = vpack.c.b16 %v2021, %v2020
        %v2041 = vpack.c.b16 %v2023, %v2022
        %v2042 = vpack.c.b16 %v2025, %v2024
        %v2043 = vpack.c.b16 %v2027, %v2026
        %v2076 = vunpack.c.l.b16 %v1980
        %v2077 = vunpack.c.l.b16 %v1981
        %v2078 = vunpack.c.l.b16 %v1982
        %v2079 = vunpack.c.l.b16 %v1983
        %v2080 = vunpack.c.l.b16 %v1984
        %v2081 = vunpack.c.l.b16 %v1985
        %v2082 = vunpack.c.l.b16 %v1986
        %v2083 = vunpack.c.l.b16 %v1987
        %v2084 = vunpack.c.l.b16 %v1988
        %v2085 = vunpack.c.l.b16 %v1989
        %v2086 = vunpack.c.l.b16 %v1990
        %v2087 = vunpack.c.l.b16 %v1991
        %v2088 = vunpack.c.l.b16 %v1992
        %v2089 = vunpack.c.l.b16 %v1993
        %v2090 = vunpack.c.l.b16 %v1994
        %v2091 = vunpack.c.l.b16 %v1995
        %v2092 = vpack.c.b16 %v2077, %v2076
        %v2093 = vpack.c.b16 %v2079, %v2078
        %v2094 = vpack.c.b16 %v2081, %v2080
        %v2095 = vpack.c.b16 %v2083, %v2082
        %v2096 = vpack.c.b16 %v2085, %v2084
        %v2097 = vpack.c.b16 %v2087, %v2086
        %v2098 = vpack.c.b16 %v2089, %v2088
        %v2099 = vpack.c.b16 %v2091, %v2090
        %2108 = vmatprep.subr.bf16.mxu0 0
        %2109 = vmatpush1.bf16.msra.mxu0 %v2092
        %2110 = vmatprep.subr.bf16.mxu0 0
        %2111 = vmatpush1.bf16.msra.mxu0 %v2093
        %2112 = vmatprep.subr.bf16.mxu0 0
        %2113 = vmatpush1.bf16.msra.mxu0 %v2094
        %2114 = vmatprep.subr.bf16.mxu0 0
        %2115 = vmatpush1.bf16.msra.mxu0 %v2095
        %2116 = vmatprep.subr.bf16.mxu0 0
        %2117 = vmatpush1.bf16.msra.mxu0 %v2096
        %2118 = vmatprep.subr.bf16.mxu0 0
        %2119 = vmatpush1.bf16.msra.mxu0 %v2097
        %2120 = vmatprep.subr.bf16.mxu0 0
        %2121 = vmatpush1.bf16.msra.mxu0 %v2098
        %2122 = vmatprep.subr.bf16.mxu0 0
        %2123 = vmatpush1.bf16.msra.mxu0 %v2099
        %2124 = vmatprep.subr.bf16.mxu0 0
        %2125 = vmatpush1.bf16.msra.mxu0 0
        %2126 = vmatprep.subr.bf16.mxu0 0
        %2127 = vmatpush1.bf16.msra.mxu0 0
        %2128 = vmatprep.subr.bf16.mxu0 0
        %2129 = vmatpush1.bf16.msra.mxu0 0
        %2130 = vmatprep.subr.bf16.mxu0 0
        %2131 = vmatpush1.bf16.msra.mxu0 0
        %2132 = vmatprep.subr.bf16.mxu0 0
        %2133 = vmatpush1.bf16.msra.mxu0 0
        %2134 = vmatprep.subr.bf16.mxu0 0
        %2135 = vmatpush1.bf16.msra.mxu0 0
        %2136 = vmatprep.subr.bf16.mxu0 0
        %2137 = vmatpush1.bf16.msra.mxu0 0
        %2138 = vmatprep.subr.bf16.mxu0 0
        %2139 = vmatpush1.bf16.msra.mxu0 0
        %2140 = vmatprep.mubr.bf16.mxu0 0
        %2141 = vmatmul.mubr.bf16.gmra.mrb[0].mxu0 %v2028
        %v2142 = vpop.f32.mrb[0].mxu0
        %v2143 = vadd.f32 0.0, %v2142
        %v2144 = vpop.f32.mrb[0].mxu0
        %v2145 = vpop.f32.mrb[0].mxu0
        %v2146 = vadd.f32 0.0, %v2145
        %v2147 = vpop.f32.mrb[0].mxu0
        %2148 = vmatprep.mubr.bf16.mxu0 0
        %2149 = vmatmul.mubr.bf16.gmra.mrb[0].mxu0 %v2029
        %v2150 = vpop.f32.mrb[0].mxu0
        %v2151 = vadd.f32 0.0, %v2150
        %v2152 = vpop.f32.mrb[0].mxu0
        %v2153 = vpop.f32.mrb[0].mxu0
        %v2154 = vadd.f32 0.0, %v2153
        %v2155 = vpop.f32.mrb[0].mxu0
        %2156 = vmatprep.mubr.bf16.mxu0 0
        %2157 = vmatmul.mubr.bf16.gmra.mrb[0].mxu0 %v2030
        %v2158 = vpop.f32.mrb[0].mxu0
        %v2159 = vadd.f32 0.0, %v2158
        %v2160 = vpop.f32.mrb[0].mxu0
        %v2161 = vpop.f32.mrb[0].mxu0
        %v2162 = vadd.f32 0.0, %v2161
        %v2163 = vpop.f32.mrb[0].mxu0
        %2164 = vmatprep.mubr.bf16.mxu0 0
        %2165 = vmatmul.mubr.bf16.gmra.mrb[0].mxu0 %v2031
        %v2166 = vpop.f32.mrb[0].mxu0
        %v2167 = vadd.f32 0.0, %v2166
        %v2168 = vpop.f32.mrb[0].mxu0
        %v2169 = vpop.f32.mrb[0].mxu0
        %v2170 = vadd.f32 0.0, %v2169
        %v2171 = vpop.f32.mrb[0].mxu0
        %2172 = vmatprep.mubr.bf16.mxu0 0
        %2173 = vmatmul.mubr.bf16.gmra.mrb[0].mxu0 %v2032
        %v2174 = vpop.f32.mrb[0].mxu0
        %v2175 = vadd.f32 0.0, %v2174
        %v2176 = vpop.f32.mrb[0].mxu0
        %v2177 = vpop.f32.mrb[0].mxu0
        %v2178 = vadd.f32 0.0, %v2177
        %v2179 = vpop.f32.mrb[0].mxu0
        %2180 = vmatprep.mubr.bf16.mxu0 0
        %2181 = vmatmul.mubr.bf16.gmra.mrb[0].mxu0 %v2033
        %v2182 = vpop.f32.mrb[0].mxu0
        %v2183 = vadd.f32 0.0, %v2182
        %v2184 = vpop.f32.mrb[0].mxu0
        %v2185 = vpop.f32.mrb[0].mxu0
        %v2186 = vadd.f32 0.0, %v2185
        %v2187 = vpop.f32.mrb[0].mxu0
        %2188 = vmatprep.mubr.bf16.mxu0 0
        %2189 = vmatmul.mubr.bf16.gmra.mrb[0].mxu0 %v2034
        %v2190 = vpop.f32.mrb[0].mxu0
        %v2191 = vadd.f32 0.0, %v2190
        %v2192 = vpop.f32.mrb[0].mxu0
        %v2193 = vpop.f32.mrb[0].mxu0
        %v2194 = vadd.f32 0.0, %v2193
        %v2195 = vpop.f32.mrb[0].mxu0
        %2196 = vmatprep.mubr.bf16.mxu0 0
        %2197 = vmatmul.mubr.bf16.gmra.mrb[0].mxu0 %v2035
        %v2198 = vpop.f32.mrb[0].mxu0
        %v2199 = vadd.f32 0.0, %v2198
        %v2200 = vpop.f32.mrb[0].mxu0
        %v2201 = vpop.f32.mrb[0].mxu0
        %v2202 = vadd.f32 0.0, %v2201
        %v2203 = vpop.f32.mrb[0].mxu0
        %2204 = vmatprep.mubr.bf16.mxu0 0
        %2205 = vmatmul.mubr.bf16.gmra.mrb[0].mxu0 %v2036
        %v2206 = vpop.f32.mrb[0].mxu0
        %v2207 = vadd.f32 0.0, %v2206
        %v2208 = vpop.f32.mrb[0].mxu0
        %v2209 = vpop.f32.mrb[0].mxu0
        %v2210 = vadd.f32 0.0, %v2209
        %v2211 = vpop.f32.mrb[0].mxu0
        %2212 = vmatprep.mubr.bf16.mxu0 0
        %2213 = vmatmul.mubr.bf16.gmra.mrb[0].mxu0 %v2037
        %v2214 = vpop.f32.mrb[0].mxu0
        %v2215 = vadd.f32 0.0, %v2214
        %v2216 = vpop.f32.mrb[0].mxu0
        %v2217 = vpop.f32.mrb[0].mxu0
        %v2218 = vadd.f32 0.0, %v2217
        %v2219 = vpop.f32.mrb[0].mxu0
        %2220 = vmatprep.mubr.bf16.mxu0 0
        %2221 = vmatmul.mubr.bf16.gmra.mrb[0].mxu0 %v2038
        %v2222 = vpop.f32.mrb[0].mxu0
        %v2223 = vadd.f32 0.0, %v2222
        %v2224 = vpop.f32.mrb[0].mxu0
        %v2225 = vpop.f32.mrb[0].mxu0
        %v2226 = vadd.f32 0.0, %v2225
        %v2227 = vpop.f32.mrb[0].mxu0
        %2228 = vmatprep.mubr.bf16.mxu0 0
        %2229 = vmatmul.mubr.bf16.gmra.mrb[0].mxu0 %v2039
        %v2230 = vpop.f32.mrb[0].mxu0
        %v2231 = vadd.f32 0.0, %v2230
        %v2232 = vpop.f32.mrb[0].mxu0
        %v2233 = vpop.f32.mrb[0].mxu0
        %v2234 = vadd.f32 0.0, %v2233
        %v2235 = vpop.f32.mrb[0].mxu0
        %2236 = vmatprep.mubr.bf16.mxu0 0
        %2237 = vmatmul.mubr.bf16.gmra.mrb[0].mxu0 %v2040
        %v2238 = vpop.f32.mrb[0].mxu0
        %v2239 = vadd.f32 0.0, %v2238
        %v2240 = vpop.f32.mrb[0].mxu0
        %v2241 = vpop.f32.mrb[0].mxu0
        %v2242 = vadd.f32 0.0, %v2241
        %v2243 = vpop.f32.mrb[0].mxu0
        %2244 = vmatprep.mubr.bf16.mxu0 0
        %2245 = vmatmul.mubr.bf16.gmra.mrb[0].mxu0 %v2041
        %v2246 = vpop.f32.mrb[0].mxu0
        %v2247 = vadd.f32 0.0, %v2246
        %v2248 = vpop.f32.mrb[0].mxu0
        %v2249 = vpop.f32.mrb[0].mxu0
        %v2250 = vadd.f32 0.0, %v2249
        %v2251 = vpop.f32.mrb[0].mxu0
        %2252 = vmatprep.mubr.bf16.mxu0 0
        %2253 = vmatmul.mubr.bf16.gmra.mrb[0].mxu0 %v2042
        %v2254 = vpop.f32.mrb[0].mxu0
        %v2255 = vadd.f32 0.0, %v2254
        %v2256 = vpop.f32.mrb[0].mxu0
        %v2257 = vpop.f32.mrb[0].mxu0
        %v2258 = vadd.f32 0.0, %v2257
        %v2259 = vpop.f32.mrb[0].mxu0
        %2260 = vmatprep.mubr.bf16.mxu0 0
        %2261 = vmatmul.mubr.bf16.gmra.mrb[0].mxu0 %v2043
        %v2262 = vpop.f32.mrb[0].mxu0
        %v2263 = vadd.f32 0.0, %v2262
        %v2264 = vpop.f32.mrb[0].mxu0
        %v2265 = vpop.f32.mrb[0].mxu0
        %v2266 = vadd.f32 0.0, %v2265
        %v2267 = vpop.f32.mrb[0].mxu0
        %2268 = vdwg.mxu0
        %v2269 = vadd.f32 %v1690, %v2143
        %v2270 = vadd.f32 %v1693, %v2146
        %v2271 = vadd.f32 %v1698, %v2151
        %v2272 = vadd.f32 %v1701, %v2154
        %v2273 = vadd.f32 %v1706, %v2159
        %v2274 = vadd.f32 %v1709, %v2162
        %v2275 = vadd.f32 %v1714, %v2167
        %v2276 = vadd.f32 %v1717, %v2170
        %v2277 = vadd.f32 %v1722, %v2175
        %v2278 = vadd.f32 %v1725, %v2178
        %v2279 = vadd.f32 %v1730, %v2183
        %v2280 = vadd.f32 %v1733, %v2186
        %v2281 = vadd.f32 %v1738, %v2191
        %v2282 = vadd.f32 %v1741, %v2194
        %v2283 = vadd.f32 %v1746, %v2199
        %v2284 = vadd.f32 %v1749, %v2202
        %v2285 = vadd.f32 %v1754, %v2207
        %v2286 = vadd.f32 %v1757, %v2210
        %v2287 = vadd.f32 %v1762, %v2215
        %v2288 = vadd.f32 %v1765, %v2218
        %v2289 = vadd.f32 %v1770, %v2223
        %v2290 = vadd.f32 %v1773, %v2226
        %v2291 = vadd.f32 %v1778, %v2231
        %v2292 = vadd.f32 %v1781, %v2234
        %v2293 = vadd.f32 %v1786, %v2239
        %v2294 = vadd.f32 %v1789, %v2242
        %v2295 = vadd.f32 %v1794, %v2247
        %v2296 = vadd.f32 %v1797, %v2250
        %v2297 = vadd.f32 %v1802, %v2255
        %v2298 = vadd.f32 %v1805, %v2258
        %v2299 = vadd.f32 %v1810, %v2263
        %v2300 = vadd.f32 %v1813, %v2266
        %v2301 = vld [vmem:[%s721] sm:$0xf]
        %v2302 = vld [vmem:[%s721 + $0x4] sm:$0xf]
        %v2303 = vld [vmem:[%s721 + $0xc] sm:$0xf]
        %v2304 = vld [vmem:[%s721 + $0x10] sm:$0xf]
        %v2305 = vld [vmem:[%s721 + $0x18] sm:$0xf]
        %v2306 = vld [vmem:[%s721 + $0x1c] sm:$0xf]
        %v2307 = vld [vmem:[%s721 + $0x24] sm:$0xf]
        %v2308 = vld [vmem:[%s721 + $0x28] sm:$0xf]
        %v2309 = vld [vmem:[%s721 + $0x30] sm:$0xf]
        %v2310 = vld [vmem:[%s721 + $0x34] sm:$0xf]
        %v2311 = vld [vmem:[%s721 + $0x3c] sm:$0xf]
        %v2312 = vld [vmem:[%s721 + $0x40] sm:$0xf]
        %v2313 = vld [vmem:[%s721 + $0x48] sm:$0xf]
        %v2314 = vld [vmem:[%s721 + $0x4c] sm:$0xf]
        %v2315 = vld [vmem:[%s721 + $0x54] sm:$0xf]
        %v2316 = vld [vmem:[%s721 + $0x58] sm:$0xf]
        %v2317 = vld [vmem:[%s721 + $0x60] sm:$0xf]
        %v2318 = vld [vmem:[%s721 + $0x64] sm:$0xf]
        %v2319 = vld [vmem:[%s721 + $0x6c] sm:$0xf]
        %v2320 = vld [vmem:[%s721 + $0x70] sm:$0xf]
        %v2321 = vld [vmem:[%s721 + $0x78] sm:$0xf]
        %v2322 = vld [vmem:[%s721 + $0x7c] sm:$0xf]
        %v2323 = vld [vmem:[%s721 + $0x84] sm:$0xf]
        %v2324 = vld [vmem:[%s721 + $0x88] sm:$0xf]
        %v2325 = vld [vmem:[%s721 + $0x90] sm:$0xf]
        %v2326 = vld [vmem:[%s721 + $0x94] sm:$0xf]
        %v2327 = vld [vmem:[%s721 + $0x9c] sm:$0xf]
        %v2328 = vld [vmem:[%s721 + $0xa0] sm:$0xf]
        %v2329 = vld [vmem:[%s721 + $0xa8] sm:$0xf]
        %v2330 = vld [vmem:[%s721 + $0xac] sm:$0xf]
        %v2331 = vld [vmem:[%s721 + $0xb4] sm:$0xf]
        %v2332 = vld [vmem:[%s721 + $0xb8] sm:$0xf]
        %s2333 = scalar_lea.vmem [#allocation6], 192
        %v2334 = vld [vmem:[%s2333] sm:$0xf]
        %v2335 = vld [vmem:[%s2333 + $0x4] sm:$0xf]
        %v2336 = vld [vmem:[%s2333 + $0x8] sm:$0xf]
        %v2337 = vld [vmem:[%s2333 + $0xc] sm:$0xf]
        %v2338 = vld [vmem:[%s2333 + $0x10] sm:$0xf]
        %v2339 = vld [vmem:[%s2333 + $0x14] sm:$0xf]
        %v2340 = vld [vmem:[%s2333 + $0x18] sm:$0xf]
        %v2341 = vld [vmem:[%s2333 + $0x1c] sm:$0xf]
        %v2342 = vld [vmem:[%s2333 + $0x20] sm:$0xf]
        %v2343 = vld [vmem:[%s2333 + $0x24] sm:$0xf]
        %v2344 = vld [vmem:[%s2333 + $0x28] sm:$0xf]
        %v2345 = vld [vmem:[%s2333 + $0x2c] sm:$0xf]
        %v2346 = vld [vmem:[%s2333 + $0x30] sm:$0xf]
        %v2347 = vld [vmem:[%s2333 + $0x34] sm:$0xf]
        %v2348 = vld [vmem:[%s2333 + $0x38] sm:$0xf]
        %v2349 = vld [vmem:[%s2333 + $0x3c] sm:$0xf]
        %v2382 = vunpack.c.l.b16 %v2301
        %v2383 = vunpack.c.l.b16 %v2302
        %v2384 = vunpack.c.l.b16 %v2303
        %v2385 = vunpack.c.l.b16 %v2304
        %v2386 = vunpack.c.l.b16 %v2305
        %v2387 = vunpack.c.l.b16 %v2306
        %v2388 = vunpack.c.l.b16 %v2307
        %v2389 = vunpack.c.l.b16 %v2308
        %v2390 = vunpack.c.l.b16 %v2309
        %v2391 = vunpack.c.l.b16 %v2310
        %v2392 = vunpack.c.l.b16 %v2311
        %v2393 = vunpack.c.l.b16 %v2312
        %v2394 = vunpack.c.l.b16 %v2313
        %v2395 = vunpack.c.l.b16 %v2314
        %v2396 = vunpack.c.l.b16 %v2315
        %v2397 = vunpack.c.l.b16 %v2316
        %v2398 = vunpack.c.l.b16 %v2317
        %v2399 = vunpack.c.l.b16 %v2318
        %v2400 = vunpack.c.l.b16 %v2319
        %v2401 = vunpack.c.l.b16 %v2320
        %v2402 = vunpack.c.l.b16 %v2321
        %v2403 = vunpack.c.l.b16 %v2322
        %v2404 = vunpack.c.l.b16 %v2323
        %v2405 = vunpack.c.l.b16 %v2324
        %v2406 = vunpack.c.l.b16 %v2325
        %v2407 = vunpack.c.l.b16 %v2326
        %v2408 = vunpack.c.l.b16 %v2327
        %v2409 = vunpack.c.l.b16 %v2328
        %v2410 = vunpack.c.l.b16 %v2329
        %v2411 = vunpack.c.l.b16 %v2330
        %v2412 = vunpack.c.l.b16 %v2331
        %v2413 = vunpack.c.l.b16 %v2332
        %v2414 = vpack.c.b16 %v2383, %v2382
        %v2415 = vpack.c.b16 %v2385, %v2384
        %v2416 = vpack.c.b16 %v2387, %v2386
        %v2417 = vpack.c.b16 %v2389, %v2388
        %v2418 = vpack.c.b16 %v2391, %v2390
        %v2419 = vpack.c.b16 %v2393, %v2392
        %v2420 = vpack.c.b16 %v2395, %v2394
        %v2421 = vpack.c.b16 %v2397, %v2396
        %v2422 = vpack.c.b16 %v2399, %v2398
        %v2423 = vpack.c.b16 %v2401, %v2400
        %v2424 = vpack.c.b16 %v2403, %v2402
        %v2425 = vpack.c.b16 %v2405, %v2404
        %v2426 = vpack.c.b16 %v2407, %v2406
        %v2427 = vpack.c.b16 %v2409, %v2408
        %v2428 = vpack.c.b16 %v2411, %v2410
        %v2429 = vpack.c.b16 %v2413, %v2412
        %v2462 = vunpack.c.l.b16 %v2334
        %v2463 = vunpack.c.l.b16 %v2335
        %v2464 = vunpack.c.l.b16 %v2336
        %v2465 = vunpack.c.l.b16 %v2337
        %v2466 = vunpack.c.l.b16 %v2338
        %v2467 = vunpack.c.l.b16 %v2339
        %v2468 = vunpack.c.l.b16 %v2340
        %v2469 = vunpack.c.l.b16 %v2341
        %v2470 = vunpack.c.l.b16 %v2342
        %v2471 = vunpack.c.l.b16 %v2343
        %v2472 = vunpack.c.l.b16 %v2344
        %v2473 = vunpack.c.l.b16 %v2345
        %v2474 = vunpack.c.l.b16 %v2346
        %v2475 = vunpack.c.l.b16 %v2347
        %v2476 = vunpack.c.l.b16 %v2348
        %v2477 = vunpack.c.l.b16 %v2349
        %v2478 = vpack.c.b16 %v2463, %v2462
        %v2479 = vpack.c.b16 %v2465, %v2464
        %v2480 = vpack.c.b16 %v2467, %v2466
        %v2481 = vpack.c.b16 %v2469, %v2468
        %v2482 = vpack.c.b16 %v2471, %v2470
        %v2483 = vpack.c.b16 %v2473, %v2472
        %v2484 = vpack.c.b16 %v2475, %v2474
        %v2485 = vpack.c.b16 %v2477, %v2476
        %2494 = vmatprep.subr.bf16.mxu0 0
        %2495 = vmatpush1.bf16.msra.mxu0 %v2478
        %2496 = vmatprep.subr.bf16.mxu0 0
        %2497 = vmatpush1.bf16.msra.mxu0 %v2479
        %2498 = vmatprep.subr.bf16.mxu0 0
        %2499 = vmatpush1.bf16.msra.mxu0 %v2480
        %2500 = vmatprep.subr.bf16.mxu0 0
        %2501 = vmatpush1.bf16.msra.mxu0 %v2481
        %2502 = vmatprep.subr.bf16.mxu0 0
        %2503 = vmatpush1.bf16.msra.mxu0 %v2482
        %2504 = vmatprep.subr.bf16.mxu0 0
        %2505 = vmatpush1.bf16.msra.mxu0 %v2483
        %2506 = vmatprep.subr.bf16.mxu0 0
        %2507 = vmatpush1.bf16.msra.mxu0 %v2484
        %2508 = vmatprep.subr.bf16.mxu0 0
        %2509 = vmatpush1.bf16.msra.mxu0 %v2485
        %2510 = vmatprep.subr.bf16.mxu0 0
        %2511 = vmatpush1.bf16.msra.mxu0 0
        %2512 = vmatprep.subr.bf16.mxu0 0
        %2513 = vmatpush1.bf16.msra.mxu0 0
        %2514 = vmatprep.subr.bf16.mxu0 0
        %2515 = vmatpush1.bf16.msra.mxu0 0
        %2516 = vmatprep.subr.bf16.mxu0 0
        %2517 = vmatpush1.bf16.msra.mxu0 0
        %2518 = vmatprep.subr.bf16.mxu0 0
        %2519 = vmatpush1.bf16.msra.mxu0 0
        %2520 = vmatprep.subr.bf16.mxu0 0
        %2521 = vmatpush1.bf16.msra.mxu0 0
        %2522 = vmatprep.subr.bf16.mxu0 0
        %2523 = vmatpush1.bf16.msra.mxu0 0
        %2524 = vmatprep.subr.bf16.mxu0 0
        %2525 = vmatpush1.bf16.msra.mxu0 0
        %2526 = vmatprep.mubr.bf16.mxu0 0
        %2527 = vmatmul.mubr.bf16.gmra.mrb[0].mxu0 %v2414
        %v2528 = vpop.f32.mrb[0].mxu0
        %v2529 = vadd.f32 0.0, %v2528
        %v2530 = vpop.f32.mrb[0].mxu0
        %v2531 = vpop.f32.mrb[0].mxu0
        %v2532 = vadd.f32 0.0, %v2531
        %v2533 = vpop.f32.mrb[0].mxu0
        %2534 = vmatprep.mubr.bf16.mxu0 0
        %2535 = vmatmul.mubr.bf16.gmra.mrb[0].mxu0 %v2415
        %v2536 = vpop.f32.mrb[0].mxu0
        %v2537 = vadd.f32 0.0, %v2536
        %v2538 = vpop.f32.mrb[0].mxu0
        %v2539 = vpop.f32.mrb[0].mxu0
        %v2540 = vadd.f32 0.0, %v2539
        %v2541 = vpop.f32.mrb[0].mxu0
        %2542 = vmatprep.mubr.bf16.mxu0 0
        %2543 = vmatmul.mubr.bf16.gmra.mrb[0].mxu0 %v2416
        %v2544 = vpop.f32.mrb[0].mxu0
        %v2545 = vadd.f32 0.0, %v2544
        %v2546 = vpop.f32.mrb[0].mxu0
        %v2547 = vpop.f32.mrb[0].mxu0
        %v2548 = vadd.f32 0.0, %v2547
        %v2549 = vpop.f32.mrb[0].mxu0
        %2550 = vmatprep.mubr.bf16.mxu0 0
        %2551 = vmatmul.mubr.bf16.gmra.mrb[0].mxu0 %v2417
        %v2552 = vpop.f32.mrb[0].mxu0
        %v2553 = vadd.f32 0.0, %v2552
        %v2554 = vpop.f32.mrb[0].mxu0
        %v2555 = vpop.f32.mrb[0].mxu0
        %v2556 = vadd.f32 0.0, %v2555
        %v2557 = vpop.f32.mrb[0].mxu0
        %2558 = vmatprep.mubr.bf16.mxu0 0
        %2559 = vmatmul.mubr.bf16.gmra.mrb[0].mxu0 %v2418
        %v2560 = vpop.f32.mrb[0].mxu0
        %v2561 = vadd.f32 0.0, %v2560
        %v2562 = vpop.f32.mrb[0].mxu0
        %v2563 = vpop.f32.mrb[0].mxu0
        %v2564 = vadd.f32 0.0, %v2563
        %v2565 = vpop.f32.mrb[0].mxu0
        %2566 = vmatprep.mubr.bf16.mxu0 0
        %2567 = vmatmul.mubr.bf16.gmra.mrb[0].mxu0 %v2419
        %v2568 = vpop.f32.mrb[0].mxu0
        %v2569 = vadd.f32 0.0, %v2568
        %v2570 = vpop.f32.mrb[0].mxu0
        %v2571 = vpop.f32.mrb[0].mxu0
        %v2572 = vadd.f32 0.0, %v2571
        %v2573 = vpop.f32.mrb[0].mxu0
        %2574 = vmatprep.mubr.bf16.mxu0 0
        %2575 = vmatmul.mubr.bf16.gmra.mrb[0].mxu0 %v2420
        %v2576 = vpop.f32.mrb[0].mxu0
        %v2577 = vadd.f32 0.0, %v2576
        %v2578 = vpop.f32.mrb[0].mxu0
        %v2579 = vpop.f32.mrb[0].mxu0
        %v2580 = vadd.f32 0.0, %v2579
        %v2581 = vpop.f32.mrb[0].mxu0
        %2582 = vmatprep.mubr.bf16.mxu0 0
        %2583 = vmatmul.mubr.bf16.gmra.mrb[0].mxu0 %v2421
        %v2584 = vpop.f32.mrb[0].mxu0
        %v2585 = vadd.f32 0.0, %v2584
        %v2586 = vpop.f32.mrb[0].mxu0
        %v2587 = vpop.f32.mrb[0].mxu0
        %v2588 = vadd.f32 0.0, %v2587
        %v2589 = vpop.f32.mrb[0].mxu0
        %2590 = vmatprep.mubr.bf16.mxu0 0
        %2591 = vmatmul.mubr.bf16.gmra.mrb[0].mxu0 %v2422
        %v2592 = vpop.f32.mrb[0].mxu0
        %v2593 = vadd.f32 0.0, %v2592
        %v2594 = vpop.f32.mrb[0].mxu0
        %v2595 = vpop.f32.mrb[0].mxu0
        %v2596 = vadd.f32 0.0, %v2595
        %v2597 = vpop.f32.mrb[0].mxu0
        %2598 = vmatprep.mubr.bf16.mxu0 0
        %2599 = vmatmul.mubr.bf16.gmra.mrb[0].mxu0 %v2423
        %v2600 = vpop.f32.mrb[0].mxu0
        %v2601 = vadd.f32 0.0, %v2600
        %v2602 = vpop.f32.mrb[0].mxu0
        %v2603 = vpop.f32.mrb[0].mxu0
        %v2604 = vadd.f32 0.0, %v2603
        %v2605 = vpop.f32.mrb[0].mxu0
        %2606 = vmatprep.mubr.bf16.mxu0 0
        %2607 = vmatmul.mubr.bf16.gmra.mrb[0].mxu0 %v2424
        %v2608 = vpop.f32.mrb[0].mxu0
        %v2609 = vadd.f32 0.0, %v2608
        %v2610 = vpop.f32.mrb[0].mxu0
        %v2611 = vpop.f32.mrb[0].mxu0
        %v2612 = vadd.f32 0.0, %v2611
        %v2613 = vpop.f32.mrb[0].mxu0
        %2614 = vmatprep.mubr.bf16.mxu0 0
        %2615 = vmatmul.mubr.bf16.gmra.mrb[0].mxu0 %v2425
        %v2616 = vpop.f32.mrb[0].mxu0
        %v2617 = vadd.f32 0.0, %v2616
        %v2618 = vpop.f32.mrb[0].mxu0
        %v2619 = vpop.f32.mrb[0].mxu0
        %v2620 = vadd.f32 0.0, %v2619
        %v2621 = vpop.f32.mrb[0].mxu0
        %2622 = vmatprep.mubr.bf16.mxu0 0
        %2623 = vmatmul.mubr.bf16.gmra.mrb[0].mxu0 %v2426
        %v2624 = vpop.f32.mrb[0].mxu0
        %v2625 = vadd.f32 0.0, %v2624
        %v2626 = vpop.f32.mrb[0].mxu0
        %v2627 = vpop.f32.mrb[0].mxu0
        %v2628 = vadd.f32 0.0, %v2627
        %v2629 = vpop.f32.mrb[0].mxu0
        %2630 = vmatprep.mubr.bf16.mxu0 0
        %2631 = vmatmul.mubr.bf16.gmra.mrb[0].mxu0 %v2427
        %v2632 = vpop.f32.mrb[0].mxu0
        %v2633 = vadd.f32 0.0, %v2632
        %v2634 = vpop.f32.mrb[0].mxu0
        %v2635 = vpop.f32.mrb[0].mxu0
        %v2636 = vadd.f32 0.0, %v2635
        %v2637 = vpop.f32.mrb[0].mxu0
        %2638 = vmatprep.mubr.bf16.mxu0 0
        %2639 = vmatmul.mubr.bf16.gmra.mrb[0].mxu0 %v2428
        %v2640 = vpop.f32.mrb[0].mxu0
        %v2641 = vadd.f32 0.0, %v2640
        %v2642 = vpop.f32.mrb[0].mxu0
        %v2643 = vpop.f32.mrb[0].mxu0
        %v2644 = vadd.f32 0.0, %v2643
        %v2645 = vpop.f32.mrb[0].mxu0
        %2646 = vmatprep.mubr.bf16.mxu0 0
        %2647 = vmatmul.mubr.bf16.gmra.mrb[0].mxu0 %v2429
        %v2648 = vpop.f32.mrb[0].mxu0
        %v2649 = vadd.f32 0.0, %v2648
        %v2650 = vpop.f32.mrb[0].mxu0
        %v2651 = vpop.f32.mrb[0].mxu0
        %v2652 = vadd.f32 0.0, %v2651
        %v2653 = vpop.f32.mrb[0].mxu0
        %2654 = vdwg.mxu0
        %v2655 = vadd.f32 %v2269, %v2529
        %v2656 = vadd.f32 %v2270, %v2532
        %v2657 = vadd.f32 %v2271, %v2537
        %v2658 = vadd.f32 %v2272, %v2540
        %v2659 = vadd.f32 %v2273, %v2545
        %v2660 = vadd.f32 %v2274, %v2548
        %v2661 = vadd.f32 %v2275, %v2553
        %v2662 = vadd.f32 %v2276, %v2556
        %v2663 = vadd.f32 %v2277, %v2561
        %v2664 = vadd.f32 %v2278, %v2564
        %v2665 = vadd.f32 %v2279, %v2569
        %v2666 = vadd.f32 %v2280, %v2572
        %v2667 = vadd.f32 %v2281, %v2577
        %v2668 = vadd.f32 %v2282, %v2580
        %v2669 = vadd.f32 %v2283, %v2585
        %v2670 = vadd.f32 %v2284, %v2588
        %v2671 = vadd.f32 %v2285, %v2593
        %v2672 = vadd.f32 %v2286, %v2596
        %v2673 = vadd.f32 %v2287, %v2601
        %v2674 = vadd.f32 %v2288, %v2604
        %v2675 = vadd.f32 %v2289, %v2609
        %v2676 = vadd.f32 %v2290, %v2612
        %v2677 = vadd.f32 %v2291, %v2617
        %v2678 = vadd.f32 %v2292, %v2620
        %v2679 = vadd.f32 %v2293, %v2625
        %v2680 = vadd.f32 %v2294, %v2628
        %v2681 = vadd.f32 %v2295, %v2633
        %v2682 = vadd.f32 %v2296, %v2636
        %v2683 = vadd.f32 %v2297, %v2641
        %v2684 = vadd.f32 %v2298, %v2644
        %v2685 = vadd.f32 %v2299, %v2649
        %v2686 = vadd.f32 %v2300, %v2652
        %v2687 = vld [vmem:[%s721] sm:$0xf]
        %v2688 = vld [vmem:[%s721 + $0x4] sm:$0xf]
        %v2689 = vld [vmem:[%s721 + $0x8] sm:$0x1]
        %v2690 = vld [vmem:[%s721 + $0xc] sm:$0xf]
        %v2691 = vld [vmem:[%s721 + $0x10] sm:$0xf]
        %v2692 = vld [vmem:[%s721 + $0x14] sm:$0x1]
        %v2693 = vld [vmem:[%s721 + $0x18] sm:$0xf]
        %v2694 = vld [vmem:[%s721 + $0x1c] sm:$0xf]
        %v2695 = vld [vmem:[%s721 + $0x20] sm:$0x1]
        %v2696 = vld [vmem:[%s721 + $0x24] sm:$0xf]
        %v2697 = vld [vmem:[%s721 + $0x28] sm:$0xf]
        %v2698 = vld [vmem:[%s721 + $0x2c] sm:$0x1]
        %v2699 = vld [vmem:[%s721 + $0x30] sm:$0xf]
        %v2700 = vld [vmem:[%s721 + $0x34] sm:$0xf]
        %v2701 = vld [vmem:[%s721 + $0x38] sm:$0x1]
        %v2702 = vld [vmem:[%s721 + $0x3c] sm:$0xf]
        %v2703 = vld [vmem:[%s721 + $0x40] sm:$0xf]
        %v2704 = vld [vmem:[%s721 + $0x44] sm:$0x1]
        %v2705 = vld [vmem:[%s721 + $0x48] sm:$0xf]
        %v2706 = vld [vmem:[%s721 + $0x4c] sm:$0xf]
        %v2707 = vld [vmem:[%s721 + $0x50] sm:$0x1]
        %v2708 = vld [vmem:[%s721 + $0x54] sm:$0xf]
        %v2709 = vld [vmem:[%s721 + $0x58] sm:$0xf]
        %v2710 = vld [vmem:[%s721 + $0x5c] sm:$0x1]
        %v2711 = vld [vmem:[%s721 + $0x60] sm:$0xf]
        %v2712 = vld [vmem:[%s721 + $0x64] sm:$0xf]
        %v2713 = vld [vmem:[%s721 + $0x68] sm:$0x1]
        %v2714 = vld [vmem:[%s721 + $0x6c] sm:$0xf]
        %v2715 = vld [vmem:[%s721 + $0x70] sm:$0xf]
        %v2716 = vld [vmem:[%s721 + $0x74] sm:$0x1]
        %v2717 = vld [vmem:[%s721 + $0x78] sm:$0xf]
        %v2718 = vld [vmem:[%s721 + $0x7c] sm:$0xf]
        %v2719 = vld [vmem:[%s721 + $0x80] sm:$0x1]
        %v2720 = vld [vmem:[%s721 + $0x84] sm:$0xf]
        %v2721 = vld [vmem:[%s721 + $0x88] sm:$0xf]
        %v2722 = vld [vmem:[%s721 + $0x8c] sm:$0x1]
        %v2723 = vld [vmem:[%s721 + $0x90] sm:$0xf]
        %v2724 = vld [vmem:[%s721 + $0x94] sm:$0xf]
        %v2725 = vld [vmem:[%s721 + $0x98] sm:$0x1]
        %v2726 = vld [vmem:[%s721 + $0x9c] sm:$0xf]
        %v2727 = vld [vmem:[%s721 + $0xa0] sm:$0xf]
        %v2728 = vld [vmem:[%s721 + $0xa4] sm:$0x1]
        %v2729 = vld [vmem:[%s721 + $0xa8] sm:$0xf]
        %v2730 = vld [vmem:[%s721 + $0xac] sm:$0xf]
        %v2731 = vld [vmem:[%s721 + $0xb0] sm:$0x1]
        %v2732 = vld [vmem:[%s721 + $0xb4] sm:$0xf]
        %v2733 = vld [vmem:[%s721 + $0xb8] sm:$0xf]
        %v2734 = vld [vmem:[%s721 + $0xbc] sm:$0x1]
        %v2736 = vshrl.u32 %v2687, 16
        %v2738 = vrot.slane %v2736, 4
        %v2739 = vshll.u32 %v2687, 16
        %v2741 = vrot.slane %v2739, 5
        %v2742 = vor.u32 %v2738, %v2741
        %v2743 = vrot.slane %v2742, 4
        %v2745 = vshll.u32 %v2688, 16
        %v2747 = vrot.slane %v2745, 5
        %v2748 = vsel %vm836, %v2743, %v2747
        %v2749 = vshrl.u32 %v2688, 16
        %v2751 = vrot.slane %v2749, 4
        %v2752 = vor.u32 %v2751, %v2747
        %v2753 = vrot.slane %v2752, 4
        %v2755 = vshll.u32 %v2689, 16
        %v2757 = vrot.slane %v2755, 5
        %v2758 = vsel %vm836, %v2753, %v2757
        %v2760 = vshrl.u32 %v2690, 16
        %v2762 = vrot.slane %v2760, 4
        %v2763 = vshll.u32 %v2690, 16
        %v2765 = vrot.slane %v2763, 5
        %v2766 = vor.u32 %v2762, %v2765
        %v2767 = vrot.slane %v2766, 4
        %v2769 = vshll.u32 %v2691, 16
        %v2771 = vrot.slane %v2769, 5
        %v2772 = vsel %vm836, %v2767, %v2771
        %v2773 = vshrl.u32 %v2691, 16
        %v2775 = vrot.slane %v2773, 4
        %v2776 = vor.u32 %v2775, %v2771
        %v2777 = vrot.slane %v2776, 4
        %v2779 = vshll.u32 %v2692, 16
        %v2781 = vrot.slane %v2779, 5
        %v2782 = vsel %vm836, %v2777, %v2781
        %v2784 = vshrl.u32 %v2693, 16
        %v2786 = vrot.slane %v2784, 4
        %v2787 = vshll.u32 %v2693, 16
        %v2789 = vrot.slane %v2787, 5
        %v2790 = vor.u32 %v2786, %v2789
        %v2791 = vrot.slane %v2790, 4
        %v2793 = vshll.u32 %v2694, 16
        %v2795 = vrot.slane %v2793, 5
        %v2796 = vsel %vm836, %v2791, %v2795
        %v2797 = vshrl.u32 %v2694, 16
        %v2799 = vrot.slane %v2797, 4
        %v2800 = vor.u32 %v2799, %v2795
        %v2801 = vrot.slane %v2800, 4
        %v2803 = vshll.u32 %v2695, 16
        %v2805 = vrot.slane %v2803, 5
        %v2806 = vsel %vm836, %v2801, %v2805
        %v2808 = vshrl.u32 %v2696, 16
        %v2810 = vrot.slane %v2808, 4
        %v2811 = vshll.u32 %v2696, 16
        %v2813 = vrot.slane %v2811, 5
        %v2814 = vor.u32 %v2810, %v2813
        %v2815 = vrot.slane %v2814, 4
        %v2817 = vshll.u32 %v2697, 16
        %v2819 = vrot.slane %v2817, 5
        %v2820 = vsel %vm836, %v2815, %v2819
        %v2821 = vshrl.u32 %v2697, 16
        %v2823 = vrot.slane %v2821, 4
        %v2824 = vor.u32 %v2823, %v2819
        %v2825 = vrot.slane %v2824, 4
        %v2827 = vshll.u32 %v2698, 16
        %v2829 = vrot.slane %v2827, 5
        %v2830 = vsel %vm836, %v2825, %v2829
        %v2832 = vshrl.u32 %v2699, 16
        %v2834 = vrot.slane %v2832, 4
        %v2835 = vshll.u32 %v2699, 16
        %v2837 = vrot.slane %v2835, 5
        %v2838 = vor.u32 %v2834, %v2837
        %v2839 = vrot.slane %v2838, 4
        %v2841 = vshll.u32 %v2700, 16
        %v2843 = vrot.slane %v2841, 5
        %v2844 = vsel %vm836, %v2839, %v2843
        %v2845 = vshrl.u32 %v2700, 16
        %v2847 = vrot.slane %v2845, 4
        %v2848 = vor.u32 %v2847, %v2843
        %v2849 = vrot.slane %v2848, 4
        %v2851 = vshll.u32 %v2701, 16
        %v2853 = vrot.slane %v2851, 5
        %v2854 = vsel %vm836, %v2849, %v2853
        %v2856 = vshrl.u32 %v2702, 16
        %v2858 = vrot.slane %v2856, 4
        %v2859 = vshll.u32 %v2702, 16
        %v2861 = vrot.slane %v2859, 5
        %v2862 = vor.u32 %v2858, %v2861
        %v2863 = vrot.slane %v2862, 4
        %v2865 = vshll.u32 %v2703, 16
        %v2867 = vrot.slane %v2865, 5
        %v2868 = vsel %vm836, %v2863, %v2867
        %v2869 = vshrl.u32 %v2703, 16
        %v2871 = vrot.slane %v2869, 4
        %v2872 = vor.u32 %v2871, %v2867
        %v2873 = vrot.slane %v2872, 4
        %v2875 = vshll.u32 %v2704, 16
        %v2877 = vrot.slane %v2875, 5
        %v2878 = vsel %vm836, %v2873, %v2877
        %v2880 = vshrl.u32 %v2705, 16
        %v2882 = vrot.slane %v2880, 4
        %v2883 = vshll.u32 %v2705, 16
        %v2885 = vrot.slane %v2883, 5
        %v2886 = vor.u32 %v2882, %v2885
        %v2887 = vrot.slane %v2886, 4
        %v2889 = vshll.u32 %v2706, 16
        %v2891 = vrot.slane %v2889, 5
        %v2892 = vsel %vm836, %v2887, %v2891
        %v2893 = vshrl.u32 %v2706, 16
        %v2895 = vrot.slane %v2893, 4
        %v2896 = vor.u32 %v2895, %v2891
        %v2897 = vrot.slane %v2896, 4
        %v2899 = vshll.u32 %v2707, 16
        %v2901 = vrot.slane %v2899, 5
        %v2902 = vsel %vm836, %v2897, %v2901
        %v2904 = vshrl.u32 %v2708, 16
        %v2906 = vrot.slane %v2904, 4
        %v2907 = vshll.u32 %v2708, 16
        %v2909 = vrot.slane %v2907, 5
        %v2910 = vor.u32 %v2906, %v2909
        %v2911 = vrot.slane %v2910, 4
        %v2913 = vshll.u32 %v2709, 16
        %v2915 = vrot.slane %v2913, 5
        %v2916 = vsel %vm836, %v2911, %v2915
        %v2917 = vshrl.u32 %v2709, 16
        %v2919 = vrot.slane %v2917, 4
        %v2920 = vor.u32 %v2919, %v2915
        %v2921 = vrot.slane %v2920, 4
        %v2923 = vshll.u32 %v2710, 16
        %v2925 = vrot.slane %v2923, 5
        %v2926 = vsel %vm836, %v2921, %v2925
        %v2928 = vshrl.u32 %v2711, 16
        %v2930 = vrot.slane %v2928, 4
        %v2931 = vshll.u32 %v2711, 16
        %v2933 = vrot.slane %v2931, 5
        %v2934 = vor.u32 %v2930, %v2933
        %v2935 = vrot.slane %v2934, 4
        %v2937 = vshll.u32 %v2712, 16
        %v2939 = vrot.slane %v2937, 5
        %v2940 = vsel %vm836, %v2935, %v2939
        %v2941 = vshrl.u32 %v2712, 16
        %v2943 = vrot.slane %v2941, 4
        %v2944 = vor.u32 %v2943, %v2939
        %v2945 = vrot.slane %v2944, 4
        %v2947 = vshll.u32 %v2713, 16
        %v2949 = vrot.slane %v2947, 5
        %v2950 = vsel %vm836, %v2945, %v2949
        %v2952 = vshrl.u32 %v2714, 16
        %v2954 = vrot.slane %v2952, 4
        %v2955 = vshll.u32 %v2714, 16
        %v2957 = vrot.slane %v2955, 5
        %v2958 = vor.u32 %v2954, %v2957
        %v2959 = vrot.slane %v2958, 4
        %v2961 = vshll.u32 %v2715, 16
        %v2963 = vrot.slane %v2961, 5
        %v2964 = vsel %vm836, %v2959, %v2963
        %v2965 = vshrl.u32 %v2715, 16
        %v2967 = vrot.slane %v2965, 4
        %v2968 = vor.u32 %v2967, %v2963
        %v2969 = vrot.slane %v2968, 4
        %v2971 = vshll.u32 %v2716, 16
        %v2973 = vrot.slane %v2971, 5
        %v2974 = vsel %vm836, %v2969, %v2973
        %v2976 = vshrl.u32 %v2717, 16
        %v2978 = vrot.slane %v2976, 4
        %v2979 = vshll.u32 %v2717, 16
        %v2981 = vrot.slane %v2979, 5
        %v2982 = vor.u32 %v2978, %v2981
        %v2983 = vrot.slane %v2982, 4
        %v2985 = vshll.u32 %v2718, 16
        %v2987 = vrot.slane %v2985, 5
        %v2988 = vsel %vm836, %v2983, %v2987
        %v2989 = vshrl.u32 %v2718, 16
        %v2991 = vrot.slane %v2989, 4
        %v2992 = vor.u32 %v2991, %v2987
        %v2993 = vrot.slane %v2992, 4
        %v2995 = vshll.u32 %v2719, 16
        %v2997 = vrot.slane %v2995, 5
        %v2998 = vsel %vm836, %v2993, %v2997
        %v3000 = vshrl.u32 %v2720, 16
        %v3002 = vrot.slane %v3000, 4
        %v3003 = vshll.u32 %v2720, 16
        %v3005 = vrot.slane %v3003, 5
        %v3006 = vor.u32 %v3002, %v3005
        %v3007 = vrot.slane %v3006, 4
        %v3009 = vshll.u32 %v2721, 16
        %v3011 = vrot.slane %v3009, 5
        %v3012 = vsel %vm836, %v3007, %v3011
        %v3013 = vshrl.u32 %v2721, 16
        %v3015 = vrot.slane %v3013, 4
        %v3016 = vor.u32 %v3015, %v3011
        %v3017 = vrot.slane %v3016, 4
        %v3019 = vshll.u32 %v2722, 16
        %v3021 = vrot.slane %v3019, 5
        %v3022 = vsel %vm836, %v3017, %v3021
        %v3024 = vshrl.u32 %v2723, 16
        %v3026 = vrot.slane %v3024, 4
        %v3027 = vshll.u32 %v2723, 16
        %v3029 = vrot.slane %v3027, 5
        %v3030 = vor.u32 %v3026, %v3029
        %v3031 = vrot.slane %v3030, 4
        %v3033 = vshll.u32 %v2724, 16
        %v3035 = vrot.slane %v3033, 5
        %v3036 = vsel %vm836, %v3031, %v3035
        %v3037 = vshrl.u32 %v2724, 16
        %v3039 = vrot.slane %v3037, 4
        %v3040 = vor.u32 %v3039, %v3035
        %v3041 = vrot.slane %v3040, 4
        %v3043 = vshll.u32 %v2725, 16
        %v3045 = vrot.slane %v3043, 5
        %v3046 = vsel %vm836, %v3041, %v3045
        %v3048 = vshrl.u32 %v2726, 16
        %v3050 = vrot.slane %v3048, 4
        %v3051 = vshll.u32 %v2726, 16
        %v3053 = vrot.slane %v3051, 5
        %v3054 = vor.u32 %v3050, %v3053
        %v3055 = vrot.slane %v3054, 4
        %v3057 = vshll.u32 %v2727, 16
        %v3059 = vrot.slane %v3057, 5
        %v3060 = vsel %vm836, %v3055, %v3059
        %v3061 = vshrl.u32 %v2727, 16
        %v3063 = vrot.slane %v3061, 4
        %v3064 = vor.u32 %v3063, %v3059
        %v3065 = vrot.slane %v3064, 4
        %v3067 = vshll.u32 %v2728, 16
        %v3069 = vrot.slane %v3067, 5
        %v3070 = vsel %vm836, %v3065, %v3069
        %v3072 = vshrl.u32 %v2729, 16
        %v3074 = vrot.slane %v3072, 4
        %v3075 = vshll.u32 %v2729, 16
        %v3077 = vrot.slane %v3075, 5
        %v3078 = vor.u32 %v3074, %v3077
        %v3079 = vrot.slane %v3078, 4
        %v3081 = vshll.u32 %v2730, 16
        %v3083 = vrot.slane %v3081, 5
        %v3084 = vsel %vm836, %v3079, %v3083
        %v3085 = vshrl.u32 %v2730, 16
        %v3087 = vrot.slane %v3085, 4
        %v3088 = vor.u32 %v3087, %v3083
        %v3089 = vrot.slane %v3088, 4
        %v3091 = vshll.u32 %v2731, 16
        %v3093 = vrot.slane %v3091, 5
        %v3094 = vsel %vm836, %v3089, %v3093
        %v3096 = vshrl.u32 %v2732, 16
        %v3098 = vrot.slane %v3096, 4
        %v3099 = vshll.u32 %v2732, 16
        %v3101 = vrot.slane %v3099, 5
        %v3102 = vor.u32 %v3098, %v3101
        %v3103 = vrot.slane %v3102, 4
        %v3105 = vshll.u32 %v2733, 16
        %v3107 = vrot.slane %v3105, 5
        %v3108 = vsel %vm836, %v3103, %v3107
        %v3109 = vshrl.u32 %v2733, 16
        %v3111 = vrot.slane %v3109, 4
        %v3112 = vor.u32 %v3111, %v3107
        %v3113 = vrot.slane %v3112, 4
        %v3115 = vshll.u32 %v2734, 16
        %v3117 = vrot.slane %v3115, 5
        %v3118 = vsel %vm836, %v3113, %v3117
        %s3119 = scalar_lea.vmem [#allocation6], 256
        %v3120 = vld [vmem:[%s3119] sm:$0xf]
        %v3121 = vld [vmem:[%s3119 + $0x4] sm:$0xf]
        %v3122 = vld [vmem:[%s3119 + $0x8] sm:$0xf]
        %v3123 = vld [vmem:[%s3119 + $0xc] sm:$0xf]
        %v3124 = vld [vmem:[%s3119 + $0x10] sm:$0xf]
        %v3125 = vld [vmem:[%s3119 + $0x14] sm:$0xf]
        %v3126 = vld [vmem:[%s3119 + $0x18] sm:$0xf]
        %v3127 = vld [vmem:[%s3119 + $0x1c] sm:$0xf]
        %v3128 = vld [vmem:[%s3119 + $0x20] sm:$0xf]
        %v3129 = vld [vmem:[%s3119 + $0x24] sm:$0xf]
        %v3130 = vld [vmem:[%s3119 + $0x28] sm:$0xf]
        %v3131 = vld [vmem:[%s3119 + $0x2c] sm:$0xf]
        %v3132 = vld [vmem:[%s3119 + $0x30] sm:$0xf]
        %v3133 = vld [vmem:[%s3119 + $0x34] sm:$0xf]
        %v3134 = vld [vmem:[%s3119 + $0x38] sm:$0xf]
        %v3135 = vld [vmem:[%s3119 + $0x3c] sm:$0xf]
        %v3136 = vunpack.c.l.b16 %v2748
        %v3137 = vunpack.c.l.b16 %v2758
        %v3138 = vunpack.c.l.b16 %v2772
        %v3139 = vunpack.c.l.b16 %v2782
        %v3140 = vunpack.c.l.b16 %v2796
        %v3141 = vunpack.c.l.b16 %v2806
        %v3142 = vunpack.c.l.b16 %v2820
        %v3143 = vunpack.c.l.b16 %v2830
        %v3144 = vunpack.c.l.b16 %v2844
        %v3145 = vunpack.c.l.b16 %v2854
        %v3146 = vunpack.c.l.b16 %v2868
        %v3147 = vunpack.c.l.b16 %v2878
        %v3148 = vunpack.c.l.b16 %v2892
        %v3149 = vunpack.c.l.b16 %v2902
        %v3150 = vunpack.c.l.b16 %v2916
        %v3151 = vunpack.c.l.b16 %v2926
        %v3152 = vunpack.c.l.b16 %v2940
        %v3153 = vunpack.c.l.b16 %v2950
        %v3154 = vunpack.c.l.b16 %v2964
        %v3155 = vunpack.c.l.b16 %v2974
        %v3156 = vunpack.c.l.b16 %v2988
        %v3157 = vunpack.c.l.b16 %v2998
        %v3158 = vunpack.c.l.b16 %v3012
        %v3159 = vunpack.c.l.b16 %v3022
        %v3160 = vunpack.c.l.b16 %v3036
        %v3161 = vunpack.c.l.b16 %v3046
        %v3162 = vunpack.c.l.b16 %v3060
        %v3163 = vunpack.c.l.b16 %v3070
        %v3164 = vunpack.c.l.b16 %v3084
        %v3165 = vunpack.c.l.b16 %v3094
        %v3166 = vunpack.c.l.b16 %v3108
        %v3167 = vunpack.c.l.b16 %v3118
        %v3168 = vpack.c.b16 %v3137, %v3136
        %v3169 = vpack.c.b16 %v3139, %v3138
        %v3170 = vpack.c.b16 %v3141, %v3140
        %v3171 = vpack.c.b16 %v3143, %v3142
        %v3172 = vpack.c.b16 %v3145, %v3144
        %v3173 = vpack.c.b16 %v3147, %v3146
        %v3174 = vpack.c.b16 %v3149, %v3148
        %v3175 = vpack.c.b16 %v3151, %v3150
        %v3176 = vpack.c.b16 %v3153, %v3152
        %v3177 = vpack.c.b16 %v3155, %v3154
        %v3178 = vpack.c.b16 %v3157, %v3156
        %v3179 = vpack.c.b16 %v3159, %v3158
        %v3180 = vpack.c.b16 %v3161, %v3160
        %v3181 = vpack.c.b16 %v3163, %v3162
        %v3182 = vpack.c.b16 %v3165, %v3164
        %v3183 = vpack.c.b16 %v3167, %v3166
        %v3216 = vunpack.c.l.b16 %v3120
        %v3217 = vunpack.c.l.b16 %v3121
        %v3218 = vunpack.c.l.b16 %v3122
        %v3219 = vunpack.c.l.b16 %v3123
        %v3220 = vunpack.c.l.b16 %v3124
        %v3221 = vunpack.c.l.b16 %v3125
        %v3222 = vunpack.c.l.b16 %v3126
        %v3223 = vunpack.c.l.b16 %v3127
        %v3224 = vunpack.c.l.b16 %v3128
        %v3225 = vunpack.c.l.b16 %v3129
        %v3226 = vunpack.c.l.b16 %v3130
        %v3227 = vunpack.c.l.b16 %v3131
        %v3228 = vunpack.c.l.b16 %v3132
        %v3229 = vunpack.c.l.b16 %v3133
        %v3230 = vunpack.c.l.b16 %v3134
        %v3231 = vunpack.c.l.b16 %v3135
        %v3232 = vpack.c.b16 %v3217, %v3216
        %v3233 = vpack.c.b16 %v3219, %v3218
        %v3234 = vpack.c.b16 %v3221, %v3220
        %v3235 = vpack.c.b16 %v3223, %v3222
        %v3236 = vpack.c.b16 %v3225, %v3224
        %v3237 = vpack.c.b16 %v3227, %v3226
        %v3238 = vpack.c.b16 %v3229, %v3228
        %v3239 = vpack.c.b16 %v3231, %v3230
        %3248 = vmatprep.subr.bf16.mxu0 0
        %3249 = vmatpush1.bf16.msra.mxu0 %v3232
        %3250 = vmatprep.subr.bf16.mxu0 0
        %3251 = vmatpush1.bf16.msra.mxu0 %v3233
        %3252 = vmatprep.subr.bf16.mxu0 0
        %3253 = vmatpush1.bf16.msra.mxu0 %v3234
        %3254 = vmatprep.subr.bf16.mxu0 0
        %3255 = vmatpush1.bf16.msra.mxu0 %v3235
        %3256 = vmatprep.subr.bf16.mxu0 0
        %3257 = vmatpush1.bf16.msra.mxu0 %v3236
        %3258 = vmatprep.subr.bf16.mxu0 0
        %3259 = vmatpush1.bf16.msra.mxu0 %v3237
        %3260 = vmatprep.subr.bf16.mxu0 0
        %3261 = vmatpush1.bf16.msra.mxu0 %v3238
        %3262 = vmatprep.subr.bf16.mxu0 0
        %3263 = vmatpush1.bf16.msra.mxu0 %v3239
        %3264 = vmatprep.subr.bf16.mxu0 0
        %3265 = vmatpush1.bf16.msra.mxu0 0
        %3266 = vmatprep.subr.bf16.mxu0 0
        %3267 = vmatpush1.bf16.msra.mxu0 0
        %3268 = vmatprep.subr.bf16.mxu0 0
        %3269 = vmatpush1.bf16.msra.mxu0 0
        %3270 = vmatprep.subr.bf16.mxu0 0
        %3271 = vmatpush1.bf16.msra.mxu0 0
        %3272 = vmatprep.subr.bf16.mxu0 0
        %3273 = vmatpush1.bf16.msra.mxu0 0
        %3274 = vmatprep.subr.bf16.mxu0 0
        %3275 = vmatpush1.bf16.msra.mxu0 0
        %3276 = vmatprep.subr.bf16.mxu0 0
        %3277 = vmatpush1.bf16.msra.mxu0 0
        %3278 = vmatprep.subr.bf16.mxu0 0
        %3279 = vmatpush1.bf16.msra.mxu0 0
        %3280 = vmatprep.mubr.bf16.mxu0 0
        %3281 = vmatmul.mubr.bf16.gmra.mrb[0].mxu0 %v3168
        %v3282 = vpop.f32.mrb[0].mxu0
        %v3283 = vadd.f32 0.0, %v3282
        %v3284 = vpop.f32.mrb[0].mxu0
        %v3285 = vpop.f32.mrb[0].mxu0
        %v3286 = vadd.f32 0.0, %v3285
        %v3287 = vpop.f32.mrb[0].mxu0
        %3288 = vmatprep.mubr.bf16.mxu0 0
        %3289 = vmatmul.mubr.bf16.gmra.mrb[0].mxu0 %v3169
        %v3290 = vpop.f32.mrb[0].mxu0
        %v3291 = vadd.f32 0.0, %v3290
        %v3292 = vpop.f32.mrb[0].mxu0
        %v3293 = vpop.f32.mrb[0].mxu0
        %v3294 = vadd.f32 0.0, %v3293
        %v3295 = vpop.f32.mrb[0].mxu0
        %3296 = vmatprep.mubr.bf16.mxu0 0
        %3297 = vmatmul.mubr.bf16.gmra.mrb[0].mxu0 %v3170
        %v3298 = vpop.f32.mrb[0].mxu0
        %v3299 = vadd.f32 0.0, %v3298
        %v3300 = vpop.f32.mrb[0].mxu0
        %v3301 = vpop.f32.mrb[0].mxu0
        %v3302 = vadd.f32 0.0, %v3301
        %v3303 = vpop.f32.mrb[0].mxu0
        %3304 = vmatprep.mubr.bf16.mxu0 0
        %3305 = vmatmul.mubr.bf16.gmra.mrb[0].mxu0 %v3171
        %v3306 = vpop.f32.mrb[0].mxu0
        %v3307 = vadd.f32 0.0, %v3306
        %v3308 = vpop.f32.mrb[0].mxu0
        %v3309 = vpop.f32.mrb[0].mxu0
        %v3310 = vadd.f32 0.0, %v3309
        %v3311 = vpop.f32.mrb[0].mxu0
        %3312 = vmatprep.mubr.bf16.mxu0 0
        %3313 = vmatmul.mubr.bf16.gmra.mrb[0].mxu0 %v3172
        %v3314 = vpop.f32.mrb[0].mxu0
        %v3315 = vadd.f32 0.0, %v3314
        %v3316 = vpop.f32.mrb[0].mxu0
        %v3317 = vpop.f32.mrb[0].mxu0
        %v3318 = vadd.f32 0.0, %v3317
        %v3319 = vpop.f32.mrb[0].mxu0
        %3320 = vmatprep.mubr.bf16.mxu0 0
        %3321 = vmatmul.mubr.bf16.gmra.mrb[0].mxu0 %v3173
        %v3322 = vpop.f32.mrb[0].mxu0
        %v3323 = vadd.f32 0.0, %v3322
        %v3324 = vpop.f32.mrb[0].mxu0
        %v3325 = vpop.f32.mrb[0].mxu0
        %v3326 = vadd.f32 0.0, %v3325
        %v3327 = vpop.f32.mrb[0].mxu0
        %3328 = vmatprep.mubr.bf16.mxu0 0
        %3329 = vmatmul.mubr.bf16.gmra.mrb[0].mxu0 %v3174
        %v3330 = vpop.f32.mrb[0].mxu0
        %v3331 = vadd.f32 0.0, %v3330
        %v3332 = vpop.f32.mrb[0].mxu0
        %v3333 = vpop.f32.mrb[0].mxu0
        %v3334 = vadd.f32 0.0, %v3333
        %v3335 = vpop.f32.mrb[0].mxu0
        %3336 = vmatprep.mubr.bf16.mxu0 0
        %3337 = vmatmul.mubr.bf16.gmra.mrb[0].mxu0 %v3175
        %v3338 = vpop.f32.mrb[0].mxu0
        %v3339 = vadd.f32 0.0, %v3338
        %v3340 = vpop.f32.mrb[0].mxu0
        %v3341 = vpop.f32.mrb[0].mxu0
        %v3342 = vadd.f32 0.0, %v3341
        %v3343 = vpop.f32.mrb[0].mxu0
        %3344 = vmatprep.mubr.bf16.mxu0 0
        %3345 = vmatmul.mubr.bf16.gmra.mrb[0].mxu0 %v3176
        %v3346 = vpop.f32.mrb[0].mxu0
        %v3347 = vadd.f32 0.0, %v3346
        %v3348 = vpop.f32.mrb[0].mxu0
        %v3349 = vpop.f32.mrb[0].mxu0
        %v3350 = vadd.f32 0.0, %v3349
        %v3351 = vpop.f32.mrb[0].mxu0
        %3352 = vmatprep.mubr.bf16.mxu0 0
        %3353 = vmatmul.mubr.bf16.gmra.mrb[0].mxu0 %v3177
        %v3354 = vpop.f32.mrb[0].mxu0
        %v3355 = vadd.f32 0.0, %v3354
        %v3356 = vpop.f32.mrb[0].mxu0
        %v3357 = vpop.f32.mrb[0].mxu0
        %v3358 = vadd.f32 0.0, %v3357
        %v3359 = vpop.f32.mrb[0].mxu0
        %3360 = vmatprep.mubr.bf16.mxu0 0
        %3361 = vmatmul.mubr.bf16.gmra.mrb[0].mxu0 %v3178
        %v3362 = vpop.f32.mrb[0].mxu0
        %v3363 = vadd.f32 0.0, %v3362
        %v3364 = vpop.f32.mrb[0].mxu0
        %v3365 = vpop.f32.mrb[0].mxu0
        %v3366 = vadd.f32 0.0, %v3365
        %v3367 = vpop.f32.mrb[0].mxu0
        %3368 = vmatprep.mubr.bf16.mxu0 0
        %3369 = vmatmul.mubr.bf16.gmra.mrb[0].mxu0 %v3179
        %v3370 = vpop.f32.mrb[0].mxu0
        %v3371 = vadd.f32 0.0, %v3370
        %v3372 = vpop.f32.mrb[0].mxu0
        %v3373 = vpop.f32.mrb[0].mxu0
        %v3374 = vadd.f32 0.0, %v3373
        %v3375 = vpop.f32.mrb[0].mxu0
        %3376 = vmatprep.mubr.bf16.mxu0 0
        %3377 = vmatmul.mubr.bf16.gmra.mrb[0].mxu0 %v3180
        %v3378 = vpop.f32.mrb[0].mxu0
        %v3379 = vadd.f32 0.0, %v3378
        %v3380 = vpop.f32.mrb[0].mxu0
        %v3381 = vpop.f32.mrb[0].mxu0
        %v3382 = vadd.f32 0.0, %v3381
        %v3383 = vpop.f32.mrb[0].mxu0
        %3384 = vmatprep.mubr.bf16.mxu0 0
        %3385 = vmatmul.mubr.bf16.gmra.mrb[0].mxu0 %v3181
        %v3386 = vpop.f32.mrb[0].mxu0
        %v3387 = vadd.f32 0.0, %v3386
        %v3388 = vpop.f32.mrb[0].mxu0
        %v3389 = vpop.f32.mrb[0].mxu0
        %v3390 = vadd.f32 0.0, %v3389
        %v3391 = vpop.f32.mrb[0].mxu0
        %3392 = vmatprep.mubr.bf16.mxu0 0
        %3393 = vmatmul.mubr.bf16.gmra.mrb[0].mxu0 %v3182
        %v3394 = vpop.f32.mrb[0].mxu0
        %v3395 = vadd.f32 0.0, %v3394
        %v3396 = vpop.f32.mrb[0].mxu0
        %v3397 = vpop.f32.mrb[0].mxu0
        %v3398 = vadd.f32 0.0, %v3397
        %v3399 = vpop.f32.mrb[0].mxu0
        %3400 = vmatprep.mubr.bf16.mxu0 0
        %3401 = vmatmul.mubr.bf16.gmra.mrb[0].mxu0 %v3183
        %v3402 = vpop.f32.mrb[0].mxu0
        %v3403 = vadd.f32 0.0, %v3402
        %v3404 = vpop.f32.mrb[0].mxu0
        %v3405 = vpop.f32.mrb[0].mxu0
        %v3406 = vadd.f32 0.0, %v3405
        %v3407 = vpop.f32.mrb[0].mxu0
        %3408 = vdwg.mxu0
        %v3409 = vadd.f32 %v2655, %v3283
        %v3410 = vadd.f32 %v2656, %v3286
        %v3411 = vadd.f32 %v2657, %v3291
        %v3412 = vadd.f32 %v2658, %v3294
        %v3413 = vadd.f32 %v2659, %v3299
        %v3414 = vadd.f32 %v2660, %v3302
        %v3415 = vadd.f32 %v2661, %v3307
        %v3416 = vadd.f32 %v2662, %v3310
        %v3417 = vadd.f32 %v2663, %v3315
        %v3418 = vadd.f32 %v2664, %v3318
        %v3419 = vadd.f32 %v2665, %v3323
        %v3420 = vadd.f32 %v2666, %v3326
        %v3421 = vadd.f32 %v2667, %v3331
        %v3422 = vadd.f32 %v2668, %v3334
        %v3423 = vadd.f32 %v2669, %v3339
        %v3424 = vadd.f32 %v2670, %v3342
        %v3425 = vadd.f32 %v2671, %v3347
        %v3426 = vadd.f32 %v2672, %v3350
        %v3427 = vadd.f32 %v2673, %v3355
        %v3428 = vadd.f32 %v2674, %v3358
        %v3429 = vadd.f32 %v2675, %v3363
        %v3430 = vadd.f32 %v2676, %v3366
        %v3431 = vadd.f32 %v2677, %v3371
        %v3432 = vadd.f32 %v2678, %v3374
        %v3433 = vadd.f32 %v2679, %v3379
        %v3434 = vadd.f32 %v2680, %v3382
        %v3435 = vadd.f32 %v2681, %v3387
        %v3436 = vadd.f32 %v2682, %v3390
        %v3437 = vadd.f32 %v2683, %v3395
        %v3438 = vadd.f32 %v2684, %v3398
        %v3439 = vadd.f32 %v2685, %v3403
        %v3440 = vadd.f32 %v2686, %v3406
        %v3441 = vld [vmem:[%s721] sm:$0xe]
        %v3442 = vld [vmem:[%s721 + $0xc] sm:$0xe]
        %v3443 = vld [vmem:[%s721 + $0x18] sm:$0xe]
        %v3444 = vld [vmem:[%s721 + $0x24] sm:$0xe]
        %v3445 = vld [vmem:[%s721 + $0x30] sm:$0xe]
        %v3446 = vld [vmem:[%s721 + $0x3c] sm:$0xe]
        %v3447 = vld [vmem:[%s721 + $0x48] sm:$0xe]
        %v3448 = vld [vmem:[%s721 + $0x54] sm:$0xe]
        %v3449 = vld [vmem:[%s721 + $0x60] sm:$0xe]
        %v3450 = vld [vmem:[%s721 + $0x6c] sm:$0xe]
        %v3451 = vld [vmem:[%s721 + $0x78] sm:$0xe]
        %v3452 = vld [vmem:[%s721 + $0x84] sm:$0xe]
        %v3453 = vld [vmem:[%s721 + $0x90] sm:$0xe]
        %v3454 = vld [vmem:[%s721 + $0x9c] sm:$0xe]
        %v3455 = vld [vmem:[%s721 + $0xa8] sm:$0xe]
        %v3456 = vld [vmem:[%s721 + $0xb4] sm:$0xe]
        %v3505 = vrot.slane %v3441, 5
        %v3506 = vrot.slane %v3505, 4
        %v3507 = vrot.slane %v2688, 5
        %v3508 = vsel %vm1866, %v3506, %v3507
        %v3509 = vrot.slane %v3507, 4
        %v3510 = vrot.slane %v2689, 5
        %v3511 = vsel %vm1866, %v3509, %v3510
        %v3512 = vrot.slane %v3442, 5
        %v3513 = vrot.slane %v3512, 4
        %v3514 = vrot.slane %v2691, 5
        %v3515 = vsel %vm1866, %v3513, %v3514
        %v3516 = vrot.slane %v3514, 4
        %v3517 = vrot.slane %v2692, 5
        %v3518 = vsel %vm1866, %v3516, %v3517
        %v3519 = vrot.slane %v3443, 5
        %v3520 = vrot.slane %v3519, 4
        %v3521 = vrot.slane %v2694, 5
        %v3522 = vsel %vm1866, %v3520, %v3521
        %v3523 = vrot.slane %v3521, 4
        %v3524 = vrot.slane %v2695, 5
        %v3525 = vsel %vm1866, %v3523, %v3524
        %v3526 = vrot.slane %v3444, 5
        %v3527 = vrot.slane %v3526, 4
        %v3528 = vrot.slane %v2697, 5
        %v3529 = vsel %vm1866, %v3527, %v3528
        %v3530 = vrot.slane %v3528, 4
        %v3531 = vrot.slane %v2698, 5
        %v3532 = vsel %vm1866, %v3530, %v3531
        %v3533 = vrot.slane %v3445, 5
        %v3534 = vrot.slane %v3533, 4
        %v3535 = vrot.slane %v2700, 5
        %v3536 = vsel %vm1866, %v3534, %v3535
        %v3537 = vrot.slane %v3535, 4
        %v3538 = vrot.slane %v2701, 5
        %v3539 = vsel %vm1866, %v3537, %v3538
        %v3540 = vrot.slane %v3446, 5
        %v3541 = vrot.slane %v3540, 4
        %v3542 = vrot.slane %v2703, 5
        %v3543 = vsel %vm1866, %v3541, %v3542
        %v3544 = vrot.slane %v3542, 4
        %v3545 = vrot.slane %v2704, 5
        %v3546 = vsel %vm1866, %v3544, %v3545
        %v3547 = vrot.slane %v3447, 5
        %v3548 = vrot.slane %v3547, 4
        %v3549 = vrot.slane %v2706, 5
        %v3550 = vsel %vm1866, %v3548, %v3549
        %v3551 = vrot.slane %v3549, 4
        %v3552 = vrot.slane %v2707, 5
        %v3553 = vsel %vm1866, %v3551, %v3552
        %v3554 = vrot.slane %v3448, 5
        %v3555 = vrot.slane %v3554, 4
        %v3556 = vrot.slane %v2709, 5
        %v3557 = vsel %vm1866, %v3555, %v3556
        %v3558 = vrot.slane %v3556, 4
        %v3559 = vrot.slane %v2710, 5
        %v3560 = vsel %vm1866, %v3558, %v3559
        %v3561 = vrot.slane %v3449, 5
        %v3562 = vrot.slane %v3561, 4
        %v3563 = vrot.slane %v2712, 5
        %v3564 = vsel %vm1866, %v3562, %v3563
        %v3565 = vrot.slane %v3563, 4
        %v3566 = vrot.slane %v2713, 5
        %v3567 = vsel %vm1866, %v3565, %v3566
        %v3568 = vrot.slane %v3450, 5
        %v3569 = vrot.slane %v3568, 4
        %v3570 = vrot.slane %v2715, 5
        %v3571 = vsel %vm1866, %v3569, %v3570
        %v3572 = vrot.slane %v3570, 4
        %v3573 = vrot.slane %v2716, 5
        %v3574 = vsel %vm1866, %v3572, %v3573
        %v3575 = vrot.slane %v3451, 5
        %v3576 = vrot.slane %v3575, 4
        %v3577 = vrot.slane %v2718, 5
        %v3578 = vsel %vm1866, %v3576, %v3577
        %v3579 = vrot.slane %v3577, 4
        %v3580 = vrot.slane %v2719, 5
        %v3581 = vsel %vm1866, %v3579, %v3580
        %v3582 = vrot.slane %v3452, 5
        %v3583 = vrot.slane %v3582, 4
        %v3584 = vrot.slane %v2721, 5
        %v3585 = vsel %vm1866, %v3583, %v3584
        %v3586 = vrot.slane %v3584, 4
        %v3587 = vrot.slane %v2722, 5
        %v3588 = vsel %vm1866, %v3586, %v3587
        %v3589 = vrot.slane %v3453, 5
        %v3590 = vrot.slane %v3589, 4
        %v3591 = vrot.slane %v2724, 5
        %v3592 = vsel %vm1866, %v3590, %v3591
        %v3593 = vrot.slane %v3591, 4
        %v3594 = vrot.slane %v2725, 5
        %v3595 = vsel %vm1866, %v3593, %v3594
        %v3596 = vrot.slane %v3454, 5
        %v3597 = vrot.slane %v3596, 4
        %v3598 = vrot.slane %v2727, 5
        %v3599 = vsel %vm1866, %v3597, %v3598
        %v3600 = vrot.slane %v3598, 4
        %v3601 = vrot.slane %v2728, 5
        %v3602 = vsel %vm1866, %v3600, %v3601
        %v3603 = vrot.slane %v3455, 5
        %v3604 = vrot.slane %v3603, 4
        %v3605 = vrot.slane %v2730, 5
        %v3606 = vsel %vm1866, %v3604, %v3605
        %v3607 = vrot.slane %v3605, 4
        %v3608 = vrot.slane %v2731, 5
        %v3609 = vsel %vm1866, %v3607, %v3608
        %v3610 = vrot.slane %v3456, 5
        %v3611 = vrot.slane %v3610, 4
        %v3612 = vrot.slane %v2733, 5
        %v3613 = vsel %vm1866, %v3611, %v3612
        %v3614 = vrot.slane %v3612, 4
        %v3615 = vrot.slane %v2734, 5
        %v3616 = vsel %vm1866, %v3614, %v3615
        %s3617 = scalar_lea.vmem [#allocation6], 320
        %v3618 = vld [vmem:[%s3617] sm:$0xf]
        %v3619 = vld [vmem:[%s3617 + $0x4] sm:$0xf]
        %v3620 = vld [vmem:[%s3617 + $0x8] sm:$0xf]
        %v3621 = vld [vmem:[%s3617 + $0xc] sm:$0xf]
        %v3622 = vld [vmem:[%s3617 + $0x10] sm:$0xf]
        %v3623 = vld [vmem:[%s3617 + $0x14] sm:$0xf]
        %v3624 = vld [vmem:[%s3617 + $0x18] sm:$0xf]
        %v3625 = vld [vmem:[%s3617 + $0x1c] sm:$0xf]
        %v3626 = vld [vmem:[%s3617 + $0x20] sm:$0xf]
        %v3627 = vld [vmem:[%s3617 + $0x24] sm:$0xf]
        %v3628 = vld [vmem:[%s3617 + $0x28] sm:$0xf]
        %v3629 = vld [vmem:[%s3617 + $0x2c] sm:$0xf]
        %v3630 = vld [vmem:[%s3617 + $0x30] sm:$0xf]
        %v3631 = vld [vmem:[%s3617 + $0x34] sm:$0xf]
        %v3632 = vld [vmem:[%s3617 + $0x38] sm:$0xf]
        %v3633 = vld [vmem:[%s3617 + $0x3c] sm:$0xf]
        %v3634 = vunpack.c.l.b16 %v3508
        %v3635 = vunpack.c.l.b16 %v3511
        %v3636 = vunpack.c.l.b16 %v3515
        %v3637 = vunpack.c.l.b16 %v3518
        %v3638 = vunpack.c.l.b16 %v3522
        %v3639 = vunpack.c.l.b16 %v3525
        %v3640 = vunpack.c.l.b16 %v3529
        %v3641 = vunpack.c.l.b16 %v3532
        %v3642 = vunpack.c.l.b16 %v3536
        %v3643 = vunpack.c.l.b16 %v3539
        %v3644 = vunpack.c.l.b16 %v3543
        %v3645 = vunpack.c.l.b16 %v3546
        %v3646 = vunpack.c.l.b16 %v3550
        %v3647 = vunpack.c.l.b16 %v3553
        %v3648 = vunpack.c.l.b16 %v3557
        %v3649 = vunpack.c.l.b16 %v3560
        %v3650 = vunpack.c.l.b16 %v3564
        %v3651 = vunpack.c.l.b16 %v3567
        %v3652 = vunpack.c.l.b16 %v3571
        %v3653 = vunpack.c.l.b16 %v3574
        %v3654 = vunpack.c.l.b16 %v3578
        %v3655 = vunpack.c.l.b16 %v3581
        %v3656 = vunpack.c.l.b16 %v3585
        %v3657 = vunpack.c.l.b16 %v3588
        %v3658 = vunpack.c.l.b16 %v3592
        %v3659 = vunpack.c.l.b16 %v3595
        %v3660 = vunpack.c.l.b16 %v3599
        %v3661 = vunpack.c.l.b16 %v3602
        %v3662 = vunpack.c.l.b16 %v3606
        %v3663 = vunpack.c.l.b16 %v3609
        %v3664 = vunpack.c.l.b16 %v3613
        %v3665 = vunpack.c.l.b16 %v3616
        %v3666 = vpack.c.b16 %v3635, %v3634
        %v3667 = vpack.c.b16 %v3637, %v3636
        %v3668 = vpack.c.b16 %v3639, %v3638
        %v3669 = vpack.c.b16 %v3641, %v3640
        %v3670 = vpack.c.b16 %v3643, %v3642
        %v3671 = vpack.c.b16 %v3645, %v3644
        %v3672 = vpack.c.b16 %v3647, %v3646
        %v3673 = vpack.c.b16 %v3649, %v3648
        %v3674 = vpack.c.b16 %v3651, %v3650
        %v3675 = vpack.c.b16 %v3653, %v3652
        %v3676 = vpack.c.b16 %v3655, %v3654
        %v3677 = vpack.c.b16 %v3657, %v3656
        %v3678 = vpack.c.b16 %v3659, %v3658
        %v3679 = vpack.c.b16 %v3661, %v3660
        %v3680 = vpack.c.b16 %v3663, %v3662
        %v3681 = vpack.c.b16 %v3665, %v3664
        %v3714 = vunpack.c.l.b16 %v3618
        %v3715 = vunpack.c.l.b16 %v3619
        %v3716 = vunpack.c.l.b16 %v3620
        %v3717 = vunpack.c.l.b16 %v3621
        %v3718 = vunpack.c.l.b16 %v3622
        %v3719 = vunpack.c.l.b16 %v3623
        %v3720 = vunpack.c.l.b16 %v3624
        %v3721 = vunpack.c.l.b16 %v3625
        %v3722 = vunpack.c.l.b16 %v3626
        %v3723 = vunpack.c.l.b16 %v3627
        %v3724 = vunpack.c.l.b16 %v3628
        %v3725 = vunpack.c.l.b16 %v3629
        %v3726 = vunpack.c.l.b16 %v3630
        %v3727 = vunpack.c.l.b16 %v3631
        %v3728 = vunpack.c.l.b16 %v3632
        %v3729 = vunpack.c.l.b16 %v3633
        %v3730 = vpack.c.b16 %v3715, %v3714
        %v3731 = vpack.c.b16 %v3717, %v3716
        %v3732 = vpack.c.b16 %v3719, %v3718
        %v3733 = vpack.c.b16 %v3721, %v3720
        %v3734 = vpack.c.b16 %v3723, %v3722
        %v3735 = vpack.c.b16 %v3725, %v3724
        %v3736 = vpack.c.b16 %v3727, %v3726
        %v3737 = vpack.c.b16 %v3729, %v3728
        %3746 = vmatprep.subr.bf16.mxu0 0
        %3747 = vmatpush1.bf16.msra.mxu0 %v3730
        %3748 = vmatprep.subr.bf16.mxu0 0
        %3749 = vmatpush1.bf16.msra.mxu0 %v3731
        %3750 = vmatprep.subr.bf16.mxu0 0
        %3751 = vmatpush1.bf16.msra.mxu0 %v3732
        %3752 = vmatprep.subr.bf16.mxu0 0
        %3753 = vmatpush1.bf16.msra.mxu0 %v3733
        %3754 = vmatprep.subr.bf16.mxu0 0
        %3755 = vmatpush1.bf16.msra.mxu0 %v3734
        %3756 = vmatprep.subr.bf16.mxu0 0
        %3757 = vmatpush1.bf16.msra.mxu0 %v3735
        %3758 = vmatprep.subr.bf16.mxu0 0
        %3759 = vmatpush1.bf16.msra.mxu0 %v3736
        %3760 = vmatprep.subr.bf16.mxu0 0
        %3761 = vmatpush1.bf16.msra.mxu0 %v3737
        %3762 = vmatprep.subr.bf16.mxu0 0
        %3763 = vmatpush1.bf16.msra.mxu0 0
        %3764 = vmatprep.subr.bf16.mxu0 0
        %3765 = vmatpush1.bf16.msra.mxu0 0
        %3766 = vmatprep.subr.bf16.mxu0 0
        %3767 = vmatpush1.bf16.msra.mxu0 0
        %3768 = vmatprep.subr.bf16.mxu0 0
        %3769 = vmatpush1.bf16.msra.mxu0 0
        %3770 = vmatprep.subr.bf16.mxu0 0
        %3771 = vmatpush1.bf16.msra.mxu0 0
        %3772 = vmatprep.subr.bf16.mxu0 0
        %3773 = vmatpush1.bf16.msra.mxu0 0
        %3774 = vmatprep.subr.bf16.mxu0 0
        %3775 = vmatpush1.bf16.msra.mxu0 0
        %3776 = vmatprep.subr.bf16.mxu0 0
        %3777 = vmatpush1.bf16.msra.mxu0 0
        %3778 = vmatprep.mubr.bf16.mxu0 0
        %3779 = vmatmul.mubr.bf16.gmra.mrb[0].mxu0 %v3666
        %v3780 = vpop.f32.mrb[0].mxu0
        %v3781 = vadd.f32 0.0, %v3780
        %v3782 = vpop.f32.mrb[0].mxu0
        %v3783 = vpop.f32.mrb[0].mxu0
        %v3784 = vadd.f32 0.0, %v3783
        %v3785 = vpop.f32.mrb[0].mxu0
        %3786 = vmatprep.mubr.bf16.mxu0 0
        %3787 = vmatmul.mubr.bf16.gmra.mrb[0].mxu0 %v3667
        %v3788 = vpop.f32.mrb[0].mxu0
        %v3789 = vadd.f32 0.0, %v3788
        %v3790 = vpop.f32.mrb[0].mxu0
        %v3791 = vpop.f32.mrb[0].mxu0
        %v3792 = vadd.f32 0.0, %v3791
        %v3793 = vpop.f32.mrb[0].mxu0
        %3794 = vmatprep.mubr.bf16.mxu0 0
        %3795 = vmatmul.mubr.bf16.gmra.mrb[0].mxu0 %v3668
        %v3796 = vpop.f32.mrb[0].mxu0
        %v3797 = vadd.f32 0.0, %v3796
        %v3798 = vpop.f32.mrb[0].mxu0
        %v3799 = vpop.f32.mrb[0].mxu0
        %v3800 = vadd.f32 0.0, %v3799
        %v3801 = vpop.f32.mrb[0].mxu0
        %3802 = vmatprep.mubr.bf16.mxu0 0
        %3803 = vmatmul.mubr.bf16.gmra.mrb[0].mxu0 %v3669
        %v3804 = vpop.f32.mrb[0].mxu0
        %v3805 = vadd.f32 0.0, %v3804
        %v3806 = vpop.f32.mrb[0].mxu0
        %v3807 = vpop.f32.mrb[0].mxu0
        %v3808 = vadd.f32 0.0, %v3807
        %v3809 = vpop.f32.mrb[0].mxu0
        %3810 = vmatprep.mubr.bf16.mxu0 0
        %3811 = vmatmul.mubr.bf16.gmra.mrb[0].mxu0 %v3670
        %v3812 = vpop.f32.mrb[0].mxu0
        %v3813 = vadd.f32 0.0, %v3812
        %v3814 = vpop.f32.mrb[0].mxu0
        %v3815 = vpop.f32.mrb[0].mxu0
        %v3816 = vadd.f32 0.0, %v3815
        %v3817 = vpop.f32.mrb[0].mxu0
        %3818 = vmatprep.mubr.bf16.mxu0 0
        %3819 = vmatmul.mubr.bf16.gmra.mrb[0].mxu0 %v3671
        %v3820 = vpop.f32.mrb[0].mxu0
        %v3821 = vadd.f32 0.0, %v3820
        %v3822 = vpop.f32.mrb[0].mxu0
        %v3823 = vpop.f32.mrb[0].mxu0
        %v3824 = vadd.f32 0.0, %v3823
        %v3825 = vpop.f32.mrb[0].mxu0
        %3826 = vmatprep.mubr.bf16.mxu0 0
        %3827 = vmatmul.mubr.bf16.gmra.mrb[0].mxu0 %v3672
        %v3828 = vpop.f32.mrb[0].mxu0
        %v3829 = vadd.f32 0.0, %v3828
        %v3830 = vpop.f32.mrb[0].mxu0
        %v3831 = vpop.f32.mrb[0].mxu0
        %v3832 = vadd.f32 0.0, %v3831
        %v3833 = vpop.f32.mrb[0].mxu0
        %3834 = vmatprep.mubr.bf16.mxu0 0
        %3835 = vmatmul.mubr.bf16.gmra.mrb[0].mxu0 %v3673
        %v3836 = vpop.f32.mrb[0].mxu0
        %v3837 = vadd.f32 0.0, %v3836
        %v3838 = vpop.f32.mrb[0].mxu0
        %v3839 = vpop.f32.mrb[0].mxu0
        %v3840 = vadd.f32 0.0, %v3839
        %v3841 = vpop.f32.mrb[0].mxu0
        %3842 = vmatprep.mubr.bf16.mxu0 0
        %3843 = vmatmul.mubr.bf16.gmra.mrb[0].mxu0 %v3674
        %v3844 = vpop.f32.mrb[0].mxu0
        %v3845 = vadd.f32 0.0, %v3844
        %v3846 = vpop.f32.mrb[0].mxu0
        %v3847 = vpop.f32.mrb[0].mxu0
        %v3848 = vadd.f32 0.0, %v3847
        %v3849 = vpop.f32.mrb[0].mxu0
        %3850 = vmatprep.mubr.bf16.mxu0 0
        %3851 = vmatmul.mubr.bf16.gmra.mrb[0].mxu0 %v3675
        %v3852 = vpop.f32.mrb[0].mxu0
        %v3853 = vadd.f32 0.0, %v3852
        %v3854 = vpop.f32.mrb[0].mxu0
        %v3855 = vpop.f32.mrb[0].mxu0
        %v3856 = vadd.f32 0.0, %v3855
        %v3857 = vpop.f32.mrb[0].mxu0
        %3858 = vmatprep.mubr.bf16.mxu0 0
        %3859 = vmatmul.mubr.bf16.gmra.mrb[0].mxu0 %v3676
        %v3860 = vpop.f32.mrb[0].mxu0
        %v3861 = vadd.f32 0.0, %v3860
        %v3862 = vpop.f32.mrb[0].mxu0
        %v3863 = vpop.f32.mrb[0].mxu0
        %v3864 = vadd.f32 0.0, %v3863
        %v3865 = vpop.f32.mrb[0].mxu0
        %3866 = vmatprep.mubr.bf16.mxu0 0
        %3867 = vmatmul.mubr.bf16.gmra.mrb[0].mxu0 %v3677
        %v3868 = vpop.f32.mrb[0].mxu0
        %v3869 = vadd.f32 0.0, %v3868
        %v3870 = vpop.f32.mrb[0].mxu0
        %v3871 = vpop.f32.mrb[0].mxu0
        %v3872 = vadd.f32 0.0, %v3871
        %v3873 = vpop.f32.mrb[0].mxu0
        %3874 = vmatprep.mubr.bf16.mxu0 0
        %3875 = vmatmul.mubr.bf16.gmra.mrb[0].mxu0 %v3678
        %v3876 = vpop.f32.mrb[0].mxu0
        %v3877 = vadd.f32 0.0, %v3876
        %v3878 = vpop.f32.mrb[0].mxu0
        %v3879 = vpop.f32.mrb[0].mxu0
        %v3880 = vadd.f32 0.0, %v3879
        %v3881 = vpop.f32.mrb[0].mxu0
        %3882 = vmatprep.mubr.bf16.mxu0 0
        %3883 = vmatmul.mubr.bf16.gmra.mrb[0].mxu0 %v3679
        %v3884 = vpop.f32.mrb[0].mxu0
        %v3885 = vadd.f32 0.0, %v3884
        %v3886 = vpop.f32.mrb[0].mxu0
        %v3887 = vpop.f32.mrb[0].mxu0
        %v3888 = vadd.f32 0.0, %v3887
        %v3889 = vpop.f32.mrb[0].mxu0
        %3890 = vmatprep.mubr.bf16.mxu0 0
        %3891 = vmatmul.mubr.bf16.gmra.mrb[0].mxu0 %v3680
        %v3892 = vpop.f32.mrb[0].mxu0
        %v3893 = vadd.f32 0.0, %v3892
        %v3894 = vpop.f32.mrb[0].mxu0
        %v3895 = vpop.f32.mrb[0].mxu0
        %v3896 = vadd.f32 0.0, %v3895
        %v3897 = vpop.f32.mrb[0].mxu0
        %3898 = vmatprep.mubr.bf16.mxu0 0
        %3899 = vmatmul.mubr.bf16.gmra.mrb[0].mxu0 %v3681
        %v3900 = vpop.f32.mrb[0].mxu0
        %v3901 = vadd.f32 0.0, %v3900
        %v3902 = vpop.f32.mrb[0].mxu0
        %v3903 = vpop.f32.mrb[0].mxu0
        %v3904 = vadd.f32 0.0, %v3903
        %v3905 = vpop.f32.mrb[0].mxu0
        %3906 = vdwg.mxu0
        %v3907 = vadd.f32 %v3409, %v3781
        %v3908 = vadd.f32 %v3410, %v3784
        %v3909 = vadd.f32 %v3411, %v3789
        %v3910 = vadd.f32 %v3412, %v3792
        %v3911 = vadd.f32 %v3413, %v3797
        %v3912 = vadd.f32 %v3414, %v3800
        %v3913 = vadd.f32 %v3415, %v3805
        %v3914 = vadd.f32 %v3416, %v3808
        %v3915 = vadd.f32 %v3417, %v3813
        %v3916 = vadd.f32 %v3418, %v3816
        %v3917 = vadd.f32 %v3419, %v3821
        %v3918 = vadd.f32 %v3420, %v3824
        %v3919 = vadd.f32 %v3421, %v3829
        %v3920 = vadd.f32 %v3422, %v3832
        %v3921 = vadd.f32 %v3423, %v3837
        %v3922 = vadd.f32 %v3424, %v3840
        %v3923 = vadd.f32 %v3425, %v3845
        %v3924 = vadd.f32 %v3426, %v3848
        %v3925 = vadd.f32 %v3427, %v3853
        %v3926 = vadd.f32 %v3428, %v3856
        %v3927 = vadd.f32 %v3429, %v3861
        %v3928 = vadd.f32 %v3430, %v3864
        %v3929 = vadd.f32 %v3431, %v3869
        %v3930 = vadd.f32 %v3432, %v3872
        %v3931 = vadd.f32 %v3433, %v3877
        %v3932 = vadd.f32 %v3434, %v3880
        %v3933 = vadd.f32 %v3435, %v3885
        %v3934 = vadd.f32 %v3436, %v3888
        %v3935 = vadd.f32 %v3437, %v3893
        %v3936 = vadd.f32 %v3438, %v3896
        %v3937 = vadd.f32 %v3439, %v3901
        %v3938 = vadd.f32 %v3440, %v3904
        %s3939 = scalar_lea.vmem [#allocation2], 24
        %v3940 = vld [vmem:[%s3939] sm:$0xf]
        %v3941 = vld [vmem:[%s3939 + $0x4] sm:$0xf]
        %v3942 = vld [vmem:[%s3939 + $0xc] sm:$0xf]
        %v3943 = vld [vmem:[%s3939 + $0x10] sm:$0xf]
        %v3944 = vld [vmem:[%s3939 + $0x18] sm:$0xf]
        %v3945 = vld [vmem:[%s3939 + $0x1c] sm:$0xf]
        %v3946 = vld [vmem:[%s3939 + $0x24] sm:$0xf]
        %v3947 = vld [vmem:[%s3939 + $0x28] sm:$0xf]
        %v3948 = vld [vmem:[%s3939 + $0x30] sm:$0xf]
        %v3949 = vld [vmem:[%s3939 + $0x34] sm:$0xf]
        %v3950 = vld [vmem:[%s3939 + $0x3c] sm:$0xf]
        %v3951 = vld [vmem:[%s3939 + $0x40] sm:$0xf]
        %v3952 = vld [vmem:[%s3939 + $0x48] sm:$0xf]
        %v3953 = vld [vmem:[%s3939 + $0x4c] sm:$0xf]
        %v3954 = vld [vmem:[%s3939 + $0x54] sm:$0xf]
        %v3955 = vld [vmem:[%s3939 + $0x58] sm:$0xf]
        %v3956 = vld [vmem:[%s3939 + $0x60] sm:$0xf]
        %v3957 = vld [vmem:[%s3939 + $0x64] sm:$0xf]
        %v3958 = vld [vmem:[%s3939 + $0x6c] sm:$0xf]
        %v3959 = vld [vmem:[%s3939 + $0x70] sm:$0xf]
        %v3960 = vld [vmem:[%s3939 + $0x78] sm:$0xf]
        %v3961 = vld [vmem:[%s3939 + $0x7c] sm:$0xf]
        %v3962 = vld [vmem:[%s3939 + $0x84] sm:$0xf]
        %v3963 = vld [vmem:[%s3939 + $0x88] sm:$0xf]
        %v3964 = vld [vmem:[%s3939 + $0x90] sm:$0xf]
        %v3965 = vld [vmem:[%s3939 + $0x94] sm:$0xf]
        %v3966 = vld [vmem:[%s3939 + $0x9c] sm:$0xf]
        %v3967 = vld [vmem:[%s3939 + $0xa0] sm:$0xf]
        %v3968 = vld [vmem:[%s3939 + $0xa8] sm:$0xf]
        %v3969 = vld [vmem:[%s3939 + $0xac] sm:$0xf]
        %v3970 = vld [vmem:[%s3939 + $0xb4] sm:$0xf]
        %v3971 = vld [vmem:[%s3939 + $0xb8] sm:$0xf]
        %s3972 = scalar_lea.vmem [#allocation6], 384
        %v3973 = vld [vmem:[%s3972] sm:$0xf]
        %v3974 = vld [vmem:[%s3972 + $0x4] sm:$0xf]
        %v3975 = vld [vmem:[%s3972 + $0x8] sm:$0xf]
        %v3976 = vld [vmem:[%s3972 + $0xc] sm:$0xf]
        %v3977 = vld [vmem:[%s3972 + $0x10] sm:$0xf]
        %v3978 = vld [vmem:[%s3972 + $0x14] sm:$0xf]
        %v3979 = vld [vmem:[%s3972 + $0x18] sm:$0xf]
        %v3980 = vld [vmem:[%s3972 + $0x1c] sm:$0xf]
        %v3981 = vld [vmem:[%s3972 + $0x20] sm:$0xf]
        %v3982 = vld [vmem:[%s3972 + $0x24] sm:$0xf]
        %v3983 = vld [vmem:[%s3972 + $0x28] sm:$0xf]
        %v3984 = vld [vmem:[%s3972 + $0x2c] sm:$0xf]
        %v3985 = vld [vmem:[%s3972 + $0x30] sm:$0xf]
        %v3986 = vld [vmem:[%s3972 + $0x34] sm:$0xf]
        %v3987 = vld [vmem:[%s3972 + $0x38] sm:$0xf]
        %v3988 = vld [vmem:[%s3972 + $0x3c] sm:$0xf]
        %v4021 = vunpack.c.l.b16 %v3940
        %v4022 = vunpack.c.l.b16 %v3941
        %v4023 = vunpack.c.l.b16 %v3942
        %v4024 = vunpack.c.l.b16 %v3943
        %v4025 = vunpack.c.l.b16 %v3944
        %v4026 = vunpack.c.l.b16 %v3945
        %v4027 = vunpack.c.l.b16 %v3946
        %v4028 = vunpack.c.l.b16 %v3947
        %v4029 = vunpack.c.l.b16 %v3948
        %v4030 = vunpack.c.l.b16 %v3949
        %v4031 = vunpack.c.l.b16 %v3950
        %v4032 = vunpack.c.l.b16 %v3951
        %v4033 = vunpack.c.l.b16 %v3952
        %v4034 = vunpack.c.l.b16 %v3953
        %v4035 = vunpack.c.l.b16 %v3954
        %v4036 = vunpack.c.l.b16 %v3955
        %v4037 = vunpack.c.l.b16 %v3956
        %v4038 = vunpack.c.l.b16 %v3957
        %v4039 = vunpack.c.l.b16 %v3958
        %v4040 = vunpack.c.l.b16 %v3959
        %v4041 = vunpack.c.l.b16 %v3960
        %v4042 = vunpack.c.l.b16 %v3961
        %v4043 = vunpack.c.l.b16 %v3962
        %v4044 = vunpack.c.l.b16 %v3963
        %v4045 = vunpack.c.l.b16 %v3964
        %v4046 = vunpack.c.l.b16 %v3965
        %v4047 = vunpack.c.l.b16 %v3966
        %v4048 = vunpack.c.l.b16 %v3967
        %v4049 = vunpack.c.l.b16 %v3968
        %v4050 = vunpack.c.l.b16 %v3969
        %v4051 = vunpack.c.l.b16 %v3970
        %v4052 = vunpack.c.l.b16 %v3971
        %v4053 = vpack.c.b16 %v4022, %v4021
        %v4054 = vpack.c.b16 %v4024, %v4023
        %v4055 = vpack.c.b16 %v4026, %v4025
        %v4056 = vpack.c.b16 %v4028, %v4027
        %v4057 = vpack.c.b16 %v4030, %v4029
        %v4058 = vpack.c.b16 %v4032, %v4031
        %v4059 = vpack.c.b16 %v4034, %v4033
        %v4060 = vpack.c.b16 %v4036, %v4035
        %v4061 = vpack.c.b16 %v4038, %v4037
        %v4062 = vpack.c.b16 %v4040, %v4039
        %v4063 = vpack.c.b16 %v4042, %v4041
        %v4064 = vpack.c.b16 %v4044, %v4043
        %v4065 = vpack.c.b16 %v4046, %v4045
        %v4066 = vpack.c.b16 %v4048, %v4047
        %v4067 = vpack.c.b16 %v4050, %v4049
        %v4068 = vpack.c.b16 %v4052, %v4051
        %v4101 = vunpack.c.l.b16 %v3973
        %v4102 = vunpack.c.l.b16 %v3974
        %v4103 = vunpack.c.l.b16 %v3975
        %v4104 = vunpack.c.l.b16 %v3976
        %v4105 = vunpack.c.l.b16 %v3977
        %v4106 = vunpack.c.l.b16 %v3978
        %v4107 = vunpack.c.l.b16 %v3979
        %v4108 = vunpack.c.l.b16 %v3980
        %v4109 = vunpack.c.l.b16 %v3981
        %v4110 = vunpack.c.l.b16 %v3982
        %v4111 = vunpack.c.l.b16 %v3983
        %v4112 = vunpack.c.l.b16 %v3984
        %v4113 = vunpack.c.l.b16 %v3985
        %v4114 = vunpack.c.l.b16 %v3986
        %v4115 = vunpack.c.l.b16 %v3987
        %v4116 = vunpack.c.l.b16 %v3988
        %v4117 = vpack.c.b16 %v4102, %v4101
        %v4118 = vpack.c.b16 %v4104, %v4103
        %v4119 = vpack.c.b16 %v4106, %v4105
        %v4120 = vpack.c.b16 %v4108, %v4107
        %v4121 = vpack.c.b16 %v4110, %v4109
        %v4122 = vpack.c.b16 %v4112, %v4111
        %v4123 = vpack.c.b16 %v4114, %v4113
        %v4124 = vpack.c.b16 %v4116, %v4115
        %4133 = vmatprep.subr.bf16.mxu0 0
        %4134 = vmatpush1.bf16.msra.mxu0 %v4117
        %4135 = vmatprep.subr.bf16.mxu0 0
        %4136 = vmatpush1.bf16.msra.mxu0 %v4118
        %4137 = vmatprep.subr.bf16.mxu0 0
        %4138 = vmatpush1.bf16.msra.mxu0 %v4119
        %4139 = vmatprep.subr.bf16.mxu0 0
        %4140 = vmatpush1.bf16.msra.mxu0 %v4120
        %4141 = vmatprep.subr.bf16.mxu0 0
        %4142 = vmatpush1.bf16.msra.mxu0 %v4121
        %4143 = vmatprep.subr.bf16.mxu0 0
        %4144 = vmatpush1.bf16.msra.mxu0 %v4122
        %4145 = vmatprep.subr.bf16.mxu0 0
        %4146 = vmatpush1.bf16.msra.mxu0 %v4123
        %4147 = vmatprep.subr.bf16.mxu0 0
        %4148 = vmatpush1.bf16.msra.mxu0 %v4124
        %4149 = vmatprep.subr.bf16.mxu0 0
        %4150 = vmatpush1.bf16.msra.mxu0 0
        %4151 = vmatprep.subr.bf16.mxu0 0
        %4152 = vmatpush1.bf16.msra.mxu0 0
        %4153 = vmatprep.subr.bf16.mxu0 0
        %4154 = vmatpush1.bf16.msra.mxu0 0
        %4155 = vmatprep.subr.bf16.mxu0 0
        %4156 = vmatpush1.bf16.msra.mxu0 0
        %4157 = vmatprep.subr.bf16.mxu0 0
        %4158 = vmatpush1.bf16.msra.mxu0 0
        %4159 = vmatprep.subr.bf16.mxu0 0
        %4160 = vmatpush1.bf16.msra.mxu0 0
        %4161 = vmatprep.subr.bf16.mxu0 0
        %4162 = vmatpush1.bf16.msra.mxu0 0
        %4163 = vmatprep.subr.bf16.mxu0 0
        %4164 = vmatpush1.bf16.msra.mxu0 0
        %4165 = vmatprep.mubr.bf16.mxu0 0
        %4166 = vmatmul.mubr.bf16.gmra.mrb[0].mxu0 %v4053
        %v4167 = vpop.f32.mrb[0].mxu0
        %v4168 = vadd.f32 0.0, %v4167
        %v4169 = vpop.f32.mrb[0].mxu0
        %v4170 = vpop.f32.mrb[0].mxu0
        %v4171 = vadd.f32 0.0, %v4170
        %v4172 = vpop.f32.mrb[0].mxu0
        %4173 = vmatprep.mubr.bf16.mxu0 0
        %4174 = vmatmul.mubr.bf16.gmra.mrb[0].mxu0 %v4054
        %v4175 = vpop.f32.mrb[0].mxu0
        %v4176 = vadd.f32 0.0, %v4175
        %v4177 = vpop.f32.mrb[0].mxu0
        %v4178 = vpop.f32.mrb[0].mxu0
        %v4179 = vadd.f32 0.0, %v4178
        %v4180 = vpop.f32.mrb[0].mxu0
        %4181 = vmatprep.mubr.bf16.mxu0 0
        %4182 = vmatmul.mubr.bf16.gmra.mrb[0].mxu0 %v4055
        %v4183 = vpop.f32.mrb[0].mxu0
        %v4184 = vadd.f32 0.0, %v4183
        %v4185 = vpop.f32.mrb[0].mxu0
        %v4186 = vpop.f32.mrb[0].mxu0
        %v4187 = vadd.f32 0.0, %v4186
        %v4188 = vpop.f32.mrb[0].mxu0
        %4189 = vmatprep.mubr.bf16.mxu0 0
        %4190 = vmatmul.mubr.bf16.gmra.mrb[0].mxu0 %v4056
        %v4191 = vpop.f32.mrb[0].mxu0
        %v4192 = vadd.f32 0.0, %v4191
        %v4193 = vpop.f32.mrb[0].mxu0
        %v4194 = vpop.f32.mrb[0].mxu0
        %v4195 = vadd.f32 0.0, %v4194
        %v4196 = vpop.f32.mrb[0].mxu0
        %4197 = vmatprep.mubr.bf16.mxu0 0
        %4198 = vmatmul.mubr.bf16.gmra.mrb[0].mxu0 %v4057
        %v4199 = vpop.f32.mrb[0].mxu0
        %v4200 = vadd.f32 0.0, %v4199
        %v4201 = vpop.f32.mrb[0].mxu0
        %v4202 = vpop.f32.mrb[0].mxu0
        %v4203 = vadd.f32 0.0, %v4202
        %v4204 = vpop.f32.mrb[0].mxu0
        %4205 = vmatprep.mubr.bf16.mxu0 0
        %4206 = vmatmul.mubr.bf16.gmra.mrb[0].mxu0 %v4058
        %v4207 = vpop.f32.mrb[0].mxu0
        %v4208 = vadd.f32 0.0, %v4207
        %v4209 = vpop.f32.mrb[0].mxu0
        %v4210 = vpop.f32.mrb[0].mxu0
        %v4211 = vadd.f32 0.0, %v4210
        %v4212 = vpop.f32.mrb[0].mxu0
        %4213 = vmatprep.mubr.bf16.mxu0 0
        %4214 = vmatmul.mubr.bf16.gmra.mrb[0].mxu0 %v4059
        %v4215 = vpop.f32.mrb[0].mxu0
        %v4216 = vadd.f32 0.0, %v4215
        %v4217 = vpop.f32.mrb[0].mxu0
        %v4218 = vpop.f32.mrb[0].mxu0
        %v4219 = vadd.f32 0.0, %v4218
        %v4220 = vpop.f32.mrb[0].mxu0
        %4221 = vmatprep.mubr.bf16.mxu0 0
        %4222 = vmatmul.mubr.bf16.gmra.mrb[0].mxu0 %v4060
        %v4223 = vpop.f32.mrb[0].mxu0
        %v4224 = vadd.f32 0.0, %v4223
        %v4225 = vpop.f32.mrb[0].mxu0
        %v4226 = vpop.f32.mrb[0].mxu0
        %v4227 = vadd.f32 0.0, %v4226
        %v4228 = vpop.f32.mrb[0].mxu0
        %4229 = vmatprep.mubr.bf16.mxu0 0
        %4230 = vmatmul.mubr.bf16.gmra.mrb[0].mxu0 %v4061
        %v4231 = vpop.f32.mrb[0].mxu0
        %v4232 = vadd.f32 0.0, %v4231
        %v4233 = vpop.f32.mrb[0].mxu0
        %v4234 = vpop.f32.mrb[0].mxu0
        %v4235 = vadd.f32 0.0, %v4234
        %v4236 = vpop.f32.mrb[0].mxu0
        %4237 = vmatprep.mubr.bf16.mxu0 0
        %4238 = vmatmul.mubr.bf16.gmra.mrb[0].mxu0 %v4062
        %v4239 = vpop.f32.mrb[0].mxu0
        %v4240 = vadd.f32 0.0, %v4239
        %v4241 = vpop.f32.mrb[0].mxu0
        %v4242 = vpop.f32.mrb[0].mxu0
        %v4243 = vadd.f32 0.0, %v4242
        %v4244 = vpop.f32.mrb[0].mxu0
        %4245 = vmatprep.mubr.bf16.mxu0 0
        %4246 = vmatmul.mubr.bf16.gmra.mrb[0].mxu0 %v4063
        %v4247 = vpop.f32.mrb[0].mxu0
        %v4248 = vadd.f32 0.0, %v4247
        %v4249 = vpop.f32.mrb[0].mxu0
        %v4250 = vpop.f32.mrb[0].mxu0
        %v4251 = vadd.f32 0.0, %v4250
        %v4252 = vpop.f32.mrb[0].mxu0
        %4253 = vmatprep.mubr.bf16.mxu0 0
        %4254 = vmatmul.mubr.bf16.gmra.mrb[0].mxu0 %v4064
        %v4255 = vpop.f32.mrb[0].mxu0
        %v4256 = vadd.f32 0.0, %v4255
        %v4257 = vpop.f32.mrb[0].mxu0
        %v4258 = vpop.f32.mrb[0].mxu0
        %v4259 = vadd.f32 0.0, %v4258
        %v4260 = vpop.f32.mrb[0].mxu0
        %4261 = vmatprep.mubr.bf16.mxu0 0
        %4262 = vmatmul.mubr.bf16.gmra.mrb[0].mxu0 %v4065
        %v4263 = vpop.f32.mrb[0].mxu0
        %v4264 = vadd.f32 0.0, %v4263
        %v4265 = vpop.f32.mrb[0].mxu0
        %v4266 = vpop.f32.mrb[0].mxu0
        %v4267 = vadd.f32 0.0, %v4266
        %v4268 = vpop.f32.mrb[0].mxu0
        %4269 = vmatprep.mubr.bf16.mxu0 0
        %4270 = vmatmul.mubr.bf16.gmra.mrb[0].mxu0 %v4066
        %v4271 = vpop.f32.mrb[0].mxu0
        %v4272 = vadd.f32 0.0, %v4271
        %v4273 = vpop.f32.mrb[0].mxu0
        %v4274 = vpop.f32.mrb[0].mxu0
        %v4275 = vadd.f32 0.0, %v4274
        %v4276 = vpop.f32.mrb[0].mxu0
        %4277 = vmatprep.mubr.bf16.mxu0 0
        %4278 = vmatmul.mubr.bf16.gmra.mrb[0].mxu0 %v4067
        %v4279 = vpop.f32.mrb[0].mxu0
        %v4280 = vadd.f32 0.0, %v4279
        %v4281 = vpop.f32.mrb[0].mxu0
        %v4282 = vpop.f32.mrb[0].mxu0
        %v4283 = vadd.f32 0.0, %v4282
        %v4284 = vpop.f32.mrb[0].mxu0
        %4285 = vmatprep.mubr.bf16.mxu0 0
        %4286 = vmatmul.mubr.bf16.gmra.mrb[0].mxu0 %v4068
        %v4287 = vpop.f32.mrb[0].mxu0
        %v4288 = vadd.f32 0.0, %v4287
        %v4289 = vpop.f32.mrb[0].mxu0
        %v4290 = vpop.f32.mrb[0].mxu0
        %v4291 = vadd.f32 0.0, %v4290
        %v4292 = vpop.f32.mrb[0].mxu0
        %4293 = vdwg.mxu0
        %v4294 = vadd.f32 %v3907, %v4168
        %v4295 = vadd.f32 %v3908, %v4171
        %v4296 = vadd.f32 %v3909, %v4176
        %v4297 = vadd.f32 %v3910, %v4179
        %v4298 = vadd.f32 %v3911, %v4184
        %v4299 = vadd.f32 %v3912, %v4187
        %v4300 = vadd.f32 %v3913, %v4192
        %v4301 = vadd.f32 %v3914, %v4195
        %v4302 = vadd.f32 %v3915, %v4200
        %v4303 = vadd.f32 %v3916, %v4203
        %v4304 = vadd.f32 %v3917, %v4208
        %v4305 = vadd.f32 %v3918, %v4211
        %v4306 = vadd.f32 %v3919, %v4216
        %v4307 = vadd.f32 %v3920, %v4219
        %v4308 = vadd.f32 %v3921, %v4224
        %v4309 = vadd.f32 %v3922, %v4227
        %v4310 = vadd.f32 %v3923, %v4232
        %v4311 = vadd.f32 %v3924, %v4235
        %v4312 = vadd.f32 %v3925, %v4240
        %v4313 = vadd.f32 %v3926, %v4243
        %v4314 = vadd.f32 %v3927, %v4248
        %v4315 = vadd.f32 %v3928, %v4251
        %v4316 = vadd.f32 %v3929, %v4256
        %v4317 = vadd.f32 %v3930, %v4259
        %v4318 = vadd.f32 %v3931, %v4264
        %v4319 = vadd.f32 %v3932, %v4267
        %v4320 = vadd.f32 %v3933, %v4272
        %v4321 = vadd.f32 %v3934, %v4275
        %v4322 = vadd.f32 %v3935, %v4280
        %v4323 = vadd.f32 %v3936, %v4283
        %v4324 = vadd.f32 %v3937, %v4288
        %v4325 = vadd.f32 %v3938, %v4291
        %v4326 = vld [vmem:[%s3939] sm:$0xf]
        %v4327 = vld [vmem:[%s3939 + $0x4] sm:$0xf]
        %v4328 = vld [vmem:[%s3939 + $0x8] sm:$0x1]
        %v4329 = vld [vmem:[%s3939 + $0xc] sm:$0xf]
        %v4330 = vld [vmem:[%s3939 + $0x10] sm:$0xf]
        %v4331 = vld [vmem:[%s3939 + $0x14] sm:$0x1]
        %v4332 = vld [vmem:[%s3939 + $0x18] sm:$0xf]
        %v4333 = vld [vmem:[%s3939 + $0x1c] sm:$0xf]
        %v4334 = vld [vmem:[%s3939 + $0x20] sm:$0x1]
        %v4335 = vld [vmem:[%s3939 + $0x24] sm:$0xf]
        %v4336 = vld [vmem:[%s3939 + $0x28] sm:$0xf]
        %v4337 = vld [vmem:[%s3939 + $0x2c] sm:$0x1]
        %v4338 = vld [vmem:[%s3939 + $0x30] sm:$0xf]
        %v4339 = vld [vmem:[%s3939 + $0x34] sm:$0xf]
        %v4340 = vld [vmem:[%s3939 + $0x38] sm:$0x1]
        %v4341 = vld [vmem:[%s3939 + $0x3c] sm:$0xf]
        %v4342 = vld [vmem:[%s3939 + $0x40] sm:$0xf]
        %v4343 = vld [vmem:[%s3939 + $0x44] sm:$0x1]
        %v4344 = vld [vmem:[%s3939 + $0x48] sm:$0xf]
        %v4345 = vld [vmem:[%s3939 + $0x4c] sm:$0xf]
        %v4346 = vld [vmem:[%s3939 + $0x50] sm:$0x1]
        %v4347 = vld [vmem:[%s3939 + $0x54] sm:$0xf]
        %v4348 = vld [vmem:[%s3939 + $0x58] sm:$0xf]
        %v4349 = vld [vmem:[%s3939 + $0x5c] sm:$0x1]
        %v4350 = vld [vmem:[%s3939 + $0x60] sm:$0xf]
        %v4351 = vld [vmem:[%s3939 + $0x64] sm:$0xf]
        %v4352 = vld [vmem:[%s3939 + $0x68] sm:$0x1]
        %v4353 = vld [vmem:[%s3939 + $0x6c] sm:$0xf]
        %v4354 = vld [vmem:[%s3939 + $0x70] sm:$0xf]
        %v4355 = vld [vmem:[%s3939 + $0x74] sm:$0x1]
        %v4356 = vld [vmem:[%s3939 + $0x78] sm:$0xf]
        %v4357 = vld [vmem:[%s3939 + $0x7c] sm:$0xf]
        %v4358 = vld [vmem:[%s3939 + $0x80] sm:$0x1]
        %v4359 = vld [vmem:[%s3939 + $0x84] sm:$0xf]
        %v4360 = vld [vmem:[%s3939 + $0x88] sm:$0xf]
        %v4361 = vld [vmem:[%s3939 + $0x8c] sm:$0x1]
        %v4362 = vld [vmem:[%s3939 + $0x90] sm:$0xf]
        %v4363 = vld [vmem:[%s3939 + $0x94] sm:$0xf]
        %v4364 = vld [vmem:[%s3939 + $0x98] sm:$0x1]
        %v4365 = vld [vmem:[%s3939 + $0x9c] sm:$0xf]
        %v4366 = vld [vmem:[%s3939 + $0xa0] sm:$0xf]
        %v4367 = vld [vmem:[%s3939 + $0xa4] sm:$0x1]
        %v4368 = vld [vmem:[%s3939 + $0xa8] sm:$0xf]
        %v4369 = vld [vmem:[%s3939 + $0xac] sm:$0xf]
        %v4370 = vld [vmem:[%s3939 + $0xb0] sm:$0x1]
        %v4371 = vld [vmem:[%s3939 + $0xb4] sm:$0xf]
        %v4372 = vld [vmem:[%s3939 + $0xb8] sm:$0xf]
        %v4373 = vld [vmem:[%s3939 + $0xbc] sm:$0x1]
        %v4375 = vshrl.u32 %v4326, 16
        %v4377 = vrot.slane %v4375, 4
        %v4378 = vshll.u32 %v4326, 16
        %v4380 = vrot.slane %v4378, 5
        %v4381 = vor.u32 %v4377, %v4380
        %v4382 = vrot.slane %v4381, 4
        %v4384 = vshll.u32 %v4327, 16
        %v4386 = vrot.slane %v4384, 5
        %v4387 = vsel %vm836, %v4382, %v4386
        %v4388 = vshrl.u32 %v4327, 16
        %v4390 = vrot.slane %v4388, 4
        %v4391 = vor.u32 %v4390, %v4386
        %v4392 = vrot.slane %v4391, 4
        %v4394 = vshll.u32 %v4328, 16
        %v4396 = vrot.slane %v4394, 5
        %v4397 = vsel %vm836, %v4392, %v4396
        %v4399 = vshrl.u32 %v4329, 16
        %v4401 = vrot.slane %v4399, 4
        %v4402 = vshll.u32 %v4329, 16
        %v4404 = vrot.slane %v4402, 5
        %v4405 = vor.u32 %v4401, %v4404
        %v4406 = vrot.slane %v4405, 4
        %v4408 = vshll.u32 %v4330, 16
        %v4410 = vrot.slane %v4408, 5
        %v4411 = vsel %vm836, %v4406, %v4410
        %v4412 = vshrl.u32 %v4330, 16
        %v4414 = vrot.slane %v4412, 4
        %v4415 = vor.u32 %v4414, %v4410
        %v4416 = vrot.slane %v4415, 4
        %v4418 = vshll.u32 %v4331, 16
        %v4420 = vrot.slane %v4418, 5
        %v4421 = vsel %vm836, %v4416, %v4420
        %v4423 = vshrl.u32 %v4332, 16
        %v4425 = vrot.slane %v4423, 4
        %v4426 = vshll.u32 %v4332, 16
        %v4428 = vrot.slane %v4426, 5
        %v4429 = vor.u32 %v4425, %v4428
        %v4430 = vrot.slane %v4429, 4
        %v4432 = vshll.u32 %v4333, 16
        %v4434 = vrot.slane %v4432, 5
        %v4435 = vsel %vm836, %v4430, %v4434
        %v4436 = vshrl.u32 %v4333, 16
        %v4438 = vrot.slane %v4436, 4
        %v4439 = vor.u32 %v4438, %v4434
        %v4440 = vrot.slane %v4439, 4
        %v4442 = vshll.u32 %v4334, 16
        %v4444 = vrot.slane %v4442, 5
        %v4445 = vsel %vm836, %v4440, %v4444
        %v4447 = vshrl.u32 %v4335, 16
        %v4449 = vrot.slane %v4447, 4
        %v4450 = vshll.u32 %v4335, 16
        %v4452 = vrot.slane %v4450, 5
        %v4453 = vor.u32 %v4449, %v4452
        %v4454 = vrot.slane %v4453, 4
        %v4456 = vshll.u32 %v4336, 16
        %v4458 = vrot.slane %v4456, 5
        %v4459 = vsel %vm836, %v4454, %v4458
        %v4460 = vshrl.u32 %v4336, 16
        %v4462 = vrot.slane %v4460, 4
        %v4463 = vor.u32 %v4462, %v4458
        %v4464 = vrot.slane %v4463, 4
        %v4466 = vshll.u32 %v4337, 16
        %v4468 = vrot.slane %v4466, 5
        %v4469 = vsel %vm836, %v4464, %v4468
        %v4471 = vshrl.u32 %v4338, 16
        %v4473 = vrot.slane %v4471, 4
        %v4474 = vshll.u32 %v4338, 16
        %v4476 = vrot.slane %v4474, 5
        %v4477 = vor.u32 %v4473, %v4476
        %v4478 = vrot.slane %v4477, 4
        %v4480 = vshll.u32 %v4339, 16
        %v4482 = vrot.slane %v4480, 5
        %v4483 = vsel %vm836, %v4478, %v4482
        %v4484 = vshrl.u32 %v4339, 16
        %v4486 = vrot.slane %v4484, 4
        %v4487 = vor.u32 %v4486, %v4482
        %v4488 = vrot.slane %v4487, 4
        %v4490 = vshll.u32 %v4340, 16
        %v4492 = vrot.slane %v4490, 5
        %v4493 = vsel %vm836, %v4488, %v4492
        %v4495 = vshrl.u32 %v4341, 16
        %v4497 = vrot.slane %v4495, 4
        %v4498 = vshll.u32 %v4341, 16
        %v4500 = vrot.slane %v4498, 5
        %v4501 = vor.u32 %v4497, %v4500
        %v4502 = vrot.slane %v4501, 4
        %v4504 = vshll.u32 %v4342, 16
        %v4506 = vrot.slane %v4504, 5
        %v4507 = vsel %vm836, %v4502, %v4506
        %v4508 = vshrl.u32 %v4342, 16
        %v4510 = vrot.slane %v4508, 4
        %v4511 = vor.u32 %v4510, %v4506
        %v4512 = vrot.slane %v4511, 4
        %v4514 = vshll.u32 %v4343, 16
        %v4516 = vrot.slane %v4514, 5
        %v4517 = vsel %vm836, %v4512, %v4516
        %v4519 = vshrl.u32 %v4344, 16
        %v4521 = vrot.slane %v4519, 4
        %v4522 = vshll.u32 %v4344, 16
        %v4524 = vrot.slane %v4522, 5
        %v4525 = vor.u32 %v4521, %v4524
        %v4526 = vrot.slane %v4525, 4
        %v4528 = vshll.u32 %v4345, 16
        %v4530 = vrot.slane %v4528, 5
        %v4531 = vsel %vm836, %v4526, %v4530
        %v4532 = vshrl.u32 %v4345, 16
        %v4534 = vrot.slane %v4532, 4
        %v4535 = vor.u32 %v4534, %v4530
        %v4536 = vrot.slane %v4535, 4
        %v4538 = vshll.u32 %v4346, 16
        %v4540 = vrot.slane %v4538, 5
        %v4541 = vsel %vm836, %v4536, %v4540
        %v4543 = vshrl.u32 %v4347, 16
        %v4545 = vrot.slane %v4543, 4
        %v4546 = vshll.u32 %v4347, 16
        %v4548 = vrot.slane %v4546, 5
        %v4549 = vor.u32 %v4545, %v4548
        %v4550 = vrot.slane %v4549, 4
        %v4552 = vshll.u32 %v4348, 16
        %v4554 = vrot.slane %v4552, 5
        %v4555 = vsel %vm836, %v4550, %v4554
        %v4556 = vshrl.u32 %v4348, 16
        %v4558 = vrot.slane %v4556, 4
        %v4559 = vor.u32 %v4558, %v4554
        %v4560 = vrot.slane %v4559, 4
        %v4562 = vshll.u32 %v4349, 16
        %v4564 = vrot.slane %v4562, 5
        %v4565 = vsel %vm836, %v4560, %v4564
        %v4567 = vshrl.u32 %v4350, 16
        %v4569 = vrot.slane %v4567, 4
        %v4570 = vshll.u32 %v4350, 16
        %v4572 = vrot.slane %v4570, 5
        %v4573 = vor.u32 %v4569, %v4572
        %v4574 = vrot.slane %v4573, 4
        %v4576 = vshll.u32 %v4351, 16
        %v4578 = vrot.slane %v4576, 5
        %v4579 = vsel %vm836, %v4574, %v4578
        %v4580 = vshrl.u32 %v4351, 16
        %v4582 = vrot.slane %v4580, 4
        %v4583 = vor.u32 %v4582, %v4578
        %v4584 = vrot.slane %v4583, 4
        %v4586 = vshll.u32 %v4352, 16
        %v4588 = vrot.slane %v4586, 5
        %v4589 = vsel %vm836, %v4584, %v4588
        %v4591 = vshrl.u32 %v4353, 16
        %v4593 = vrot.slane %v4591, 4
        %v4594 = vshll.u32 %v4353, 16
        %v4596 = vrot.slane %v4594, 5
        %v4597 = vor.u32 %v4593, %v4596
        %v4598 = vrot.slane %v4597, 4
        %v4600 = vshll.u32 %v4354, 16
        %v4602 = vrot.slane %v4600, 5
        %v4603 = vsel %vm836, %v4598, %v4602
        %v4604 = vshrl.u32 %v4354, 16
        %v4606 = vrot.slane %v4604, 4
        %v4607 = vor.u32 %v4606, %v4602
        %v4608 = vrot.slane %v4607, 4
        %v4610 = vshll.u32 %v4355, 16
        %v4612 = vrot.slane %v4610, 5
        %v4613 = vsel %vm836, %v4608, %v4612
        %v4615 = vshrl.u32 %v4356, 16
        %v4617 = vrot.slane %v4615, 4
        %v4618 = vshll.u32 %v4356, 16
        %v4620 = vrot.slane %v4618, 5
        %v4621 = vor.u32 %v4617, %v4620
        %v4622 = vrot.slane %v4621, 4
        %v4624 = vshll.u32 %v4357, 16
        %v4626 = vrot.slane %v4624, 5
        %v4627 = vsel %vm836, %v4622, %v4626
        %v4628 = vshrl.u32 %v4357, 16
        %v4630 = vrot.slane %v4628, 4
        %v4631 = vor.u32 %v4630, %v4626
        %v4632 = vrot.slane %v4631, 4
        %v4634 = vshll.u32 %v4358, 16
        %v4636 = vrot.slane %v4634, 5
        %v4637 = vsel %vm836, %v4632, %v4636
        %v4639 = vshrl.u32 %v4359, 16
        %v4641 = vrot.slane %v4639, 4
        %v4642 = vshll.u32 %v4359, 16
        %v4644 = vrot.slane %v4642, 5
        %v4645 = vor.u32 %v4641, %v4644
        %v4646 = vrot.slane %v4645, 4
        %v4648 = vshll.u32 %v4360, 16
        %v4650 = vrot.slane %v4648, 5
        %v4651 = vsel %vm836, %v4646, %v4650
        %v4652 = vshrl.u32 %v4360, 16
        %v4654 = vrot.slane %v4652, 4
        %v4655 = vor.u32 %v4654, %v4650
        %v4656 = vrot.slane %v4655, 4
        %v4658 = vshll.u32 %v4361, 16
        %v4660 = vrot.slane %v4658, 5
        %v4661 = vsel %vm836, %v4656, %v4660
        %v4663 = vshrl.u32 %v4362, 16
        %v4665 = vrot.slane %v4663, 4
        %v4666 = vshll.u32 %v4362, 16
        %v4668 = vrot.slane %v4666, 5
        %v4669 = vor.u32 %v4665, %v4668
        %v4670 = vrot.slane %v4669, 4
        %v4672 = vshll.u32 %v4363, 16
        %v4674 = vrot.slane %v4672, 5
        %v4675 = vsel %vm836, %v4670, %v4674
        %v4676 = vshrl.u32 %v4363, 16
        %v4678 = vrot.slane %v4676, 4
        %v4679 = vor.u32 %v4678, %v4674
        %v4680 = vrot.slane %v4679, 4
        %v4682 = vshll.u32 %v4364, 16
        %v4684 = vrot.slane %v4682, 5
        %v4685 = vsel %vm836, %v4680, %v4684
        %v4687 = vshrl.u32 %v4365, 16
        %v4689 = vrot.slane %v4687, 4
        %v4690 = vshll.u32 %v4365, 16
        %v4692 = vrot.slane %v4690, 5
        %v4693 = vor.u32 %v4689, %v4692
        %v4694 = vrot.slane %v4693, 4
        %v4696 = vshll.u32 %v4366, 16
        %v4698 = vrot.slane %v4696, 5
        %v4699 = vsel %vm836, %v4694, %v4698
        %v4700 = vshrl.u32 %v4366, 16
        %v4702 = vrot.slane %v4700, 4
        %v4703 = vor.u32 %v4702, %v4698
        %v4704 = vrot.slane %v4703, 4
        %v4706 = vshll.u32 %v4367, 16
        %v4708 = vrot.slane %v4706, 5
        %v4709 = vsel %vm836, %v4704, %v4708
        %v4711 = vshrl.u32 %v4368, 16
        %v4713 = vrot.slane %v4711, 4
        %v4714 = vshll.u32 %v4368, 16
        %v4716 = vrot.slane %v4714, 5
        %v4717 = vor.u32 %v4713, %v4716
        %v4718 = vrot.slane %v4717, 4
        %v4720 = vshll.u32 %v4369, 16
        %v4722 = vrot.slane %v4720, 5
        %v4723 = vsel %vm836, %v4718, %v4722
        %v4724 = vshrl.u32 %v4369, 16
        %v4726 = vrot.slane %v4724, 4
        %v4727 = vor.u32 %v4726, %v4722
        %v4728 = vrot.slane %v4727, 4
        %v4730 = vshll.u32 %v4370, 16
        %v4732 = vrot.slane %v4730, 5
        %v4733 = vsel %vm836, %v4728, %v4732
        %v4735 = vshrl.u32 %v4371, 16
        %v4737 = vrot.slane %v4735, 4
        %v4738 = vshll.u32 %v4371, 16
        %v4740 = vrot.slane %v4738, 5
        %v4741 = vor.u32 %v4737, %v4740
        %v4742 = vrot.slane %v4741, 4
        %v4744 = vshll.u32 %v4372, 16
        %v4746 = vrot.slane %v4744, 5
        %v4747 = vsel %vm836, %v4742, %v4746
        %v4748 = vshrl.u32 %v4372, 16
        %v4750 = vrot.slane %v4748, 4
        %v4751 = vor.u32 %v4750, %v4746
        %v4752 = vrot.slane %v4751, 4
        %v4754 = vshll.u32 %v4373, 16
        %v4756 = vrot.slane %v4754, 5
        %v4757 = vsel %vm836, %v4752, %v4756
        %s4758 = scalar_lea.vmem [#allocation6], 448
        %v4759 = vld [vmem:[%s4758] sm:$0xf]
        %v4760 = vld [vmem:[%s4758 + $0x4] sm:$0xf]
        %v4761 = vld [vmem:[%s4758 + $0x8] sm:$0xf]
        %v4762 = vld [vmem:[%s4758 + $0xc] sm:$0xf]
        %v4763 = vld [vmem:[%s4758 + $0x10] sm:$0xf]
        %v4764 = vld [vmem:[%s4758 + $0x14] sm:$0xf]
        %v4765 = vld [vmem:[%s4758 + $0x18] sm:$0xf]
        %v4766 = vld [vmem:[%s4758 + $0x1c] sm:$0xf]
        %v4767 = vld [vmem:[%s4758 + $0x20] sm:$0xf]
        %v4768 = vld [vmem:[%s4758 + $0x24] sm:$0xf]
        %v4769 = vld [vmem:[%s4758 + $0x28] sm:$0xf]
        %v4770 = vld [vmem:[%s4758 + $0x2c] sm:$0xf]
        %v4771 = vld [vmem:[%s4758 + $0x30] sm:$0xf]
        %v4772 = vld [vmem:[%s4758 + $0x34] sm:$0xf]
        %v4773 = vld [vmem:[%s4758 + $0x38] sm:$0xf]
        %v4774 = vld [vmem:[%s4758 + $0x3c] sm:$0xf]
        %v4775 = vunpack.c.l.b16 %v4387
        %v4776 = vunpack.c.l.b16 %v4397
        %v4777 = vunpack.c.l.b16 %v4411
        %v4778 = vunpack.c.l.b16 %v4421
        %v4779 = vunpack.c.l.b16 %v4435
        %v4780 = vunpack.c.l.b16 %v4445
        %v4781 = vunpack.c.l.b16 %v4459
        %v4782 = vunpack.c.l.b16 %v4469
        %v4783 = vunpack.c.l.b16 %v4483
        %v4784 = vunpack.c.l.b16 %v4493
        %v4785 = vunpack.c.l.b16 %v4507
        %v4786 = vunpack.c.l.b16 %v4517
        %v4787 = vunpack.c.l.b16 %v4531
        %v4788 = vunpack.c.l.b16 %v4541
        %v4789 = vunpack.c.l.b16 %v4555
        %v4790 = vunpack.c.l.b16 %v4565
        %v4791 = vunpack.c.l.b16 %v4579
        %v4792 = vunpack.c.l.b16 %v4589
        %v4793 = vunpack.c.l.b16 %v4603
        %v4794 = vunpack.c.l.b16 %v4613
        %v4795 = vunpack.c.l.b16 %v4627
        %v4796 = vunpack.c.l.b16 %v4637
        %v4797 = vunpack.c.l.b16 %v4651
        %v4798 = vunpack.c.l.b16 %v4661
        %v4799 = vunpack.c.l.b16 %v4675
        %v4800 = vunpack.c.l.b16 %v4685
        %v4801 = vunpack.c.l.b16 %v4699
        %v4802 = vunpack.c.l.b16 %v4709
        %v4803 = vunpack.c.l.b16 %v4723
        %v4804 = vunpack.c.l.b16 %v4733
        %v4805 = vunpack.c.l.b16 %v4747
        %v4806 = vunpack.c.l.b16 %v4757
        %v4807 = vpack.c.b16 %v4776, %v4775
        %v4808 = vpack.c.b16 %v4778, %v4777
        %v4809 = vpack.c.b16 %v4780, %v4779
        %v4810 = vpack.c.b16 %v4782, %v4781
        %v4811 = vpack.c.b16 %v4784, %v4783
        %v4812 = vpack.c.b16 %v4786, %v4785
        %v4813 = vpack.c.b16 %v4788, %v4787
        %v4814 = vpack.c.b16 %v4790, %v4789
        %v4815 = vpack.c.b16 %v4792, %v4791
        %v4816 = vpack.c.b16 %v4794, %v4793
        %v4817 = vpack.c.b16 %v4796, %v4795
        %v4818 = vpack.c.b16 %v4798, %v4797
        %v4819 = vpack.c.b16 %v4800, %v4799
        %v4820 = vpack.c.b16 %v4802, %v4801
        %v4821 = vpack.c.b16 %v4804, %v4803
        %v4822 = vpack.c.b16 %v4806, %v4805
        %v4855 = vunpack.c.l.b16 %v4759
        %v4856 = vunpack.c.l.b16 %v4760
        %v4857 = vunpack.c.l.b16 %v4761
        %v4858 = vunpack.c.l.b16 %v4762
        %v4859 = vunpack.c.l.b16 %v4763
        %v4860 = vunpack.c.l.b16 %v4764
        %v4861 = vunpack.c.l.b16 %v4765
        %v4862 = vunpack.c.l.b16 %v4766
        %v4863 = vunpack.c.l.b16 %v4767
        %v4864 = vunpack.c.l.b16 %v4768
        %v4865 = vunpack.c.l.b16 %v4769
        %v4866 = vunpack.c.l.b16 %v4770
        %v4867 = vunpack.c.l.b16 %v4771
        %v4868 = vunpack.c.l.b16 %v4772
        %v4869 = vunpack.c.l.b16 %v4773
        %v4870 = vunpack.c.l.b16 %v4774
        %v4871 = vpack.c.b16 %v4856, %v4855
        %v4872 = vpack.c.b16 %v4858, %v4857
        %v4873 = vpack.c.b16 %v4860, %v4859
        %v4874 = vpack.c.b16 %v4862, %v4861
        %v4875 = vpack.c.b16 %v4864, %v4863
        %v4876 = vpack.c.b16 %v4866, %v4865
        %v4877 = vpack.c.b16 %v4868, %v4867
        %v4878 = vpack.c.b16 %v4870, %v4869
        %4887 = vmatprep.subr.bf16.mxu0 0
        %4888 = vmatpush1.bf16.msra.mxu0 %v4871
        %4889 = vmatprep.subr.bf16.mxu0 0
        %4890 = vmatpush1.bf16.msra.mxu0 %v4872
        %4891 = vmatprep.subr.bf16.mxu0 0
        %4892 = vmatpush1.bf16.msra.mxu0 %v4873
        %4893 = vmatprep.subr.bf16.mxu0 0
        %4894 = vmatpush1.bf16.msra.mxu0 %v4874
        %4895 = vmatprep.subr.bf16.mxu0 0
        %4896 = vmatpush1.bf16.msra.mxu0 %v4875
        %4897 = vmatprep.subr.bf16.mxu0 0
        %4898 = vmatpush1.bf16.msra.mxu0 %v4876
        %4899 = vmatprep.subr.bf16.mxu0 0
        %4900 = vmatpush1.bf16.msra.mxu0 %v4877
        %4901 = vmatprep.subr.bf16.mxu0 0
        %4902 = vmatpush1.bf16.msra.mxu0 %v4878
        %4903 = vmatprep.subr.bf16.mxu0 0
        %4904 = vmatpush1.bf16.msra.mxu0 0
        %4905 = vmatprep.subr.bf16.mxu0 0
        %4906 = vmatpush1.bf16.msra.mxu0 0
        %4907 = vmatprep.subr.bf16.mxu0 0
        %4908 = vmatpush1.bf16.msra.mxu0 0
        %4909 = vmatprep.subr.bf16.mxu0 0
        %4910 = vmatpush1.bf16.msra.mxu0 0
        %4911 = vmatprep.subr.bf16.mxu0 0
        %4912 = vmatpush1.bf16.msra.mxu0 0
        %4913 = vmatprep.subr.bf16.mxu0 0
        %4914 = vmatpush1.bf16.msra.mxu0 0
        %4915 = vmatprep.subr.bf16.mxu0 0
        %4916 = vmatpush1.bf16.msra.mxu0 0
        %4917 = vmatprep.subr.bf16.mxu0 0
        %4918 = vmatpush1.bf16.msra.mxu0 0
        %4919 = vmatprep.mubr.bf16.mxu0 0
        %4920 = vmatmul.mubr.bf16.gmra.mrb[0].mxu0 %v4807
        %v4921 = vpop.f32.mrb[0].mxu0
        %v4922 = vadd.f32 0.0, %v4921
        %v4923 = vpop.f32.mrb[0].mxu0
        %v4924 = vpop.f32.mrb[0].mxu0
        %v4925 = vadd.f32 0.0, %v4924
        %v4926 = vpop.f32.mrb[0].mxu0
        %4927 = vmatprep.mubr.bf16.mxu0 0
        %4928 = vmatmul.mubr.bf16.gmra.mrb[0].mxu0 %v4808
        %v4929 = vpop.f32.mrb[0].mxu0
        %v4930 = vadd.f32 0.0, %v4929
        %v4931 = vpop.f32.mrb[0].mxu0
        %v4932 = vpop.f32.mrb[0].mxu0
        %v4933 = vadd.f32 0.0, %v4932
        %v4934 = vpop.f32.mrb[0].mxu0
        %4935 = vmatprep.mubr.bf16.mxu0 0
        %4936 = vmatmul.mubr.bf16.gmra.mrb[0].mxu0 %v4809
        %v4937 = vpop.f32.mrb[0].mxu0
        %v4938 = vadd.f32 0.0, %v4937
        %v4939 = vpop.f32.mrb[0].mxu0
        %v4940 = vpop.f32.mrb[0].mxu0
        %v4941 = vadd.f32 0.0, %v4940
        %v4942 = vpop.f32.mrb[0].mxu0
        %4943 = vmatprep.mubr.bf16.mxu0 0
        %4944 = vmatmul.mubr.bf16.gmra.mrb[0].mxu0 %v4810
        %v4945 = vpop.f32.mrb[0].mxu0
        %v4946 = vadd.f32 0.0, %v4945
        %v4947 = vpop.f32.mrb[0].mxu0
        %v4948 = vpop.f32.mrb[0].mxu0
        %v4949 = vadd.f32 0.0, %v4948
        %v4950 = vpop.f32.mrb[0].mxu0
        %4951 = vmatprep.mubr.bf16.mxu0 0
        %4952 = vmatmul.mubr.bf16.gmra.mrb[0].mxu0 %v4811
        %v4953 = vpop.f32.mrb[0].mxu0
        %v4954 = vadd.f32 0.0, %v4953
        %v4955 = vpop.f32.mrb[0].mxu0
        %v4956 = vpop.f32.mrb[0].mxu0
        %v4957 = vadd.f32 0.0, %v4956
        %v4958 = vpop.f32.mrb[0].mxu0
        %4959 = vmatprep.mubr.bf16.mxu0 0
        %4960 = vmatmul.mubr.bf16.gmra.mrb[0].mxu0 %v4812
        %v4961 = vpop.f32.mrb[0].mxu0
        %v4962 = vadd.f32 0.0, %v4961
        %v4963 = vpop.f32.mrb[0].mxu0
        %v4964 = vpop.f32.mrb[0].mxu0
        %v4965 = vadd.f32 0.0, %v4964
        %v4966 = vpop.f32.mrb[0].mxu0
        %4967 = vmatprep.mubr.bf16.mxu0 0
        %4968 = vmatmul.mubr.bf16.gmra.mrb[0].mxu0 %v4813
        %v4969 = vpop.f32.mrb[0].mxu0
        %v4970 = vadd.f32 0.0, %v4969
        %v4971 = vpop.f32.mrb[0].mxu0
        %v4972 = vpop.f32.mrb[0].mxu0
        %v4973 = vadd.f32 0.0, %v4972
        %v4974 = vpop.f32.mrb[0].mxu0
        %4975 = vmatprep.mubr.bf16.mxu0 0
        %4976 = vmatmul.mubr.bf16.gmra.mrb[0].mxu0 %v4814
        %v4977 = vpop.f32.mrb[0].mxu0
        %v4978 = vadd.f32 0.0, %v4977
        %v4979 = vpop.f32.mrb[0].mxu0
        %v4980 = vpop.f32.mrb[0].mxu0
        %v4981 = vadd.f32 0.0, %v4980
        %v4982 = vpop.f32.mrb[0].mxu0
        %4983 = vmatprep.mubr.bf16.mxu0 0
        %4984 = vmatmul.mubr.bf16.gmra.mrb[0].mxu0 %v4815
        %v4985 = vpop.f32.mrb[0].mxu0
        %v4986 = vadd.f32 0.0, %v4985
        %v4987 = vpop.f32.mrb[0].mxu0
        %v4988 = vpop.f32.mrb[0].mxu0
        %v4989 = vadd.f32 0.0, %v4988
        %v4990 = vpop.f32.mrb[0].mxu0
        %4991 = vmatprep.mubr.bf16.mxu0 0
        %4992 = vmatmul.mubr.bf16.gmra.mrb[0].mxu0 %v4816
        %v4993 = vpop.f32.mrb[0].mxu0
        %v4994 = vadd.f32 0.0, %v4993
        %v4995 = vpop.f32.mrb[0].mxu0
        %v4996 = vpop.f32.mrb[0].mxu0
        %v4997 = vadd.f32 0.0, %v4996
        %v4998 = vpop.f32.mrb[0].mxu0
        %4999 = vmatprep.mubr.bf16.mxu0 0
        %5000 = vmatmul.mubr.bf16.gmra.mrb[0].mxu0 %v4817
        %v5001 = vpop.f32.mrb[0].mxu0
        %v5002 = vadd.f32 0.0, %v5001
        %v5003 = vpop.f32.mrb[0].mxu0
        %v5004 = vpop.f32.mrb[0].mxu0
        %v5005 = vadd.f32 0.0, %v5004
        %v5006 = vpop.f32.mrb[0].mxu0
        %5007 = vmatprep.mubr.bf16.mxu0 0
        %5008 = vmatmul.mubr.bf16.gmra.mrb[0].mxu0 %v4818
        %v5009 = vpop.f32.mrb[0].mxu0
        %v5010 = vadd.f32 0.0, %v5009
        %v5011 = vpop.f32.mrb[0].mxu0
        %v5012 = vpop.f32.mrb[0].mxu0
        %v5013 = vadd.f32 0.0, %v5012
        %v5014 = vpop.f32.mrb[0].mxu0
        %5015 = vmatprep.mubr.bf16.mxu0 0
        %5016 = vmatmul.mubr.bf16.gmra.mrb[0].mxu0 %v4819
        %v5017 = vpop.f32.mrb[0].mxu0
        %v5018 = vadd.f32 0.0, %v5017
        %v5019 = vpop.f32.mrb[0].mxu0
        %v5020 = vpop.f32.mrb[0].mxu0
        %v5021 = vadd.f32 0.0, %v5020
        %v5022 = vpop.f32.mrb[0].mxu0
        %5023 = vmatprep.mubr.bf16.mxu0 0
        %5024 = vmatmul.mubr.bf16.gmra.mrb[0].mxu0 %v4820
        %v5025 = vpop.f32.mrb[0].mxu0
        %v5026 = vadd.f32 0.0, %v5025
        %v5027 = vpop.f32.mrb[0].mxu0
        %v5028 = vpop.f32.mrb[0].mxu0
        %v5029 = vadd.f32 0.0, %v5028
        %v5030 = vpop.f32.mrb[0].mxu0
        %5031 = vmatprep.mubr.bf16.mxu0 0
        %5032 = vmatmul.mubr.bf16.gmra.mrb[0].mxu0 %v4821
        %v5033 = vpop.f32.mrb[0].mxu0
        %v5034 = vadd.f32 0.0, %v5033
        %v5035 = vpop.f32.mrb[0].mxu0
        %v5036 = vpop.f32.mrb[0].mxu0
        %v5037 = vadd.f32 0.0, %v5036
        %v5038 = vpop.f32.mrb[0].mxu0
        %5039 = vmatprep.mubr.bf16.mxu0 0
        %5040 = vmatmul.mubr.bf16.gmra.mrb[0].mxu0 %v4822
        %v5041 = vpop.f32.mrb[0].mxu0
        %v5042 = vadd.f32 0.0, %v5041
        %v5043 = vpop.f32.mrb[0].mxu0
        %v5044 = vpop.f32.mrb[0].mxu0
        %v5045 = vadd.f32 0.0, %v5044
        %v5046 = vpop.f32.mrb[0].mxu0
        %5047 = vdwg.mxu0
        %v5048 = vadd.f32 %v4294, %v4922
        %v5049 = vadd.f32 %v4295, %v4925
        %v5050 = vadd.f32 %v4296, %v4930
        %v5051 = vadd.f32 %v4297, %v4933
        %v5052 = vadd.f32 %v4298, %v4938
        %v5053 = vadd.f32 %v4299, %v4941
        %v5054 = vadd.f32 %v4300, %v4946
        %v5055 = vadd.f32 %v4301, %v4949
        %v5056 = vadd.f32 %v4302, %v4954
        %v5057 = vadd.f32 %v4303, %v4957
        %v5058 = vadd.f32 %v4304, %v4962
        %v5059 = vadd.f32 %v4305, %v4965
        %v5060 = vadd.f32 %v4306, %v4970
        %v5061 = vadd.f32 %v4307, %v4973
        %v5062 = vadd.f32 %v4308, %v4978
        %v5063 = vadd.f32 %v4309, %v4981
        %v5064 = vadd.f32 %v4310, %v4986
        %v5065 = vadd.f32 %v4311, %v4989
        %v5066 = vadd.f32 %v4312, %v4994
        %v5067 = vadd.f32 %v4313, %v4997
        %v5068 = vadd.f32 %v4314, %v5002
        %v5069 = vadd.f32 %v4315, %v5005
        %v5070 = vadd.f32 %v4316, %v5010
        %v5071 = vadd.f32 %v4317, %v5013
        %v5072 = vadd.f32 %v4318, %v5018
        %v5073 = vadd.f32 %v4319, %v5021
        %v5074 = vadd.f32 %v4320, %v5026
        %v5075 = vadd.f32 %v4321, %v5029
        %v5076 = vadd.f32 %v4322, %v5034
        %v5077 = vadd.f32 %v4323, %v5037
        %v5078 = vadd.f32 %v4324, %v5042
        %v5079 = vadd.f32 %v4325, %v5045
        %v5080 = vld [vmem:[%s3939] sm:$0xe]
        %v5081 = vld [vmem:[%s3939 + $0xc] sm:$0xe]
        %v5082 = vld [vmem:[%s3939 + $0x18] sm:$0xe]
        %v5083 = vld [vmem:[%s3939 + $0x24] sm:$0xe]
        %v5084 = vld [vmem:[%s3939 + $0x30] sm:$0xe]
        %v5085 = vld [vmem:[%s3939 + $0x3c] sm:$0xe]
        %v5086 = vld [vmem:[%s3939 + $0x48] sm:$0xe]
        %v5087 = vld [vmem:[%s3939 + $0x54] sm:$0xe]
        %v5088 = vld [vmem:[%s3939 + $0x60] sm:$0xe]
        %v5089 = vld [vmem:[%s3939 + $0x6c] sm:$0xe]
        %v5090 = vld [vmem:[%s3939 + $0x78] sm:$0xe]
        %v5091 = vld [vmem:[%s3939 + $0x84] sm:$0xe]
        %v5092 = vld [vmem:[%s3939 + $0x90] sm:$0xe]
        %v5093 = vld [vmem:[%s3939 + $0x9c] sm:$0xe]
        %v5094 = vld [vmem:[%s3939 + $0xa8] sm:$0xe]
        %v5095 = vld [vmem:[%s3939 + $0xb4] sm:$0xe]
        %v5144 = vrot.slane %v5080, 5
        %v5145 = vrot.slane %v5144, 4
        %v5146 = vrot.slane %v4327, 5
        %v5147 = vsel %vm1866, %v5145, %v5146
        %v5148 = vrot.slane %v5146, 4
        %v5149 = vrot.slane %v4328, 5
        %v5150 = vsel %vm1866, %v5148, %v5149
        %v5151 = vrot.slane %v5081, 5
        %v5152 = vrot.slane %v5151, 4
        %v5153 = vrot.slane %v4330, 5
        %v5154 = vsel %vm1866, %v5152, %v5153
        %v5155 = vrot.slane %v5153, 4
        %v5156 = vrot.slane %v4331, 5
        %v5157 = vsel %vm1866, %v5155, %v5156
        %v5158 = vrot.slane %v5082, 5
        %v5159 = vrot.slane %v5158, 4
        %v5160 = vrot.slane %v4333, 5
        %v5161 = vsel %vm1866, %v5159, %v5160
        %v5162 = vrot.slane %v5160, 4
        %v5163 = vrot.slane %v4334, 5
        %v5164 = vsel %vm1866, %v5162, %v5163
        %v5165 = vrot.slane %v5083, 5
        %v5166 = vrot.slane %v5165, 4
        %v5167 = vrot.slane %v4336, 5
        %v5168 = vsel %vm1866, %v5166, %v5167
        %v5169 = vrot.slane %v5167, 4
        %v5170 = vrot.slane %v4337, 5
        %v5171 = vsel %vm1866, %v5169, %v5170
        %v5172 = vrot.slane %v5084, 5
        %v5173 = vrot.slane %v5172, 4
        %v5174 = vrot.slane %v4339, 5
        %v5175 = vsel %vm1866, %v5173, %v5174
        %v5176 = vrot.slane %v5174, 4
        %v5177 = vrot.slane %v4340, 5
        %v5178 = vsel %vm1866, %v5176, %v5177
        %v5179 = vrot.slane %v5085, 5
        %v5180 = vrot.slane %v5179, 4
        %v5181 = vrot.slane %v4342, 5
        %v5182 = vsel %vm1866, %v5180, %v5181
        %v5183 = vrot.slane %v5181, 4
        %v5184 = vrot.slane %v4343, 5
        %v5185 = vsel %vm1866, %v5183, %v5184
        %v5186 = vrot.slane %v5086, 5
        %v5187 = vrot.slane %v5186, 4
        %v5188 = vrot.slane %v4345, 5
        %v5189 = vsel %vm1866, %v5187, %v5188
        %v5190 = vrot.slane %v5188, 4
        %v5191 = vrot.slane %v4346, 5
        %v5192 = vsel %vm1866, %v5190, %v5191
        %v5193 = vrot.slane %v5087, 5
        %v5194 = vrot.slane %v5193, 4
        %v5195 = vrot.slane %v4348, 5
        %v5196 = vsel %vm1866, %v5194, %v5195
        %v5197 = vrot.slane %v5195, 4
        %v5198 = vrot.slane %v4349, 5
        %v5199 = vsel %vm1866, %v5197, %v5198
        %v5200 = vrot.slane %v5088, 5
        %v5201 = vrot.slane %v5200, 4
        %v5202 = vrot.slane %v4351, 5
        %v5203 = vsel %vm1866, %v5201, %v5202
        %v5204 = vrot.slane %v5202, 4
        %v5205 = vrot.slane %v4352, 5
        %v5206 = vsel %vm1866, %v5204, %v5205
        %v5207 = vrot.slane %v5089, 5
        %v5208 = vrot.slane %v5207, 4
        %v5209 = vrot.slane %v4354, 5
        %v5210 = vsel %vm1866, %v5208, %v5209
        %v5211 = vrot.slane %v5209, 4
        %v5212 = vrot.slane %v4355, 5
        %v5213 = vsel %vm1866, %v5211, %v5212
        %v5214 = vrot.slane %v5090, 5
        %v5215 = vrot.slane %v5214, 4
        %v5216 = vrot.slane %v4357, 5
        %v5217 = vsel %vm1866, %v5215, %v5216
        %v5218 = vrot.slane %v5216, 4
        %v5219 = vrot.slane %v4358, 5
        %v5220 = vsel %vm1866, %v5218, %v5219
        %v5221 = vrot.slane %v5091, 5
        %v5222 = vrot.slane %v5221, 4
        %v5223 = vrot.slane %v4360, 5
        %v5224 = vsel %vm1866, %v5222, %v5223
        %v5225 = vrot.slane %v5223, 4
        %v5226 = vrot.slane %v4361, 5
        %v5227 = vsel %vm1866, %v5225, %v5226
        %v5228 = vrot.slane %v5092, 5
        %v5229 = vrot.slane %v5228, 4
        %v5230 = vrot.slane %v4363, 5
        %v5231 = vsel %vm1866, %v5229, %v5230
        %v5232 = vrot.slane %v5230, 4
        %v5233 = vrot.slane %v4364, 5
        %v5234 = vsel %vm1866, %v5232, %v5233
        %v5235 = vrot.slane %v5093, 5
        %v5236 = vrot.slane %v5235, 4
        %v5237 = vrot.slane %v4366, 5
        %v5238 = vsel %vm1866, %v5236, %v5237
        %v5239 = vrot.slane %v5237, 4
        %v5240 = vrot.slane %v4367, 5
        %v5241 = vsel %vm1866, %v5239, %v5240
        %v5242 = vrot.slane %v5094, 5
        %v5243 = vrot.slane %v5242, 4
        %v5244 = vrot.slane %v4369, 5
        %v5245 = vsel %vm1866, %v5243, %v5244
        %v5246 = vrot.slane %v5244, 4
        %v5247 = vrot.slane %v4370, 5
        %v5248 = vsel %vm1866, %v5246, %v5247
        %v5249 = vrot.slane %v5095, 5
        %v5250 = vrot.slane %v5249, 4
        %v5251 = vrot.slane %v4372, 5
        %v5252 = vsel %vm1866, %v5250, %v5251
        %v5253 = vrot.slane %v5251, 4
        %v5254 = vrot.slane %v4373, 5
        %v5255 = vsel %vm1866, %v5253, %v5254
        %s5256 = scalar_lea.vmem [#allocation6], 512
        %v5257 = vld [vmem:[%s5256] sm:$0xf]
        %v5258 = vld [vmem:[%s5256 + $0x4] sm:$0xf]
        %v5259 = vld [vmem:[%s5256 + $0x8] sm:$0xf]
        %v5260 = vld [vmem:[%s5256 + $0xc] sm:$0xf]
        %v5261 = vld [vmem:[%s5256 + $0x10] sm:$0xf]
        %v5262 = vld [vmem:[%s5256 + $0x14] sm:$0xf]
        %v5263 = vld [vmem:[%s5256 + $0x18] sm:$0xf]
        %v5264 = vld [vmem:[%s5256 + $0x1c] sm:$0xf]
        %v5265 = vld [vmem:[%s5256 + $0x20] sm:$0xf]
        %v5266 = vld [vmem:[%s5256 + $0x24] sm:$0xf]
        %v5267 = vld [vmem:[%s5256 + $0x28] sm:$0xf]
        %v5268 = vld [vmem:[%s5256 + $0x2c] sm:$0xf]
        %v5269 = vld [vmem:[%s5256 + $0x30] sm:$0xf]
        %v5270 = vld [vmem:[%s5256 + $0x34] sm:$0xf]
        %v5271 = vld [vmem:[%s5256 + $0x38] sm:$0xf]
        %v5272 = vld [vmem:[%s5256 + $0x3c] sm:$0xf]
        %v5273 = vunpack.c.l.b16 %v5147
        %v5274 = vunpack.c.l.b16 %v5150
        %v5275 = vunpack.c.l.b16 %v5154
        %v5276 = vunpack.c.l.b16 %v5157
        %v5277 = vunpack.c.l.b16 %v5161
        %v5278 = vunpack.c.l.b16 %v5164
        %v5279 = vunpack.c.l.b16 %v5168
        %v5280 = vunpack.c.l.b16 %v5171
        %v5281 = vunpack.c.l.b16 %v5175
        %v5282 = vunpack.c.l.b16 %v5178
        %v5283 = vunpack.c.l.b16 %v5182
        %v5284 = vunpack.c.l.b16 %v5185
        %v5285 = vunpack.c.l.b16 %v5189
        %v5286 = vunpack.c.l.b16 %v5192
        %v5287 = vunpack.c.l.b16 %v5196
        %v5288 = vunpack.c.l.b16 %v5199
        %v5289 = vunpack.c.l.b16 %v5203
        %v5290 = vunpack.c.l.b16 %v5206
        %v5291 = vunpack.c.l.b16 %v5210
        %v5292 = vunpack.c.l.b16 %v5213
        %v5293 = vunpack.c.l.b16 %v5217
        %v5294 = vunpack.c.l.b16 %v5220
        %v5295 = vunpack.c.l.b16 %v5224
        %v5296 = vunpack.c.l.b16 %v5227
        %v5297 = vunpack.c.l.b16 %v5231
        %v5298 = vunpack.c.l.b16 %v5234
        %v5299 = vunpack.c.l.b16 %v5238
        %v5300 = vunpack.c.l.b16 %v5241
        %v5301 = vunpack.c.l.b16 %v5245
        %v5302 = vunpack.c.l.b16 %v5248
        %v5303 = vunpack.c.l.b16 %v5252
        %v5304 = vunpack.c.l.b16 %v5255
        %v5305 = vpack.c.b16 %v5274, %v5273
        %v5306 = vpack.c.b16 %v5276, %v5275
        %v5307 = vpack.c.b16 %v5278, %v5277
        %v5308 = vpack.c.b16 %v5280, %v5279
        %v5309 = vpack.c.b16 %v5282, %v5281
        %v5310 = vpack.c.b16 %v5284, %v5283
        %v5311 = vpack.c.b16 %v5286, %v5285
        %v5312 = vpack.c.b16 %v5288, %v5287
        %v5313 = vpack.c.b16 %v5290, %v5289
        %v5314 = vpack.c.b16 %v5292, %v5291
        %v5315 = vpack.c.b16 %v5294, %v5293
        %v5316 = vpack.c.b16 %v5296, %v5295
        %v5317 = vpack.c.b16 %v5298, %v5297
        %v5318 = vpack.c.b16 %v5300, %v5299
        %v5319 = vpack.c.b16 %v5302, %v5301
        %v5320 = vpack.c.b16 %v5304, %v5303
        %v5353 = vunpack.c.l.b16 %v5257
        %v5354 = vunpack.c.l.b16 %v5258
        %v5355 = vunpack.c.l.b16 %v5259
        %v5356 = vunpack.c.l.b16 %v5260
        %v5357 = vunpack.c.l.b16 %v5261
        %v5358 = vunpack.c.l.b16 %v5262
        %v5359 = vunpack.c.l.b16 %v5263
        %v5360 = vunpack.c.l.b16 %v5264
        %v5361 = vunpack.c.l.b16 %v5265
        %v5362 = vunpack.c.l.b16 %v5266
        %v5363 = vunpack.c.l.b16 %v5267
        %v5364 = vunpack.c.l.b16 %v5268
        %v5365 = vunpack.c.l.b16 %v5269
        %v5366 = vunpack.c.l.b16 %v5270
        %v5367 = vunpack.c.l.b16 %v5271
        %v5368 = vunpack.c.l.b16 %v5272
        %v5369 = vpack.c.b16 %v5354, %v5353
        %v5370 = vpack.c.b16 %v5356, %v5355
        %v5371 = vpack.c.b16 %v5358, %v5357
        %v5372 = vpack.c.b16 %v5360, %v5359
        %v5373 = vpack.c.b16 %v5362, %v5361
        %v5374 = vpack.c.b16 %v5364, %v5363
        %v5375 = vpack.c.b16 %v5366, %v5365
        %v5376 = vpack.c.b16 %v5368, %v5367
        %5385 = vmatprep.subr.bf16.mxu0 0
        %5386 = vmatpush1.bf16.msra.mxu0 %v5369
        %5387 = vmatprep.subr.bf16.mxu0 0
        %5388 = vmatpush1.bf16.msra.mxu0 %v5370
        %5389 = vmatprep.subr.bf16.mxu0 0
        %5390 = vmatpush1.bf16.msra.mxu0 %v5371
        %5391 = vmatprep.subr.bf16.mxu0 0
        %5392 = vmatpush1.bf16.msra.mxu0 %v5372
        %5393 = vmatprep.subr.bf16.mxu0 0
        %5394 = vmatpush1.bf16.msra.mxu0 %v5373
        %5395 = vmatprep.subr.bf16.mxu0 0
        %5396 = vmatpush1.bf16.msra.mxu0 %v5374
        %5397 = vmatprep.subr.bf16.mxu0 0
        %5398 = vmatpush1.bf16.msra.mxu0 %v5375
        %5399 = vmatprep.subr.bf16.mxu0 0
        %5400 = vmatpush1.bf16.msra.mxu0 %v5376
        %5401 = vmatprep.subr.bf16.mxu0 0
        %5402 = vmatpush1.bf16.msra.mxu0 0
        %5403 = vmatprep.subr.bf16.mxu0 0
        %5404 = vmatpush1.bf16.msra.mxu0 0
        %5405 = vmatprep.subr.bf16.mxu0 0
        %5406 = vmatpush1.bf16.msra.mxu0 0
        %5407 = vmatprep.subr.bf16.mxu0 0
        %5408 = vmatpush1.bf16.msra.mxu0 0
        %5409 = vmatprep.subr.bf16.mxu0 0
        %5410 = vmatpush1.bf16.msra.mxu0 0
        %5411 = vmatprep.subr.bf16.mxu0 0
        %5412 = vmatpush1.bf16.msra.mxu0 0
        %5413 = vmatprep.subr.bf16.mxu0 0
        %5414 = vmatpush1.bf16.msra.mxu0 0
        %5415 = vmatprep.subr.bf16.mxu0 0
        %5416 = vmatpush1.bf16.msra.mxu0 0
        %5417 = vmatprep.mubr.bf16.mxu0 0
        %5418 = vmatmul.mubr.bf16.gmra.mrb[0].mxu0 %v5305
        %v5419 = vpop.f32.mrb[0].mxu0
        %v5420 = vadd.f32 0.0, %v5419
        %v5421 = vpop.f32.mrb[0].mxu0
        %v5422 = vpop.f32.mrb[0].mxu0
        %v5423 = vadd.f32 0.0, %v5422
        %v5424 = vpop.f32.mrb[0].mxu0
        %5425 = vmatprep.mubr.bf16.mxu0 0
        %5426 = vmatmul.mubr.bf16.gmra.mrb[0].mxu0 %v5306
        %v5427 = vpop.f32.mrb[0].mxu0
        %v5428 = vadd.f32 0.0, %v5427
        %v5429 = vpop.f32.mrb[0].mxu0
        %v5430 = vpop.f32.mrb[0].mxu0
        %v5431 = vadd.f32 0.0, %v5430
        %v5432 = vpop.f32.mrb[0].mxu0
        %5433 = vmatprep.mubr.bf16.mxu0 0
        %5434 = vmatmul.mubr.bf16.gmra.mrb[0].mxu0 %v5307
        %v5435 = vpop.f32.mrb[0].mxu0
        %v5436 = vadd.f32 0.0, %v5435
        %v5437 = vpop.f32.mrb[0].mxu0
        %v5438 = vpop.f32.mrb[0].mxu0
        %v5439 = vadd.f32 0.0, %v5438
        %v5440 = vpop.f32.mrb[0].mxu0
        %5441 = vmatprep.mubr.bf16.mxu0 0
        %5442 = vmatmul.mubr.bf16.gmra.mrb[0].mxu0 %v5308
        %v5443 = vpop.f32.mrb[0].mxu0
        %v5444 = vadd.f32 0.0, %v5443
        %v5445 = vpop.f32.mrb[0].mxu0
        %v5446 = vpop.f32.mrb[0].mxu0
        %v5447 = vadd.f32 0.0, %v5446
        %v5448 = vpop.f32.mrb[0].mxu0
        %5449 = vmatprep.mubr.bf16.mxu0 0
        %5450 = vmatmul.mubr.bf16.gmra.mrb[0].mxu0 %v5309
        %v5451 = vpop.f32.mrb[0].mxu0
        %v5452 = vadd.f32 0.0, %v5451
        %v5453 = vpop.f32.mrb[0].mxu0
        %v5454 = vpop.f32.mrb[0].mxu0
        %v5455 = vadd.f32 0.0, %v5454
        %v5456 = vpop.f32.mrb[0].mxu0
        %5457 = vmatprep.mubr.bf16.mxu0 0
        %5458 = vmatmul.mubr.bf16.gmra.mrb[0].mxu0 %v5310
        %v5459 = vpop.f32.mrb[0].mxu0
        %v5460 = vadd.f32 0.0, %v5459
        %v5461 = vpop.f32.mrb[0].mxu0
        %v5462 = vpop.f32.mrb[0].mxu0
        %v5463 = vadd.f32 0.0, %v5462
        %v5464 = vpop.f32.mrb[0].mxu0
        %5465 = vmatprep.mubr.bf16.mxu0 0
        %5466 = vmatmul.mubr.bf16.gmra.mrb[0].mxu0 %v5311
        %v5467 = vpop.f32.mrb[0].mxu0
        %v5468 = vadd.f32 0.0, %v5467
        %v5469 = vpop.f32.mrb[0].mxu0
        %v5470 = vpop.f32.mrb[0].mxu0
        %v5471 = vadd.f32 0.0, %v5470
        %v5472 = vpop.f32.mrb[0].mxu0
        %5473 = vmatprep.mubr.bf16.mxu0 0
        %5474 = vmatmul.mubr.bf16.gmra.mrb[0].mxu0 %v5312
        %v5475 = vpop.f32.mrb[0].mxu0
        %v5476 = vadd.f32 0.0, %v5475
        %v5477 = vpop.f32.mrb[0].mxu0
        %v5478 = vpop.f32.mrb[0].mxu0
        %v5479 = vadd.f32 0.0, %v5478
        %v5480 = vpop.f32.mrb[0].mxu0
        %5481 = vmatprep.mubr.bf16.mxu0 0
        %5482 = vmatmul.mubr.bf16.gmra.mrb[0].mxu0 %v5313
        %v5483 = vpop.f32.mrb[0].mxu0
        %v5484 = vadd.f32 0.0, %v5483
        %v5485 = vpop.f32.mrb[0].mxu0
        %v5486 = vpop.f32.mrb[0].mxu0
        %v5487 = vadd.f32 0.0, %v5486
        %v5488 = vpop.f32.mrb[0].mxu0
        %5489 = vmatprep.mubr.bf16.mxu0 0
        %5490 = vmatmul.mubr.bf16.gmra.mrb[0].mxu0 %v5314
        %v5491 = vpop.f32.mrb[0].mxu0
        %v5492 = vadd.f32 0.0, %v5491
        %v5493 = vpop.f32.mrb[0].mxu0
        %v5494 = vpop.f32.mrb[0].mxu0
        %v5495 = vadd.f32 0.0, %v5494
        %v5496 = vpop.f32.mrb[0].mxu0
        %5497 = vmatprep.mubr.bf16.mxu0 0
        %5498 = vmatmul.mubr.bf16.gmra.mrb[0].mxu0 %v5315
        %v5499 = vpop.f32.mrb[0].mxu0
        %v5500 = vadd.f32 0.0, %v5499
        %v5501 = vpop.f32.mrb[0].mxu0
        %v5502 = vpop.f32.mrb[0].mxu0
        %v5503 = vadd.f32 0.0, %v5502
        %v5504 = vpop.f32.mrb[0].mxu0
        %5505 = vmatprep.mubr.bf16.mxu0 0
        %5506 = vmatmul.mubr.bf16.gmra.mrb[0].mxu0 %v5316
        %v5507 = vpop.f32.mrb[0].mxu0
        %v5508 = vadd.f32 0.0, %v5507
        %v5509 = vpop.f32.mrb[0].mxu0
        %v5510 = vpop.f32.mrb[0].mxu0
        %v5511 = vadd.f32 0.0, %v5510
        %v5512 = vpop.f32.mrb[0].mxu0
        %5513 = vmatprep.mubr.bf16.mxu0 0
        %5514 = vmatmul.mubr.bf16.gmra.mrb[0].mxu0 %v5317
        %v5515 = vpop.f32.mrb[0].mxu0
        %v5516 = vadd.f32 0.0, %v5515
        %v5517 = vpop.f32.mrb[0].mxu0
        %v5518 = vpop.f32.mrb[0].mxu0
        %v5519 = vadd.f32 0.0, %v5518
        %v5520 = vpop.f32.mrb[0].mxu0
        %5521 = vmatprep.mubr.bf16.mxu0 0
        %5522 = vmatmul.mubr.bf16.gmra.mrb[0].mxu0 %v5318
        %v5523 = vpop.f32.mrb[0].mxu0
        %v5524 = vadd.f32 0.0, %v5523
        %v5525 = vpop.f32.mrb[0].mxu0
        %v5526 = vpop.f32.mrb[0].mxu0
        %v5527 = vadd.f32 0.0, %v5526
        %v5528 = vpop.f32.mrb[0].mxu0
        %5529 = vmatprep.mubr.bf16.mxu0 0
        %5530 = vmatmul.mubr.bf16.gmra.mrb[0].mxu0 %v5319
        %v5531 = vpop.f32.mrb[0].mxu0
        %v5532 = vadd.f32 0.0, %v5531
        %v5533 = vpop.f32.mrb[0].mxu0
        %v5534 = vpop.f32.mrb[0].mxu0
        %v5535 = vadd.f32 0.0, %v5534
        %v5536 = vpop.f32.mrb[0].mxu0
        %5537 = vmatprep.mubr.bf16.mxu0 0
        %5538 = vmatmul.mubr.bf16.gmra.mrb[0].mxu0 %v5320
        %v5539 = vpop.f32.mrb[0].mxu0
        %v5540 = vadd.f32 0.0, %v5539
        %v5541 = vpop.f32.mrb[0].mxu0
        %v5542 = vpop.f32.mrb[0].mxu0
        %v5543 = vadd.f32 0.0, %v5542
        %v5544 = vpop.f32.mrb[0].mxu0
        %5545 = vdwg.mxu0
        %v5546 = vadd.f32 %v5048, %v5420
        %v5547 = vadd.f32 %v5049, %v5423
        %v5548 = vadd.f32 %v5050, %v5428
        %v5549 = vadd.f32 %v5051, %v5431
        %v5550 = vadd.f32 %v5052, %v5436
        %v5551 = vadd.f32 %v5053, %v5439
        %v5552 = vadd.f32 %v5054, %v5444
        %v5553 = vadd.f32 %v5055, %v5447
        %v5554 = vadd.f32 %v5056, %v5452
        %v5555 = vadd.f32 %v5057, %v5455
        %v5556 = vadd.f32 %v5058, %v5460
        %v5557 = vadd.f32 %v5059, %v5463
        %v5558 = vadd.f32 %v5060, %v5468
        %v5559 = vadd.f32 %v5061, %v5471
        %v5560 = vadd.f32 %v5062, %v5476
        %v5561 = vadd.f32 %v5063, %v5479
        %v5562 = vadd.f32 %v5064, %v5484
        %v5563 = vadd.f32 %v5065, %v5487
        %v5564 = vadd.f32 %v5066, %v5492
        %v5565 = vadd.f32 %v5067, %v5495
        %v5566 = vadd.f32 %v5068, %v5500
        %v5567 = vadd.f32 %v5069, %v5503
        %v5568 = vadd.f32 %v5070, %v5508
        %v5569 = vadd.f32 %v5071, %v5511
        %v5570 = vadd.f32 %v5072, %v5516
        %v5571 = vadd.f32 %v5073, %v5519
        %v5572 = vadd.f32 %v5074, %v5524
        %v5573 = vadd.f32 %v5075, %v5527
        %v5574 = vadd.f32 %v5076, %v5532
        %v5575 = vadd.f32 %v5077, %v5535
        %v5576 = vadd.f32 %v5078, %v5540
        %v5577 = vadd.f32 %v5079, %v5543
        %v5578 = vadd.f32 %v5546, %v5547
        %v5579 = vadd.f32 %v5578, %v5548
        %v5580 = vadd.f32 %v5579, %v5549
        %v5581 = vadd.f32 %v5580, %v5550
        %v5582 = vadd.f32 %v5581, %v5551
        %v5583 = vadd.f32 %v5582, %v5552
        %v5584 = vadd.f32 %v5583, %v5553
        %v5585 = vadd.f32 %v5584, %v5554
        %v5586 = vadd.f32 %v5585, %v5555
        %v5587 = vadd.f32 %v5586, %v5556
        %v5588 = vadd.f32 %v5587, %v5557
        %v5589 = vadd.f32 %v5588, %v5558
        %v5590 = vadd.f32 %v5589, %v5559
        %v5591 = vadd.f32 %v5590, %v5560
        %v5592 = vadd.f32 %v5591, %v5561
        %v5593 = vadd.f32 %v5592, %v5562
        %v5594 = vadd.f32 %v5593, %v5563
        %v5595 = vadd.f32 %v5594, %v5564
        %v5596 = vadd.f32 %v5595, %v5565
        %v5597 = vadd.f32 %v5596, %v5566
        %v5598 = vadd.f32 %v5597, %v5567
        %v5599 = vadd.f32 %v5598, %v5568
        %v5600 = vadd.f32 %v5599, %v5569
        %v5601 = vadd.f32 %v5600, %v5570
        %v5602 = vadd.f32 %v5601, %v5571
        %v5603 = vadd.f32 %v5602, %v5572
        %v5604 = vadd.f32 %v5603, %v5573
        %v5605 = vadd.f32 %v5604, %v5574
        %v5606 = vadd.f32 %v5605, %v5575
        %v5607 = vadd.f32 %v5606, %v5576
        %v5608 = vadd.f32 %v5607, %v5577
        %v5609 = vrot.slane %v5608, 4
        %v5610 = vadd.f32 %v5608, %v5609
        %v5611 = vrot.slane %v5610, 2
        %v5612 = vadd.f32 %v5610, %v5611
        %v5613 = vrot.slane %v5612, 1
        %v5614 = vadd.f32 %v5612, %v5613
        %v5615 = vmul.f32 %v5546, %v5546
        %v5616 = vmul.f32 %v5547, %v5547
        %v5617 = vmul.f32 %v5548, %v5548
        %v5618 = vmul.f32 %v5549, %v5549
        %v5619 = vmul.f32 %v5550, %v5550
        %v5620 = vmul.f32 %v5551, %v5551
        %v5621 = vmul.f32 %v5552, %v5552
        %v5622 = vmul.f32 %v5553, %v5553
        %v5623 = vmul.f32 %v5554, %v5554
        %v5624 = vmul.f32 %v5555, %v5555
        %v5625 = vmul.f32 %v5556, %v5556
        %v5626 = vmul.f32 %v5557, %v5557
        %v5627 = vmul.f32 %v5558, %v5558
        %v5628 = vmul.f32 %v5559, %v5559
        %v5629 = vmul.f32 %v5560, %v5560
        %v5630 = vmul.f32 %v5561, %v5561
        %v5631 = vmul.f32 %v5562, %v5562
        %v5632 = vmul.f32 %v5563, %v5563
        %v5633 = vmul.f32 %v5564, %v5564
        %v5634 = vmul.f32 %v5565, %v5565
        %v5635 = vmul.f32 %v5566, %v5566
        %v5636 = vmul.f32 %v5567, %v5567
        %v5637 = vmul.f32 %v5568, %v5568
        %v5638 = vmul.f32 %v5569, %v5569
        %v5639 = vmul.f32 %v5570, %v5570
        %v5640 = vmul.f32 %v5571, %v5571
        %v5641 = vmul.f32 %v5572, %v5572
        %v5642 = vmul.f32 %v5573, %v5573
        %v5643 = vmul.f32 %v5574, %v5574
        %v5644 = vmul.f32 %v5575, %v5575
        %v5645 = vmul.f32 %v5576, %v5576
        %v5646 = vmul.f32 %v5577, %v5577
        %v5647 = vadd.f32 %v5615, %v5616
        %v5648 = vadd.f32 %v5647, %v5617
        %v5649 = vadd.f32 %v5648, %v5618
        %v5650 = vadd.f32 %v5649, %v5619
        %v5651 = vadd.f32 %v5650, %v5620
        %v5652 = vadd.f32 %v5651, %v5621
        %v5653 = vadd.f32 %v5652, %v5622
        %v5654 = vadd.f32 %v5653, %v5623
        %v5655 = vadd.f32 %v5654, %v5624
        %v5656 = vadd.f32 %v5655, %v5625
        %v5657 = vadd.f32 %v5656, %v5626
        %v5658 = vadd.f32 %v5657, %v5627
        %v5659 = vadd.f32 %v5658, %v5628
        %v5660 = vadd.f32 %v5659, %v5629
        %v5661 = vadd.f32 %v5660, %v5630
        %v5662 = vadd.f32 %v5661, %v5631
        %v5663 = vadd.f32 %v5662, %v5632
        %v5664 = vadd.f32 %v5663, %v5633
        %v5665 = vadd.f32 %v5664, %v5634
        %v5666 = vadd.f32 %v5665, %v5635
        %v5667 = vadd.f32 %v5666, %v5636
        %v5668 = vadd.f32 %v5667, %v5637
        %v5669 = vadd.f32 %v5668, %v5638
        %v5670 = vadd.f32 %v5669, %v5639
        %v5671 = vadd.f32 %v5670, %v5640
        %v5672 = vadd.f32 %v5671, %v5641
        %v5673 = vadd.f32 %v5672, %v5642
        %v5674 = vadd.f32 %v5673, %v5643
        %v5675 = vadd.f32 %v5674, %v5644
        %v5676 = vadd.f32 %v5675, %v5645
        %v5677 = vadd.f32 %v5676, %v5646
        %v5678 = vrot.slane %v5677, 4
        %v5679 = vadd.f32 %v5677, %v5678
        %v5680 = vrot.slane %v5679, 2
        %v5681 = vadd.f32 %v5679, %v5680
        %v5682 = vrot.slane %v5681, 1
        %v5683 = vadd.f32 %v5681, %v5682
        %v5684 = vmul.f32 %v5614, 0.00390625
        %v5685 = vmul.f32 %v5683, 0.00390625
        %v5686 = vmul.f32 %v5684, %v5684
        %v5687 = vsub.f32 %v5685, %v5686
        %v5688 = vmax.f32 %v5687, 0.0
        %v5689 = vadd.f32 %v5688, 1e-05
        %v5690 = vrsqrt.pop %v5689
        %v5691 = vmul.f32 %v246, %v5690
        %v5692 = vlaneseq
        %v5693 = vand.u32 %v5692, 127
        %vm5694 = vcmp.lt.s32.totalorder %v5693, 8
        %v5695 = vsel %vm5694, %v5691, 1.0
        %v5696 = vmul.f32 %v5684, %v5691
        %v5698 = vrot.slane %v5696, 7
        %v5700 = vsub.f32 %v246, %v5698
        %v5702 = vrot.slane %v246, 1
        %v5704 = vsel %vm5694, %v5700, %v5702
        %v5705 = vlaneseq
        %v5706 = vshrl.u32 %v5705, 7
        %v5707 = vsub.s32 0, %v5706
        %v5708 = vrot.slane %v5695, %v5707
        %v5709 = vmul.f32 %v5546, %v5708
        %v5710 = vmul.f32 %v5547, %v5708
        %v5711 = vmul.f32 %v5548, %v5708
        %v5712 = vmul.f32 %v5549, %v5708
        %v5713 = vmul.f32 %v5550, %v5708
        %v5714 = vmul.f32 %v5551, %v5708
        %v5715 = vmul.f32 %v5552, %v5708
        %v5716 = vmul.f32 %v5553, %v5708
        %v5717 = vmul.f32 %v5554, %v5708
        %v5718 = vmul.f32 %v5555, %v5708
        %v5719 = vmul.f32 %v5556, %v5708
        %v5720 = vmul.f32 %v5557, %v5708
        %v5721 = vmul.f32 %v5558, %v5708
        %v5722 = vmul.f32 %v5559, %v5708
        %v5723 = vmul.f32 %v5560, %v5708
        %v5724 = vmul.f32 %v5561, %v5708
        %v5725 = vmul.f32 %v5562, %v5708
        %v5726 = vmul.f32 %v5563, %v5708
        %v5727 = vmul.f32 %v5564, %v5708
        %v5728 = vmul.f32 %v5565, %v5708
        %v5729 = vmul.f32 %v5566, %v5708
        %v5730 = vmul.f32 %v5567, %v5708
        %v5731 = vmul.f32 %v5568, %v5708
        %v5732 = vmul.f32 %v5569, %v5708
        %v5733 = vmul.f32 %v5570, %v5708
        %v5734 = vmul.f32 %v5571, %v5708
        %v5735 = vmul.f32 %v5572, %v5708
        %v5736 = vmul.f32 %v5573, %v5708
        %v5737 = vmul.f32 %v5574, %v5708
        %v5738 = vmul.f32 %v5575, %v5708
        %v5739 = vmul.f32 %v5576, %v5708
        %v5740 = vmul.f32 %v5577, %v5708
        %v5741 = vlaneseq
        %v5742 = vshrl.u32 %v5741, 7
        %v5743 = vsub.s32 1, %v5742
        %v5744 = vrot.slane %v5704, %v5743
        %v5745 = vadd.f32 %v5709, %v5744
        %v5746 = vadd.f32 %v5710, %v5744
        %v5747 = vadd.f32 %v5711, %v5744
        %v5748 = vadd.f32 %v5712, %v5744
        %v5749 = vadd.f32 %v5713, %v5744
        %v5750 = vadd.f32 %v5714, %v5744
        %v5751 = vadd.f32 %v5715, %v5744
        %v5752 = vadd.f32 %v5716, %v5744
        %v5753 = vadd.f32 %v5717, %v5744
        %v5754 = vadd.f32 %v5718, %v5744
        %v5755 = vadd.f32 %v5719, %v5744
        %v5756 = vadd.f32 %v5720, %v5744
        %v5757 = vadd.f32 %v5721, %v5744
        %v5758 = vadd.f32 %v5722, %v5744
        %v5759 = vadd.f32 %v5723, %v5744
        %v5760 = vadd.f32 %v5724, %v5744
        %v5761 = vadd.f32 %v5725, %v5744
        %v5762 = vadd.f32 %v5726, %v5744
        %v5763 = vadd.f32 %v5727, %v5744
        %v5764 = vadd.f32 %v5728, %v5744
        %v5765 = vadd.f32 %v5729, %v5744
        %v5766 = vadd.f32 %v5730, %v5744
        %v5767 = vadd.f32 %v5731, %v5744
        %v5768 = vadd.f32 %v5732, %v5744
        %v5769 = vadd.f32 %v5733, %v5744
        %v5770 = vadd.f32 %v5734, %v5744
        %v5771 = vadd.f32 %v5735, %v5744
        %v5772 = vadd.f32 %v5736, %v5744
        %v5773 = vadd.f32 %v5737, %v5744
        %v5774 = vadd.f32 %v5738, %v5744
        %v5775 = vadd.f32 %v5739, %v5744
        %v5776 = vadd.f32 %v5740, %v5744
        %v5777 = vmax.f32 %v5745, 0.0
        %v5778 = vmax.f32 %v5746, 0.0
        %v5779 = vmax.f32 %v5747, 0.0
        %v5780 = vmax.f32 %v5748, 0.0
        %v5781 = vmax.f32 %v5749, 0.0
        %v5782 = vmax.f32 %v5750, 0.0
        %v5783 = vmax.f32 %v5751, 0.0
        %v5784 = vmax.f32 %v5752, 0.0
        %v5785 = vmax.f32 %v5753, 0.0
        %v5786 = vmax.f32 %v5754, 0.0
        %v5787 = vmax.f32 %v5755, 0.0
        %v5788 = vmax.f32 %v5756, 0.0
        %v5789 = vmax.f32 %v5757, 0.0
        %v5790 = vmax.f32 %v5758, 0.0
        %v5791 = vmax.f32 %v5759, 0.0
        %v5792 = vmax.f32 %v5760, 0.0
        %v5793 = vmax.f32 %v5761, 0.0
        %v5794 = vmax.f32 %v5762, 0.0
        %v5795 = vmax.f32 %v5763, 0.0
        %v5796 = vmax.f32 %v5764, 0.0
        %v5797 = vmax.f32 %v5765, 0.0
        %v5798 = vmax.f32 %v5766, 0.0
        %v5799 = vmax.f32 %v5767, 0.0
        %v5800 = vmax.f32 %v5768, 0.0
        %v5801 = vmax.f32 %v5769, 0.0
        %v5802 = vmax.f32 %v5770, 0.0
        %v5803 = vmax.f32 %v5771, 0.0
        %v5804 = vmax.f32 %v5772, 0.0
        %v5805 = vmax.f32 %v5773, 0.0
        %v5806 = vmax.f32 %v5774, 0.0
        %v5807 = vmax.f32 %v5775, 0.0
        %v5808 = vmax.f32 %v5776, 0.0
        %v5809 = vpack.c.bf16 %v5778, %v5777
        %v5810 = vpack.c.bf16 %v5780, %v5779
        %v5811 = vpack.c.bf16 %v5782, %v5781
        %v5812 = vpack.c.bf16 %v5784, %v5783
        %v5813 = vpack.c.bf16 %v5786, %v5785
        %v5814 = vpack.c.bf16 %v5788, %v5787
        %v5815 = vpack.c.bf16 %v5790, %v5789
        %v5816 = vpack.c.bf16 %v5792, %v5791
        %v5817 = vpack.c.bf16 %v5794, %v5793
        %v5818 = vpack.c.bf16 %v5796, %v5795
        %v5819 = vpack.c.bf16 %v5798, %v5797
        %v5820 = vpack.c.bf16 %v5800, %v5799
        %v5821 = vpack.c.bf16 %v5802, %v5801
        %v5822 = vpack.c.bf16 %v5804, %v5803
        %v5823 = vpack.c.bf16 %v5806, %v5805
        %v5824 = vpack.c.bf16 %v5808, %v5807
        %v5826 = vshrl.u32 %v5809, 16
        %v5828 = vrot.slane %v5826, 7
        %v5829 = vshll.u32 %v5809, 16
        %v5831 = vor.u32 %v5828, %v5829
        %v5833 = vshrl.u32 %v5810, 16
        %v5835 = vrot.slane %v5833, 7
        %v5836 = vshll.u32 %v5810, 16
        %v5838 = vor.u32 %v5835, %v5836
        %v5840 = vshrl.u32 %v5811, 16
        %v5842 = vrot.slane %v5840, 7
        %v5843 = vshll.u32 %v5811, 16
        %v5845 = vor.u32 %v5842, %v5843
        %v5847 = vshrl.u32 %v5812, 16
        %v5849 = vrot.slane %v5847, 7
        %v5850 = vshll.u32 %v5812, 16
        %v5852 = vor.u32 %v5849, %v5850
        %v5854 = vshrl.u32 %v5813, 16
        %v5856 = vrot.slane %v5854, 7
        %v5857 = vshll.u32 %v5813, 16
        %v5859 = vor.u32 %v5856, %v5857
        %v5861 = vshrl.u32 %v5814, 16
        %v5863 = vrot.slane %v5861, 7
        %v5864 = vshll.u32 %v5814, 16
        %v5866 = vor.u32 %v5863, %v5864
        %v5868 = vshrl.u32 %v5815, 16
        %v5870 = vrot.slane %v5868, 7
        %v5871 = vshll.u32 %v5815, 16
        %v5873 = vor.u32 %v5870, %v5871
        %v5875 = vshrl.u32 %v5816, 16
        %v5877 = vrot.slane %v5875, 7
        %v5878 = vshll.u32 %v5816, 16
        %v5880 = vor.u32 %v5877, %v5878
        %v5882 = vshrl.u32 %v5817, 16
        %v5884 = vrot.slane %v5882, 7
        %v5885 = vshll.u32 %v5817, 16
        %v5887 = vor.u32 %v5884, %v5885
        %v5889 = vshrl.u32 %v5818, 16
        %v5891 = vrot.slane %v5889, 7
        %v5892 = vshll.u32 %v5818, 16
        %v5894 = vor.u32 %v5891, %v5892
        %v5896 = vshrl.u32 %v5819, 16
        %v5898 = vrot.slane %v5896, 7
        %v5899 = vshll.u32 %v5819, 16
        %v5901 = vor.u32 %v5898, %v5899
        %v5903 = vshrl.u32 %v5820, 16
        %v5905 = vrot.slane %v5903, 7
        %v5906 = vshll.u32 %v5820, 16
        %v5908 = vor.u32 %v5905, %v5906
        %v5910 = vshrl.u32 %v5821, 16
        %v5912 = vrot.slane %v5910, 7
        %v5913 = vshll.u32 %v5821, 16
        %v5915 = vor.u32 %v5912, %v5913
        %v5917 = vshrl.u32 %v5822, 16
        %v5919 = vrot.slane %v5917, 7
        %v5920 = vshll.u32 %v5822, 16
        %v5922 = vor.u32 %v5919, %v5920
        %v5924 = vshrl.u32 %v5823, 16
        %v5926 = vrot.slane %v5924, 7
        %v5927 = vshll.u32 %v5823, 16
        %v5929 = vor.u32 %v5926, %v5927
        %v5931 = vshrl.u32 %v5824, 16
        %v5933 = vrot.slane %v5931, 7
        %v5934 = vshll.u32 %v5824, 16
        %v5936 = vor.u32 %v5933, %v5934
        %v5969 = vsel %vm512, 0, %v5831
        %v5970 = vsel %vm512, 0, %v5838
        %v5971 = vsel %vm512, 0, %v5845
        %v5972 = vsel %vm512, 0, %v5852
        %v5973 = vsel %vm512, 0, %v5859
        %v5974 = vsel %vm512, 0, %v5866
        %v5975 = vsel %vm512, 0, %v5873
        %v5976 = vsel %vm512, 0, %v5880
        %v5977 = vsel %vm512, 0, %v5887
        %v5978 = vsel %vm512, 0, %v5894
        %v5979 = vsel %vm512, 0, %v5901
        %v5980 = vsel %vm512, 0, %v5908
        %v5981 = vsel %vm512, 0, %v5915
        %v5982 = vsel %vm512, 0, %v5922
        %v5983 = vsel %vm512, 0, %v5929
        %v5984 = vsel %vm512, 0, %v5936
        %v5985 = vsel %vm512, %v5828, 0
        %v5986 = vsel %vm512, %v5835, 0
        %v5987 = vsel %vm512, %v5842, 0
        %v5988 = vsel %vm512, %v5849, 0
        %v5989 = vsel %vm512, %v5856, 0
        %v5990 = vsel %vm512, %v5863, 0
        %v5991 = vsel %vm512, %v5870, 0
        %v5992 = vsel %vm512, %v5877, 0
        %v5993 = vsel %vm512, %v5884, 0
        %v5994 = vsel %vm512, %v5891, 0
        %v5995 = vsel %vm512, %v5898, 0
        %v5996 = vsel %vm512, %v5905, 0
        %v5997 = vsel %vm512, %v5912, 0
        %v5998 = vsel %vm512, %v5919, 0
        %v5999 = vsel %vm512, %v5926, 0
        %v6000 = vsel %vm512, %v5933, 0
        %v6033 = vunpack.c.l.b16 %v5969
        %v6034 = vunpack.c.h.b16 %v5969
        %v6035 = vunpack.c.l.b16 %v5985
        %v6036 = vunpack.c.l.b16 %v5970
        %v6037 = vunpack.c.h.b16 %v5970
        %v6038 = vunpack.c.l.b16 %v5986
        %v6039 = vunpack.c.l.b16 %v5971
        %v6040 = vunpack.c.h.b16 %v5971
        %v6041 = vunpack.c.l.b16 %v5987
        %v6042 = vunpack.c.l.b16 %v5972
        %v6043 = vunpack.c.h.b16 %v5972
        %v6044 = vunpack.c.l.b16 %v5988
        %v6045 = vunpack.c.l.b16 %v5973
        %v6046 = vunpack.c.h.b16 %v5973
        %v6047 = vunpack.c.l.b16 %v5989
        %v6048 = vunpack.c.l.b16 %v5974
        %v6049 = vunpack.c.h.b16 %v5974
        %v6050 = vunpack.c.l.b16 %v5990
        %v6051 = vunpack.c.l.b16 %v5975
        %v6052 = vunpack.c.h.b16 %v5975
        %v6053 = vunpack.c.l.b16 %v5991
        %v6054 = vunpack.c.l.b16 %v5976
        %v6055 = vunpack.c.h.b16 %v5976
        %v6056 = vunpack.c.l.b16 %v5992
        %v6057 = vunpack.c.l.b16 %v5977
        %v6058 = vunpack.c.h.b16 %v5977
        %v6059 = vunpack.c.l.b16 %v5993
        %v6060 = vunpack.c.l.b16 %v5978
        %v6061 = vunpack.c.h.b16 %v5978
        %v6062 = vunpack.c.l.b16 %v5994
        %v6063 = vunpack.c.l.b16 %v5979
        %v6064 = vunpack.c.h.b16 %v5979
        %v6065 = vunpack.c.l.b16 %v5995
        %v6066 = vunpack.c.l.b16 %v5980
        %v6067 = vunpack.c.h.b16 %v5980
        %v6068 = vunpack.c.l.b16 %v5996
        %v6069 = vunpack.c.l.b16 %v5981
        %v6070 = vunpack.c.h.b16 %v5981
        %v6071 = vunpack.c.l.b16 %v5997
        %v6072 = vunpack.c.l.b16 %v5982
        %v6073 = vunpack.c.h.b16 %v5982
        %v6074 = vunpack.c.l.b16 %v5998
        %v6075 = vunpack.c.l.b16 %v5983
        %v6076 = vunpack.c.h.b16 %v5983
        %v6077 = vunpack.c.l.b16 %v5999
        %v6078 = vunpack.c.l.b16 %v5984
        %v6079 = vunpack.c.h.b16 %v5984
        %v6080 = vunpack.c.l.b16 %v6000
        %v6081 = vpack.c.b16 %v6033, %v6033
        %v6082 = vpack.c.b16 %v6034, %v6034
        %v6083 = vpack.c.b16 %v6035, %v6035
        %v6084 = vpack.c.b16 %v6036, %v6036
        %v6085 = vpack.c.b16 %v6037, %v6037
        %v6086 = vpack.c.b16 %v6038, %v6038
        %v6087 = vpack.c.b16 %v6039, %v6039
        %v6088 = vpack.c.b16 %v6040, %v6040
        %v6089 = vpack.c.b16 %v6041, %v6041
        %v6090 = vpack.c.b16 %v6042, %v6042
        %v6091 = vpack.c.b16 %v6043, %v6043
        %v6092 = vpack.c.b16 %v6044, %v6044
        %v6093 = vpack.c.b16 %v6045, %v6045
        %v6094 = vpack.c.b16 %v6046, %v6046
        %v6095 = vpack.c.b16 %v6047, %v6047
        %v6096 = vpack.c.b16 %v6048, %v6048
        %v6097 = vpack.c.b16 %v6049, %v6049
        %v6098 = vpack.c.b16 %v6050, %v6050
        %v6099 = vpack.c.b16 %v6051, %v6051
        %v6100 = vpack.c.b16 %v6052, %v6052
        %v6101 = vpack.c.b16 %v6053, %v6053
        %v6102 = vpack.c.b16 %v6054, %v6054
        %v6103 = vpack.c.b16 %v6055, %v6055
        %v6104 = vpack.c.b16 %v6056, %v6056
        %v6105 = vpack.c.b16 %v6057, %v6057
        %v6106 = vpack.c.b16 %v6058, %v6058
        %v6107 = vpack.c.b16 %v6059, %v6059
        %v6108 = vpack.c.b16 %v6060, %v6060
        %v6109 = vpack.c.b16 %v6061, %v6061
        %v6110 = vpack.c.b16 %v6062, %v6062
        %v6111 = vpack.c.b16 %v6063, %v6063
        %v6112 = vpack.c.b16 %v6064, %v6064
        %v6113 = vpack.c.b16 %v6065, %v6065
        %v6114 = vpack.c.b16 %v6066, %v6066
        %v6115 = vpack.c.b16 %v6067, %v6067
        %v6116 = vpack.c.b16 %v6068, %v6068
        %v6117 = vpack.c.b16 %v6069, %v6069
        %v6118 = vpack.c.b16 %v6070, %v6070
        %v6119 = vpack.c.b16 %v6071, %v6071
        %v6120 = vpack.c.b16 %v6072, %v6072
        %v6121 = vpack.c.b16 %v6073, %v6073
        %v6122 = vpack.c.b16 %v6074, %v6074
        %v6123 = vpack.c.b16 %v6075, %v6075
        %v6124 = vpack.c.b16 %v6076, %v6076
        %v6125 = vpack.c.b16 %v6077, %v6077
        %v6126 = vpack.c.b16 %v6078, %v6078
        %v6127 = vpack.c.b16 %v6079, %v6079
        %v6128 = vpack.c.b16 %v6080, %v6080
        %6177 = vst [vmem:[%s721] sm:$0xf] %v6081
        %6178 = vst [vmem:[%s721 + $0x4] sm:$0xf] %v6082
        %6179 = vst [vmem:[%s721 + $0x8] sm:$0x1] %v6083
        %6180 = vst [vmem:[%s721 + $0xc] sm:$0xf] %v6084
        %6181 = vst [vmem:[%s721 + $0x10] sm:$0xf] %v6085
        %6182 = vst [vmem:[%s721 + $0x14] sm:$0x1] %v6086
        %6183 = vst [vmem:[%s721 + $0x18] sm:$0xf] %v6087
        %6184 = vst [vmem:[%s721 + $0x1c] sm:$0xf] %v6088
        %6185 = vst [vmem:[%s721 + $0x20] sm:$0x1] %v6089
        %6186 = vst [vmem:[%s721 + $0x24] sm:$0xf] %v6090
        %6187 = vst [vmem:[%s721 + $0x28] sm:$0xf] %v6091
        %6188 = vst [vmem:[%s721 + $0x2c] sm:$0x1] %v6092
        %6189 = vst [vmem:[%s721 + $0x30] sm:$0xf] %v6093
        %6190 = vst [vmem:[%s721 + $0x34] sm:$0xf] %v6094
        %6191 = vst [vmem:[%s721 + $0x38] sm:$0x1] %v6095
        %6192 = vst [vmem:[%s721 + $0x3c] sm:$0xf] %v6096
        %6193 = vst [vmem:[%s721 + $0x40] sm:$0xf] %v6097
        %6194 = vst [vmem:[%s721 + $0x44] sm:$0x1] %v6098
        %6195 = vst [vmem:[%s721 + $0x48] sm:$0xf] %v6099
        %6196 = vst [vmem:[%s721 + $0x4c] sm:$0xf] %v6100
        %6197 = vst [vmem:[%s721 + $0x50] sm:$0x1] %v6101
        %6198 = vst [vmem:[%s721 + $0x54] sm:$0xf] %v6102
        %6199 = vst [vmem:[%s721 + $0x58] sm:$0xf] %v6103
        %6200 = vst [vmem:[%s721 + $0x5c] sm:$0x1] %v6104
        %6201 = vst [vmem:[%s721 + $0x60] sm:$0xf] %v6105
        %6202 = vst [vmem:[%s721 + $0x64] sm:$0xf] %v6106
        %6203 = vst [vmem:[%s721 + $0x68] sm:$0x1] %v6107
        %6204 = vst [vmem:[%s721 + $0x6c] sm:$0xf] %v6108
        %6205 = vst [vmem:[%s721 + $0x70] sm:$0xf] %v6109
        %6206 = vst [vmem:[%s721 + $0x74] sm:$0x1] %v6110
        %6207 = vst [vmem:[%s721 + $0x78] sm:$0xf] %v6111
        %6208 = vst [vmem:[%s721 + $0x7c] sm:$0xf] %v6112
        %6209 = vst [vmem:[%s721 + $0x80] sm:$0x1] %v6113
        %6210 = vst [vmem:[%s721 + $0x84] sm:$0xf] %v6114
        %6211 = vst [vmem:[%s721 + $0x88] sm:$0xf] %v6115
        %6212 = vst [vmem:[%s721 + $0x8c] sm:$0x1] %v6116
        %6213 = vst [vmem:[%s721 + $0x90] sm:$0xf] %v6117
        %6214 = vst [vmem:[%s721 + $0x94] sm:$0xf] %v6118
        %6215 = vst [vmem:[%s721 + $0x98] sm:$0x1] %v6119
        %6216 = vst [vmem:[%s721 + $0x9c] sm:$0xf] %v6120
        %6217 = vst [vmem:[%s721 + $0xa0] sm:$0xf] %v6121
        %6218 = vst [vmem:[%s721 + $0xa4] sm:$0x1] %v6122
        %6219 = vst [vmem:[%s721 + $0xa8] sm:$0xf] %v6123
        %6220 = vst [vmem:[%s721 + $0xac] sm:$0xf] %v6124
        %6221 = vst [vmem:[%s721 + $0xb0] sm:$0x1] %v6125
        %6222 = vst [vmem:[%s721 + $0xb4] sm:$0xf] %v6126
        %6223 = vst [vmem:[%s721 + $0xb8] sm:$0xf] %v6127
        %6224 = vst [vmem:[%s721 + $0xbc] sm:$0x1] %v6128
        %v6225 = vld [vmem:[#allocation2] sm:$0xf]
        %v6226 = vld [vmem:[#allocation2 + $0x4] sm:$0xf]
        %v6227 = vld [vmem:[#allocation2 + $0xc] sm:$0xf]
        %v6228 = vld [vmem:[#allocation2 + $0x10] sm:$0xf]
        %v6229 = vld [vmem:[#allocation2 + $0x18] sm:$0xf]
        %v6230 = vld [vmem:[#allocation2 + $0x1c] sm:$0xf]
        %v6231 = vld [vmem:[#allocation2 + $0x24] sm:$0xf]
        %v6232 = vld [vmem:[#allocation2 + $0x28] sm:$0xf]
        %v6233 = vld [vmem:[#allocation2 + $0x30] sm:$0xf]
        %v6234 = vld [vmem:[#allocation2 + $0x34] sm:$0xf]
        %v6235 = vld [vmem:[#allocation2 + $0x3c] sm:$0xf]
        %v6236 = vld [vmem:[#allocation2 + $0x40] sm:$0xf]
        %v6237 = vld [vmem:[#allocation2 + $0x48] sm:$0xf]
        %v6238 = vld [vmem:[#allocation2 + $0x4c] sm:$0xf]
        %v6239 = vld [vmem:[#allocation2 + $0x54] sm:$0xf]
        %v6240 = vld [vmem:[#allocation2 + $0x58] sm:$0xf]
        %v6241 = vld [vmem:[#allocation2 + $0x60] sm:$0xf]
        %v6242 = vld [vmem:[#allocation2 + $0x64] sm:$0xf]
        %v6243 = vld [vmem:[#allocation2 + $0x6c] sm:$0xf]
        %v6244 = vld [vmem:[#allocation2 + $0x70] sm:$0xf]
        %v6245 = vld [vmem:[#allocation2 + $0x78] sm:$0xf]
        %v6246 = vld [vmem:[#allocation2 + $0x7c] sm:$0xf]
        %v6247 = vld [vmem:[#allocation2 + $0x84] sm:$0xf]
        %v6248 = vld [vmem:[#allocation2 + $0x88] sm:$0xf]
        %v6249 = vld [vmem:[#allocation2 + $0x90] sm:$0xf]
        %v6250 = vld [vmem:[#allocation2 + $0x94] sm:$0xf]
        %v6251 = vld [vmem:[#allocation2 + $0x9c] sm:$0xf]
        %v6252 = vld [vmem:[#allocation2 + $0xa0] sm:$0xf]
        %v6253 = vld [vmem:[#allocation2 + $0xa8] sm:$0xf]
        %v6254 = vld [vmem:[#allocation2 + $0xac] sm:$0xf]
        %v6255 = vld [vmem:[#allocation2 + $0xb4] sm:$0xf]
        %v6256 = vld [vmem:[#allocation2 + $0xb8] sm:$0xf]
        %v6257 = vld [vmem:[#allocation8] sm:$0xf]
        %v6258 = vld [vmem:[#allocation8 + $0x4] sm:$0xf]
        %v6259 = vld [vmem:[#allocation8 + $0x8] sm:$0xf]
        %v6260 = vld [vmem:[#allocation8 + $0xc] sm:$0xf]
        %v6261 = vld [vmem:[#allocation8 + $0x10] sm:$0xf]
        %v6262 = vld [vmem:[#allocation8 + $0x14] sm:$0xf]
        %v6263 = vld [vmem:[#allocation8 + $0x18] sm:$0xf]
        %v6264 = vld [vmem:[#allocation8 + $0x1c] sm:$0xf]
        %v6265 = vld [vmem:[#allocation8 + $0x20] sm:$0xf]
        %v6266 = vld [vmem:[#allocation8 + $0x24] sm:$0xf]
        %v6267 = vld [vmem:[#allocation8 + $0x28] sm:$0xf]
        %v6268 = vld [vmem:[#allocation8 + $0x2c] sm:$0xf]
        %v6269 = vld [vmem:[#allocation8 + $0x30] sm:$0xf]
        %v6270 = vld [vmem:[#allocation8 + $0x34] sm:$0xf]
        %v6271 = vld [vmem:[#allocation8 + $0x38] sm:$0xf]
        %v6272 = vld [vmem:[#allocation8 + $0x3c] sm:$0xf]
        %v6273 = vld [vmem:[#allocation2 + $0x8] sm:$0x1]
        %v6274 = vld [vmem:[#allocation2 + $0x14] sm:$0x1]
        %v6275 = vld [vmem:[#allocation2 + $0x20] sm:$0x1]
        %v6276 = vld [vmem:[#allocation2 + $0x2c] sm:$0x1]
        %v6277 = vld [vmem:[#allocation2 + $0x38] sm:$0x1]
        %v6278 = vld [vmem:[#allocation2 + $0x44] sm:$0x1]
        %v6279 = vld [vmem:[#allocation2 + $0x50] sm:$0x1]
        %v6280 = vld [vmem:[#allocation2 + $0x5c] sm:$0x1]
        %v6281 = vld [vmem:[#allocation2 + $0x68] sm:$0x1]
        %v6282 = vld [vmem:[#allocation2 + $0x74] sm:$0x1]
        %v6283 = vld [vmem:[#allocation2 + $0x80] sm:$0x1]
        %v6284 = vld [vmem:[#allocation2 + $0x8c] sm:$0x1]
        %v6285 = vld [vmem:[#allocation2 + $0x98] sm:$0x1]
        %v6286 = vld [vmem:[#allocation2 + $0xa4] sm:$0x1]
        %v6287 = vld [vmem:[#allocation2 + $0xb0] sm:$0x1]
        %v6288 = vld [vmem:[#allocation2 + $0xbc] sm:$0x1]
        %v6290 = vshrl.u32 %v6225, 16
        %v6292 = vrot.slane %v6290, 4
        %v6293 = vshll.u32 %v6225, 16
        %v6295 = vrot.slane %v6293, 5
        %v6296 = vor.u32 %v6292, %v6295
        %v6297 = vrot.slane %v6296, 4
        %v6299 = vshll.u32 %v6226, 16
        %v6301 = vrot.slane %v6299, 5
        %v6302 = vsel %vm836, %v6297, %v6301
        %v6303 = vshrl.u32 %v6226, 16
        %v6305 = vrot.slane %v6303, 4
        %v6306 = vor.u32 %v6305, %v6301
        %v6307 = vrot.slane %v6306, 4
        %v6309 = vshll.u32 %v6273, 16
        %v6311 = vrot.slane %v6309, 5
        %v6312 = vsel %vm836, %v6307, %v6311
        %v6314 = vshrl.u32 %v6227, 16
        %v6316 = vrot.slane %v6314, 4
        %v6317 = vshll.u32 %v6227, 16
        %v6319 = vrot.slane %v6317, 5
        %v6320 = vor.u32 %v6316, %v6319
        %v6321 = vrot.slane %v6320, 4
        %v6323 = vshll.u32 %v6228, 16
        %v6325 = vrot.slane %v6323, 5
        %v6326 = vsel %vm836, %v6321, %v6325
        %v6327 = vshrl.u32 %v6228, 16
        %v6329 = vrot.slane %v6327, 4
        %v6330 = vor.u32 %v6329, %v6325
        %v6331 = vrot.slane %v6330, 4
        %v6333 = vshll.u32 %v6274, 16
        %v6335 = vrot.slane %v6333, 5
        %v6336 = vsel %vm836, %v6331, %v6335
        %v6338 = vshrl.u32 %v6229, 16
        %v6340 = vrot.slane %v6338, 4
        %v6341 = vshll.u32 %v6229, 16
        %v6343 = vrot.slane %v6341, 5
        %v6344 = vor.u32 %v6340, %v6343
        %v6345 = vrot.slane %v6344, 4
        %v6347 = vshll.u32 %v6230, 16
        %v6349 = vrot.slane %v6347, 5
        %v6350 = vsel %vm836, %v6345, %v6349
        %v6351 = vshrl.u32 %v6230, 16
        %v6353 = vrot.slane %v6351, 4
        %v6354 = vor.u32 %v6353, %v6349
        %v6355 = vrot.slane %v6354, 4
        %v6357 = vshll.u32 %v6275, 16
        %v6359 = vrot.slane %v6357, 5
        %v6360 = vsel %vm836, %v6355, %v6359
        %v6362 = vshrl.u32 %v6231, 16
        %v6364 = vrot.slane %v6362, 4
        %v6365 = vshll.u32 %v6231, 16
        %v6367 = vrot.slane %v6365, 5
        %v6368 = vor.u32 %v6364, %v6367
        %v6369 = vrot.slane %v6368, 4
        %v6371 = vshll.u32 %v6232, 16
        %v6373 = vrot.slane %v6371, 5
        %v6374 = vsel %vm836, %v6369, %v6373
        %v6375 = vshrl.u32 %v6232, 16
        %v6377 = vrot.slane %v6375, 4
        %v6378 = vor.u32 %v6377, %v6373
        %v6379 = vrot.slane %v6378, 4
        %v6381 = vshll.u32 %v6276, 16
        %v6383 = vrot.slane %v6381, 5
        %v6384 = vsel %vm836, %v6379, %v6383
        %v6386 = vshrl.u32 %v6233, 16
        %v6388 = vrot.slane %v6386, 4
        %v6389 = vshll.u32 %v6233, 16
        %v6391 = vrot.slane %v6389, 5
        %v6392 = vor.u32 %v6388, %v6391
        %v6393 = vrot.slane %v6392, 4
        %v6395 = vshll.u32 %v6234, 16
        %v6397 = vrot.slane %v6395, 5
        %v6398 = vsel %vm836, %v6393, %v6397
        %v6399 = vshrl.u32 %v6234, 16
        %v6401 = vrot.slane %v6399, 4
        %v6402 = vor.u32 %v6401, %v6397
        %v6403 = vrot.slane %v6402, 4
        %v6405 = vshll.u32 %v6277, 16
        %v6407 = vrot.slane %v6405, 5
        %v6408 = vsel %vm836, %v6403, %v6407
        %v6410 = vshrl.u32 %v6235, 16
        %v6412 = vrot.slane %v6410, 4
        %v6413 = vshll.u32 %v6235, 16
        %v6415 = vrot.slane %v6413, 5
        %v6416 = vor.u32 %v6412, %v6415
        %v6417 = vrot.slane %v6416, 4
        %v6419 = vshll.u32 %v6236, 16
        %v6421 = vrot.slane %v6419, 5
        %v6422 = vsel %vm836, %v6417, %v6421
        %v6423 = vshrl.u32 %v6236, 16
        %v6425 = vrot.slane %v6423, 4
        %v6426 = vor.u32 %v6425, %v6421
        %v6427 = vrot.slane %v6426, 4
        %v6429 = vshll.u32 %v6278, 16
        %v6431 = vrot.slane %v6429, 5
        %v6432 = vsel %vm836, %v6427, %v6431
        %v6434 = vshrl.u32 %v6237, 16
        %v6436 = vrot.slane %v6434, 4
        %v6437 = vshll.u32 %v6237, 16
        %v6439 = vrot.slane %v6437, 5
        %v6440 = vor.u32 %v6436, %v6439
        %v6441 = vrot.slane %v6440, 4
        %v6443 = vshll.u32 %v6238, 16
        %v6445 = vrot.slane %v6443, 5
        %v6446 = vsel %vm836, %v6441, %v6445
        %v6447 = vshrl.u32 %v6238, 16
        %v6449 = vrot.slane %v6447, 4
        %v6450 = vor.u32 %v6449, %v6445
        %v6451 = vrot.slane %v6450, 4
        %v6453 = vshll.u32 %v6279, 16
        %v6455 = vrot.slane %v6453, 5
        %v6456 = vsel %vm836, %v6451, %v6455
        %v6458 = vshrl.u32 %v6239, 16
        %v6460 = vrot.slane %v6458, 4
        %v6461 = vshll.u32 %v6239, 16
        %v6463 = vrot.slane %v6461, 5
        %v6464 = vor.u32 %v6460, %v6463
        %v6465 = vrot.slane %v6464, 4
        %v6467 = vshll.u32 %v6240, 16
        %v6469 = vrot.slane %v6467, 5
        %v6470 = vsel %vm836, %v6465, %v6469
        %v6471 = vshrl.u32 %v6240, 16
        %v6473 = vrot.slane %v6471, 4
        %v6474 = vor.u32 %v6473, %v6469
        %v6475 = vrot.slane %v6474, 4
        %v6477 = vshll.u32 %v6280, 16
        %v6479 = vrot.slane %v6477, 5
        %v6480 = vsel %vm836, %v6475, %v6479
        %v6482 = vshrl.u32 %v6241, 16
        %v6484 = vrot.slane %v6482, 4
        %v6485 = vshll.u32 %v6241, 16
        %v6487 = vrot.slane %v6485, 5
        %v6488 = vor.u32 %v6484, %v6487
        %v6489 = vrot.slane %v6488, 4
        %v6491 = vshll.u32 %v6242, 16
        %v6493 = vrot.slane %v6491, 5
        %v6494 = vsel %vm836, %v6489, %v6493
        %v6495 = vshrl.u32 %v6242, 16
        %v6497 = vrot.slane %v6495, 4
        %v6498 = vor.u32 %v6497, %v6493
        %v6499 = vrot.slane %v6498, 4
        %v6501 = vshll.u32 %v6281, 16
        %v6503 = vrot.slane %v6501, 5
        %v6504 = vsel %vm836, %v6499, %v6503
        %v6506 = vshrl.u32 %v6243, 16
        %v6508 = vrot.slane %v6506, 4
        %v6509 = vshll.u32 %v6243, 16
        %v6511 = vrot.slane %v6509, 5
        %v6512 = vor.u32 %v6508, %v6511
        %v6513 = vrot.slane %v6512, 4
        %v6515 = vshll.u32 %v6244, 16
        %v6517 = vrot.slane %v6515, 5
        %v6518 = vsel %vm836, %v6513, %v6517
        %v6519 = vshrl.u32 %v6244, 16
        %v6521 = vrot.slane %v6519, 4
        %v6522 = vor.u32 %v6521, %v6517
        %v6523 = vrot.slane %v6522, 4
        %v6525 = vshll.u32 %v6282, 16
        %v6527 = vrot.slane %v6525, 5
        %v6528 = vsel %vm836, %v6523, %v6527
        %v6530 = vshrl.u32 %v6245, 16
        %v6532 = vrot.slane %v6530, 4
        %v6533 = vshll.u32 %v6245, 16
        %v6535 = vrot.slane %v6533, 5
        %v6536 = vor.u32 %v6532, %v6535
        %v6537 = vrot.slane %v6536, 4
        %v6539 = vshll.u32 %v6246, 16
        %v6541 = vrot.slane %v6539, 5
        %v6542 = vsel %vm836, %v6537, %v6541
        %v6543 = vshrl.u32 %v6246, 16
        %v6545 = vrot.slane %v6543, 4
        %v6546 = vor.u32 %v6545, %v6541
        %v6547 = vrot.slane %v6546, 4
        %v6549 = vshll.u32 %v6283, 16
        %v6551 = vrot.slane %v6549, 5
        %v6552 = vsel %vm836, %v6547, %v6551
        %v6554 = vshrl.u32 %v6247, 16
        %v6556 = vrot.slane %v6554, 4
        %v6557 = vshll.u32 %v6247, 16
        %v6559 = vrot.slane %v6557, 5
        %v6560 = vor.u32 %v6556, %v6559
        %v6561 = vrot.slane %v6560, 4
        %v6563 = vshll.u32 %v6248, 16
        %v6565 = vrot.slane %v6563, 5
        %v6566 = vsel %vm836, %v6561, %v6565
        %v6567 = vshrl.u32 %v6248, 16
        %v6569 = vrot.slane %v6567, 4
        %v6570 = vor.u32 %v6569, %v6565
        %v6571 = vrot.slane %v6570, 4
        %v6573 = vshll.u32 %v6284, 16
        %v6575 = vrot.slane %v6573, 5
        %v6576 = vsel %vm836, %v6571, %v6575
        %v6578 = vshrl.u32 %v6249, 16
        %v6580 = vrot.slane %v6578, 4
        %v6581 = vshll.u32 %v6249, 16
        %v6583 = vrot.slane %v6581, 5
        %v6584 = vor.u32 %v6580, %v6583
        %v6585 = vrot.slane %v6584, 4
        %v6587 = vshll.u32 %v6250, 16
        %v6589 = vrot.slane %v6587, 5
        %v6590 = vsel %vm836, %v6585, %v6589
        %v6591 = vshrl.u32 %v6250, 16
        %v6593 = vrot.slane %v6591, 4
        %v6594 = vor.u32 %v6593, %v6589
        %v6595 = vrot.slane %v6594, 4
        %v6597 = vshll.u32 %v6285, 16
        %v6599 = vrot.slane %v6597, 5
        %v6600 = vsel %vm836, %v6595, %v6599
        %v6602 = vshrl.u32 %v6251, 16
        %v6604 = vrot.slane %v6602, 4
        %v6605 = vshll.u32 %v6251, 16
        %v6607 = vrot.slane %v6605, 5
        %v6608 = vor.u32 %v6604, %v6607
        %v6609 = vrot.slane %v6608, 4
        %v6611 = vshll.u32 %v6252, 16
        %v6613 = vrot.slane %v6611, 5
        %v6614 = vsel %vm836, %v6609, %v6613
        %v6615 = vshrl.u32 %v6252, 16
        %v6617 = vrot.slane %v6615, 4
        %v6618 = vor.u32 %v6617, %v6613
        %v6619 = vrot.slane %v6618, 4
        %v6621 = vshll.u32 %v6286, 16
        %v6623 = vrot.slane %v6621, 5
        %v6624 = vsel %vm836, %v6619, %v6623
        %v6626 = vshrl.u32 %v6253, 16
        %v6628 = vrot.slane %v6626, 4
        %v6629 = vshll.u32 %v6253, 16
        %v6631 = vrot.slane %v6629, 5
        %v6632 = vor.u32 %v6628, %v6631
        %v6633 = vrot.slane %v6632, 4
        %v6635 = vshll.u32 %v6254, 16
        %v6637 = vrot.slane %v6635, 5
        %v6638 = vsel %vm836, %v6633, %v6637
        %v6639 = vshrl.u32 %v6254, 16
        %v6641 = vrot.slane %v6639, 4
        %v6642 = vor.u32 %v6641, %v6637
        %v6643 = vrot.slane %v6642, 4
        %v6645 = vshll.u32 %v6287, 16
        %v6647 = vrot.slane %v6645, 5
        %v6648 = vsel %vm836, %v6643, %v6647
        %v6650 = vshrl.u32 %v6255, 16
        %v6652 = vrot.slane %v6650, 4
        %v6653 = vshll.u32 %v6255, 16
        %v6655 = vrot.slane %v6653, 5
        %v6656 = vor.u32 %v6652, %v6655
        %v6657 = vrot.slane %v6656, 4
        %v6659 = vshll.u32 %v6256, 16
        %v6661 = vrot.slane %v6659, 5
        %v6662 = vsel %vm836, %v6657, %v6661
        %v6663 = vshrl.u32 %v6256, 16
        %v6665 = vrot.slane %v6663, 4
        %v6666 = vor.u32 %v6665, %v6661
        %v6667 = vrot.slane %v6666, 4
        %v6669 = vshll.u32 %v6288, 16
        %v6671 = vrot.slane %v6669, 5
        %v6672 = vsel %vm836, %v6667, %v6671
        %s6673 = scalar_lea.vmem [#allocation8], 64
        %v6674 = vld [vmem:[%s6673] sm:$0xf]
        %v6675 = vld [vmem:[%s6673 + $0x4] sm:$0xf]
        %v6676 = vld [vmem:[%s6673 + $0x8] sm:$0xf]
        %v6677 = vld [vmem:[%s6673 + $0xc] sm:$0xf]
        %v6678 = vld [vmem:[%s6673 + $0x10] sm:$0xf]
        %v6679 = vld [vmem:[%s6673 + $0x14] sm:$0xf]
        %v6680 = vld [vmem:[%s6673 + $0x18] sm:$0xf]
        %v6681 = vld [vmem:[%s6673 + $0x1c] sm:$0xf]
        %v6682 = vld [vmem:[%s6673 + $0x20] sm:$0xf]
        %v6683 = vld [vmem:[%s6673 + $0x24] sm:$0xf]
        %v6684 = vld [vmem:[%s6673 + $0x28] sm:$0xf]
        %v6685 = vld [vmem:[%s6673 + $0x2c] sm:$0xf]
        %v6686 = vld [vmem:[%s6673 + $0x30] sm:$0xf]
        %v6687 = vld [vmem:[%s6673 + $0x34] sm:$0xf]
        %v6688 = vld [vmem:[%s6673 + $0x38] sm:$0xf]
        %v6689 = vld [vmem:[%s6673 + $0x3c] sm:$0xf]
        %v6690 = vunpack.c.l.b16 %v6302
        %v6691 = vunpack.c.l.b16 %v6312
        %v6692 = vunpack.c.l.b16 %v6326
        %v6693 = vunpack.c.l.b16 %v6336
        %v6694 = vunpack.c.l.b16 %v6350
        %v6695 = vunpack.c.l.b16 %v6360
        %v6696 = vunpack.c.l.b16 %v6374
        %v6697 = vunpack.c.l.b16 %v6384
        %v6698 = vunpack.c.l.b16 %v6398
        %v6699 = vunpack.c.l.b16 %v6408
        %v6700 = vunpack.c.l.b16 %v6422
        %v6701 = vunpack.c.l.b16 %v6432
        %v6702 = vunpack.c.l.b16 %v6446
        %v6703 = vunpack.c.l.b16 %v6456
        %v6704 = vunpack.c.l.b16 %v6470
        %v6705 = vunpack.c.l.b16 %v6480
        %v6706 = vunpack.c.l.b16 %v6494
        %v6707 = vunpack.c.l.b16 %v6504
        %v6708 = vunpack.c.l.b16 %v6518
        %v6709 = vunpack.c.l.b16 %v6528
        %v6710 = vunpack.c.l.b16 %v6542
        %v6711 = vunpack.c.l.b16 %v6552
        %v6712 = vunpack.c.l.b16 %v6566
        %v6713 = vunpack.c.l.b16 %v6576
        %v6714 = vunpack.c.l.b16 %v6590
        %v6715 = vunpack.c.l.b16 %v6600
        %v6716 = vunpack.c.l.b16 %v6614
        %v6717 = vunpack.c.l.b16 %v6624
        %v6718 = vunpack.c.l.b16 %v6638
        %v6719 = vunpack.c.l.b16 %v6648
        %v6720 = vunpack.c.l.b16 %v6662
        %v6721 = vunpack.c.l.b16 %v6672
        %v6722 = vpack.c.b16 %v6691, %v6690
        %v6723 = vpack.c.b16 %v6693, %v6692
        %v6724 = vpack.c.b16 %v6695, %v6694
        %v6725 = vpack.c.b16 %v6697, %v6696
        %v6726 = vpack.c.b16 %v6699, %v6698
        %v6727 = vpack.c.b16 %v6701, %v6700
        %v6728 = vpack.c.b16 %v6703, %v6702
        %v6729 = vpack.c.b16 %v6705, %v6704
        %v6730 = vpack.c.b16 %v6707, %v6706
        %v6731 = vpack.c.b16 %v6709, %v6708
        %v6732 = vpack.c.b16 %v6711, %v6710
        %v6733 = vpack.c.b16 %v6713, %v6712
        %v6734 = vpack.c.b16 %v6715, %v6714
        %v6735 = vpack.c.b16 %v6717, %v6716
        %v6736 = vpack.c.b16 %v6719, %v6718
        %v6737 = vpack.c.b16 %v6721, %v6720
        %v6770 = vunpack.c.l.b16 %v6674
        %v6771 = vunpack.c.l.b16 %v6675
        %v6772 = vunpack.c.l.b16 %v6676
        %v6773 = vunpack.c.l.b16 %v6677
        %v6774 = vunpack.c.l.b16 %v6678
        %v6775 = vunpack.c.l.b16 %v6679
        %v6776 = vunpack.c.l.b16 %v6680
        %v6777 = vunpack.c.l.b16 %v6681
        %v6778 = vunpack.c.l.b16 %v6682
        %v6779 = vunpack.c.l.b16 %v6683
        %v6780 = vunpack.c.l.b16 %v6684
        %v6781 = vunpack.c.l.b16 %v6685
        %v6782 = vunpack.c.l.b16 %v6686
        %v6783 = vunpack.c.l.b16 %v6687
        %v6784 = vunpack.c.l.b16 %v6688
        %v6785 = vunpack.c.l.b16 %v6689
        %v6786 = vpack.c.b16 %v6771, %v6770
        %v6787 = vpack.c.b16 %v6773, %v6772
        %v6788 = vpack.c.b16 %v6775, %v6774
        %v6789 = vpack.c.b16 %v6777, %v6776
        %v6790 = vpack.c.b16 %v6779, %v6778
        %v6791 = vpack.c.b16 %v6781, %v6780
        %v6792 = vpack.c.b16 %v6783, %v6782
        %v6793 = vpack.c.b16 %v6785, %v6784
        %6802 = vmatprep.subr.bf16.mxu0 0
        %6803 = vmatpush1.bf16.msra.mxu0 %v6786
        %6804 = vmatprep.subr.bf16.mxu0 0
        %6805 = vmatpush1.bf16.msra.mxu0 %v6787
        %6806 = vmatprep.subr.bf16.mxu0 0
        %6807 = vmatpush1.bf16.msra.mxu0 %v6788
        %6808 = vmatprep.subr.bf16.mxu0 0
        %6809 = vmatpush1.bf16.msra.mxu0 %v6789
        %6810 = vmatprep.subr.bf16.mxu0 0
        %6811 = vmatpush1.bf16.msra.mxu0 %v6790
        %6812 = vmatprep.subr.bf16.mxu0 0
        %6813 = vmatpush1.bf16.msra.mxu0 %v6791
        %6814 = vmatprep.subr.bf16.mxu0 0
        %6815 = vmatpush1.bf16.msra.mxu0 %v6792
        %6816 = vmatprep.subr.bf16.mxu0 0
        %6817 = vmatpush1.bf16.msra.mxu0 %v6793
        %6818 = vmatprep.subr.bf16.mxu0 0
        %6819 = vmatpush1.bf16.msra.mxu0 0
        %6820 = vmatprep.subr.bf16.mxu0 0
        %6821 = vmatpush1.bf16.msra.mxu0 0
        %6822 = vmatprep.subr.bf16.mxu0 0
        %6823 = vmatpush1.bf16.msra.mxu0 0
        %6824 = vmatprep.subr.bf16.mxu0 0
        %6825 = vmatpush1.bf16.msra.mxu0 0
        %6826 = vmatprep.subr.bf16.mxu0 0
        %6827 = vmatpush1.bf16.msra.mxu0 0
        %6828 = vmatprep.subr.bf16.mxu0 0
        %6829 = vmatpush1.bf16.msra.mxu0 0
        %6830 = vmatprep.subr.bf16.mxu0 0
        %6831 = vmatpush1.bf16.msra.mxu0 0
        %6832 = vmatprep.subr.bf16.mxu0 0
        %6833 = vmatpush1.bf16.msra.mxu0 0
        %6834 = vmatprep.mubr.bf16.mxu0 0
        %6835 = vmatmul.mubr.bf16.gmra.mrb[0].mxu0 %v6722
        %v6836 = vpop.f32.mrb[0].mxu0
        %v6837 = vadd.f32 0.0, %v6836
        %v6838 = vpop.f32.mrb[0].mxu0
        %v6839 = vpop.f32.mrb[0].mxu0
        %v6840 = vadd.f32 0.0, %v6839
        %v6841 = vpop.f32.mrb[0].mxu0
        %6842 = vmatprep.mubr.bf16.mxu0 0
        %6843 = vmatmul.mubr.bf16.gmra.mrb[0].mxu0 %v6723
        %v6844 = vpop.f32.mrb[0].mxu0
        %v6845 = vadd.f32 0.0, %v6844
        %v6846 = vpop.f32.mrb[0].mxu0
        %v6847 = vpop.f32.mrb[0].mxu0
        %v6848 = vadd.f32 0.0, %v6847
        %v6849 = vpop.f32.mrb[0].mxu0
        %6850 = vmatprep.mubr.bf16.mxu0 0
        %6851 = vmatmul.mubr.bf16.gmra.mrb[0].mxu0 %v6724
        %v6852 = vpop.f32.mrb[0].mxu0
        %v6853 = vadd.f32 0.0, %v6852
        %v6854 = vpop.f32.mrb[0].mxu0
        %v6855 = vpop.f32.mrb[0].mxu0
        %v6856 = vadd.f32 0.0, %v6855
        %v6857 = vpop.f32.mrb[0].mxu0
        %6858 = vmatprep.mubr.bf16.mxu0 0
        %6859 = vmatmul.mubr.bf16.gmra.mrb[0].mxu0 %v6725
        %v6860 = vpop.f32.mrb[0].mxu0
        %v6861 = vadd.f32 0.0, %v6860
        %v6862 = vpop.f32.mrb[0].mxu0
        %v6863 = vpop.f32.mrb[0].mxu0
        %v6864 = vadd.f32 0.0, %v6863
        %v6865 = vpop.f32.mrb[0].mxu0
        %6866 = vmatprep.mubr.bf16.mxu0 0
        %6867 = vmatmul.mubr.bf16.gmra.mrb[0].mxu0 %v6726
        %v6868 = vpop.f32.mrb[0].mxu0
        %v6869 = vadd.f32 0.0, %v6868
        %v6870 = vpop.f32.mrb[0].mxu0
        %v6871 = vpop.f32.mrb[0].mxu0
        %v6872 = vadd.f32 0.0, %v6871
        %v6873 = vpop.f32.mrb[0].mxu0
        %6874 = vmatprep.mubr.bf16.mxu0 0
        %6875 = vmatmul.mubr.bf16.gmra.mrb[0].mxu0 %v6727
        %v6876 = vpop.f32.mrb[0].mxu0
        %v6877 = vadd.f32 0.0, %v6876
        %v6878 = vpop.f32.mrb[0].mxu0
        %v6879 = vpop.f32.mrb[0].mxu0
        %v6880 = vadd.f32 0.0, %v6879
        %v6881 = vpop.f32.mrb[0].mxu0
        %6882 = vmatprep.mubr.bf16.mxu0 0
        %6883 = vmatmul.mubr.bf16.gmra.mrb[0].mxu0 %v6728
        %v6884 = vpop.f32.mrb[0].mxu0
        %v6885 = vadd.f32 0.0, %v6884
        %v6886 = vpop.f32.mrb[0].mxu0
        %v6887 = vpop.f32.mrb[0].mxu0
        %v6888 = vadd.f32 0.0, %v6887
        %v6889 = vpop.f32.mrb[0].mxu0
        %6890 = vmatprep.mubr.bf16.mxu0 0
        %6891 = vmatmul.mubr.bf16.gmra.mrb[0].mxu0 %v6729
        %v6892 = vpop.f32.mrb[0].mxu0
        %v6893 = vadd.f32 0.0, %v6892
        %v6894 = vpop.f32.mrb[0].mxu0
        %v6895 = vpop.f32.mrb[0].mxu0
        %v6896 = vadd.f32 0.0, %v6895
        %v6897 = vpop.f32.mrb[0].mxu0
        %6898 = vmatprep.mubr.bf16.mxu0 0
        %6899 = vmatmul.mubr.bf16.gmra.mrb[0].mxu0 %v6730
        %v6900 = vpop.f32.mrb[0].mxu0
        %v6901 = vadd.f32 0.0, %v6900
        %v6902 = vpop.f32.mrb[0].mxu0
        %v6903 = vpop.f32.mrb[0].mxu0
        %v6904 = vadd.f32 0.0, %v6903
        %v6905 = vpop.f32.mrb[0].mxu0
        %6906 = vmatprep.mubr.bf16.mxu0 0
        %6907 = vmatmul.mubr.bf16.gmra.mrb[0].mxu0 %v6731
        %v6908 = vpop.f32.mrb[0].mxu0
        %v6909 = vadd.f32 0.0, %v6908
        %v6910 = vpop.f32.mrb[0].mxu0
        %v6911 = vpop.f32.mrb[0].mxu0
        %v6912 = vadd.f32 0.0, %v6911
        %v6913 = vpop.f32.mrb[0].mxu0
        %6914 = vmatprep.mubr.bf16.mxu0 0
        %6915 = vmatmul.mubr.bf16.gmra.mrb[0].mxu0 %v6732
        %v6916 = vpop.f32.mrb[0].mxu0
        %v6917 = vadd.f32 0.0, %v6916
        %v6918 = vpop.f32.mrb[0].mxu0
        %v6919 = vpop.f32.mrb[0].mxu0
        %v6920 = vadd.f32 0.0, %v6919
        %v6921 = vpop.f32.mrb[0].mxu0
        %6922 = vmatprep.mubr.bf16.mxu0 0
        %6923 = vmatmul.mubr.bf16.gmra.mrb[0].mxu0 %v6733
        %v6924 = vpop.f32.mrb[0].mxu0
        %v6925 = vadd.f32 0.0, %v6924
        %v6926 = vpop.f32.mrb[0].mxu0
        %v6927 = vpop.f32.mrb[0].mxu0
        %v6928 = vadd.f32 0.0, %v6927
        %v6929 = vpop.f32.mrb[0].mxu0
        %6930 = vmatprep.mubr.bf16.mxu0 0
        %6931 = vmatmul.mubr.bf16.gmra.mrb[0].mxu0 %v6734
        %v6932 = vpop.f32.mrb[0].mxu0
        %v6933 = vadd.f32 0.0, %v6932
        %v6934 = vpop.f32.mrb[0].mxu0
        %v6935 = vpop.f32.mrb[0].mxu0
        %v6936 = vadd.f32 0.0, %v6935
        %v6937 = vpop.f32.mrb[0].mxu0
        %6938 = vmatprep.mubr.bf16.mxu0 0
        %6939 = vmatmul.mubr.bf16.gmra.mrb[0].mxu0 %v6735
        %v6940 = vpop.f32.mrb[0].mxu0
        %v6941 = vadd.f32 0.0, %v6940
        %v6942 = vpop.f32.mrb[0].mxu0
        %v6943 = vpop.f32.mrb[0].mxu0
        %v6944 = vadd.f32 0.0, %v6943
        %v6945 = vpop.f32.mrb[0].mxu0
        %6946 = vmatprep.mubr.bf16.mxu0 0
        %6947 = vmatmul.mubr.bf16.gmra.mrb[0].mxu0 %v6736
        %v6948 = vpop.f32.mrb[0].mxu0
        %v6949 = vadd.f32 0.0, %v6948
        %v6950 = vpop.f32.mrb[0].mxu0
        %v6951 = vpop.f32.mrb[0].mxu0
        %v6952 = vadd.f32 0.0, %v6951
        %v6953 = vpop.f32.mrb[0].mxu0
        %6954 = vmatprep.mubr.bf16.mxu0 0
        %6955 = vmatmul.mubr.bf16.gmra.mrb[0].mxu0 %v6737
        %v6956 = vpop.f32.mrb[0].mxu0
        %v6957 = vadd.f32 0.0, %v6956
        %v6958 = vpop.f32.mrb[0].mxu0
        %v6959 = vpop.f32.mrb[0].mxu0
        %v6960 = vadd.f32 0.0, %v6959
        %v6961 = vpop.f32.mrb[0].mxu0
        %6962 = vdwg.mxu0
        %v6995 = vunpack.c.l.b16 %v6225
        %v6996 = vunpack.c.l.b16 %v6226
        %v6997 = vunpack.c.l.b16 %v6227
        %v6998 = vunpack.c.l.b16 %v6228
        %v6999 = vunpack.c.l.b16 %v6229
        %v7000 = vunpack.c.l.b16 %v6230
        %v7001 = vunpack.c.l.b16 %v6231
        %v7002 = vunpack.c.l.b16 %v6232
        %v7003 = vunpack.c.l.b16 %v6233
        %v7004 = vunpack.c.l.b16 %v6234
        %v7005 = vunpack.c.l.b16 %v6235
        %v7006 = vunpack.c.l.b16 %v6236
        %v7007 = vunpack.c.l.b16 %v6237
        %v7008 = vunpack.c.l.b16 %v6238
        %v7009 = vunpack.c.l.b16 %v6239
        %v7010 = vunpack.c.l.b16 %v6240
        %v7011 = vunpack.c.l.b16 %v6241
        %v7012 = vunpack.c.l.b16 %v6242
        %v7013 = vunpack.c.l.b16 %v6243
        %v7014 = vunpack.c.l.b16 %v6244
        %v7015 = vunpack.c.l.b16 %v6245
        %v7016 = vunpack.c.l.b16 %v6246
        %v7017 = vunpack.c.l.b16 %v6247
        %v7018 = vunpack.c.l.b16 %v6248
        %v7019 = vunpack.c.l.b16 %v6249
        %v7020 = vunpack.c.l.b16 %v6250
        %v7021 = vunpack.c.l.b16 %v6251
        %v7022 = vunpack.c.l.b16 %v6252
        %v7023 = vunpack.c.l.b16 %v6253
        %v7024 = vunpack.c.l.b16 %v6254
        %v7025 = vunpack.c.l.b16 %v6255
        %v7026 = vunpack.c.l.b16 %v6256
        %v7027 = vpack.c.b16 %v6996, %v6995
        %v7028 = vpack.c.b16 %v6998, %v6997
        %v7029 = vpack.c.b16 %v7000, %v6999
        %v7030 = vpack.c.b16 %v7002, %v7001
        %v7031 = vpack.c.b16 %v7004, %v7003
        %v7032 = vpack.c.b16 %v7006, %v7005
        %v7033 = vpack.c.b16 %v7008, %v7007
        %v7034 = vpack.c.b16 %v7010, %v7009
        %v7035 = vpack.c.b16 %v7012, %v7011
        %v7036 = vpack.c.b16 %v7014, %v7013
        %v7037 = vpack.c.b16 %v7016, %v7015
        %v7038 = vpack.c.b16 %v7018, %v7017
        %v7039 = vpack.c.b16 %v7020, %v7019
        %v7040 = vpack.c.b16 %v7022, %v7021
        %v7041 = vpack.c.b16 %v7024, %v7023
        %v7042 = vpack.c.b16 %v7026, %v7025
        %v7075 = vunpack.c.l.b16 %v6257
        %v7076 = vunpack.c.l.b16 %v6258
        %v7077 = vunpack.c.l.b16 %v6259
        %v7078 = vunpack.c.l.b16 %v6260
        %v7079 = vunpack.c.l.b16 %v6261
        %v7080 = vunpack.c.l.b16 %v6262
        %v7081 = vunpack.c.l.b16 %v6263
        %v7082 = vunpack.c.l.b16 %v6264
        %v7083 = vunpack.c.l.b16 %v6265
        %v7084 = vunpack.c.l.b16 %v6266
        %v7085 = vunpack.c.l.b16 %v6267
        %v7086 = vunpack.c.l.b16 %v6268
        %v7087 = vunpack.c.l.b16 %v6269
        %v7088 = vunpack.c.l.b16 %v6270
        %v7089 = vunpack.c.l.b16 %v6271
        %v7090 = vunpack.c.l.b16 %v6272
        %v7091 = vpack.c.b16 %v7076, %v7075
        %v7092 = vpack.c.b16 %v7078, %v7077
        %v7093 = vpack.c.b16 %v7080, %v7079
        %v7094 = vpack.c.b16 %v7082, %v7081
        %v7095 = vpack.c.b16 %v7084, %v7083
        %v7096 = vpack.c.b16 %v7086, %v7085
        %v7097 = vpack.c.b16 %v7088, %v7087
        %v7098 = vpack.c.b16 %v7090, %v7089
        %7107 = vmatprep.subr.bf16.mxu0 0
        %7108 = vmatpush1.bf16.msra.mxu0 %v7091
        %7109 = vmatprep.subr.bf16.mxu0 0
        %7110 = vmatpush1.bf16.msra.mxu0 %v7092
        %7111 = vmatprep.subr.bf16.mxu0 0
        %7112 = vmatpush1.bf16.msra.mxu0 %v7093
        %7113 = vmatprep.subr.bf16.mxu0 0
        %7114 = vmatpush1.bf16.msra.mxu0 %v7094
        %7115 = vmatprep.subr.bf16.mxu0 0
        %7116 = vmatpush1.bf16.msra.mxu0 %v7095
        %7117 = vmatprep.subr.bf16.mxu0 0
        %7118 = vmatpush1.bf16.msra.mxu0 %v7096
        %7119 = vmatprep.subr.bf16.mxu0 0
        %7120 = vmatpush1.bf16.msra.mxu0 %v7097
        %7121 = vmatprep.subr.bf16.mxu0 0
        %7122 = vmatpush1.bf16.msra.mxu0 %v7098
        %7123 = vmatprep.subr.bf16.mxu0 0
        %7124 = vmatpush1.bf16.msra.mxu0 0
        %7125 = vmatprep.subr.bf16.mxu0 0
        %7126 = vmatpush1.bf16.msra.mxu0 0
        %7127 = vmatprep.subr.bf16.mxu0 0
        %7128 = vmatpush1.bf16.msra.mxu0 0
        %7129 = vmatprep.subr.bf16.mxu0 0
        %7130 = vmatpush1.bf16.msra.mxu0 0
        %7131 = vmatprep.subr.bf16.mxu0 0
        %7132 = vmatpush1.bf16.msra.mxu0 0
        %7133 = vmatprep.subr.bf16.mxu0 0
        %7134 = vmatpush1.bf16.msra.mxu0 0
        %7135 = vmatprep.subr.bf16.mxu0 0
        %7136 = vmatpush1.bf16.msra.mxu0 0
        %7137 = vmatprep.subr.bf16.mxu0 0
        %7138 = vmatpush1.bf16.msra.mxu0 0
        %7139 = vmatprep.mubr.bf16.mxu0 0
        %7140 = vmatmul.mubr.bf16.gmra.mrb[0].mxu0 %v7027
        %v7141 = vpop.f32.mrb[0].mxu0
        %v7142 = vadd.f32 %v6837, %v7141
        %v7143 = vpop.f32.mrb[0].mxu0
        %v7144 = vpop.f32.mrb[0].mxu0
        %v7145 = vadd.f32 %v6840, %v7144
        %v7146 = vpop.f32.mrb[0].mxu0
        %7147 = vmatprep.mubr.bf16.mxu0 0
        %7148 = vmatmul.mubr.bf16.gmra.mrb[0].mxu0 %v7028
        %v7149 = vpop.f32.mrb[0].mxu0
        %v7150 = vadd.f32 %v6845, %v7149
        %v7151 = vpop.f32.mrb[0].mxu0
        %v7152 = vpop.f32.mrb[0].mxu0
        %v7153 = vadd.f32 %v6848, %v7152
        %v7154 = vpop.f32.mrb[0].mxu0
        %7155 = vmatprep.mubr.bf16.mxu0 0
        %7156 = vmatmul.mubr.bf16.gmra.mrb[0].mxu0 %v7029
        %v7157 = vpop.f32.mrb[0].mxu0
        %v7158 = vadd.f32 %v6853, %v7157
        %v7159 = vpop.f32.mrb[0].mxu0
        %v7160 = vpop.f32.mrb[0].mxu0
        %v7161 = vadd.f32 %v6856, %v7160
        %v7162 = vpop.f32.mrb[0].mxu0
        %7163 = vmatprep.mubr.bf16.mxu0 0
        %7164 = vmatmul.mubr.bf16.gmra.mrb[0].mxu0 %v7030
        %v7165 = vpop.f32.mrb[0].mxu0
        %v7166 = vadd.f32 %v6861, %v7165
        %v7167 = vpop.f32.mrb[0].mxu0
        %v7168 = vpop.f32.mrb[0].mxu0
        %v7169 = vadd.f32 %v6864, %v7168
        %v7170 = vpop.f32.mrb[0].mxu0
        %7171 = vmatprep.mubr.bf16.mxu0 0
        %7172 = vmatmul.mubr.bf16.gmra.mrb[0].mxu0 %v7031
        %v7173 = vpop.f32.mrb[0].mxu0
        %v7174 = vadd.f32 %v6869, %v7173
        %v7175 = vpop.f32.mrb[0].mxu0
        %v7176 = vpop.f32.mrb[0].mxu0
        %v7177 = vadd.f32 %v6872, %v7176
        %v7178 = vpop.f32.mrb[0].mxu0
        %7179 = vmatprep.mubr.bf16.mxu0 0
        %7180 = vmatmul.mubr.bf16.gmra.mrb[0].mxu0 %v7032
        %v7181 = vpop.f32.mrb[0].mxu0
        %v7182 = vadd.f32 %v6877, %v7181
        %v7183 = vpop.f32.mrb[0].mxu0
        %v7184 = vpop.f32.mrb[0].mxu0
        %v7185 = vadd.f32 %v6880, %v7184
        %v7186 = vpop.f32.mrb[0].mxu0
        %7187 = vmatprep.mubr.bf16.mxu0 0
        %7188 = vmatmul.mubr.bf16.gmra.mrb[0].mxu0 %v7033
        %v7189 = vpop.f32.mrb[0].mxu0
        %v7190 = vadd.f32 %v6885, %v7189
        %v7191 = vpop.f32.mrb[0].mxu0
        %v7192 = vpop.f32.mrb[0].mxu0
        %v7193 = vadd.f32 %v6888, %v7192
        %v7194 = vpop.f32.mrb[0].mxu0
        %7195 = vmatprep.mubr.bf16.mxu0 0
        %7196 = vmatmul.mubr.bf16.gmra.mrb[0].mxu0 %v7034
        %v7197 = vpop.f32.mrb[0].mxu0
        %v7198 = vadd.f32 %v6893, %v7197
        %v7199 = vpop.f32.mrb[0].mxu0
        %v7200 = vpop.f32.mrb[0].mxu0
        %v7201 = vadd.f32 %v6896, %v7200
        %v7202 = vpop.f32.mrb[0].mxu0
        %7203 = vmatprep.mubr.bf16.mxu0 0
        %7204 = vmatmul.mubr.bf16.gmra.mrb[0].mxu0 %v7035
        %v7205 = vpop.f32.mrb[0].mxu0
        %v7206 = vadd.f32 %v6901, %v7205
        %v7207 = vpop.f32.mrb[0].mxu0
        %v7208 = vpop.f32.mrb[0].mxu0
        %v7209 = vadd.f32 %v6904, %v7208
        %v7210 = vpop.f32.mrb[0].mxu0
        %7211 = vmatprep.mubr.bf16.mxu0 0
        %7212 = vmatmul.mubr.bf16.gmra.mrb[0].mxu0 %v7036
        %v7213 = vpop.f32.mrb[0].mxu0
        %v7214 = vadd.f32 %v6909, %v7213
        %v7215 = vpop.f32.mrb[0].mxu0
        %v7216 = vpop.f32.mrb[0].mxu0
        %v7217 = vadd.f32 %v6912, %v7216
        %v7218 = vpop.f32.mrb[0].mxu0
        %7219 = vmatprep.mubr.bf16.mxu0 0
        %7220 = vmatmul.mubr.bf16.gmra.mrb[0].mxu0 %v7037
        %v7221 = vpop.f32.mrb[0].mxu0
        %v7222 = vadd.f32 %v6917, %v7221
        %v7223 = vpop.f32.mrb[0].mxu0
        %v7224 = vpop.f32.mrb[0].mxu0
        %v7225 = vadd.f32 %v6920, %v7224
        %v7226 = vpop.f32.mrb[0].mxu0
        %7227 = vmatprep.mubr.bf16.mxu0 0
        %7228 = vmatmul.mubr.bf16.gmra.mrb[0].mxu0 %v7038
        %v7229 = vpop.f32.mrb[0].mxu0
        %v7230 = vadd.f32 %v6925, %v7229
        %v7231 = vpop.f32.mrb[0].mxu0
        %v7232 = vpop.f32.mrb[0].mxu0
        %v7233 = vadd.f32 %v6928, %v7232
        %v7234 = vpop.f32.mrb[0].mxu0
        %7235 = vmatprep.mubr.bf16.mxu0 0
        %7236 = vmatmul.mubr.bf16.gmra.mrb[0].mxu0 %v7039
        %v7237 = vpop.f32.mrb[0].mxu0
        %v7238 = vadd.f32 %v6933, %v7237
        %v7239 = vpop.f32.mrb[0].mxu0
        %v7240 = vpop.f32.mrb[0].mxu0
        %v7241 = vadd.f32 %v6936, %v7240
        %v7242 = vpop.f32.mrb[0].mxu0
        %7243 = vmatprep.mubr.bf16.mxu0 0
        %7244 = vmatmul.mubr.bf16.gmra.mrb[0].mxu0 %v7040
        %v7245 = vpop.f32.mrb[0].mxu0
        %v7246 = vadd.f32 %v6941, %v7245
        %v7247 = vpop.f32.mrb[0].mxu0
        %v7248 = vpop.f32.mrb[0].mxu0
        %v7249 = vadd.f32 %v6944, %v7248
        %v7250 = vpop.f32.mrb[0].mxu0
        %7251 = vmatprep.mubr.bf16.mxu0 0
        %7252 = vmatmul.mubr.bf16.gmra.mrb[0].mxu0 %v7041
        %v7253 = vpop.f32.mrb[0].mxu0
        %v7254 = vadd.f32 %v6949, %v7253
        %v7255 = vpop.f32.mrb[0].mxu0
        %v7256 = vpop.f32.mrb[0].mxu0
        %v7257 = vadd.f32 %v6952, %v7256
        %v7258 = vpop.f32.mrb[0].mxu0
        %7259 = vmatprep.mubr.bf16.mxu0 0
        %7260 = vmatmul.mubr.bf16.gmra.mrb[0].mxu0 %v7042
        %v7261 = vpop.f32.mrb[0].mxu0
        %v7262 = vadd.f32 %v6957, %v7261
        %v7263 = vpop.f32.mrb[0].mxu0
        %v7264 = vpop.f32.mrb[0].mxu0
        %v7265 = vadd.f32 %v6960, %v7264
        %v7266 = vpop.f32.mrb[0].mxu0
        %7267 = vdwg.mxu0
        %v7268 = vld [vmem:[#allocation2] sm:$0xe]
        %v7269 = vld [vmem:[#allocation2 + $0xc] sm:$0xe]
        %v7270 = vld [vmem:[#allocation2 + $0x18] sm:$0xe]
        %v7271 = vld [vmem:[#allocation2 + $0x24] sm:$0xe]
        %v7272 = vld [vmem:[#allocation2 + $0x30] sm:$0xe]
        %v7273 = vld [vmem:[#allocation2 + $0x3c] sm:$0xe]
        %v7274 = vld [vmem:[#allocation2 + $0x48] sm:$0xe]
        %v7275 = vld [vmem:[#allocation2 + $0x54] sm:$0xe]
        %v7276 = vld [vmem:[#allocation2 + $0x60] sm:$0xe]
        %v7277 = vld [vmem:[#allocation2 + $0x6c] sm:$0xe]
        %v7278 = vld [vmem:[#allocation2 + $0x78] sm:$0xe]
        %v7279 = vld [vmem:[#allocation2 + $0x84] sm:$0xe]
        %v7280 = vld [vmem:[#allocation2 + $0x90] sm:$0xe]
        %v7281 = vld [vmem:[#allocation2 + $0x9c] sm:$0xe]
        %v7282 = vld [vmem:[#allocation2 + $0xa8] sm:$0xe]
        %v7283 = vld [vmem:[#allocation2 + $0xb4] sm:$0xe]
        %v7316 = vrot.slane %v7268, 5
        %v7317 = vrot.slane %v7316, 4
        %v7318 = vrot.slane %v6226, 5
        %v7319 = vsel %vm1866, %v7317, %v7318
        %v7320 = vrot.slane %v7318, 4
        %v7321 = vrot.slane %v6273, 5
        %v7322 = vsel %vm1866, %v7320, %v7321
        %v7323 = vrot.slane %v7269, 5
        %v7324 = vrot.slane %v7323, 4
        %v7325 = vrot.slane %v6228, 5
        %v7326 = vsel %vm1866, %v7324, %v7325
        %v7327 = vrot.slane %v7325, 4
        %v7328 = vrot.slane %v6274, 5
        %v7329 = vsel %vm1866, %v7327, %v7328
        %v7330 = vrot.slane %v7270, 5
        %v7331 = vrot.slane %v7330, 4
        %v7332 = vrot.slane %v6230, 5
        %v7333 = vsel %vm1866, %v7331, %v7332
        %v7334 = vrot.slane %v7332, 4
        %v7335 = vrot.slane %v6275, 5
        %v7336 = vsel %vm1866, %v7334, %v7335
        %v7337 = vrot.slane %v7271, 5
        %v7338 = vrot.slane %v7337, 4
        %v7339 = vrot.slane %v6232, 5
        %v7340 = vsel %vm1866, %v7338, %v7339
        %v7341 = vrot.slane %v7339, 4
        %v7342 = vrot.slane %v6276, 5
        %v7343 = vsel %vm1866, %v7341, %v7342
        %v7344 = vrot.slane %v7272, 5
        %v7345 = vrot.slane %v7344, 4
        %v7346 = vrot.slane %v6234, 5
        %v7347 = vsel %vm1866, %v7345, %v7346
        %v7348 = vrot.slane %v7346, 4
        %v7349 = vrot.slane %v6277, 5
        %v7350 = vsel %vm1866, %v7348, %v7349
        %v7351 = vrot.slane %v7273, 5
        %v7352 = vrot.slane %v7351, 4
        %v7353 = vrot.slane %v6236, 5
        %v7354 = vsel %vm1866, %v7352, %v7353
        %v7355 = vrot.slane %v7353, 4
        %v7356 = vrot.slane %v6278, 5
        %v7357 = vsel %vm1866, %v7355, %v7356
        %v7358 = vrot.slane %v7274, 5
        %v7359 = vrot.slane %v7358, 4
        %v7360 = vrot.slane %v6238, 5
        %v7361 = vsel %vm1866, %v7359, %v7360
        %v7362 = vrot.slane %v7360, 4
        %v7363 = vrot.slane %v6279, 5
        %v7364 = vsel %vm1866, %v7362, %v7363
        %v7365 = vrot.slane %v7275, 5
        %v7366 = vrot.slane %v7365, 4
        %v7367 = vrot.slane %v6240, 5
        %v7368 = vsel %vm1866, %v7366, %v7367
        %v7369 = vrot.slane %v7367, 4
        %v7370 = vrot.slane %v6280, 5
        %v7371 = vsel %vm1866, %v7369, %v7370
        %v7372 = vrot.slane %v7276, 5
        %v7373 = vrot.slane %v7372, 4
        %v7374 = vrot.slane %v6242, 5
        %v7375 = vsel %vm1866, %v7373, %v7374
        %v7376 = vrot.slane %v7374, 4
        %v7377 = vrot.slane %v6281, 5
        %v7378 = vsel %vm1866, %v7376, %v7377
        %v7379 = vrot.slane %v7277, 5
        %v7380 = vrot.slane %v7379, 4
        %v7381 = vrot.slane %v6244, 5
        %v7382 = vsel %vm1866, %v7380, %v7381
        %v7383 = vrot.slane %v7381, 4
        %v7384 = vrot.slane %v6282, 5
        %v7385 = vsel %vm1866, %v7383, %v7384
        %v7386 = vrot.slane %v7278, 5
        %v7387 = vrot.slane %v7386, 4
        %v7388 = vrot.slane %v6246, 5
        %v7389 = vsel %vm1866, %v7387, %v7388
        %v7390 = vrot.slane %v7388, 4
        %v7391 = vrot.slane %v6283, 5
        %v7392 = vsel %vm1866, %v7390, %v7391
        %v7393 = vrot.slane %v7279, 5
        %v7394 = vrot.slane %v7393, 4
        %v7395 = vrot.slane %v6248, 5
        %v7396 = vsel %vm1866, %v7394, %v7395
        %v7397 = vrot.slane %v7395, 4
        %v7398 = vrot.slane %v6284, 5
        %v7399 = vsel %vm1866, %v7397, %v7398
        %v7400 = vrot.slane %v7280, 5
        %v7401 = vrot.slane %v7400, 4
        %v7402 = vrot.slane %v6250, 5
        %v7403 = vsel %vm1866, %v7401, %v7402
        %v7404 = vrot.slane %v7402, 4
        %v7405 = vrot.slane %v6285, 5
        %v7406 = vsel %vm1866, %v7404, %v7405
        %v7407 = vrot.slane %v7281, 5
        %v7408 = vrot.slane %v7407, 4
        %v7409 = vrot.slane %v6252, 5
        %v7410 = vsel %vm1866, %v7408, %v7409
        %v7411 = vrot.slane %v7409, 4
        %v7412 = vrot.slane %v6286, 5
        %v7413 = vsel %vm1866, %v7411, %v7412
        %v7414 = vrot.slane %v7282, 5
        %v7415 = vrot.slane %v7414, 4
        %v7416 = vrot.slane %v6254, 5
        %v7417 = vsel %vm1866, %v7415, %v7416
        %v7418 = vrot.slane %v7416, 4
        %v7419 = vrot.slane %v6287, 5
        %v7420 = vsel %vm1866, %v7418, %v7419
        %v7421 = vrot.slane %v7283, 5
        %v7422 = vrot.slane %v7421, 4
        %v7423 = vrot.slane %v6256, 5
        %v7424 = vsel %vm1866, %v7422, %v7423
        %v7425 = vrot.slane %v7423, 4
        %v7426 = vrot.slane %v6288, 5
        %v7427 = vsel %vm1866, %v7425, %v7426
        %s7428 = scalar_lea.vmem [#allocation8], 128
        %v7429 = vld [vmem:[%s7428] sm:$0xf]
        %v7430 = vld [vmem:[%s7428 + $0x4] sm:$0xf]
        %v7431 = vld [vmem:[%s7428 + $0x8] sm:$0xf]
        %v7432 = vld [vmem:[%s7428 + $0xc] sm:$0xf]
        %v7433 = vld [vmem:[%s7428 + $0x10] sm:$0xf]
        %v7434 = vld [vmem:[%s7428 + $0x14] sm:$0xf]
        %v7435 = vld [vmem:[%s7428 + $0x18] sm:$0xf]
        %v7436 = vld [vmem:[%s7428 + $0x1c] sm:$0xf]
        %v7437 = vld [vmem:[%s7428 + $0x20] sm:$0xf]
        %v7438 = vld [vmem:[%s7428 + $0x24] sm:$0xf]
        %v7439 = vld [vmem:[%s7428 + $0x28] sm:$0xf]
        %v7440 = vld [vmem:[%s7428 + $0x2c] sm:$0xf]
        %v7441 = vld [vmem:[%s7428 + $0x30] sm:$0xf]
        %v7442 = vld [vmem:[%s7428 + $0x34] sm:$0xf]
        %v7443 = vld [vmem:[%s7428 + $0x38] sm:$0xf]
        %v7444 = vld [vmem:[%s7428 + $0x3c] sm:$0xf]
        %v7445 = vunpack.c.l.b16 %v7319
        %v7446 = vunpack.c.l.b16 %v7322
        %v7447 = vunpack.c.l.b16 %v7326
        %v7448 = vunpack.c.l.b16 %v7329
        %v7449 = vunpack.c.l.b16 %v7333
        %v7450 = vunpack.c.l.b16 %v7336
        %v7451 = vunpack.c.l.b16 %v7340
        %v7452 = vunpack.c.l.b16 %v7343
        %v7453 = vunpack.c.l.b16 %v7347
        %v7454 = vunpack.c.l.b16 %v7350
        %v7455 = vunpack.c.l.b16 %v7354
        %v7456 = vunpack.c.l.b16 %v7357
        %v7457 = vunpack.c.l.b16 %v7361
        %v7458 = vunpack.c.l.b16 %v7364
        %v7459 = vunpack.c.l.b16 %v7368
        %v7460 = vunpack.c.l.b16 %v7371
        %v7461 = vunpack.c.l.b16 %v7375
        %v7462 = vunpack.c.l.b16 %v7378
        %v7463 = vunpack.c.l.b16 %v7382
        %v7464 = vunpack.c.l.b16 %v7385
        %v7465 = vunpack.c.l.b16 %v7389
        %v7466 = vunpack.c.l.b16 %v7392
        %v7467 = vunpack.c.l.b16 %v7396
        %v7468 = vunpack.c.l.b16 %v7399
        %v7469 = vunpack.c.l.b16 %v7403
        %v7470 = vunpack.c.l.b16 %v7406
        %v7471 = vunpack.c.l.b16 %v7410
        %v7472 = vunpack.c.l.b16 %v7413
        %v7473 = vunpack.c.l.b16 %v7417
        %v7474 = vunpack.c.l.b16 %v7420
        %v7475 = vunpack.c.l.b16 %v7424
        %v7476 = vunpack.c.l.b16 %v7427
        %v7477 = vpack.c.b16 %v7446, %v7445
        %v7478 = vpack.c.b16 %v7448, %v7447
        %v7479 = vpack.c.b16 %v7450, %v7449
        %v7480 = vpack.c.b16 %v7452, %v7451
        %v7481 = vpack.c.b16 %v7454, %v7453
        %v7482 = vpack.c.b16 %v7456, %v7455
        %v7483 = vpack.c.b16 %v7458, %v7457
        %v7484 = vpack.c.b16 %v7460, %v7459
        %v7485 = vpack.c.b16 %v7462, %v7461
        %v7486 = vpack.c.b16 %v7464, %v7463
        %v7487 = vpack.c.b16 %v7466, %v7465
        %v7488 = vpack.c.b16 %v7468, %v7467
        %v7489 = vpack.c.b16 %v7470, %v7469
        %v7490 = vpack.c.b16 %v7472, %v7471
        %v7491 = vpack.c.b16 %v7474, %v7473
        %v7492 = vpack.c.b16 %v7476, %v7475
        %v7525 = vunpack.c.l.b16 %v7429
        %v7526 = vunpack.c.l.b16 %v7430
        %v7527 = vunpack.c.l.b16 %v7431
        %v7528 = vunpack.c.l.b16 %v7432
        %v7529 = vunpack.c.l.b16 %v7433
        %v7530 = vunpack.c.l.b16 %v7434
        %v7531 = vunpack.c.l.b16 %v7435
        %v7532 = vunpack.c.l.b16 %v7436
        %v7533 = vunpack.c.l.b16 %v7437
        %v7534 = vunpack.c.l.b16 %v7438
        %v7535 = vunpack.c.l.b16 %v7439
        %v7536 = vunpack.c.l.b16 %v7440
        %v7537 = vunpack.c.l.b16 %v7441
        %v7538 = vunpack.c.l.b16 %v7442
        %v7539 = vunpack.c.l.b16 %v7443
        %v7540 = vunpack.c.l.b16 %v7444
        %v7541 = vpack.c.b16 %v7526, %v7525
        %v7542 = vpack.c.b16 %v7528, %v7527
        %v7543 = vpack.c.b16 %v7530, %v7529
        %v7544 = vpack.c.b16 %v7532, %v7531
        %v7545 = vpack.c.b16 %v7534, %v7533
        %v7546 = vpack.c.b16 %v7536, %v7535
        %v7547 = vpack.c.b16 %v7538, %v7537
        %v7548 = vpack.c.b16 %v7540, %v7539
        %7557 = vmatprep.subr.bf16.mxu0 0
        %7558 = vmatpush1.bf16.msra.mxu0 %v7541
        %7559 = vmatprep.subr.bf16.mxu0 0
        %7560 = vmatpush1.bf16.msra.mxu0 %v7542
        %7561 = vmatprep.subr.bf16.mxu0 0
        %7562 = vmatpush1.bf16.msra.mxu0 %v7543
        %7563 = vmatprep.subr.bf16.mxu0 0
        %7564 = vmatpush1.bf16.msra.mxu0 %v7544
        %7565 = vmatprep.subr.bf16.mxu0 0
        %7566 = vmatpush1.bf16.msra.mxu0 %v7545
        %7567 = vmatprep.subr.bf16.mxu0 0
        %7568 = vmatpush1.bf16.msra.mxu0 %v7546
        %7569 = vmatprep.subr.bf16.mxu0 0
        %7570 = vmatpush1.bf16.msra.mxu0 %v7547
        %7571 = vmatprep.subr.bf16.mxu0 0
        %7572 = vmatpush1.bf16.msra.mxu0 %v7548
        %7573 = vmatprep.subr.bf16.mxu0 0
        %7574 = vmatpush1.bf16.msra.mxu0 0
        %7575 = vmatprep.subr.bf16.mxu0 0
        %7576 = vmatpush1.bf16.msra.mxu0 0
        %7577 = vmatprep.subr.bf16.mxu0 0
        %7578 = vmatpush1.bf16.msra.mxu0 0
        %7579 = vmatprep.subr.bf16.mxu0 0
        %7580 = vmatpush1.bf16.msra.mxu0 0
        %7581 = vmatprep.subr.bf16.mxu0 0
        %7582 = vmatpush1.bf16.msra.mxu0 0
        %7583 = vmatprep.subr.bf16.mxu0 0
        %7584 = vmatpush1.bf16.msra.mxu0 0
        %7585 = vmatprep.subr.bf16.mxu0 0
        %7586 = vmatpush1.bf16.msra.mxu0 0
        %7587 = vmatprep.subr.bf16.mxu0 0
        %7588 = vmatpush1.bf16.msra.mxu0 0
        %7589 = vmatprep.mubr.bf16.mxu0 0
        %7590 = vmatmul.mubr.bf16.gmra.mrb[0].mxu0 %v7477
        %v7591 = vpop.f32.mrb[0].mxu0
        %v7592 = vadd.f32 0.0, %v7591
        %v7593 = vpop.f32.mrb[0].mxu0
        %v7594 = vpop.f32.mrb[0].mxu0
        %v7595 = vadd.f32 0.0, %v7594
        %v7596 = vpop.f32.mrb[0].mxu0
        %7597 = vmatprep.mubr.bf16.mxu0 0
        %7598 = vmatmul.mubr.bf16.gmra.mrb[0].mxu0 %v7478
        %v7599 = vpop.f32.mrb[0].mxu0
        %v7600 = vadd.f32 0.0, %v7599
        %v7601 = vpop.f32.mrb[0].mxu0
        %v7602 = vpop.f32.mrb[0].mxu0
        %v7603 = vadd.f32 0.0, %v7602
        %v7604 = vpop.f32.mrb[0].mxu0
        %7605 = vmatprep.mubr.bf16.mxu0 0
        %7606 = vmatmul.mubr.bf16.gmra.mrb[0].mxu0 %v7479
        %v7607 = vpop.f32.mrb[0].mxu0
        %v7608 = vadd.f32 0.0, %v7607
        %v7609 = vpop.f32.mrb[0].mxu0
        %v7610 = vpop.f32.mrb[0].mxu0
        %v7611 = vadd.f32 0.0, %v7610
        %v7612 = vpop.f32.mrb[0].mxu0
        %7613 = vmatprep.mubr.bf16.mxu0 0
        %7614 = vmatmul.mubr.bf16.gmra.mrb[0].mxu0 %v7480
        %v7615 = vpop.f32.mrb[0].mxu0
        %v7616 = vadd.f32 0.0, %v7615
        %v7617 = vpop.f32.mrb[0].mxu0
        %v7618 = vpop.f32.mrb[0].mxu0
        %v7619 = vadd.f32 0.0, %v7618
        %v7620 = vpop.f32.mrb[0].mxu0
        %7621 = vmatprep.mubr.bf16.mxu0 0
        %7622 = vmatmul.mubr.bf16.gmra.mrb[0].mxu0 %v7481
        %v7623 = vpop.f32.mrb[0].mxu0
        %v7624 = vadd.f32 0.0, %v7623
        %v7625 = vpop.f32.mrb[0].mxu0
        %v7626 = vpop.f32.mrb[0].mxu0
        %v7627 = vadd.f32 0.0, %v7626
        %v7628 = vpop.f32.mrb[0].mxu0
        %7629 = vmatprep.mubr.bf16.mxu0 0
        %7630 = vmatmul.mubr.bf16.gmra.mrb[0].mxu0 %v7482
        %v7631 = vpop.f32.mrb[0].mxu0
        %v7632 = vadd.f32 0.0, %v7631
        %v7633 = vpop.f32.mrb[0].mxu0
        %v7634 = vpop.f32.mrb[0].mxu0
        %v7635 = vadd.f32 0.0, %v7634
        %v7636 = vpop.f32.mrb[0].mxu0
        %7637 = vmatprep.mubr.bf16.mxu0 0
        %7638 = vmatmul.mubr.bf16.gmra.mrb[0].mxu0 %v7483
        %v7639 = vpop.f32.mrb[0].mxu0
        %v7640 = vadd.f32 0.0, %v7639
        %v7641 = vpop.f32.mrb[0].mxu0
        %v7642 = vpop.f32.mrb[0].mxu0
        %v7643 = vadd.f32 0.0, %v7642
        %v7644 = vpop.f32.mrb[0].mxu0
        %7645 = vmatprep.mubr.bf16.mxu0 0
        %7646 = vmatmul.mubr.bf16.gmra.mrb[0].mxu0 %v7484
        %v7647 = vpop.f32.mrb[0].mxu0
        %v7648 = vadd.f32 0.0, %v7647
        %v7649 = vpop.f32.mrb[0].mxu0
        %v7650 = vpop.f32.mrb[0].mxu0
        %v7651 = vadd.f32 0.0, %v7650
        %v7652 = vpop.f32.mrb[0].mxu0
        %7653 = vmatprep.mubr.bf16.mxu0 0
        %7654 = vmatmul.mubr.bf16.gmra.mrb[0].mxu0 %v7485
        %v7655 = vpop.f32.mrb[0].mxu0
        %v7656 = vadd.f32 0.0, %v7655
        %v7657 = vpop.f32.mrb[0].mxu0
        %v7658 = vpop.f32.mrb[0].mxu0
        %v7659 = vadd.f32 0.0, %v7658
        %v7660 = vpop.f32.mrb[0].mxu0
        %7661 = vmatprep.mubr.bf16.mxu0 0
        %7662 = vmatmul.mubr.bf16.gmra.mrb[0].mxu0 %v7486
        %v7663 = vpop.f32.mrb[0].mxu0
        %v7664 = vadd.f32 0.0, %v7663
        %v7665 = vpop.f32.mrb[0].mxu0
        %v7666 = vpop.f32.mrb[0].mxu0
        %v7667 = vadd.f32 0.0, %v7666
        %v7668 = vpop.f32.mrb[0].mxu0
        %7669 = vmatprep.mubr.bf16.mxu0 0
        %7670 = vmatmul.mubr.bf16.gmra.mrb[0].mxu0 %v7487
        %v7671 = vpop.f32.mrb[0].mxu0
        %v7672 = vadd.f32 0.0, %v7671
        %v7673 = vpop.f32.mrb[0].mxu0
        %v7674 = vpop.f32.mrb[0].mxu0
        %v7675 = vadd.f32 0.0, %v7674
        %v7676 = vpop.f32.mrb[0].mxu0
        %7677 = vmatprep.mubr.bf16.mxu0 0
        %7678 = vmatmul.mubr.bf16.gmra.mrb[0].mxu0 %v7488
        %v7679 = vpop.f32.mrb[0].mxu0
        %v7680 = vadd.f32 0.0, %v7679
        %v7681 = vpop.f32.mrb[0].mxu0
        %v7682 = vpop.f32.mrb[0].mxu0
        %v7683 = vadd.f32 0.0, %v7682
        %v7684 = vpop.f32.mrb[0].mxu0
        %7685 = vmatprep.mubr.bf16.mxu0 0
        %7686 = vmatmul.mubr.bf16.gmra.mrb[0].mxu0 %v7489
        %v7687 = vpop.f32.mrb[0].mxu0
        %v7688 = vadd.f32 0.0, %v7687
        %v7689 = vpop.f32.mrb[0].mxu0
        %v7690 = vpop.f32.mrb[0].mxu0
        %v7691 = vadd.f32 0.0, %v7690
        %v7692 = vpop.f32.mrb[0].mxu0
        %7693 = vmatprep.mubr.bf16.mxu0 0
        %7694 = vmatmul.mubr.bf16.gmra.mrb[0].mxu0 %v7490
        %v7695 = vpop.f32.mrb[0].mxu0
        %v7696 = vadd.f32 0.0, %v7695
        %v7697 = vpop.f32.mrb[0].mxu0
        %v7698 = vpop.f32.mrb[0].mxu0
        %v7699 = vadd.f32 0.0, %v7698
        %v7700 = vpop.f32.mrb[0].mxu0
        %7701 = vmatprep.mubr.bf16.mxu0 0
        %7702 = vmatmul.mubr.bf16.gmra.mrb[0].mxu0 %v7491
        %v7703 = vpop.f32.mrb[0].mxu0
        %v7704 = vadd.f32 0.0, %v7703
        %v7705 = vpop.f32.mrb[0].mxu0
        %v7706 = vpop.f32.mrb[0].mxu0
        %v7707 = vadd.f32 0.0, %v7706
        %v7708 = vpop.f32.mrb[0].mxu0
        %7709 = vmatprep.mubr.bf16.mxu0 0
        %7710 = vmatmul.mubr.bf16.gmra.mrb[0].mxu0 %v7492
        %v7711 = vpop.f32.mrb[0].mxu0
        %v7712 = vadd.f32 0.0, %v7711
        %v7713 = vpop.f32.mrb[0].mxu0
        %v7714 = vpop.f32.mrb[0].mxu0
        %v7715 = vadd.f32 0.0, %v7714
        %v7716 = vpop.f32.mrb[0].mxu0
        %7717 = vdwg.mxu0
        %v7718 = vadd.f32 %v7142, %v7592
        %v7719 = vadd.f32 %v7145, %v7595
        %v7720 = vadd.f32 %v7150, %v7600
        %v7721 = vadd.f32 %v7153, %v7603
        %v7722 = vadd.f32 %v7158, %v7608
        %v7723 = vadd.f32 %v7161, %v7611
        %v7724 = vadd.f32 %v7166, %v7616
        %v7725 = vadd.f32 %v7169, %v7619
        %v7726 = vadd.f32 %v7174, %v7624
        %v7727 = vadd.f32 %v7177, %v7627
        %v7728 = vadd.f32 %v7182, %v7632
        %v7729 = vadd.f32 %v7185, %v7635
        %v7730 = vadd.f32 %v7190, %v7640
        %v7731 = vadd.f32 %v7193, %v7643
        %v7732 = vadd.f32 %v7198, %v7648
        %v7733 = vadd.f32 %v7201, %v7651
        %v7734 = vadd.f32 %v7206, %v7656
        %v7735 = vadd.f32 %v7209, %v7659
        %v7736 = vadd.f32 %v7214, %v7664
        %v7737 = vadd.f32 %v7217, %v7667
        %v7738 = vadd.f32 %v7222, %v7672
        %v7739 = vadd.f32 %v7225, %v7675
        %v7740 = vadd.f32 %v7230, %v7680
        %v7741 = vadd.f32 %v7233, %v7683
        %v7742 = vadd.f32 %v7238, %v7688
        %v7743 = vadd.f32 %v7241, %v7691
        %v7744 = vadd.f32 %v7246, %v7696
        %v7745 = vadd.f32 %v7249, %v7699
        %v7746 = vadd.f32 %v7254, %v7704
        %v7747 = vadd.f32 %v7257, %v7707
        %v7748 = vadd.f32 %v7262, %v7712
        %v7749 = vadd.f32 %v7265, %v7715
        %v7750 = vld [vmem:[%s721] sm:$0xf]
        %v7751 = vld [vmem:[%s721 + $0x4] sm:$0xf]
        %v7752 = vld [vmem:[%s721 + $0xc] sm:$0xf]
        %v7753 = vld [vmem:[%s721 + $0x10] sm:$0xf]
        %v7754 = vld [vmem:[%s721 + $0x18] sm:$0xf]
        %v7755 = vld [vmem:[%s721 + $0x1c] sm:$0xf]
        %v7756 = vld [vmem:[%s721 + $0x24] sm:$0xf]
        %v7757 = vld [vmem:[%s721 + $0x28] sm:$0xf]
        %v7758 = vld [vmem:[%s721 + $0x30] sm:$0xf]
        %v7759 = vld [vmem:[%s721 + $0x34] sm:$0xf]
        %v7760 = vld [vmem:[%s721 + $0x3c] sm:$0xf]
        %v7761 = vld [vmem:[%s721 + $0x40] sm:$0xf]
        %v7762 = vld [vmem:[%s721 + $0x48] sm:$0xf]
        %v7763 = vld [vmem:[%s721 + $0x4c] sm:$0xf]
        %v7764 = vld [vmem:[%s721 + $0x54] sm:$0xf]
        %v7765 = vld [vmem:[%s721 + $0x58] sm:$0xf]
        %v7766 = vld [vmem:[%s721 + $0x60] sm:$0xf]
        %v7767 = vld [vmem:[%s721 + $0x64] sm:$0xf]
        %v7768 = vld [vmem:[%s721 + $0x6c] sm:$0xf]
        %v7769 = vld [vmem:[%s721 + $0x70] sm:$0xf]
        %v7770 = vld [vmem:[%s721 + $0x78] sm:$0xf]
        %v7771 = vld [vmem:[%s721 + $0x7c] sm:$0xf]
        %v7772 = vld [vmem:[%s721 + $0x84] sm:$0xf]
        %v7773 = vld [vmem:[%s721 + $0x88] sm:$0xf]
        %v7774 = vld [vmem:[%s721 + $0x90] sm:$0xf]
        %v7775 = vld [vmem:[%s721 + $0x94] sm:$0xf]
        %v7776 = vld [vmem:[%s721 + $0x9c] sm:$0xf]
        %v7777 = vld [vmem:[%s721 + $0xa0] sm:$0xf]
        %v7778 = vld [vmem:[%s721 + $0xa8] sm:$0xf]
        %v7779 = vld [vmem:[%s721 + $0xac] sm:$0xf]
        %v7780 = vld [vmem:[%s721 + $0xb4] sm:$0xf]
        %v7781 = vld [vmem:[%s721 + $0xb8] sm:$0xf]
        %s7782 = scalar_lea.vmem [#allocation8], 192
        %v7783 = vld [vmem:[%s7782] sm:$0xf]
        %v7784 = vld [vmem:[%s7782 + $0x4] sm:$0xf]
        %v7785 = vld [vmem:[%s7782 + $0x8] sm:$0xf]
        %v7786 = vld [vmem:[%s7782 + $0xc] sm:$0xf]
        %v7787 = vld [vmem:[%s7782 + $0x10] sm:$0xf]
        %v7788 = vld [vmem:[%s7782 + $0x14] sm:$0xf]
        %v7789 = vld [vmem:[%s7782 + $0x18] sm:$0xf]
        %v7790 = vld [vmem:[%s7782 + $0x1c] sm:$0xf]
        %v7791 = vld [vmem:[%s7782 + $0x20] sm:$0xf]
        %v7792 = vld [vmem:[%s7782 + $0x24] sm:$0xf]
        %v7793 = vld [vmem:[%s7782 + $0x28] sm:$0xf]
        %v7794 = vld [vmem:[%s7782 + $0x2c] sm:$0xf]
        %v7795 = vld [vmem:[%s7782 + $0x30] sm:$0xf]
        %v7796 = vld [vmem:[%s7782 + $0x34] sm:$0xf]
        %v7797 = vld [vmem:[%s7782 + $0x38] sm:$0xf]
        %v7798 = vld [vmem:[%s7782 + $0x3c] sm:$0xf]
        %v7831 = vunpack.c.l.b16 %v7750
        %v7832 = vunpack.c.l.b16 %v7751
        %v7833 = vunpack.c.l.b16 %v7752
        %v7834 = vunpack.c.l.b16 %v7753
        %v7835 = vunpack.c.l.b16 %v7754
        %v7836 = vunpack.c.l.b16 %v7755
        %v7837 = vunpack.c.l.b16 %v7756
        %v7838 = vunpack.c.l.b16 %v7757
        %v7839 = vunpack.c.l.b16 %v7758
        %v7840 = vunpack.c.l.b16 %v7759
        %v7841 = vunpack.c.l.b16 %v7760
        %v7842 = vunpack.c.l.b16 %v7761
        %v7843 = vunpack.c.l.b16 %v7762
        %v7844 = vunpack.c.l.b16 %v7763
        %v7845 = vunpack.c.l.b16 %v7764
        %v7846 = vunpack.c.l.b16 %v7765
        %v7847 = vunpack.c.l.b16 %v7766
        %v7848 = vunpack.c.l.b16 %v7767
        %v7849 = vunpack.c.l.b16 %v7768
        %v7850 = vunpack.c.l.b16 %v7769
        %v7851 = vunpack.c.l.b16 %v7770
        %v7852 = vunpack.c.l.b16 %v7771
        %v7853 = vunpack.c.l.b16 %v7772
        %v7854 = vunpack.c.l.b16 %v7773
        %v7855 = vunpack.c.l.b16 %v7774
        %v7856 = vunpack.c.l.b16 %v7775
        %v7857 = vunpack.c.l.b16 %v7776
        %v7858 = vunpack.c.l.b16 %v7777
        %v7859 = vunpack.c.l.b16 %v7778
        %v7860 = vunpack.c.l.b16 %v7779
        %v7861 = vunpack.c.l.b16 %v7780
        %v7862 = vunpack.c.l.b16 %v7781
        %v7863 = vpack.c.b16 %v7832, %v7831
        %v7864 = vpack.c.b16 %v7834, %v7833
        %v7865 = vpack.c.b16 %v7836, %v7835
        %v7866 = vpack.c.b16 %v7838, %v7837
        %v7867 = vpack.c.b16 %v7840, %v7839
        %v7868 = vpack.c.b16 %v7842, %v7841
        %v7869 = vpack.c.b16 %v7844, %v7843
        %v7870 = vpack.c.b16 %v7846, %v7845
        %v7871 = vpack.c.b16 %v7848, %v7847
        %v7872 = vpack.c.b16 %v7850, %v7849
        %v7873 = vpack.c.b16 %v7852, %v7851
        %v7874 = vpack.c.b16 %v7854, %v7853
        %v7875 = vpack.c.b16 %v7856, %v7855
        %v7876 = vpack.c.b16 %v7858, %v7857
        %v7877 = vpack.c.b16 %v7860, %v7859
        %v7878 = vpack.c.b16 %v7862, %v7861
        %v7911 = vunpack.c.l.b16 %v7783
        %v7912 = vunpack.c.l.b16 %v7784
        %v7913 = vunpack.c.l.b16 %v7785
        %v7914 = vunpack.c.l.b16 %v7786
        %v7915 = vunpack.c.l.b16 %v7787
        %v7916 = vunpack.c.l.b16 %v7788
        %v7917 = vunpack.c.l.b16 %v7789
        %v7918 = vunpack.c.l.b16 %v7790
        %v7919 = vunpack.c.l.b16 %v7791
        %v7920 = vunpack.c.l.b16 %v7792
        %v7921 = vunpack.c.l.b16 %v7793
        %v7922 = vunpack.c.l.b16 %v7794
        %v7923 = vunpack.c.l.b16 %v7795
        %v7924 = vunpack.c.l.b16 %v7796
        %v7925 = vunpack.c.l.b16 %v7797
        %v7926 = vunpack.c.l.b16 %v7798
        %v7927 = vpack.c.b16 %v7912, %v7911
        %v7928 = vpack.c.b16 %v7914, %v7913
        %v7929 = vpack.c.b16 %v7916, %v7915
        %v7930 = vpack.c.b16 %v7918, %v7917
        %v7931 = vpack.c.b16 %v7920, %v7919
        %v7932 = vpack.c.b16 %v7922, %v7921
        %v7933 = vpack.c.b16 %v7924, %v7923
        %v7934 = vpack.c.b16 %v7926, %v7925
        %7943 = vmatprep.subr.bf16.mxu0 0
        %7944 = vmatpush1.bf16.msra.mxu0 %v7927
        %7945 = vmatprep.subr.bf16.mxu0 0
        %7946 = vmatpush1.bf16.msra.mxu0 %v7928
        %7947 = vmatprep.subr.bf16.mxu0 0
        %7948 = vmatpush1.bf16.msra.mxu0 %v7929
        %7949 = vmatprep.subr.bf16.mxu0 0
        %7950 = vmatpush1.bf16.msra.mxu0 %v7930
        %7951 = vmatprep.subr.bf16.mxu0 0
        %7952 = vmatpush1.bf16.msra.mxu0 %v7931
        %7953 = vmatprep.subr.bf16.mxu0 0
        %7954 = vmatpush1.bf16.msra.mxu0 %v7932
        %7955 = vmatprep.subr.bf16.mxu0 0
        %7956 = vmatpush1.bf16.msra.mxu0 %v7933
        %7957 = vmatprep.subr.bf16.mxu0 0
        %7958 = vmatpush1.bf16.msra.mxu0 %v7934
        %7959 = vmatprep.subr.bf16.mxu0 0
        %7960 = vmatpush1.bf16.msra.mxu0 0
        %7961 = vmatprep.subr.bf16.mxu0 0
        %7962 = vmatpush1.bf16.msra.mxu0 0
        %7963 = vmatprep.subr.bf16.mxu0 0
        %7964 = vmatpush1.bf16.msra.mxu0 0
        %7965 = vmatprep.subr.bf16.mxu0 0
        %7966 = vmatpush1.bf16.msra.mxu0 0
        %7967 = vmatprep.subr.bf16.mxu0 0
        %7968 = vmatpush1.bf16.msra.mxu0 0
        %7969 = vmatprep.subr.bf16.mxu0 0
        %7970 = vmatpush1.bf16.msra.mxu0 0
        %7971 = vmatprep.subr.bf16.mxu0 0
        %7972 = vmatpush1.bf16.msra.mxu0 0
        %7973 = vmatprep.subr.bf16.mxu0 0
        %7974 = vmatpush1.bf16.msra.mxu0 0
        %7975 = vmatprep.mubr.bf16.mxu0 0
        %7976 = vmatmul.mubr.bf16.gmra.mrb[0].mxu0 %v7863
        %v7977 = vpop.f32.mrb[0].mxu0
        %v7978 = vadd.f32 0.0, %v7977
        %v7979 = vpop.f32.mrb[0].mxu0
        %v7980 = vpop.f32.mrb[0].mxu0
        %v7981 = vadd.f32 0.0, %v7980
        %v7982 = vpop.f32.mrb[0].mxu0
        %7983 = vmatprep.mubr.bf16.mxu0 0
        %7984 = vmatmul.mubr.bf16.gmra.mrb[0].mxu0 %v7864
        %v7985 = vpop.f32.mrb[0].mxu0
        %v7986 = vadd.f32 0.0, %v7985
        %v7987 = vpop.f32.mrb[0].mxu0
        %v7988 = vpop.f32.mrb[0].mxu0
        %v7989 = vadd.f32 0.0, %v7988
        %v7990 = vpop.f32.mrb[0].mxu0
        %7991 = vmatprep.mubr.bf16.mxu0 0
        %7992 = vmatmul.mubr.bf16.gmra.mrb[0].mxu0 %v7865
        %v7993 = vpop.f32.mrb[0].mxu0
        %v7994 = vadd.f32 0.0, %v7993
        %v7995 = vpop.f32.mrb[0].mxu0
        %v7996 = vpop.f32.mrb[0].mxu0
        %v7997 = vadd.f32 0.0, %v7996
        %v7998 = vpop.f32.mrb[0].mxu0
        %7999 = vmatprep.mubr.bf16.mxu0 0
        %8000 = vmatmul.mubr.bf16.gmra.mrb[0].mxu0 %v7866
        %v8001 = vpop.f32.mrb[0].mxu0
        %v8002 = vadd.f32 0.0, %v8001
        %v8003 = vpop.f32.mrb[0].mxu0
        %v8004 = vpop.f32.mrb[0].mxu0
        %v8005 = vadd.f32 0.0, %v8004
        %v8006 = vpop.f32.mrb[0].mxu0
        %8007 = vmatprep.mubr.bf16.mxu0 0
        %8008 = vmatmul.mubr.bf16.gmra.mrb[0].mxu0 %v7867
        %v8009 = vpop.f32.mrb[0].mxu0
        %v8010 = vadd.f32 0.0, %v8009
        %v8011 = vpop.f32.mrb[0].mxu0
        %v8012 = vpop.f32.mrb[0].mxu0
        %v8013 = vadd.f32 0.0, %v8012
        %v8014 = vpop.f32.mrb[0].mxu0
        %8015 = vmatprep.mubr.bf16.mxu0 0
        %8016 = vmatmul.mubr.bf16.gmra.mrb[0].mxu0 %v7868
        %v8017 = vpop.f32.mrb[0].mxu0
        %v8018 = vadd.f32 0.0, %v8017
        %v8019 = vpop.f32.mrb[0].mxu0
        %v8020 = vpop.f32.mrb[0].mxu0
        %v8021 = vadd.f32 0.0, %v8020
        %v8022 = vpop.f32.mrb[0].mxu0
        %8023 = vmatprep.mubr.bf16.mxu0 0
        %8024 = vmatmul.mubr.bf16.gmra.mrb[0].mxu0 %v7869
        %v8025 = vpop.f32.mrb[0].mxu0
        %v8026 = vadd.f32 0.0, %v8025
        %v8027 = vpop.f32.mrb[0].mxu0
        %v8028 = vpop.f32.mrb[0].mxu0
        %v8029 = vadd.f32 0.0, %v8028
        %v8030 = vpop.f32.mrb[0].mxu0
        %8031 = vmatprep.mubr.bf16.mxu0 0
        %8032 = vmatmul.mubr.bf16.gmra.mrb[0].mxu0 %v7870
        %v8033 = vpop.f32.mrb[0].mxu0
        %v8034 = vadd.f32 0.0, %v8033
        %v8035 = vpop.f32.mrb[0].mxu0
        %v8036 = vpop.f32.mrb[0].mxu0
        %v8037 = vadd.f32 0.0, %v8036
        %v8038 = vpop.f32.mrb[0].mxu0
        %8039 = vmatprep.mubr.bf16.mxu0 0
        %8040 = vmatmul.mubr.bf16.gmra.mrb[0].mxu0 %v7871
        %v8041 = vpop.f32.mrb[0].mxu0
        %v8042 = vadd.f32 0.0, %v8041
        %v8043 = vpop.f32.mrb[0].mxu0
        %v8044 = vpop.f32.mrb[0].mxu0
        %v8045 = vadd.f32 0.0, %v8044
        %v8046 = vpop.f32.mrb[0].mxu0
        %8047 = vmatprep.mubr.bf16.mxu0 0
        %8048 = vmatmul.mubr.bf16.gmra.mrb[0].mxu0 %v7872
        %v8049 = vpop.f32.mrb[0].mxu0
        %v8050 = vadd.f32 0.0, %v8049
        %v8051 = vpop.f32.mrb[0].mxu0
        %v8052 = vpop.f32.mrb[0].mxu0
        %v8053 = vadd.f32 0.0, %v8052
        %v8054 = vpop.f32.mrb[0].mxu0
        %8055 = vmatprep.mubr.bf16.mxu0 0
        %8056 = vmatmul.mubr.bf16.gmra.mrb[0].mxu0 %v7873
        %v8057 = vpop.f32.mrb[0].mxu0
        %v8058 = vadd.f32 0.0, %v8057
        %v8059 = vpop.f32.mrb[0].mxu0
        %v8060 = vpop.f32.mrb[0].mxu0
        %v8061 = vadd.f32 0.0, %v8060
        %v8062 = vpop.f32.mrb[0].mxu0
        %8063 = vmatprep.mubr.bf16.mxu0 0
        %8064 = vmatmul.mubr.bf16.gmra.mrb[0].mxu0 %v7874
        %v8065 = vpop.f32.mrb[0].mxu0
        %v8066 = vadd.f32 0.0, %v8065
        %v8067 = vpop.f32.mrb[0].mxu0
        %v8068 = vpop.f32.mrb[0].mxu0
        %v8069 = vadd.f32 0.0, %v8068
        %v8070 = vpop.f32.mrb[0].mxu0
        %8071 = vmatprep.mubr.bf16.mxu0 0
        %8072 = vmatmul.mubr.bf16.gmra.mrb[0].mxu0 %v7875
        %v8073 = vpop.f32.mrb[0].mxu0
        %v8074 = vadd.f32 0.0, %v8073
        %v8075 = vpop.f32.mrb[0].mxu0
        %v8076 = vpop.f32.mrb[0].mxu0
        %v8077 = vadd.f32 0.0, %v8076
        %v8078 = vpop.f32.mrb[0].mxu0
        %8079 = vmatprep.mubr.bf16.mxu0 0
        %8080 = vmatmul.mubr.bf16.gmra.mrb[0].mxu0 %v7876
        %v8081 = vpop.f32.mrb[0].mxu0
        %v8082 = vadd.f32 0.0, %v8081
        %v8083 = vpop.f32.mrb[0].mxu0
        %v8084 = vpop.f32.mrb[0].mxu0
        %v8085 = vadd.f32 0.0, %v8084
        %v8086 = vpop.f32.mrb[0].mxu0
        %8087 = vmatprep.mubr.bf16.mxu0 0
        %8088 = vmatmul.mubr.bf16.gmra.mrb[0].mxu0 %v7877
        %v8089 = vpop.f32.mrb[0].mxu0
        %v8090 = vadd.f32 0.0, %v8089
        %v8091 = vpop.f32.mrb[0].mxu0
        %v8092 = vpop.f32.mrb[0].mxu0
        %v8093 = vadd.f32 0.0, %v8092
        %v8094 = vpop.f32.mrb[0].mxu0
        %8095 = vmatprep.mubr.bf16.mxu0 0
        %8096 = vmatmul.mubr.bf16.gmra.mrb[0].mxu0 %v7878
        %v8097 = vpop.f32.mrb[0].mxu0
        %v8098 = vadd.f32 0.0, %v8097
        %v8099 = vpop.f32.mrb[0].mxu0
        %v8100 = vpop.f32.mrb[0].mxu0
        %v8101 = vadd.f32 0.0, %v8100
        %v8102 = vpop.f32.mrb[0].mxu0
        %8103 = vdwg.mxu0
        %v8104 = vadd.f32 %v7718, %v7978
        %v8105 = vadd.f32 %v7719, %v7981
        %v8106 = vadd.f32 %v7720, %v7986
        %v8107 = vadd.f32 %v7721, %v7989
        %v8108 = vadd.f32 %v7722, %v7994
        %v8109 = vadd.f32 %v7723, %v7997
        %v8110 = vadd.f32 %v7724, %v8002
        %v8111 = vadd.f32 %v7725, %v8005
        %v8112 = vadd.f32 %v7726, %v8010
        %v8113 = vadd.f32 %v7727, %v8013
        %v8114 = vadd.f32 %v7728, %v8018
        %v8115 = vadd.f32 %v7729, %v8021
        %v8116 = vadd.f32 %v7730, %v8026
        %v8117 = vadd.f32 %v7731, %v8029
        %v8118 = vadd.f32 %v7732, %v8034
        %v8119 = vadd.f32 %v7733, %v8037
        %v8120 = vadd.f32 %v7734, %v8042
        %v8121 = vadd.f32 %v7735, %v8045
        %v8122 = vadd.f32 %v7736, %v8050
        %v8123 = vadd.f32 %v7737, %v8053
        %v8124 = vadd.f32 %v7738, %v8058
        %v8125 = vadd.f32 %v7739, %v8061
        %v8126 = vadd.f32 %v7740, %v8066
        %v8127 = vadd.f32 %v7741, %v8069
        %v8128 = vadd.f32 %v7742, %v8074
        %v8129 = vadd.f32 %v7743, %v8077
        %v8130 = vadd.f32 %v7744, %v8082
        %v8131 = vadd.f32 %v7745, %v8085
        %v8132 = vadd.f32 %v7746, %v8090
        %v8133 = vadd.f32 %v7747, %v8093
        %v8134 = vadd.f32 %v7748, %v8098
        %v8135 = vadd.f32 %v7749, %v8101
        %v8136 = vld [vmem:[%s721] sm:$0xf]
        %v8137 = vld [vmem:[%s721 + $0x4] sm:$0xf]
        %v8138 = vld [vmem:[%s721 + $0x8] sm:$0x1]
        %v8139 = vld [vmem:[%s721 + $0xc] sm:$0xf]
        %v8140 = vld [vmem:[%s721 + $0x10] sm:$0xf]
        %v8141 = vld [vmem:[%s721 + $0x14] sm:$0x1]
        %v8142 = vld [vmem:[%s721 + $0x18] sm:$0xf]
        %v8143 = vld [vmem:[%s721 + $0x1c] sm:$0xf]
        %v8144 = vld [vmem:[%s721 + $0x20] sm:$0x1]
        %v8145 = vld [vmem:[%s721 + $0x24] sm:$0xf]
        %v8146 = vld [vmem:[%s721 + $0x28] sm:$0xf]
        %v8147 = vld [vmem:[%s721 + $0x2c] sm:$0x1]
        %v8148 = vld [vmem:[%s721 + $0x30] sm:$0xf]
        %v8149 = vld [vmem:[%s721 + $0x34] sm:$0xf]
        %v8150 = vld [vmem:[%s721 + $0x38] sm:$0x1]
        %v8151 = vld [vmem:[%s721 + $0x3c] sm:$0xf]
        %v8152 = vld [vmem:[%s721 + $0x40] sm:$0xf]
        %v8153 = vld [vmem:[%s721 + $0x44] sm:$0x1]
        %v8154 = vld [vmem:[%s721 + $0x48] sm:$0xf]
        %v8155 = vld [vmem:[%s721 + $0x4c] sm:$0xf]
        %v8156 = vld [vmem:[%s721 + $0x50] sm:$0x1]
        %v8157 = vld [vmem:[%s721 + $0x54] sm:$0xf]
        %v8158 = vld [vmem:[%s721 + $0x58] sm:$0xf]
        %v8159 = vld [vmem:[%s721 + $0x5c] sm:$0x1]
        %v8160 = vld [vmem:[%s721 + $0x60] sm:$0xf]
        %v8161 = vld [vmem:[%s721 + $0x64] sm:$0xf]
        %v8162 = vld [vmem:[%s721 + $0x68] sm:$0x1]
        %v8163 = vld [vmem:[%s721 + $0x6c] sm:$0xf]
        %v8164 = vld [vmem:[%s721 + $0x70] sm:$0xf]
        %v8165 = vld [vmem:[%s721 + $0x74] sm:$0x1]
        %v8166 = vld [vmem:[%s721 + $0x78] sm:$0xf]
        %v8167 = vld [vmem:[%s721 + $0x7c] sm:$0xf]
        %v8168 = vld [vmem:[%s721 + $0x80] sm:$0x1]
        %v8169 = vld [vmem:[%s721 + $0x84] sm:$0xf]
        %v8170 = vld [vmem:[%s721 + $0x88] sm:$0xf]
        %v8171 = vld [vmem:[%s721 + $0x8c] sm:$0x1]
        %v8172 = vld [vmem:[%s721 + $0x90] sm:$0xf]
        %v8173 = vld [vmem:[%s721 + $0x94] sm:$0xf]
        %v8174 = vld [vmem:[%s721 + $0x98] sm:$0x1]
        %v8175 = vld [vmem:[%s721 + $0x9c] sm:$0xf]
        %v8176 = vld [vmem:[%s721 + $0xa0] sm:$0xf]
        %v8177 = vld [vmem:[%s721 + $0xa4] sm:$0x1]
        %v8178 = vld [vmem:[%s721 + $0xa8] sm:$0xf]
        %v8179 = vld [vmem:[%s721 + $0xac] sm:$0xf]
        %v8180 = vld [vmem:[%s721 + $0xb0] sm:$0x1]
        %v8181 = vld [vmem:[%s721 + $0xb4] sm:$0xf]
        %v8182 = vld [vmem:[%s721 + $0xb8] sm:$0xf]
        %v8183 = vld [vmem:[%s721 + $0xbc] sm:$0x1]
        %v8185 = vshrl.u32 %v8136, 16
        %v8187 = vrot.slane %v8185, 4
        %v8188 = vshll.u32 %v8136, 16
        %v8190 = vrot.slane %v8188, 5
        %v8191 = vor.u32 %v8187, %v8190
        %v8192 = vrot.slane %v8191, 4
        %v8194 = vshll.u32 %v8137, 16
        %v8196 = vrot.slane %v8194, 5
        %v8197 = vsel %vm836, %v8192, %v8196
        %v8198 = vshrl.u32 %v8137, 16
        %v8200 = vrot.slane %v8198, 4
        %v8201 = vor.u32 %v8200, %v8196
        %v8202 = vrot.slane %v8201, 4
        %v8204 = vshll.u32 %v8138, 16
        %v8206 = vrot.slane %v8204, 5
        %v8207 = vsel %vm836, %v8202, %v8206
        %v8209 = vshrl.u32 %v8139, 16
        %v8211 = vrot.slane %v8209, 4
        %v8212 = vshll.u32 %v8139, 16
        %v8214 = vrot.slane %v8212, 5
        %v8215 = vor.u32 %v8211, %v8214
        %v8216 = vrot.slane %v8215, 4
        %v8218 = vshll.u32 %v8140, 16
        %v8220 = vrot.slane %v8218, 5
        %v8221 = vsel %vm836, %v8216, %v8220
        %v8222 = vshrl.u32 %v8140, 16
        %v8224 = vrot.slane %v8222, 4
        %v8225 = vor.u32 %v8224, %v8220
        %v8226 = vrot.slane %v8225, 4
        %v8228 = vshll.u32 %v8141, 16
        %v8230 = vrot.slane %v8228, 5
        %v8231 = vsel %vm836, %v8226, %v8230
        %v8233 = vshrl.u32 %v8142, 16
        %v8235 = vrot.slane %v8233, 4
        %v8236 = vshll.u32 %v8142, 16
        %v8238 = vrot.slane %v8236, 5
        %v8239 = vor.u32 %v8235, %v8238
        %v8240 = vrot.slane %v8239, 4
        %v8242 = vshll.u32 %v8143, 16
        %v8244 = vrot.slane %v8242, 5
        %v8245 = vsel %vm836, %v8240, %v8244
        %v8246 = vshrl.u32 %v8143, 16
        %v8248 = vrot.slane %v8246, 4
        %v8249 = vor.u32 %v8248, %v8244
        %v8250 = vrot.slane %v8249, 4
        %v8252 = vshll.u32 %v8144, 16
        %v8254 = vrot.slane %v8252, 5
        %v8255 = vsel %vm836, %v8250, %v8254
        %v8257 = vshrl.u32 %v8145, 16
        %v8259 = vrot.slane %v8257, 4
        %v8260 = vshll.u32 %v8145, 16
        %v8262 = vrot.slane %v8260, 5
        %v8263 = vor.u32 %v8259, %v8262
        %v8264 = vrot.slane %v8263, 4
        %v8266 = vshll.u32 %v8146, 16
        %v8268 = vrot.slane %v8266, 5
        %v8269 = vsel %vm836, %v8264, %v8268
        %v8270 = vshrl.u32 %v8146, 16
        %v8272 = vrot.slane %v8270, 4
        %v8273 = vor.u32 %v8272, %v8268
        %v8274 = vrot.slane %v8273, 4
        %v8276 = vshll.u32 %v8147, 16
        %v8278 = vrot.slane %v8276, 5
        %v8279 = vsel %vm836, %v8274, %v8278
        %v8281 = vshrl.u32 %v8148, 16
        %v8283 = vrot.slane %v8281, 4
        %v8284 = vshll.u32 %v8148, 16
        %v8286 = vrot.slane %v8284, 5
        %v8287 = vor.u32 %v8283, %v8286
        %v8288 = vrot.slane %v8287, 4
        %v8290 = vshll.u32 %v8149, 16
        %v8292 = vrot.slane %v8290, 5
        %v8293 = vsel %vm836, %v8288, %v8292
        %v8294 = vshrl.u32 %v8149, 16
        %v8296 = vrot.slane %v8294, 4
        %v8297 = vor.u32 %v8296, %v8292
        %v8298 = vrot.slane %v8297, 4
        %v8300 = vshll.u32 %v8150, 16
        %v8302 = vrot.slane %v8300, 5
        %v8303 = vsel %vm836, %v8298, %v8302
        %v8305 = vshrl.u32 %v8151, 16
        %v8307 = vrot.slane %v8305, 4
        %v8308 = vshll.u32 %v8151, 16
        %v8310 = vrot.slane %v8308, 5
        %v8311 = vor.u32 %v8307, %v8310
        %v8312 = vrot.slane %v8311, 4
        %v8314 = vshll.u32 %v8152, 16
        %v8316 = vrot.slane %v8314, 5
        %v8317 = vsel %vm836, %v8312, %v8316
        %v8318 = vshrl.u32 %v8152, 16
        %v8320 = vrot.slane %v8318, 4
        %v8321 = vor.u32 %v8320, %v8316
        %v8322 = vrot.slane %v8321, 4
        %v8324 = vshll.u32 %v8153, 16
        %v8326 = vrot.slane %v8324, 5
        %v8327 = vsel %vm836, %v8322, %v8326
        %v8329 = vshrl.u32 %v8154, 16
        %v8331 = vrot.slane %v8329, 4
        %v8332 = vshll.u32 %v8154, 16
        %v8334 = vrot.slane %v8332, 5
        %v8335 = vor.u32 %v8331, %v8334
        %v8336 = vrot.slane %v8335, 4
        %v8338 = vshll.u32 %v8155, 16
        %v8340 = vrot.slane %v8338, 5
        %v8341 = vsel %vm836, %v8336, %v8340
        %v8342 = vshrl.u32 %v8155, 16
        %v8344 = vrot.slane %v8342, 4
        %v8345 = vor.u32 %v8344, %v8340
        %v8346 = vrot.slane %v8345, 4
        %v8348 = vshll.u32 %v8156, 16
        %v8350 = vrot.slane %v8348, 5
        %v8351 = vsel %vm836, %v8346, %v8350
        %v8353 = vshrl.u32 %v8157, 16
        %v8355 = vrot.slane %v8353, 4
        %v8356 = vshll.u32 %v8157, 16
        %v8358 = vrot.slane %v8356, 5
        %v8359 = vor.u32 %v8355, %v8358
        %v8360 = vrot.slane %v8359, 4
        %v8362 = vshll.u32 %v8158, 16
        %v8364 = vrot.slane %v8362, 5
        %v8365 = vsel %vm836, %v8360, %v8364
        %v8366 = vshrl.u32 %v8158, 16
        %v8368 = vrot.slane %v8366, 4
        %v8369 = vor.u32 %v8368, %v8364
        %v8370 = vrot.slane %v8369, 4
        %v8372 = vshll.u32 %v8159, 16
        %v8374 = vrot.slane %v8372, 5
        %v8375 = vsel %vm836, %v8370, %v8374
        %v8377 = vshrl.u32 %v8160, 16
        %v8379 = vrot.slane %v8377, 4
        %v8380 = vshll.u32 %v8160, 16
        %v8382 = vrot.slane %v8380, 5
        %v8383 = vor.u32 %v8379, %v8382
        %v8384 = vrot.slane %v8383, 4
        %v8386 = vshll.u32 %v8161, 16
        %v8388 = vrot.slane %v8386, 5
        %v8389 = vsel %vm836, %v8384, %v8388
        %v8390 = vshrl.u32 %v8161, 16
        %v8392 = vrot.slane %v8390, 4
        %v8393 = vor.u32 %v8392, %v8388
        %v8394 = vrot.slane %v8393, 4
        %v8396 = vshll.u32 %v8162, 16
        %v8398 = vrot.slane %v8396, 5
        %v8399 = vsel %vm836, %v8394, %v8398
        %v8401 = vshrl.u32 %v8163, 16
        %v8403 = vrot.slane %v8401, 4
        %v8404 = vshll.u32 %v8163, 16
        %v8406 = vrot.slane %v8404, 5
        %v8407 = vor.u32 %v8403, %v8406
        %v8408 = vrot.slane %v8407, 4
        %v8410 = vshll.u32 %v8164, 16
        %v8412 = vrot.slane %v8410, 5
        %v8413 = vsel %vm836, %v8408, %v8412
        %v8414 = vshrl.u32 %v8164, 16
        %v8416 = vrot.slane %v8414, 4
        %v8417 = vor.u32 %v8416, %v8412
        %v8418 = vrot.slane %v8417, 4
        %v8420 = vshll.u32 %v8165, 16
        %v8422 = vrot.slane %v8420, 5
        %v8423 = vsel %vm836, %v8418, %v8422
        %v8425 = vshrl.u32 %v8166, 16
        %v8427 = vrot.slane %v8425, 4
        %v8428 = vshll.u32 %v8166, 16
        %v8430 = vrot.slane %v8428, 5
        %v8431 = vor.u32 %v8427, %v8430
        %v8432 = vrot.slane %v8431, 4
        %v8434 = vshll.u32 %v8167, 16
        %v8436 = vrot.slane %v8434, 5
        %v8437 = vsel %vm836, %v8432, %v8436
        %v8438 = vshrl.u32 %v8167, 16
        %v8440 = vrot.slane %v8438, 4
        %v8441 = vor.u32 %v8440, %v8436
        %v8442 = vrot.slane %v8441, 4
        %v8444 = vshll.u32 %v8168, 16
        %v8446 = vrot.slane %v8444, 5
        %v8447 = vsel %vm836, %v8442, %v8446
        %v8449 = vshrl.u32 %v8169, 16
        %v8451 = vrot.slane %v8449, 4
        %v8452 = vshll.u32 %v8169, 16
        %v8454 = vrot.slane %v8452, 5
        %v8455 = vor.u32 %v8451, %v8454
        %v8456 = vrot.slane %v8455, 4
        %v8458 = vshll.u32 %v8170, 16
        %v8460 = vrot.slane %v8458, 5
        %v8461 = vsel %vm836, %v8456, %v8460
        %v8462 = vshrl.u32 %v8170, 16
        %v8464 = vrot.slane %v8462, 4
        %v8465 = vor.u32 %v8464, %v8460
        %v8466 = vrot.slane %v8465, 4
        %v8468 = vshll.u32 %v8171, 16
        %v8470 = vrot.slane %v8468, 5
        %v8471 = vsel %vm836, %v8466, %v8470
        %v8473 = vshrl.u32 %v8172, 16
        %v8475 = vrot.slane %v8473, 4
        %v8476 = vshll.u32 %v8172, 16
        %v8478 = vrot.slane %v8476, 5
        %v8479 = vor.u32 %v8475, %v8478
        %v8480 = vrot.slane %v8479, 4
        %v8482 = vshll.u32 %v8173, 16
        %v8484 = vrot.slane %v8482, 5
        %v8485 = vsel %vm836, %v8480, %v8484
        %v8486 = vshrl.u32 %v8173, 16
        %v8488 = vrot.slane %v8486, 4
        %v8489 = vor.u32 %v8488, %v8484
        %v8490 = vrot.slane %v8489, 4
        %v8492 = vshll.u32 %v8174, 16
        %v8494 = vrot.slane %v8492, 5
        %v8495 = vsel %vm836, %v8490, %v8494
        %v8497 = vshrl.u32 %v8175, 16
        %v8499 = vrot.slane %v8497, 4
        %v8500 = vshll.u32 %v8175, 16
        %v8502 = vrot.slane %v8500, 5
        %v8503 = vor.u32 %v8499, %v8502
        %v8504 = vrot.slane %v8503, 4
        %v8506 = vshll.u32 %v8176, 16
        %v8508 = vrot.slane %v8506, 5
        %v8509 = vsel %vm836, %v8504, %v8508
        %v8510 = vshrl.u32 %v8176, 16
        %v8512 = vrot.slane %v8510, 4
        %v8513 = vor.u32 %v8512, %v8508
        %v8514 = vrot.slane %v8513, 4
        %v8516 = vshll.u32 %v8177, 16
        %v8518 = vrot.slane %v8516, 5
        %v8519 = vsel %vm836, %v8514, %v8518
        %v8521 = vshrl.u32 %v8178, 16
        %v8523 = vrot.slane %v8521, 4
        %v8524 = vshll.u32 %v8178, 16
        %v8526 = vrot.slane %v8524, 5
        %v8527 = vor.u32 %v8523, %v8526
        %v8528 = vrot.slane %v8527, 4
        %v8530 = vshll.u32 %v8179, 16
        %v8532 = vrot.slane %v8530, 5
        %v8533 = vsel %vm836, %v8528, %v8532
        %v8534 = vshrl.u32 %v8179, 16
        %v8536 = vrot.slane %v8534, 4
        %v8537 = vor.u32 %v8536, %v8532
        %v8538 = vrot.slane %v8537, 4
        %v8540 = vshll.u32 %v8180, 16
        %v8542 = vrot.slane %v8540, 5
        %v8543 = vsel %vm836, %v8538, %v8542
        %v8545 = vshrl.u32 %v8181, 16
        %v8547 = vrot.slane %v8545, 4
        %v8548 = vshll.u32 %v8181, 16
        %v8550 = vrot.slane %v8548, 5
        %v8551 = vor.u32 %v8547, %v8550
        %v8552 = vrot.slane %v8551, 4
        %v8554 = vshll.u32 %v8182, 16
        %v8556 = vrot.slane %v8554, 5
        %v8557 = vsel %vm836, %v8552, %v8556
        %v8558 = vshrl.u32 %v8182, 16
        %v8560 = vrot.slane %v8558, 4
        %v8561 = vor.u32 %v8560, %v8556
        %v8562 = vrot.slane %v8561, 4
        %v8564 = vshll.u32 %v8183, 16
        %v8566 = vrot.slane %v8564, 5
        %v8567 = vsel %vm836, %v8562, %v8566
        %s8568 = scalar_lea.vmem [#allocation8], 256
        %v8569 = vld [vmem:[%s8568] sm:$0xf]
        %v8570 = vld [vmem:[%s8568 + $0x4] sm:$0xf]
        %v8571 = vld [vmem:[%s8568 + $0x8] sm:$0xf]
        %v8572 = vld [vmem:[%s8568 + $0xc] sm:$0xf]
        %v8573 = vld [vmem:[%s8568 + $0x10] sm:$0xf]
        %v8574 = vld [vmem:[%s8568 + $0x14] sm:$0xf]
        %v8575 = vld [vmem:[%s8568 + $0x18] sm:$0xf]
        %v8576 = vld [vmem:[%s8568 + $0x1c] sm:$0xf]
        %v8577 = vld [vmem:[%s8568 + $0x20] sm:$0xf]
        %v8578 = vld [vmem:[%s8568 + $0x24] sm:$0xf]
        %v8579 = vld [vmem:[%s8568 + $0x28] sm:$0xf]
        %v8580 = vld [vmem:[%s8568 + $0x2c] sm:$0xf]
        %v8581 = vld [vmem:[%s8568 + $0x30] sm:$0xf]
        %v8582 = vld [vmem:[%s8568 + $0x34] sm:$0xf]
        %v8583 = vld [vmem:[%s8568 + $0x38] sm:$0xf]
        %v8584 = vld [vmem:[%s8568 + $0x3c] sm:$0xf]
        %v8585 = vunpack.c.l.b16 %v8197
        %v8586 = vunpack.c.l.b16 %v8207
        %v8587 = vunpack.c.l.b16 %v8221
        %v8588 = vunpack.c.l.b16 %v8231
        %v8589 = vunpack.c.l.b16 %v8245
        %v8590 = vunpack.c.l.b16 %v8255
        %v8591 = vunpack.c.l.b16 %v8269
        %v8592 = vunpack.c.l.b16 %v8279
        %v8593 = vunpack.c.l.b16 %v8293
        %v8594 = vunpack.c.l.b16 %v8303
        %v8595 = vunpack.c.l.b16 %v8317
        %v8596 = vunpack.c.l.b16 %v8327
        %v8597 = vunpack.c.l.b16 %v8341
        %v8598 = vunpack.c.l.b16 %v8351
        %v8599 = vunpack.c.l.b16 %v8365
        %v8600 = vunpack.c.l.b16 %v8375
        %v8601 = vunpack.c.l.b16 %v8389
        %v8602 = vunpack.c.l.b16 %v8399
        %v8603 = vunpack.c.l.b16 %v8413
        %v8604 = vunpack.c.l.b16 %v8423
        %v8605 = vunpack.c.l.b16 %v8437
        %v8606 = vunpack.c.l.b16 %v8447
        %v8607 = vunpack.c.l.b16 %v8461
        %v8608 = vunpack.c.l.b16 %v8471
        %v8609 = vunpack.c.l.b16 %v8485
        %v8610 = vunpack.c.l.b16 %v8495
        %v8611 = vunpack.c.l.b16 %v8509
        %v8612 = vunpack.c.l.b16 %v8519
        %v8613 = vunpack.c.l.b16 %v8533
        %v8614 = vunpack.c.l.b16 %v8543
        %v8615 = vunpack.c.l.b16 %v8557
        %v8616 = vunpack.c.l.b16 %v8567
        %v8617 = vpack.c.b16 %v8586, %v8585
        %v8618 = vpack.c.b16 %v8588, %v8587
        %v8619 = vpack.c.b16 %v8590, %v8589
        %v8620 = vpack.c.b16 %v8592, %v8591
        %v8621 = vpack.c.b16 %v8594, %v8593
        %v8622 = vpack.c.b16 %v8596, %v8595
        %v8623 = vpack.c.b16 %v8598, %v8597
        %v8624 = vpack.c.b16 %v8600, %v8599
        %v8625 = vpack.c.b16 %v8602, %v8601
        %v8626 = vpack.c.b16 %v8604, %v8603
        %v8627 = vpack.c.b16 %v8606, %v8605
        %v8628 = vpack.c.b16 %v8608, %v8607
        %v8629 = vpack.c.b16 %v8610, %v8609
        %v8630 = vpack.c.b16 %v8612, %v8611
        %v8631 = vpack.c.b16 %v8614, %v8613
        %v8632 = vpack.c.b16 %v8616, %v8615
        %v8665 = vunpack.c.l.b16 %v8569
        %v8666 = vunpack.c.l.b16 %v8570
        %v8667 = vunpack.c.l.b16 %v8571
        %v8668 = vunpack.c.l.b16 %v8572
        %v8669 = vunpack.c.l.b16 %v8573
        %v8670 = vunpack.c.l.b16 %v8574
        %v8671 = vunpack.c.l.b16 %v8575
        %v8672 = vunpack.c.l.b16 %v8576
        %v8673 = vunpack.c.l.b16 %v8577
        %v8674 = vunpack.c.l.b16 %v8578
        %v8675 = vunpack.c.l.b16 %v8579
        %v8676 = vunpack.c.l.b16 %v8580
        %v8677 = vunpack.c.l.b16 %v8581
        %v8678 = vunpack.c.l.b16 %v8582
        %v8679 = vunpack.c.l.b16 %v8583
        %v8680 = vunpack.c.l.b16 %v8584
        %v8681 = vpack.c.b16 %v8666, %v8665
        %v8682 = vpack.c.b16 %v8668, %v8667
        %v8683 = vpack.c.b16 %v8670, %v8669
        %v8684 = vpack.c.b16 %v8672, %v8671
        %v8685 = vpack.c.b16 %v8674, %v8673
        %v8686 = vpack.c.b16 %v8676, %v8675
        %v8687 = vpack.c.b16 %v8678, %v8677
        %v8688 = vpack.c.b16 %v8680, %v8679
        %8697 = vmatprep.subr.bf16.mxu0 0
        %8698 = vmatpush1.bf16.msra.mxu0 %v8681
        %8699 = vmatprep.subr.bf16.mxu0 0
        %8700 = vmatpush1.bf16.msra.mxu0 %v8682
        %8701 = vmatprep.subr.bf16.mxu0 0
        %8702 = vmatpush1.bf16.msra.mxu0 %v8683
        %8703 = vmatprep.subr.bf16.mxu0 0
        %8704 = vmatpush1.bf16.msra.mxu0 %v8684
        %8705 = vmatprep.subr.bf16.mxu0 0
        %8706 = vmatpush1.bf16.msra.mxu0 %v8685
        %8707 = vmatprep.subr.bf16.mxu0 0
        %8708 = vmatpush1.bf16.msra.mxu0 %v8686
        %8709 = vmatprep.subr.bf16.mxu0 0
        %8710 = vmatpush1.bf16.msra.mxu0 %v8687
        %8711 = vmatprep.subr.bf16.mxu0 0
        %8712 = vmatpush1.bf16.msra.mxu0 %v8688
        %8713 = vmatprep.subr.bf16.mxu0 0
        %8714 = vmatpush1.bf16.msra.mxu0 0
        %8715 = vmatprep.subr.bf16.mxu0 0
        %8716 = vmatpush1.bf16.msra.mxu0 0
        %8717 = vmatprep.subr.bf16.mxu0 0
        %8718 = vmatpush1.bf16.msra.mxu0 0
        %8719 = vmatprep.subr.bf16.mxu0 0
        %8720 = vmatpush1.bf16.msra.mxu0 0
        %8721 = vmatprep.subr.bf16.mxu0 0
        %8722 = vmatpush1.bf16.msra.mxu0 0
        %8723 = vmatprep.subr.bf16.mxu0 0
        %8724 = vmatpush1.bf16.msra.mxu0 0
        %8725 = vmatprep.subr.bf16.mxu0 0
        %8726 = vmatpush1.bf16.msra.mxu0 0
        %8727 = vmatprep.subr.bf16.mxu0 0
        %8728 = vmatpush1.bf16.msra.mxu0 0
        %8729 = vmatprep.mubr.bf16.mxu0 0
        %8730 = vmatmul.mubr.bf16.gmra.mrb[0].mxu0 %v8617
        %v8731 = vpop.f32.mrb[0].mxu0
        %v8732 = vadd.f32 0.0, %v8731
        %v8733 = vpop.f32.mrb[0].mxu0
        %v8734 = vpop.f32.mrb[0].mxu0
        %v8735 = vadd.f32 0.0, %v8734
        %v8736 = vpop.f32.mrb[0].mxu0
        %8737 = vmatprep.mubr.bf16.mxu0 0
        %8738 = vmatmul.mubr.bf16.gmra.mrb[0].mxu0 %v8618
        %v8739 = vpop.f32.mrb[0].mxu0
        %v8740 = vadd.f32 0.0, %v8739
        %v8741 = vpop.f32.mrb[0].mxu0
        %v8742 = vpop.f32.mrb[0].mxu0
        %v8743 = vadd.f32 0.0, %v8742
        %v8744 = vpop.f32.mrb[0].mxu0
        %8745 = vmatprep.mubr.bf16.mxu0 0
        %8746 = vmatmul.mubr.bf16.gmra.mrb[0].mxu0 %v8619
        %v8747 = vpop.f32.mrb[0].mxu0
        %v8748 = vadd.f32 0.0, %v8747
        %v8749 = vpop.f32.mrb[0].mxu0
        %v8750 = vpop.f32.mrb[0].mxu0
        %v8751 = vadd.f32 0.0, %v8750
        %v8752 = vpop.f32.mrb[0].mxu0
        %8753 = vmatprep.mubr.bf16.mxu0 0
        %8754 = vmatmul.mubr.bf16.gmra.mrb[0].mxu0 %v8620
        %v8755 = vpop.f32.mrb[0].mxu0
        %v8756 = vadd.f32 0.0, %v8755
        %v8757 = vpop.f32.mrb[0].mxu0
        %v8758 = vpop.f32.mrb[0].mxu0
        %v8759 = vadd.f32 0.0, %v8758
        %v8760 = vpop.f32.mrb[0].mxu0
        %8761 = vmatprep.mubr.bf16.mxu0 0
        %8762 = vmatmul.mubr.bf16.gmra.mrb[0].mxu0 %v8621
        %v8763 = vpop.f32.mrb[0].mxu0
        %v8764 = vadd.f32 0.0, %v8763
        %v8765 = vpop.f32.mrb[0].mxu0
        %v8766 = vpop.f32.mrb[0].mxu0
        %v8767 = vadd.f32 0.0, %v8766
        %v8768 = vpop.f32.mrb[0].mxu0
        %8769 = vmatprep.mubr.bf16.mxu0 0
        %8770 = vmatmul.mubr.bf16.gmra.mrb[0].mxu0 %v8622
        %v8771 = vpop.f32.mrb[0].mxu0
        %v8772 = vadd.f32 0.0, %v8771
        %v8773 = vpop.f32.mrb[0].mxu0
        %v8774 = vpop.f32.mrb[0].mxu0
        %v8775 = vadd.f32 0.0, %v8774
        %v8776 = vpop.f32.mrb[0].mxu0
        %8777 = vmatprep.mubr.bf16.mxu0 0
        %8778 = vmatmul.mubr.bf16.gmra.mrb[0].mxu0 %v8623
        %v8779 = vpop.f32.mrb[0].mxu0
        %v8780 = vadd.f32 0.0, %v8779
        %v8781 = vpop.f32.mrb[0].mxu0
        %v8782 = vpop.f32.mrb[0].mxu0
        %v8783 = vadd.f32 0.0, %v8782
        %v8784 = vpop.f32.mrb[0].mxu0
        %8785 = vmatprep.mubr.bf16.mxu0 0
        %8786 = vmatmul.mubr.bf16.gmra.mrb[0].mxu0 %v8624
        %v8787 = vpop.f32.mrb[0].mxu0
        %v8788 = vadd.f32 0.0, %v8787
        %v8789 = vpop.f32.mrb[0].mxu0
        %v8790 = vpop.f32.mrb[0].mxu0
        %v8791 = vadd.f32 0.0, %v8790
        %v8792 = vpop.f32.mrb[0].mxu0
        %8793 = vmatprep.mubr.bf16.mxu0 0
        %8794 = vmatmul.mubr.bf16.gmra.mrb[0].mxu0 %v8625
        %v8795 = vpop.f32.mrb[0].mxu0
        %v8796 = vadd.f32 0.0, %v8795
        %v8797 = vpop.f32.mrb[0].mxu0
        %v8798 = vpop.f32.mrb[0].mxu0
        %v8799 = vadd.f32 0.0, %v8798
        %v8800 = vpop.f32.mrb[0].mxu0
        %8801 = vmatprep.mubr.bf16.mxu0 0
        %8802 = vmatmul.mubr.bf16.gmra.mrb[0].mxu0 %v8626
        %v8803 = vpop.f32.mrb[0].mxu0
        %v8804 = vadd.f32 0.0, %v8803
        %v8805 = vpop.f32.mrb[0].mxu0
        %v8806 = vpop.f32.mrb[0].mxu0
        %v8807 = vadd.f32 0.0, %v8806
        %v8808 = vpop.f32.mrb[0].mxu0
        %8809 = vmatprep.mubr.bf16.mxu0 0
        %8810 = vmatmul.mubr.bf16.gmra.mrb[0].mxu0 %v8627
        %v8811 = vpop.f32.mrb[0].mxu0
        %v8812 = vadd.f32 0.0, %v8811
        %v8813 = vpop.f32.mrb[0].mxu0
        %v8814 = vpop.f32.mrb[0].mxu0
        %v8815 = vadd.f32 0.0, %v8814
        %v8816 = vpop.f32.mrb[0].mxu0
        %8817 = vmatprep.mubr.bf16.mxu0 0
        %8818 = vmatmul.mubr.bf16.gmra.mrb[0].mxu0 %v8628
        %v8819 = vpop.f32.mrb[0].mxu0
        %v8820 = vadd.f32 0.0, %v8819
        %v8821 = vpop.f32.mrb[0].mxu0
        %v8822 = vpop.f32.mrb[0].mxu0
        %v8823 = vadd.f32 0.0, %v8822
        %v8824 = vpop.f32.mrb[0].mxu0
        %8825 = vmatprep.mubr.bf16.mxu0 0
        %8826 = vmatmul.mubr.bf16.gmra.mrb[0].mxu0 %v8629
        %v8827 = vpop.f32.mrb[0].mxu0
        %v8828 = vadd.f32 0.0, %v8827
        %v8829 = vpop.f32.mrb[0].mxu0
        %v8830 = vpop.f32.mrb[0].mxu0
        %v8831 = vadd.f32 0.0, %v8830
        %v8832 = vpop.f32.mrb[0].mxu0
        %8833 = vmatprep.mubr.bf16.mxu0 0
        %8834 = vmatmul.mubr.bf16.gmra.mrb[0].mxu0 %v8630
        %v8835 = vpop.f32.mrb[0].mxu0
        %v8836 = vadd.f32 0.0, %v8835
        %v8837 = vpop.f32.mrb[0].mxu0
        %v8838 = vpop.f32.mrb[0].mxu0
        %v8839 = vadd.f32 0.0, %v8838
        %v8840 = vpop.f32.mrb[0].mxu0
        %8841 = vmatprep.mubr.bf16.mxu0 0
        %8842 = vmatmul.mubr.bf16.gmra.mrb[0].mxu0 %v8631
        %v8843 = vpop.f32.mrb[0].mxu0
        %v8844 = vadd.f32 0.0, %v8843
        %v8845 = vpop.f32.mrb[0].mxu0
        %v8846 = vpop.f32.mrb[0].mxu0
        %v8847 = vadd.f32 0.0, %v8846
        %v8848 = vpop.f32.mrb[0].mxu0
        %8849 = vmatprep.mubr.bf16.mxu0 0
        %8850 = vmatmul.mubr.bf16.gmra.mrb[0].mxu0 %v8632
        %v8851 = vpop.f32.mrb[0].mxu0
        %v8852 = vadd.f32 0.0, %v8851
        %v8853 = vpop.f32.mrb[0].mxu0
        %v8854 = vpop.f32.mrb[0].mxu0
        %v8855 = vadd.f32 0.0, %v8854
        %v8856 = vpop.f32.mrb[0].mxu0
        %8857 = vdwg.mxu0
        %v8858 = vadd.f32 %v8104, %v8732
        %v8859 = vadd.f32 %v8105, %v8735
        %v8860 = vadd.f32 %v8106, %v8740
        %v8861 = vadd.f32 %v8107, %v8743
        %v8862 = vadd.f32 %v8108, %v8748
        %v8863 = vadd.f32 %v8109, %v8751
        %v8864 = vadd.f32 %v8110, %v8756
        %v8865 = vadd.f32 %v8111, %v8759
        %v8866 = vadd.f32 %v8112, %v8764
        %v8867 = vadd.f32 %v8113, %v8767
        %v8868 = vadd.f32 %v8114, %v8772
        %v8869 = vadd.f32 %v8115, %v8775
        %v8870 = vadd.f32 %v8116, %v8780
        %v8871 = vadd.f32 %v8117, %v8783
        %v8872 = vadd.f32 %v8118, %v8788
        %v8873 = vadd.f32 %v8119, %v8791
        %v8874 = vadd.f32 %v8120, %v8796
        %v8875 = vadd.f32 %v8121, %v8799
        %v8876 = vadd.f32 %v8122, %v8804
        %v8877 = vadd.f32 %v8123, %v8807
        %v8878 = vadd.f32 %v8124, %v8812
        %v8879 = vadd.f32 %v8125, %v8815
        %v8880 = vadd.f32 %v8126, %v8820
        %v8881 = vadd.f32 %v8127, %v8823
        %v8882 = vadd.f32 %v8128, %v8828
        %v8883 = vadd.f32 %v8129, %v8831
        %v8884 = vadd.f32 %v8130, %v8836
        %v8885 = vadd.f32 %v8131, %v8839
        %v8886 = vadd.f32 %v8132, %v8844
        %v8887 = vadd.f32 %v8133, %v8847
        %v8888 = vadd.f32 %v8134, %v8852
        %v8889 = vadd.f32 %v8135, %v8855
        %v8890 = vld [vmem:[%s721] sm:$0xe]
        %v8891 = vld [vmem:[%s721 + $0xc] sm:$0xe]
        %v8892 = vld [vmem:[%s721 + $0x18] sm:$0xe]
        %v8893 = vld [vmem:[%s721 + $0x24] sm:$0xe]
        %v8894 = vld [vmem:[%s721 + $0x30] sm:$0xe]
        %v8895 = vld [vmem:[%s721 + $0x3c] sm:$0xe]
        %v8896 = vld [vmem:[%s721 + $0x48] sm:$0xe]
        %v8897 = vld [vmem:[%s721 + $0x54] sm:$0xe]
        %v8898 = vld [vmem:[%s721 + $0x60] sm:$0xe]
        %v8899 = vld [vmem:[%s721 + $0x6c] sm:$0xe]
        %v8900 = vld [vmem:[%s721 + $0x78] sm:$0xe]
        %v8901 = vld [vmem:[%s721 + $0x84] sm:$0xe]
        %v8902 = vld [vmem:[%s721 + $0x90] sm:$0xe]
        %v8903 = vld [vmem:[%s721 + $0x9c] sm:$0xe]
        %v8904 = vld [vmem:[%s721 + $0xa8] sm:$0xe]
        %v8905 = vld [vmem:[%s721 + $0xb4] sm:$0xe]
        %v8954 = vrot.slane %v8890, 5
        %v8955 = vrot.slane %v8954, 4
        %v8956 = vrot.slane %v8137, 5
        %v8957 = vsel %vm1866, %v8955, %v8956
        %v8958 = vrot.slane %v8956, 4
        %v8959 = vrot.slane %v8138, 5
        %v8960 = vsel %vm1866, %v8958, %v8959
        %v8961 = vrot.slane %v8891, 5
        %v8962 = vrot.slane %v8961, 4
        %v8963 = vrot.slane %v8140, 5
        %v8964 = vsel %vm1866, %v8962, %v8963
        %v8965 = vrot.slane %v8963, 4
        %v8966 = vrot.slane %v8141, 5
        %v8967 = vsel %vm1866, %v8965, %v8966
        %v8968 = vrot.slane %v8892, 5
        %v8969 = vrot.slane %v8968, 4
        %v8970 = vrot.slane %v8143, 5
        %v8971 = vsel %vm1866, %v8969, %v8970
        %v8972 = vrot.slane %v8970, 4
        %v8973 = vrot.slane %v8144, 5
        %v8974 = vsel %vm1866, %v8972, %v8973
        %v8975 = vrot.slane %v8893, 5
        %v8976 = vrot.slane %v8975, 4
        %v8977 = vrot.slane %v8146, 5
        %v8978 = vsel %vm1866, %v8976, %v8977
        %v8979 = vrot.slane %v8977, 4
        %v8980 = vrot.slane %v8147, 5
        %v8981 = vsel %vm1866, %v8979, %v8980
        %v8982 = vrot.slane %v8894, 5
        %v8983 = vrot.slane %v8982, 4
        %v8984 = vrot.slane %v8149, 5
        %v8985 = vsel %vm1866, %v8983, %v8984
        %v8986 = vrot.slane %v8984, 4
        %v8987 = vrot.slane %v8150, 5
        %v8988 = vsel %vm1866, %v8986, %v8987
        %v8989 = vrot.slane %v8895, 5
        %v8990 = vrot.slane %v8989, 4
        %v8991 = vrot.slane %v8152, 5
        %v8992 = vsel %vm1866, %v8990, %v8991
        %v8993 = vrot.slane %v8991, 4
        %v8994 = vrot.slane %v8153, 5
        %v8995 = vsel %vm1866, %v8993, %v8994
        %v8996 = vrot.slane %v8896, 5
        %v8997 = vrot.slane %v8996, 4
        %v8998 = vrot.slane %v8155, 5
        %v8999 = vsel %vm1866, %v8997, %v8998
        %v9000 = vrot.slane %v8998, 4
        %v9001 = vrot.slane %v8156, 5
        %v9002 = vsel %vm1866, %v9000, %v9001
        %v9003 = vrot.slane %v8897, 5
        %v9004 = vrot.slane %v9003, 4
        %v9005 = vrot.slane %v8158, 5
        %v9006 = vsel %vm1866, %v9004, %v9005
        %v9007 = vrot.slane %v9005, 4
        %v9008 = vrot.slane %v8159, 5
        %v9009 = vsel %vm1866, %v9007, %v9008
        %v9010 = vrot.slane %v8898, 5
        %v9011 = vrot.slane %v9010, 4
        %v9012 = vrot.slane %v8161, 5
        %v9013 = vsel %vm1866, %v9011, %v9012
        %v9014 = vrot.slane %v9012, 4
        %v9015 = vrot.slane %v8162, 5
        %v9016 = vsel %vm1866, %v9014, %v9015
        %v9017 = vrot.slane %v8899, 5
        %v9018 = vrot.slane %v9017, 4
        %v9019 = vrot.slane %v8164, 5
        %v9020 = vsel %vm1866, %v9018, %v9019
        %v9021 = vrot.slane %v9019, 4
        %v9022 = vrot.slane %v8165, 5
        %v9023 = vsel %vm1866, %v9021, %v9022
        %v9024 = vrot.slane %v8900, 5
        %v9025 = vrot.slane %v9024, 4
        %v9026 = vrot.slane %v8167, 5
        %v9027 = vsel %vm1866, %v9025, %v9026
        %v9028 = vrot.slane %v9026, 4
        %v9029 = vrot.slane %v8168, 5
        %v9030 = vsel %vm1866, %v9028, %v9029
        %v9031 = vrot.slane %v8901, 5
        %v9032 = vrot.slane %v9031, 4
        %v9033 = vrot.slane %v8170, 5
        %v9034 = vsel %vm1866, %v9032, %v9033
        %v9035 = vrot.slane %v9033, 4
        %v9036 = vrot.slane %v8171, 5
        %v9037 = vsel %vm1866, %v9035, %v9036
        %v9038 = vrot.slane %v8902, 5
        %v9039 = vrot.slane %v9038, 4
        %v9040 = vrot.slane %v8173, 5
        %v9041 = vsel %vm1866, %v9039, %v9040
        %v9042 = vrot.slane %v9040, 4
        %v9043 = vrot.slane %v8174, 5
        %v9044 = vsel %vm1866, %v9042, %v9043
        %v9045 = vrot.slane %v8903, 5
        %v9046 = vrot.slane %v9045, 4
        %v9047 = vrot.slane %v8176, 5
        %v9048 = vsel %vm1866, %v9046, %v9047
        %v9049 = vrot.slane %v9047, 4
        %v9050 = vrot.slane %v8177, 5
        %v9051 = vsel %vm1866, %v9049, %v9050
        %v9052 = vrot.slane %v8904, 5
        %v9053 = vrot.slane %v9052, 4
        %v9054 = vrot.slane %v8179, 5
        %v9055 = vsel %vm1866, %v9053, %v9054
        %v9056 = vrot.slane %v9054, 4
        %v9057 = vrot.slane %v8180, 5
        %v9058 = vsel %vm1866, %v9056, %v9057
        %v9059 = vrot.slane %v8905, 5
        %v9060 = vrot.slane %v9059, 4
        %v9061 = vrot.slane %v8182, 5
        %v9062 = vsel %vm1866, %v9060, %v9061
        %v9063 = vrot.slane %v9061, 4
        %v9064 = vrot.slane %v8183, 5
        %v9065 = vsel %vm1866, %v9063, %v9064
        %s9066 = scalar_lea.vmem [#allocation8], 320
        %v9067 = vld [vmem:[%s9066] sm:$0xf]
        %v9068 = vld [vmem:[%s9066 + $0x4] sm:$0xf]
        %v9069 = vld [vmem:[%s9066 + $0x8] sm:$0xf]
        %v9070 = vld [vmem:[%s9066 + $0xc] sm:$0xf]
        %v9071 = vld [vmem:[%s9066 + $0x10] sm:$0xf]
        %v9072 = vld [vmem:[%s9066 + $0x14] sm:$0xf]
        %v9073 = vld [vmem:[%s9066 + $0x18] sm:$0xf]
        %v9074 = vld [vmem:[%s9066 + $0x1c] sm:$0xf]
        %v9075 = vld [vmem:[%s9066 + $0x20] sm:$0xf]
        %v9076 = vld [vmem:[%s9066 + $0x24] sm:$0xf]
        %v9077 = vld [vmem:[%s9066 + $0x28] sm:$0xf]
        %v9078 = vld [vmem:[%s9066 + $0x2c] sm:$0xf]
        %v9079 = vld [vmem:[%s9066 + $0x30] sm:$0xf]
        %v9080 = vld [vmem:[%s9066 + $0x34] sm:$0xf]
        %v9081 = vld [vmem:[%s9066 + $0x38] sm:$0xf]
        %v9082 = vld [vmem:[%s9066 + $0x3c] sm:$0xf]
        %v9083 = vunpack.c.l.b16 %v8957
        %v9084 = vunpack.c.l.b16 %v8960
        %v9085 = vunpack.c.l.b16 %v8964
        %v9086 = vunpack.c.l.b16 %v8967
        %v9087 = vunpack.c.l.b16 %v8971
        %v9088 = vunpack.c.l.b16 %v8974
        %v9089 = vunpack.c.l.b16 %v8978
        %v9090 = vunpack.c.l.b16 %v8981
        %v9091 = vunpack.c.l.b16 %v8985
        %v9092 = vunpack.c.l.b16 %v8988
        %v9093 = vunpack.c.l.b16 %v8992
        %v9094 = vunpack.c.l.b16 %v8995
        %v9095 = vunpack.c.l.b16 %v8999
        %v9096 = vunpack.c.l.b16 %v9002
        %v9097 = vunpack.c.l.b16 %v9006
        %v9098 = vunpack.c.l.b16 %v9009
        %v9099 = vunpack.c.l.b16 %v9013
        %v9100 = vunpack.c.l.b16 %v9016
        %v9101 = vunpack.c.l.b16 %v9020
        %v9102 = vunpack.c.l.b16 %v9023
        %v9103 = vunpack.c.l.b16 %v9027
        %v9104 = vunpack.c.l.b16 %v9030
        %v9105 = vunpack.c.l.b16 %v9034
        %v9106 = vunpack.c.l.b16 %v9037
        %v9107 = vunpack.c.l.b16 %v9041
        %v9108 = vunpack.c.l.b16 %v9044
        %v9109 = vunpack.c.l.b16 %v9048
        %v9110 = vunpack.c.l.b16 %v9051
        %v9111 = vunpack.c.l.b16 %v9055
        %v9112 = vunpack.c.l.b16 %v9058
        %v9113 = vunpack.c.l.b16 %v9062
        %v9114 = vunpack.c.l.b16 %v9065
        %v9115 = vpack.c.b16 %v9084, %v9083
        %v9116 = vpack.c.b16 %v9086, %v9085
        %v9117 = vpack.c.b16 %v9088, %v9087
        %v9118 = vpack.c.b16 %v9090, %v9089
        %v9119 = vpack.c.b16 %v9092, %v9091
        %v9120 = vpack.c.b16 %v9094, %v9093
        %v9121 = vpack.c.b16 %v9096, %v9095
        %v9122 = vpack.c.b16 %v9098, %v9097
        %v9123 = vpack.c.b16 %v9100, %v9099
        %v9124 = vpack.c.b16 %v9102, %v9101
        %v9125 = vpack.c.b16 %v9104, %v9103
        %v9126 = vpack.c.b16 %v9106, %v9105
        %v9127 = vpack.c.b16 %v9108, %v9107
        %v9128 = vpack.c.b16 %v9110, %v9109
        %v9129 = vpack.c.b16 %v9112, %v9111
        %v9130 = vpack.c.b16 %v9114, %v9113
        %v9163 = vunpack.c.l.b16 %v9067
        %v9164 = vunpack.c.l.b16 %v9068
        %v9165 = vunpack.c.l.b16 %v9069
        %v9166 = vunpack.c.l.b16 %v9070
        %v9167 = vunpack.c.l.b16 %v9071
        %v9168 = vunpack.c.l.b16 %v9072
        %v9169 = vunpack.c.l.b16 %v9073
        %v9170 = vunpack.c.l.b16 %v9074
        %v9171 = vunpack.c.l.b16 %v9075
        %v9172 = vunpack.c.l.b16 %v9076
        %v9173 = vunpack.c.l.b16 %v9077
        %v9174 = vunpack.c.l.b16 %v9078
        %v9175 = vunpack.c.l.b16 %v9079
        %v9176 = vunpack.c.l.b16 %v9080
        %v9177 = vunpack.c.l.b16 %v9081
        %v9178 = vunpack.c.l.b16 %v9082
        %v9179 = vpack.c.b16 %v9164, %v9163
        %v9180 = vpack.c.b16 %v9166, %v9165
        %v9181 = vpack.c.b16 %v9168, %v9167
        %v9182 = vpack.c.b16 %v9170, %v9169
        %v9183 = vpack.c.b16 %v9172, %v9171
        %v9184 = vpack.c.b16 %v9174, %v9173
        %v9185 = vpack.c.b16 %v9176, %v9175
        %v9186 = vpack.c.b16 %v9178, %v9177
        %9195 = vmatprep.subr.bf16.mxu0 0
        %9196 = vmatpush1.bf16.msra.mxu0 %v9179
        %9197 = vmatprep.subr.bf16.mxu0 0
        %9198 = vmatpush1.bf16.msra.mxu0 %v9180
        %9199 = vmatprep.subr.bf16.mxu0 0
        %9200 = vmatpush1.bf16.msra.mxu0 %v9181
        %9201 = vmatprep.subr.bf16.mxu0 0
        %9202 = vmatpush1.bf16.msra.mxu0 %v9182
        %9203 = vmatprep.subr.bf16.mxu0 0
        %9204 = vmatpush1.bf16.msra.mxu0 %v9183
        %9205 = vmatprep.subr.bf16.mxu0 0
        %9206 = vmatpush1.bf16.msra.mxu0 %v9184
        %9207 = vmatprep.subr.bf16.mxu0 0
        %9208 = vmatpush1.bf16.msra.mxu0 %v9185
        %9209 = vmatprep.subr.bf16.mxu0 0
        %9210 = vmatpush1.bf16.msra.mxu0 %v9186
        %9211 = vmatprep.subr.bf16.mxu0 0
        %9212 = vmatpush1.bf16.msra.mxu0 0
        %9213 = vmatprep.subr.bf16.mxu0 0
        %9214 = vmatpush1.bf16.msra.mxu0 0
        %9215 = vmatprep.subr.bf16.mxu0 0
        %9216 = vmatpush1.bf16.msra.mxu0 0
        %9217 = vmatprep.subr.bf16.mxu0 0
        %9218 = vmatpush1.bf16.msra.mxu0 0
        %9219 = vmatprep.subr.bf16.mxu0 0
        %9220 = vmatpush1.bf16.msra.mxu0 0
        %9221 = vmatprep.subr.bf16.mxu0 0
        %9222 = vmatpush1.bf16.msra.mxu0 0
        %9223 = vmatprep.subr.bf16.mxu0 0
        %9224 = vmatpush1.bf16.msra.mxu0 0
        %9225 = vmatprep.subr.bf16.mxu0 0
        %9226 = vmatpush1.bf16.msra.mxu0 0
        %9227 = vmatprep.mubr.bf16.mxu0 0
        %9228 = vmatmul.mubr.bf16.gmra.mrb[0].mxu0 %v9115
        %v9229 = vpop.f32.mrb[0].mxu0
        %v9230 = vadd.f32 0.0, %v9229
        %v9231 = vpop.f32.mrb[0].mxu0
        %v9232 = vpop.f32.mrb[0].mxu0
        %v9233 = vadd.f32 0.0, %v9232
        %v9234 = vpop.f32.mrb[0].mxu0
        %9235 = vmatprep.mubr.bf16.mxu0 0
        %9236 = vmatmul.mubr.bf16.gmra.mrb[0].mxu0 %v9116
        %v9237 = vpop.f32.mrb[0].mxu0
        %v9238 = vadd.f32 0.0, %v9237
        %v9239 = vpop.f32.mrb[0].mxu0
        %v9240 = vpop.f32.mrb[0].mxu0
        %v9241 = vadd.f32 0.0, %v9240
        %v9242 = vpop.f32.mrb[0].mxu0
        %9243 = vmatprep.mubr.bf16.mxu0 0
        %9244 = vmatmul.mubr.bf16.gmra.mrb[0].mxu0 %v9117
        %v9245 = vpop.f32.mrb[0].mxu0
        %v9246 = vadd.f32 0.0, %v9245
        %v9247 = vpop.f32.mrb[0].mxu0
        %v9248 = vpop.f32.mrb[0].mxu0
        %v9249 = vadd.f32 0.0, %v9248
        %v9250 = vpop.f32.mrb[0].mxu0
        %9251 = vmatprep.mubr.bf16.mxu0 0
        %9252 = vmatmul.mubr.bf16.gmra.mrb[0].mxu0 %v9118
        %v9253 = vpop.f32.mrb[0].mxu0
        %v9254 = vadd.f32 0.0, %v9253
        %v9255 = vpop.f32.mrb[0].mxu0
        %v9256 = vpop.f32.mrb[0].mxu0
        %v9257 = vadd.f32 0.0, %v9256
        %v9258 = vpop.f32.mrb[0].mxu0
        %9259 = vmatprep.mubr.bf16.mxu0 0
        %9260 = vmatmul.mubr.bf16.gmra.mrb[0].mxu0 %v9119
        %v9261 = vpop.f32.mrb[0].mxu0
        %v9262 = vadd.f32 0.0, %v9261
        %v9263 = vpop.f32.mrb[0].mxu0
        %v9264 = vpop.f32.mrb[0].mxu0
        %v9265 = vadd.f32 0.0, %v9264
        %v9266 = vpop.f32.mrb[0].mxu0
        %9267 = vmatprep.mubr.bf16.mxu0 0
        %9268 = vmatmul.mubr.bf16.gmra.mrb[0].mxu0 %v9120
        %v9269 = vpop.f32.mrb[0].mxu0
        %v9270 = vadd.f32 0.0, %v9269
        %v9271 = vpop.f32.mrb[0].mxu0
        %v9272 = vpop.f32.mrb[0].mxu0
        %v9273 = vadd.f32 0.0, %v9272
        %v9274 = vpop.f32.mrb[0].mxu0
        %9275 = vmatprep.mubr.bf16.mxu0 0
        %9276 = vmatmul.mubr.bf16.gmra.mrb[0].mxu0 %v9121
        %v9277 = vpop.f32.mrb[0].mxu0
        %v9278 = vadd.f32 0.0, %v9277
        %v9279 = vpop.f32.mrb[0].mxu0
        %v9280 = vpop.f32.mrb[0].mxu0
        %v9281 = vadd.f32 0.0, %v9280
        %v9282 = vpop.f32.mrb[0].mxu0
        %9283 = vmatprep.mubr.bf16.mxu0 0
        %9284 = vmatmul.mubr.bf16.gmra.mrb[0].mxu0 %v9122
        %v9285 = vpop.f32.mrb[0].mxu0
        %v9286 = vadd.f32 0.0, %v9285
        %v9287 = vpop.f32.mrb[0].mxu0
        %v9288 = vpop.f32.mrb[0].mxu0
        %v9289 = vadd.f32 0.0, %v9288
        %v9290 = vpop.f32.mrb[0].mxu0
        %9291 = vmatprep.mubr.bf16.mxu0 0
        %9292 = vmatmul.mubr.bf16.gmra.mrb[0].mxu0 %v9123
        %v9293 = vpop.f32.mrb[0].mxu0
        %v9294 = vadd.f32 0.0, %v9293
        %v9295 = vpop.f32.mrb[0].mxu0
        %v9296 = vpop.f32.mrb[0].mxu0
        %v9297 = vadd.f32 0.0, %v9296
        %v9298 = vpop.f32.mrb[0].mxu0
        %9299 = vmatprep.mubr.bf16.mxu0 0
        %9300 = vmatmul.mubr.bf16.gmra.mrb[0].mxu0 %v9124
        %v9301 = vpop.f32.mrb[0].mxu0
        %v9302 = vadd.f32 0.0, %v9301
        %v9303 = vpop.f32.mrb[0].mxu0
        %v9304 = vpop.f32.mrb[0].mxu0
        %v9305 = vadd.f32 0.0, %v9304
        %v9306 = vpop.f32.mrb[0].mxu0
        %9307 = vmatprep.mubr.bf16.mxu0 0
        %9308 = vmatmul.mubr.bf16.gmra.mrb[0].mxu0 %v9125
        %v9309 = vpop.f32.mrb[0].mxu0
        %v9310 = vadd.f32 0.0, %v9309
        %v9311 = vpop.f32.mrb[0].mxu0
        %v9312 = vpop.f32.mrb[0].mxu0
        %v9313 = vadd.f32 0.0, %v9312
        %v9314 = vpop.f32.mrb[0].mxu0
        %9315 = vmatprep.mubr.bf16.mxu0 0
        %9316 = vmatmul.mubr.bf16.gmra.mrb[0].mxu0 %v9126
        %v9317 = vpop.f32.mrb[0].mxu0
        %v9318 = vadd.f32 0.0, %v9317
        %v9319 = vpop.f32.mrb[0].mxu0
        %v9320 = vpop.f32.mrb[0].mxu0
        %v9321 = vadd.f32 0.0, %v9320
        %v9322 = vpop.f32.mrb[0].mxu0
        %9323 = vmatprep.mubr.bf16.mxu0 0
        %9324 = vmatmul.mubr.bf16.gmra.mrb[0].mxu0 %v9127
        %v9325 = vpop.f32.mrb[0].mxu0
        %v9326 = vadd.f32 0.0, %v9325
        %v9327 = vpop.f32.mrb[0].mxu0
        %v9328 = vpop.f32.mrb[0].mxu0
        %v9329 = vadd.f32 0.0, %v9328
        %v9330 = vpop.f32.mrb[0].mxu0
        %9331 = vmatprep.mubr.bf16.mxu0 0
        %9332 = vmatmul.mubr.bf16.gmra.mrb[0].mxu0 %v9128
        %v9333 = vpop.f32.mrb[0].mxu0
        %v9334 = vadd.f32 0.0, %v9333
        %v9335 = vpop.f32.mrb[0].mxu0
        %v9336 = vpop.f32.mrb[0].mxu0
        %v9337 = vadd.f32 0.0, %v9336
        %v9338 = vpop.f32.mrb[0].mxu0
        %9339 = vmatprep.mubr.bf16.mxu0 0
        %9340 = vmatmul.mubr.bf16.gmra.mrb[0].mxu0 %v9129
        %v9341 = vpop.f32.mrb[0].mxu0
        %v9342 = vadd.f32 0.0, %v9341
        %v9343 = vpop.f32.mrb[0].mxu0
        %v9344 = vpop.f32.mrb[0].mxu0
        %v9345 = vadd.f32 0.0, %v9344
        %v9346 = vpop.f32.mrb[0].mxu0
        %9347 = vmatprep.mubr.bf16.mxu0 0
        %9348 = vmatmul.mubr.bf16.gmra.mrb[0].mxu0 %v9130
        %v9349 = vpop.f32.mrb[0].mxu0
        %v9350 = vadd.f32 0.0, %v9349
        %v9351 = vpop.f32.mrb[0].mxu0
        %v9352 = vpop.f32.mrb[0].mxu0
        %v9353 = vadd.f32 0.0, %v9352
        %v9354 = vpop.f32.mrb[0].mxu0
        %9355 = vdwg.mxu0
        %v9356 = vadd.f32 %v8858, %v9230
        %v9357 = vadd.f32 %v8859, %v9233
        %v9358 = vadd.f32 %v8860, %v9238
        %v9359 = vadd.f32 %v8861, %v9241
        %v9360 = vadd.f32 %v8862, %v9246
        %v9361 = vadd.f32 %v8863, %v9249
        %v9362 = vadd.f32 %v8864, %v9254
        %v9363 = vadd.f32 %v8865, %v9257
        %v9364 = vadd.f32 %v8866, %v9262
        %v9365 = vadd.f32 %v8867, %v9265
        %v9366 = vadd.f32 %v8868, %v9270
        %v9367 = vadd.f32 %v8869, %v9273
        %v9368 = vadd.f32 %v8870, %v9278
        %v9369 = vadd.f32 %v8871, %v9281
        %v9370 = vadd.f32 %v8872, %v9286
        %v9371 = vadd.f32 %v8873, %v9289
        %v9372 = vadd.f32 %v8874, %v9294
        %v9373 = vadd.f32 %v8875, %v9297
        %v9374 = vadd.f32 %v8876, %v9302
        %v9375 = vadd.f32 %v8877, %v9305
        %v9376 = vadd.f32 %v8878, %v9310
        %v9377 = vadd.f32 %v8879, %v9313
        %v9378 = vadd.f32 %v8880, %v9318
        %v9379 = vadd.f32 %v8881, %v9321
        %v9380 = vadd.f32 %v8882, %v9326
        %v9381 = vadd.f32 %v8883, %v9329
        %v9382 = vadd.f32 %v8884, %v9334
        %v9383 = vadd.f32 %v8885, %v9337
        %v9384 = vadd.f32 %v8886, %v9342
        %v9385 = vadd.f32 %v8887, %v9345
        %v9386 = vadd.f32 %v8888, %v9350
        %v9387 = vadd.f32 %v8889, %v9353
        %v9388 = vld [vmem:[%s3939] sm:$0xf]
        %v9389 = vld [vmem:[%s3939 + $0x4] sm:$0xf]
        %v9390 = vld [vmem:[%s3939 + $0xc] sm:$0xf]
        %v9391 = vld [vmem:[%s3939 + $0x10] sm:$0xf]
        %v9392 = vld [vmem:[%s3939 + $0x18] sm:$0xf]
        %v9393 = vld [vmem:[%s3939 + $0x1c] sm:$0xf]
        %v9394 = vld [vmem:[%s3939 + $0x24] sm:$0xf]
        %v9395 = vld [vmem:[%s3939 + $0x28] sm:$0xf]
        %v9396 = vld [vmem:[%s3939 + $0x30] sm:$0xf]
        %v9397 = vld [vmem:[%s3939 + $0x34] sm:$0xf]
        %v9398 = vld [vmem:[%s3939 + $0x3c] sm:$0xf]
        %v9399 = vld [vmem:[%s3939 + $0x40] sm:$0xf]
        %v9400 = vld [vmem:[%s3939 + $0x48] sm:$0xf]
        %v9401 = vld [vmem:[%s3939 + $0x4c] sm:$0xf]
        %v9402 = vld [vmem:[%s3939 + $0x54] sm:$0xf]
        %v9403 = vld [vmem:[%s3939 + $0x58] sm:$0xf]
        %v9404 = vld [vmem:[%s3939 + $0x60] sm:$0xf]
        %v9405 = vld [vmem:[%s3939 + $0x64] sm:$0xf]
        %v9406 = vld [vmem:[%s3939 + $0x6c] sm:$0xf]
        %v9407 = vld [vmem:[%s3939 + $0x70] sm:$0xf]
        %v9408 = vld [vmem:[%s3939 + $0x78] sm:$0xf]
        %v9409 = vld [vmem:[%s3939 + $0x7c] sm:$0xf]
        %v9410 = vld [vmem:[%s3939 + $0x84] sm:$0xf]
        %v9411 = vld [vmem:[%s3939 + $0x88] sm:$0xf]
        %v9412 = vld [vmem:[%s3939 + $0x90] sm:$0xf]
        %v9413 = vld [vmem:[%s3939 + $0x94] sm:$0xf]
        %v9414 = vld [vmem:[%s3939 + $0x9c] sm:$0xf]
        %v9415 = vld [vmem:[%s3939 + $0xa0] sm:$0xf]
        %v9416 = vld [vmem:[%s3939 + $0xa8] sm:$0xf]
        %v9417 = vld [vmem:[%s3939 + $0xac] sm:$0xf]
        %v9418 = vld [vmem:[%s3939 + $0xb4] sm:$0xf]
        %v9419 = vld [vmem:[%s3939 + $0xb8] sm:$0xf]
        %s9420 = scalar_lea.vmem [#allocation8], 384
        %v9421 = vld [vmem:[%s9420] sm:$0xf]
        %v9422 = vld [vmem:[%s9420 + $0x4] sm:$0xf]
        %v9423 = vld [vmem:[%s9420 + $0x8] sm:$0xf]
        %v9424 = vld [vmem:[%s9420 + $0xc] sm:$0xf]
        %v9425 = vld [vmem:[%s9420 + $0x10] sm:$0xf]
        %v9426 = vld [vmem:[%s9420 + $0x14] sm:$0xf]
        %v9427 = vld [vmem:[%s9420 + $0x18] sm:$0xf]
        %v9428 = vld [vmem:[%s9420 + $0x1c] sm:$0xf]
        %v9429 = vld [vmem:[%s9420 + $0x20] sm:$0xf]
        %v9430 = vld [vmem:[%s9420 + $0x24] sm:$0xf]
        %v9431 = vld [vmem:[%s9420 + $0x28] sm:$0xf]
        %v9432 = vld [vmem:[%s9420 + $0x2c] sm:$0xf]
        %v9433 = vld [vmem:[%s9420 + $0x30] sm:$0xf]
        %v9434 = vld [vmem:[%s9420 + $0x34] sm:$0xf]
        %v9435 = vld [vmem:[%s9420 + $0x38] sm:$0xf]
        %v9436 = vld [vmem:[%s9420 + $0x3c] sm:$0xf]
        %v9469 = vunpack.c.l.b16 %v9388
        %v9470 = vunpack.c.l.b16 %v9389
        %v9471 = vunpack.c.l.b16 %v9390
        %v9472 = vunpack.c.l.b16 %v9391
        %v9473 = vunpack.c.l.b16 %v9392
        %v9474 = vunpack.c.l.b16 %v9393
        %v9475 = vunpack.c.l.b16 %v9394
        %v9476 = vunpack.c.l.b16 %v9395
        %v9477 = vunpack.c.l.b16 %v9396
        %v9478 = vunpack.c.l.b16 %v9397
        %v9479 = vunpack.c.l.b16 %v9398
        %v9480 = vunpack.c.l.b16 %v9399
        %v9481 = vunpack.c.l.b16 %v9400
        %v9482 = vunpack.c.l.b16 %v9401
        %v9483 = vunpack.c.l.b16 %v9402
        %v9484 = vunpack.c.l.b16 %v9403
        %v9485 = vunpack.c.l.b16 %v9404
        %v9486 = vunpack.c.l.b16 %v9405
        %v9487 = vunpack.c.l.b16 %v9406
        %v9488 = vunpack.c.l.b16 %v9407
        %v9489 = vunpack.c.l.b16 %v9408
        %v9490 = vunpack.c.l.b16 %v9409
        %v9491 = vunpack.c.l.b16 %v9410
        %v9492 = vunpack.c.l.b16 %v9411
        %v9493 = vunpack.c.l.b16 %v9412
        %v9494 = vunpack.c.l.b16 %v9413
        %v9495 = vunpack.c.l.b16 %v9414
        %v9496 = vunpack.c.l.b16 %v9415
        %v9497 = vunpack.c.l.b16 %v9416
        %v9498 = vunpack.c.l.b16 %v9417
        %v9499 = vunpack.c.l.b16 %v9418
        %v9500 = vunpack.c.l.b16 %v9419
        %v9501 = vpack.c.b16 %v9470, %v9469
        %v9502 = vpack.c.b16 %v9472, %v9471
        %v9503 = vpack.c.b16 %v9474, %v9473
        %v9504 = vpack.c.b16 %v9476, %v9475
        %v9505 = vpack.c.b16 %v9478, %v9477
        %v9506 = vpack.c.b16 %v9480, %v9479
        %v9507 = vpack.c.b16 %v9482, %v9481
        %v9508 = vpack.c.b16 %v9484, %v9483
        %v9509 = vpack.c.b16 %v9486, %v9485
        %v9510 = vpack.c.b16 %v9488, %v9487
        %v9511 = vpack.c.b16 %v9490, %v9489
        %v9512 = vpack.c.b16 %v9492, %v9491
        %v9513 = vpack.c.b16 %v9494, %v9493
        %v9514 = vpack.c.b16 %v9496, %v9495
        %v9515 = vpack.c.b16 %v9498, %v9497
        %v9516 = vpack.c.b16 %v9500, %v9499
        %v9549 = vunpack.c.l.b16 %v9421
        %v9550 = vunpack.c.l.b16 %v9422
        %v9551 = vunpack.c.l.b16 %v9423
        %v9552 = vunpack.c.l.b16 %v9424
        %v9553 = vunpack.c.l.b16 %v9425
        %v9554 = vunpack.c.l.b16 %v9426
        %v9555 = vunpack.c.l.b16 %v9427
        %v9556 = vunpack.c.l.b16 %v9428
        %v9557 = vunpack.c.l.b16 %v9429
        %v9558 = vunpack.c.l.b16 %v9430
        %v9559 = vunpack.c.l.b16 %v9431
        %v9560 = vunpack.c.l.b16 %v9432
        %v9561 = vunpack.c.l.b16 %v9433
        %v9562 = vunpack.c.l.b16 %v9434
        %v9563 = vunpack.c.l.b16 %v9435
        %v9564 = vunpack.c.l.b16 %v9436
        %v9565 = vpack.c.b16 %v9550, %v9549
        %v9566 = vpack.c.b16 %v9552, %v9551
        %v9567 = vpack.c.b16 %v9554, %v9553
        %v9568 = vpack.c.b16 %v9556, %v9555
        %v9569 = vpack.c.b16 %v9558, %v9557
        %v9570 = vpack.c.b16 %v9560, %v9559
        %v9571 = vpack.c.b16 %v9562, %v9561
        %v9572 = vpack.c.b16 %v9564, %v9563
        %9581 = vmatprep.subr.bf16.mxu0 0
        %9582 = vmatpush1.bf16.msra.mxu0 %v9565
        %9583 = vmatprep.subr.bf16.mxu0 0
        %9584 = vmatpush1.bf16.msra.mxu0 %v9566
        %9585 = vmatprep.subr.bf16.mxu0 0
        %9586 = vmatpush1.bf16.msra.mxu0 %v9567
        %9587 = vmatprep.subr.bf16.mxu0 0
        %9588 = vmatpush1.bf16.msra.mxu0 %v9568
        %9589 = vmatprep.subr.bf16.mxu0 0
        %9590 = vmatpush1.bf16.msra.mxu0 %v9569
        %9591 = vmatprep.subr.bf16.mxu0 0
        %9592 = vmatpush1.bf16.msra.mxu0 %v9570
        %9593 = vmatprep.subr.bf16.mxu0 0
        %9594 = vmatpush1.bf16.msra.mxu0 %v9571
        %9595 = vmatprep.subr.bf16.mxu0 0
        %9596 = vmatpush1.bf16.msra.mxu0 %v9572
        %9597 = vmatprep.subr.bf16.mxu0 0
        %9598 = vmatpush1.bf16.msra.mxu0 0
        %9599 = vmatprep.subr.bf16.mxu0 0
        %9600 = vmatpush1.bf16.msra.mxu0 0
        %9601 = vmatprep.subr.bf16.mxu0 0
        %9602 = vmatpush1.bf16.msra.mxu0 0
        %9603 = vmatprep.subr.bf16.mxu0 0
        %9604 = vmatpush1.bf16.msra.mxu0 0
        %9605 = vmatprep.subr.bf16.mxu0 0
        %9606 = vmatpush1.bf16.msra.mxu0 0
        %9607 = vmatprep.subr.bf16.mxu0 0
        %9608 = vmatpush1.bf16.msra.mxu0 0
        %9609 = vmatprep.subr.bf16.mxu0 0
        %9610 = vmatpush1.bf16.msra.mxu0 0
        %9611 = vmatprep.subr.bf16.mxu0 0
        %9612 = vmatpush1.bf16.msra.mxu0 0
        %9613 = vmatprep.mubr.bf16.mxu0 0
        %9614 = vmatmul.mubr.bf16.gmra.mrb[0].mxu0 %v9501
        %v9615 = vpop.f32.mrb[0].mxu0
        %v9616 = vadd.f32 0.0, %v9615
        %v9617 = vpop.f32.mrb[0].mxu0
        %v9618 = vpop.f32.mrb[0].mxu0
        %v9619 = vadd.f32 0.0, %v9618
        %v9620 = vpop.f32.mrb[0].mxu0
        %9621 = vmatprep.mubr.bf16.mxu0 0
        %9622 = vmatmul.mubr.bf16.gmra.mrb[0].mxu0 %v9502
        %v9623 = vpop.f32.mrb[0].mxu0
        %v9624 = vadd.f32 0.0, %v9623
        %v9625 = vpop.f32.mrb[0].mxu0
        %v9626 = vpop.f32.mrb[0].mxu0
        %v9627 = vadd.f32 0.0, %v9626
        %v9628 = vpop.f32.mrb[0].mxu0
        %9629 = vmatprep.mubr.bf16.mxu0 0
        %9630 = vmatmul.mubr.bf16.gmra.mrb[0].mxu0 %v9503
        %v9631 = vpop.f32.mrb[0].mxu0
        %v9632 = vadd.f32 0.0, %v9631
        %v9633 = vpop.f32.mrb[0].mxu0
        %v9634 = vpop.f32.mrb[0].mxu0
        %v9635 = vadd.f32 0.0, %v9634
        %v9636 = vpop.f32.mrb[0].mxu0
        %9637 = vmatprep.mubr.bf16.mxu0 0
        %9638 = vmatmul.mubr.bf16.gmra.mrb[0].mxu0 %v9504
        %v9639 = vpop.f32.mrb[0].mxu0
        %v9640 = vadd.f32 0.0, %v9639
        %v9641 = vpop.f32.mrb[0].mxu0
        %v9642 = vpop.f32.mrb[0].mxu0
        %v9643 = vadd.f32 0.0, %v9642
        %v9644 = vpop.f32.mrb[0].mxu0
        %9645 = vmatprep.mubr.bf16.mxu0 0
        %9646 = vmatmul.mubr.bf16.gmra.mrb[0].mxu0 %v9505
        %v9647 = vpop.f32.mrb[0].mxu0
        %v9648 = vadd.f32 0.0, %v9647
        %v9649 = vpop.f32.mrb[0].mxu0
        %v9650 = vpop.f32.mrb[0].mxu0
        %v9651 = vadd.f32 0.0, %v9650
        %v9652 = vpop.f32.mrb[0].mxu0
        %9653 = vmatprep.mubr.bf16.mxu0 0
        %9654 = vmatmul.mubr.bf16.gmra.mrb[0].mxu0 %v9506
        %v9655 = vpop.f32.mrb[0].mxu0
        %v9656 = vadd.f32 0.0, %v9655
        %v9657 = vpop.f32.mrb[0].mxu0
        %v9658 = vpop.f32.mrb[0].mxu0
        %v9659 = vadd.f32 0.0, %v9658
        %v9660 = vpop.f32.mrb[0].mxu0
        %9661 = vmatprep.mubr.bf16.mxu0 0
        %9662 = vmatmul.mubr.bf16.gmra.mrb[0].mxu0 %v9507
        %v9663 = vpop.f32.mrb[0].mxu0
        %v9664 = vadd.f32 0.0, %v9663
        %v9665 = vpop.f32.mrb[0].mxu0
        %v9666 = vpop.f32.mrb[0].mxu0
        %v9667 = vadd.f32 0.0, %v9666
        %v9668 = vpop.f32.mrb[0].mxu0
        %9669 = vmatprep.mubr.bf16.mxu0 0
        %9670 = vmatmul.mubr.bf16.gmra.mrb[0].mxu0 %v9508
        %v9671 = vpop.f32.mrb[0].mxu0
        %v9672 = vadd.f32 0.0, %v9671
        %v9673 = vpop.f32.mrb[0].mxu0
        %v9674 = vpop.f32.mrb[0].mxu0
        %v9675 = vadd.f32 0.0, %v9674
        %v9676 = vpop.f32.mrb[0].mxu0
        %9677 = vmatprep.mubr.bf16.mxu0 0
        %9678 = vmatmul.mubr.bf16.gmra.mrb[0].mxu0 %v9509
        %v9679 = vpop.f32.mrb[0].mxu0
        %v9680 = vadd.f32 0.0, %v9679
        %v9681 = vpop.f32.mrb[0].mxu0
        %v9682 = vpop.f32.mrb[0].mxu0
        %v9683 = vadd.f32 0.0, %v9682
        %v9684 = vpop.f32.mrb[0].mxu0
        %9685 = vmatprep.mubr.bf16.mxu0 0
        %9686 = vmatmul.mubr.bf16.gmra.mrb[0].mxu0 %v9510
        %v9687 = vpop.f32.mrb[0].mxu0
        %v9688 = vadd.f32 0.0, %v9687
        %v9689 = vpop.f32.mrb[0].mxu0
        %v9690 = vpop.f32.mrb[0].mxu0
        %v9691 = vadd.f32 0.0, %v9690
        %v9692 = vpop.f32.mrb[0].mxu0
        %9693 = vmatprep.mubr.bf16.mxu0 0
        %9694 = vmatmul.mubr.bf16.gmra.mrb[0].mxu0 %v9511
        %v9695 = vpop.f32.mrb[0].mxu0
        %v9696 = vadd.f32 0.0, %v9695
        %v9697 = vpop.f32.mrb[0].mxu0
        %v9698 = vpop.f32.mrb[0].mxu0
        %v9699 = vadd.f32 0.0, %v9698
        %v9700 = vpop.f32.mrb[0].mxu0
        %9701 = vmatprep.mubr.bf16.mxu0 0
        %9702 = vmatmul.mubr.bf16.gmra.mrb[0].mxu0 %v9512
        %v9703 = vpop.f32.mrb[0].mxu0
        %v9704 = vadd.f32 0.0, %v9703
        %v9705 = vpop.f32.mrb[0].mxu0
        %v9706 = vpop.f32.mrb[0].mxu0
        %v9707 = vadd.f32 0.0, %v9706
        %v9708 = vpop.f32.mrb[0].mxu0
        %9709 = vmatprep.mubr.bf16.mxu0 0
        %9710 = vmatmul.mubr.bf16.gmra.mrb[0].mxu0 %v9513
        %v9711 = vpop.f32.mrb[0].mxu0
        %v9712 = vadd.f32 0.0, %v9711
        %v9713 = vpop.f32.mrb[0].mxu0
        %v9714 = vpop.f32.mrb[0].mxu0
        %v9715 = vadd.f32 0.0, %v9714
        %v9716 = vpop.f32.mrb[0].mxu0
        %9717 = vmatprep.mubr.bf16.mxu0 0
        %9718 = vmatmul.mubr.bf16.gmra.mrb[0].mxu0 %v9514
        %v9719 = vpop.f32.mrb[0].mxu0
        %v9720 = vadd.f32 0.0, %v9719
        %v9721 = vpop.f32.mrb[0].mxu0
        %v9722 = vpop.f32.mrb[0].mxu0
        %v9723 = vadd.f32 0.0, %v9722
        %v9724 = vpop.f32.mrb[0].mxu0
        %9725 = vmatprep.mubr.bf16.mxu0 0
        %9726 = vmatmul.mubr.bf16.gmra.mrb[0].mxu0 %v9515
        %v9727 = vpop.f32.mrb[0].mxu0
        %v9728 = vadd.f32 0.0, %v9727
        %v9729 = vpop.f32.mrb[0].mxu0
        %v9730 = vpop.f32.mrb[0].mxu0
        %v9731 = vadd.f32 0.0, %v9730
        %v9732 = vpop.f32.mrb[0].mxu0
        %9733 = vmatprep.mubr.bf16.mxu0 0
        %9734 = vmatmul.mubr.bf16.gmra.mrb[0].mxu0 %v9516
        %v9735 = vpop.f32.mrb[0].mxu0
        %v9736 = vadd.f32 0.0, %v9735
        %v9737 = vpop.f32.mrb[0].mxu0
        %v9738 = vpop.f32.mrb[0].mxu0
        %v9739 = vadd.f32 0.0, %v9738
        %v9740 = vpop.f32.mrb[0].mxu0
        %9741 = vdwg.mxu0
        %v9742 = vadd.f32 %v9356, %v9616
        %v9743 = vadd.f32 %v9357, %v9619
        %v9744 = vadd.f32 %v9358, %v9624
        %v9745 = vadd.f32 %v9359, %v9627
        %v9746 = vadd.f32 %v9360, %v9632
        %v9747 = vadd.f32 %v9361, %v9635
        %v9748 = vadd.f32 %v9362, %v9640
        %v9749 = vadd.f32 %v9363, %v9643
        %v9750 = vadd.f32 %v9364, %v9648
        %v9751 = vadd.f32 %v9365, %v9651
        %v9752 = vadd.f32 %v9366, %v9656
        %v9753 = vadd.f32 %v9367, %v9659
        %v9754 = vadd.f32 %v9368, %v9664
        %v9755 = vadd.f32 %v9369, %v9667
        %v9756 = vadd.f32 %v9370, %v9672
        %v9757 = vadd.f32 %v9371, %v9675
        %v9758 = vadd.f32 %v9372, %v9680
        %v9759 = vadd.f32 %v9373, %v9683
        %v9760 = vadd.f32 %v9374, %v9688
        %v9761 = vadd.f32 %v9375, %v9691
        %v9762 = vadd.f32 %v9376, %v9696
        %v9763 = vadd.f32 %v9377, %v9699
        %v9764 = vadd.f32 %v9378, %v9704
        %v9765 = vadd.f32 %v9379, %v9707
        %v9766 = vadd.f32 %v9380, %v9712
        %v9767 = vadd.f32 %v9381, %v9715
        %v9768 = vadd.f32 %v9382, %v9720
        %v9769 = vadd.f32 %v9383, %v9723
        %v9770 = vadd.f32 %v9384, %v9728
        %v9771 = vadd.f32 %v9385, %v9731
        %v9772 = vadd.f32 %v9386, %v9736
        %v9773 = vadd.f32 %v9387, %v9739
        %v9774 = vld [vmem:[%s3939] sm:$0xf]
        %v9775 = vld [vmem:[%s3939 + $0x4] sm:$0xf]
        %v9776 = vld [vmem:[%s3939 + $0x8] sm:$0x1]
        %v9777 = vld [vmem:[%s3939 + $0xc] sm:$0xf]
        %v9778 = vld [vmem:[%s3939 + $0x10] sm:$0xf]
        %v9779 = vld [vmem:[%s3939 + $0x14] sm:$0x1]
        %v9780 = vld [vmem:[%s3939 + $0x18] sm:$0xf]
        %v9781 = vld [vmem:[%s3939 + $0x1c] sm:$0xf]
        %v9782 = vld [vmem:[%s3939 + $0x20] sm:$0x1]
        %v9783 = vld [vmem:[%s3939 + $0x24] sm:$0xf]
        %v9784 = vld [vmem:[%s3939 + $0x28] sm:$0xf]
        %v9785 = vld [vmem:[%s3939 + $0x2c] sm:$0x1]
        %v9786 = vld [vmem:[%s3939 + $0x30] sm:$0xf]
        %v9787 = vld [vmem:[%s3939 + $0x34] sm:$0xf]
        %v9788 = vld [vmem:[%s3939 + $0x38] sm:$0x1]
        %v9789 = vld [vmem:[%s3939 + $0x3c] sm:$0xf]
        %v9790 = vld [vmem:[%s3939 + $0x40] sm:$0xf]
        %v9791 = vld [vmem:[%s3939 + $0x44] sm:$0x1]
        %v9792 = vld [vmem:[%s3939 + $0x48] sm:$0xf]
        %v9793 = vld [vmem:[%s3939 + $0x4c] sm:$0xf]
        %v9794 = vld [vmem:[%s3939 + $0x50] sm:$0x1]
        %v9795 = vld [vmem:[%s3939 + $0x54] sm:$0xf]
        %v9796 = vld [vmem:[%s3939 + $0x58] sm:$0xf]
        %v9797 = vld [vmem:[%s3939 + $0x5c] sm:$0x1]
        %v9798 = vld [vmem:[%s3939 + $0x60] sm:$0xf]
        %v9799 = vld [vmem:[%s3939 + $0x64] sm:$0xf]
        %v9800 = vld [vmem:[%s3939 + $0x68] sm:$0x1]
        %v9801 = vld [vmem:[%s3939 + $0x6c] sm:$0xf]
        %v9802 = vld [vmem:[%s3939 + $0x70] sm:$0xf]
        %v9803 = vld [vmem:[%s3939 + $0x74] sm:$0x1]
        %v9804 = vld [vmem:[%s3939 + $0x78] sm:$0xf]
        %v9805 = vld [vmem:[%s3939 + $0x7c] sm:$0xf]
        %v9806 = vld [vmem:[%s3939 + $0x80] sm:$0x1]
        %v9807 = vld [vmem:[%s3939 + $0x84] sm:$0xf]
        %v9808 = vld [vmem:[%s3939 + $0x88] sm:$0xf]
        %v9809 = vld [vmem:[%s3939 + $0x8c] sm:$0x1]
        %v9810 = vld [vmem:[%s3939 + $0x90] sm:$0xf]
        %v9811 = vld [vmem:[%s3939 + $0x94] sm:$0xf]
        %v9812 = vld [vmem:[%s3939 + $0x98] sm:$0x1]
        %v9813 = vld [vmem:[%s3939 + $0x9c] sm:$0xf]
        %v9814 = vld [vmem:[%s3939 + $0xa0] sm:$0xf]
        %v9815 = vld [vmem:[%s3939 + $0xa4] sm:$0x1]
        %v9816 = vld [vmem:[%s3939 + $0xa8] sm:$0xf]
        %v9817 = vld [vmem:[%s3939 + $0xac] sm:$0xf]
        %v9818 = vld [vmem:[%s3939 + $0xb0] sm:$0x1]
        %v9819 = vld [vmem:[%s3939 + $0xb4] sm:$0xf]
        %v9820 = vld [vmem:[%s3939 + $0xb8] sm:$0xf]
        %v9821 = vld [vmem:[%s3939 + $0xbc] sm:$0x1]
        %v9823 = vshrl.u32 %v9774, 16
        %v9825 = vrot.slane %v9823, 4
        %v9826 = vshll.u32 %v9774, 16
        %v9828 = vrot.slane %v9826, 5
        %v9829 = vor.u32 %v9825, %v9828
        %v9830 = vrot.slane %v9829, 4
        %v9832 = vshll.u32 %v9775, 16
        %v9834 = vrot.slane %v9832, 5
        %v9835 = vsel %vm836, %v9830, %v9834
        %v9836 = vshrl.u32 %v9775, 16
        %v9838 = vrot.slane %v9836, 4
        %v9839 = vor.u32 %v9838, %v9834
        %v9840 = vrot.slane %v9839, 4
        %v9842 = vshll.u32 %v9776, 16
        %v9844 = vrot.slane %v9842, 5
        %v9845 = vsel %vm836, %v9840, %v9844
        %v9847 = vshrl.u32 %v9777, 16
        %v9849 = vrot.slane %v9847, 4
        %v9850 = vshll.u32 %v9777, 16
        %v9852 = vrot.slane %v9850, 5
        %v9853 = vor.u32 %v9849, %v9852
        %v9854 = vrot.slane %v9853, 4
        %v9856 = vshll.u32 %v9778, 16
        %v9858 = vrot.slane %v9856, 5
        %v9859 = vsel %vm836, %v9854, %v9858
        %v9860 = vshrl.u32 %v9778, 16
        %v9862 = vrot.slane %v9860, 4
        %v9863 = vor.u32 %v9862, %v9858
        %v9864 = vrot.slane %v9863, 4
        %v9866 = vshll.u32 %v9779, 16
        %v9868 = vrot.slane %v9866, 5
        %v9869 = vsel %vm836, %v9864, %v9868
        %v9871 = vshrl.u32 %v9780, 16
        %v9873 = vrot.slane %v9871, 4
        %v9874 = vshll.u32 %v9780, 16
        %v9876 = vrot.slane %v9874, 5
        %v9877 = vor.u32 %v9873, %v9876
        %v9878 = vrot.slane %v9877, 4
        %v9880 = vshll.u32 %v9781, 16
        %v9882 = vrot.slane %v9880, 5
        %v9883 = vsel %vm836, %v9878, %v9882
        %v9884 = vshrl.u32 %v9781, 16
        %v9886 = vrot.slane %v9884, 4
        %v9887 = vor.u32 %v9886, %v9882
        %v9888 = vrot.slane %v9887, 4
        %v9890 = vshll.u32 %v9782, 16
        %v9892 = vrot.slane %v9890, 5
        %v9893 = vsel %vm836, %v9888, %v9892
        %v9895 = vshrl.u32 %v9783, 16
        %v9897 = vrot.slane %v9895, 4
        %v9898 = vshll.u32 %v9783, 16
        %v9900 = vrot.slane %v9898, 5
        %v9901 = vor.u32 %v9897, %v9900
        %v9902 = vrot.slane %v9901, 4
        %v9904 = vshll.u32 %v9784, 16
        %v9906 = vrot.slane %v9904, 5
        %v9907 = vsel %vm836, %v9902, %v9906
        %v9908 = vshrl.u32 %v9784, 16
        %v9910 = vrot.slane %v9908, 4
        %v9911 = vor.u32 %v9910, %v9906
        %v9912 = vrot.slane %v9911, 4
        %v9914 = vshll.u32 %v9785, 16
        %v9916 = vrot.slane %v9914, 5
        %v9917 = vsel %vm836, %v9912, %v9916
        %v9919 = vshrl.u32 %v9786, 16
        %v9921 = vrot.slane %v9919, 4
        %v9922 = vshll.u32 %v9786, 16
        %v9924 = vrot.slane %v9922, 5
        %v9925 = vor.u32 %v9921, %v9924
        %v9926 = vrot.slane %v9925, 4
        %v9928 = vshll.u32 %v9787, 16
        %v9930 = vrot.slane %v9928, 5
        %v9931 = vsel %vm836, %v9926, %v9930
        %v9932 = vshrl.u32 %v9787, 16
        %v9934 = vrot.slane %v9932, 4
        %v9935 = vor.u32 %v9934, %v9930
        %v9936 = vrot.slane %v9935, 4
        %v9938 = vshll.u32 %v9788, 16
        %v9940 = vrot.slane %v9938, 5
        %v9941 = vsel %vm836, %v9936, %v9940
        %v9943 = vshrl.u32 %v9789, 16
        %v9945 = vrot.slane %v9943, 4
        %v9946 = vshll.u32 %v9789, 16
        %v9948 = vrot.slane %v9946, 5
        %v9949 = vor.u32 %v9945, %v9948
        %v9950 = vrot.slane %v9949, 4
        %v9952 = vshll.u32 %v9790, 16
        %v9954 = vrot.slane %v9952, 5
        %v9955 = vsel %vm836, %v9950, %v9954
        %v9956 = vshrl.u32 %v9790, 16
        %v9958 = vrot.slane %v9956, 4
        %v9959 = vor.u32 %v9958, %v9954
        %v9960 = vrot.slane %v9959, 4
        %v9962 = vshll.u32 %v9791, 16
        %v9964 = vrot.slane %v9962, 5
        %v9965 = vsel %vm836, %v9960, %v9964
        %v9967 = vshrl.u32 %v9792, 16
        %v9969 = vrot.slane %v9967, 4
        %v9970 = vshll.u32 %v9792, 16
        %v9972 = vrot.slane %v9970, 5
        %v9973 = vor.u32 %v9969, %v9972
        %v9974 = vrot.slane %v9973, 4
        %v9976 = vshll.u32 %v9793, 16
        %v9978 = vrot.slane %v9976, 5
        %v9979 = vsel %vm836, %v9974, %v9978
        %v9980 = vshrl.u32 %v9793, 16
        %v9982 = vrot.slane %v9980, 4
        %v9983 = vor.u32 %v9982, %v9978
        %v9984 = vrot.slane %v9983, 4
        %v9986 = vshll.u32 %v9794, 16
        %v9988 = vrot.slane %v9986, 5
        %v9989 = vsel %vm836, %v9984, %v9988
        %v9991 = vshrl.u32 %v9795, 16
        %v9993 = vrot.slane %v9991, 4
        %v9994 = vshll.u32 %v9795, 16
        %v9996 = vrot.slane %v9994, 5
        %v9997 = vor.u32 %v9993, %v9996
        %v9998 = vrot.slane %v9997, 4
        %v10000 = vshll.u32 %v9796, 16
        %v10002 = vrot.slane %v10000, 5
        %v10003 = vsel %vm836, %v9998, %v10002
        %v10004 = vshrl.u32 %v9796, 16
        %v10006 = vrot.slane %v10004, 4
        %v10007 = vor.u32 %v10006, %v10002
        %v10008 = vrot.slane %v10007, 4
        %v10010 = vshll.u32 %v9797, 16
        %v10012 = vrot.slane %v10010, 5
        %v10013 = vsel %vm836, %v10008, %v10012
        %v10015 = vshrl.u32 %v9798, 16
        %v10017 = vrot.slane %v10015, 4
        %v10018 = vshll.u32 %v9798, 16
        %v10020 = vrot.slane %v10018, 5
        %v10021 = vor.u32 %v10017, %v10020
        %v10022 = vrot.slane %v10021, 4
        %v10024 = vshll.u32 %v9799, 16
        %v10026 = vrot.slane %v10024, 5
        %v10027 = vsel %vm836, %v10022, %v10026
        %v10028 = vshrl.u32 %v9799, 16
        %v10030 = vrot.slane %v10028, 4
        %v10031 = vor.u32 %v10030, %v10026
        %v10032 = vrot.slane %v10031, 4
        %v10034 = vshll.u32 %v9800, 16
        %v10036 = vrot.slane %v10034, 5
        %v10037 = vsel %vm836, %v10032, %v10036
        %v10039 = vshrl.u32 %v9801, 16
        %v10041 = vrot.slane %v10039, 4
        %v10042 = vshll.u32 %v9801, 16
        %v10044 = vrot.slane %v10042, 5
        %v10045 = vor.u32 %v10041, %v10044
        %v10046 = vrot.slane %v10045, 4
        %v10048 = vshll.u32 %v9802, 16
        %v10050 = vrot.slane %v10048, 5
        %v10051 = vsel %vm836, %v10046, %v10050
        %v10052 = vshrl.u32 %v9802, 16
        %v10054 = vrot.slane %v10052, 4
        %v10055 = vor.u32 %v10054, %v10050
        %v10056 = vrot.slane %v10055, 4
        %v10058 = vshll.u32 %v9803, 16
        %v10060 = vrot.slane %v10058, 5
        %v10061 = vsel %vm836, %v10056, %v10060
        %v10063 = vshrl.u32 %v9804, 16
        %v10065 = vrot.slane %v10063, 4
        %v10066 = vshll.u32 %v9804, 16
        %v10068 = vrot.slane %v10066, 5
        %v10069 = vor.u32 %v10065, %v10068
        %v10070 = vrot.slane %v10069, 4
        %v10072 = vshll.u32 %v9805, 16
        %v10074 = vrot.slane %v10072, 5
        %v10075 = vsel %vm836, %v10070, %v10074
        %v10076 = vshrl.u32 %v9805, 16
        %v10078 = vrot.slane %v10076, 4
        %v10079 = vor.u32 %v10078, %v10074
        %v10080 = vrot.slane %v10079, 4
        %v10082 = vshll.u32 %v9806, 16
        %v10084 = vrot.slane %v10082, 5
        %v10085 = vsel %vm836, %v10080, %v10084
        %v10087 = vshrl.u32 %v9807, 16
        %v10089 = vrot.slane %v10087, 4
        %v10090 = vshll.u32 %v9807, 16
        %v10092 = vrot.slane %v10090, 5
        %v10093 = vor.u32 %v10089, %v10092
        %v10094 = vrot.slane %v10093, 4
        %v10096 = vshll.u32 %v9808, 16
        %v10098 = vrot.slane %v10096, 5
        %v10099 = vsel %vm836, %v10094, %v10098
        %v10100 = vshrl.u32 %v9808, 16
        %v10102 = vrot.slane %v10100, 4
        %v10103 = vor.u32 %v10102, %v10098
        %v10104 = vrot.slane %v10103, 4
        %v10106 = vshll.u32 %v9809, 16
        %v10108 = vrot.slane %v10106, 5
        %v10109 = vsel %vm836, %v10104, %v10108
        %v10111 = vshrl.u32 %v9810, 16
        %v10113 = vrot.slane %v10111, 4
        %v10114 = vshll.u32 %v9810, 16
        %v10116 = vrot.slane %v10114, 5
        %v10117 = vor.u32 %v10113, %v10116
        %v10118 = vrot.slane %v10117, 4
        %v10120 = vshll.u32 %v9811, 16
        %v10122 = vrot.slane %v10120, 5
        %v10123 = vsel %vm836, %v10118, %v10122
        %v10124 = vshrl.u32 %v9811, 16
        %v10126 = vrot.slane %v10124, 4
        %v10127 = vor.u32 %v10126, %v10122
        %v10128 = vrot.slane %v10127, 4
        %v10130 = vshll.u32 %v9812, 16
        %v10132 = vrot.slane %v10130, 5
        %v10133 = vsel %vm836, %v10128, %v10132
        %v10135 = vshrl.u32 %v9813, 16
        %v10137 = vrot.slane %v10135, 4
        %v10138 = vshll.u32 %v9813, 16
        %v10140 = vrot.slane %v10138, 5
        %v10141 = vor.u32 %v10137, %v10140
        %v10142 = vrot.slane %v10141, 4
        %v10144 = vshll.u32 %v9814, 16
        %v10146 = vrot.slane %v10144, 5
        %v10147 = vsel %vm836, %v10142, %v10146
        %v10148 = vshrl.u32 %v9814, 16
        %v10150 = vrot.slane %v10148, 4
        %v10151 = vor.u32 %v10150, %v10146
        %v10152 = vrot.slane %v10151, 4
        %v10154 = vshll.u32 %v9815, 16
        %v10156 = vrot.slane %v10154, 5
        %v10157 = vsel %vm836, %v10152, %v10156
        %v10159 = vshrl.u32 %v9816, 16
        %v10161 = vrot.slane %v10159, 4
        %v10162 = vshll.u32 %v9816, 16
        %v10164 = vrot.slane %v10162, 5
        %v10165 = vor.u32 %v10161, %v10164
        %v10166 = vrot.slane %v10165, 4
        %v10168 = vshll.u32 %v9817, 16
        %v10170 = vrot.slane %v10168, 5
        %v10171 = vsel %vm836, %v10166, %v10170
        %v10172 = vshrl.u32 %v9817, 16
        %v10174 = vrot.slane %v10172, 4
        %v10175 = vor.u32 %v10174, %v10170
        %v10176 = vrot.slane %v10175, 4
        %v10178 = vshll.u32 %v9818, 16
        %v10180 = vrot.slane %v10178, 5
        %v10181 = vsel %vm836, %v10176, %v10180
        %v10183 = vshrl.u32 %v9819, 16
        %v10185 = vrot.slane %v10183, 4
        %v10186 = vshll.u32 %v9819, 16
        %v10188 = vrot.slane %v10186, 5
        %v10189 = vor.u32 %v10185, %v10188
        %v10190 = vrot.slane %v10189, 4
        %v10192 = vshll.u32 %v9820, 16
        %v10194 = vrot.slane %v10192, 5
        %v10195 = vsel %vm836, %v10190, %v10194
        %v10196 = vshrl.u32 %v9820, 16
        %v10198 = vrot.slane %v10196, 4
        %v10199 = vor.u32 %v10198, %v10194
        %v10200 = vrot.slane %v10199, 4
        %v10202 = vshll.u32 %v9821, 16
        %v10204 = vrot.slane %v10202, 5
        %v10205 = vsel %vm836, %v10200, %v10204
        %s10206 = scalar_lea.vmem [#allocation8], 448
        %v10207 = vld [vmem:[%s10206] sm:$0xf]
        %v10208 = vld [vmem:[%s10206 + $0x4] sm:$0xf]
        %v10209 = vld [vmem:[%s10206 + $0x8] sm:$0xf]
        %v10210 = vld [vmem:[%s10206 + $0xc] sm:$0xf]
        %v10211 = vld [vmem:[%s10206 + $0x10] sm:$0xf]
        %v10212 = vld [vmem:[%s10206 + $0x14] sm:$0xf]
        %v10213 = vld [vmem:[%s10206 + $0x18] sm:$0xf]
        %v10214 = vld [vmem:[%s10206 + $0x1c] sm:$0xf]
        %v10215 = vld [vmem:[%s10206 + $0x20] sm:$0xf]
        %v10216 = vld [vmem:[%s10206 + $0x24] sm:$0xf]
        %v10217 = vld [vmem:[%s10206 + $0x28] sm:$0xf]
        %v10218 = vld [vmem:[%s10206 + $0x2c] sm:$0xf]
        %v10219 = vld [vmem:[%s10206 + $0x30] sm:$0xf]
        %v10220 = vld [vmem:[%s10206 + $0x34] sm:$0xf]
        %v10221 = vld [vmem:[%s10206 + $0x38] sm:$0xf]
        %v10222 = vld [vmem:[%s10206 + $0x3c] sm:$0xf]
        %v10223 = vunpack.c.l.b16 %v9835
        %v10224 = vunpack.c.l.b16 %v9845
        %v10225 = vunpack.c.l.b16 %v9859
        %v10226 = vunpack.c.l.b16 %v9869
        %v10227 = vunpack.c.l.b16 %v9883
        %v10228 = vunpack.c.l.b16 %v9893
        %v10229 = vunpack.c.l.b16 %v9907
        %v10230 = vunpack.c.l.b16 %v9917
        %v10231 = vunpack.c.l.b16 %v9931
        %v10232 = vunpack.c.l.b16 %v9941
        %v10233 = vunpack.c.l.b16 %v9955
        %v10234 = vunpack.c.l.b16 %v9965
        %v10235 = vunpack.c.l.b16 %v9979
        %v10236 = vunpack.c.l.b16 %v9989
        %v10237 = vunpack.c.l.b16 %v10003
        %v10238 = vunpack.c.l.b16 %v10013
        %v10239 = vunpack.c.l.b16 %v10027
        %v10240 = vunpack.c.l.b16 %v10037
        %v10241 = vunpack.c.l.b16 %v10051
        %v10242 = vunpack.c.l.b16 %v10061
        %v10243 = vunpack.c.l.b16 %v10075
        %v10244 = vunpack.c.l.b16 %v10085
        %v10245 = vunpack.c.l.b16 %v10099
        %v10246 = vunpack.c.l.b16 %v10109
        %v10247 = vunpack.c.l.b16 %v10123
        %v10248 = vunpack.c.l.b16 %v10133
        %v10249 = vunpack.c.l.b16 %v10147
        %v10250 = vunpack.c.l.b16 %v10157
        %v10251 = vunpack.c.l.b16 %v10171
        %v10252 = vunpack.c.l.b16 %v10181
        %v10253 = vunpack.c.l.b16 %v10195
        %v10254 = vunpack.c.l.b16 %v10205
        %v10255 = vpack.c.b16 %v10224, %v10223
        %v10256 = vpack.c.b16 %v10226, %v10225
        %v10257 = vpack.c.b16 %v10228, %v10227
        %v10258 = vpack.c.b16 %v10230, %v10229
        %v10259 = vpack.c.b16 %v10232, %v10231
        %v10260 = vpack.c.b16 %v10234, %v10233
        %v10261 = vpack.c.b16 %v10236, %v10235
        %v10262 = vpack.c.b16 %v10238, %v10237
        %v10263 = vpack.c.b16 %v10240, %v10239
        %v10264 = vpack.c.b16 %v10242, %v10241
        %v10265 = vpack.c.b16 %v10244, %v10243
        %v10266 = vpack.c.b16 %v10246, %v10245
        %v10267 = vpack.c.b16 %v10248, %v10247
        %v10268 = vpack.c.b16 %v10250, %v10249
        %v10269 = vpack.c.b16 %v10252, %v10251
        %v10270 = vpack.c.b16 %v10254, %v10253
        %v10303 = vunpack.c.l.b16 %v10207
        %v10304 = vunpack.c.l.b16 %v10208
        %v10305 = vunpack.c.l.b16 %v10209
        %v10306 = vunpack.c.l.b16 %v10210
        %v10307 = vunpack.c.l.b16 %v10211
        %v10308 = vunpack.c.l.b16 %v10212
        %v10309 = vunpack.c.l.b16 %v10213
        %v10310 = vunpack.c.l.b16 %v10214
        %v10311 = vunpack.c.l.b16 %v10215
        %v10312 = vunpack.c.l.b16 %v10216
        %v10313 = vunpack.c.l.b16 %v10217
        %v10314 = vunpack.c.l.b16 %v10218
        %v10315 = vunpack.c.l.b16 %v10219
        %v10316 = vunpack.c.l.b16 %v10220
        %v10317 = vunpack.c.l.b16 %v10221
        %v10318 = vunpack.c.l.b16 %v10222
        %v10319 = vpack.c.b16 %v10304, %v10303
        %v10320 = vpack.c.b16 %v10306, %v10305
        %v10321 = vpack.c.b16 %v10308, %v10307
        %v10322 = vpack.c.b16 %v10310, %v10309
        %v10323 = vpack.c.b16 %v10312, %v10311
        %v10324 = vpack.c.b16 %v10314, %v10313
        %v10325 = vpack.c.b16 %v10316, %v10315
        %v10326 = vpack.c.b16 %v10318, %v10317
        %10335 = vmatprep.subr.bf16.mxu0 0
        %10336 = vmatpush1.bf16.msra.mxu0 %v10319
        %10337 = vmatprep.subr.bf16.mxu0 0
        %10338 = vmatpush1.bf16.msra.mxu0 %v10320
        %10339 = vmatprep.subr.bf16.mxu0 0
        %10340 = vmatpush1.bf16.msra.mxu0 %v10321
        %10341 = vmatprep.subr.bf16.mxu0 0
        %10342 = vmatpush1.bf16.msra.mxu0 %v10322
        %10343 = vmatprep.subr.bf16.mxu0 0
        %10344 = vmatpush1.bf16.msra.mxu0 %v10323
        %10345 = vmatprep.subr.bf16.mxu0 0
        %10346 = vmatpush1.bf16.msra.mxu0 %v10324
        %10347 = vmatprep.subr.bf16.mxu0 0
        %10348 = vmatpush1.bf16.msra.mxu0 %v10325
        %10349 = vmatprep.subr.bf16.mxu0 0
        %10350 = vmatpush1.bf16.msra.mxu0 %v10326
        %10351 = vmatprep.subr.bf16.mxu0 0
        %10352 = vmatpush1.bf16.msra.mxu0 0
        %10353 = vmatprep.subr.bf16.mxu0 0
        %10354 = vmatpush1.bf16.msra.mxu0 0
        %10355 = vmatprep.subr.bf16.mxu0 0
        %10356 = vmatpush1.bf16.msra.mxu0 0
        %10357 = vmatprep.subr.bf16.mxu0 0
        %10358 = vmatpush1.bf16.msra.mxu0 0
        %10359 = vmatprep.subr.bf16.mxu0 0
        %10360 = vmatpush1.bf16.msra.mxu0 0
        %10361 = vmatprep.subr.bf16.mxu0 0
        %10362 = vmatpush1.bf16.msra.mxu0 0
        %10363 = vmatprep.subr.bf16.mxu0 0
        %10364 = vmatpush1.bf16.msra.mxu0 0
        %10365 = vmatprep.subr.bf16.mxu0 0
        %10366 = vmatpush1.bf16.msra.mxu0 0
        %10367 = vmatprep.mubr.bf16.mxu0 0
        %10368 = vmatmul.mubr.bf16.gmra.mrb[0].mxu0 %v10255
        %v10369 = vpop.f32.mrb[0].mxu0
        %v10370 = vadd.f32 0.0, %v10369
        %v10371 = vpop.f32.mrb[0].mxu0
        %v10372 = vpop.f32.mrb[0].mxu0
        %v10373 = vadd.f32 0.0, %v10372
        %v10374 = vpop.f32.mrb[0].mxu0
        %10375 = vmatprep.mubr.bf16.mxu0 0
        %10376 = vmatmul.mubr.bf16.gmra.mrb[0].mxu0 %v10256
        %v10377 = vpop.f32.mrb[0].mxu0
        %v10378 = vadd.f32 0.0, %v10377
        %v10379 = vpop.f32.mrb[0].mxu0
        %v10380 = vpop.f32.mrb[0].mxu0
        %v10381 = vadd.f32 0.0, %v10380
        %v10382 = vpop.f32.mrb[0].mxu0
        %10383 = vmatprep.mubr.bf16.mxu0 0
        %10384 = vmatmul.mubr.bf16.gmra.mrb[0].mxu0 %v10257
        %v10385 = vpop.f32.mrb[0].mxu0
        %v10386 = vadd.f32 0.0, %v10385
        %v10387 = vpop.f32.mrb[0].mxu0
        %v10388 = vpop.f32.mrb[0].mxu0
        %v10389 = vadd.f32 0.0, %v10388
        %v10390 = vpop.f32.mrb[0].mxu0
        %10391 = vmatprep.mubr.bf16.mxu0 0
        %10392 = vmatmul.mubr.bf16.gmra.mrb[0].mxu0 %v10258
        %v10393 = vpop.f32.mrb[0].mxu0
        %v10394 = vadd.f32 0.0, %v10393
        %v10395 = vpop.f32.mrb[0].mxu0
        %v10396 = vpop.f32.mrb[0].mxu0
        %v10397 = vadd.f32 0.0, %v10396
        %v10398 = vpop.f32.mrb[0].mxu0
        %10399 = vmatprep.mubr.bf16.mxu0 0
        %10400 = vmatmul.mubr.bf16.gmra.mrb[0].mxu0 %v10259
        %v10401 = vpop.f32.mrb[0].mxu0
        %v10402 = vadd.f32 0.0, %v10401
        %v10403 = vpop.f32.mrb[0].mxu0
        %v10404 = vpop.f32.mrb[0].mxu0
        %v10405 = vadd.f32 0.0, %v10404
        %v10406 = vpop.f32.mrb[0].mxu0
        %10407 = vmatprep.mubr.bf16.mxu0 0
        %10408 = vmatmul.mubr.bf16.gmra.mrb[0].mxu0 %v10260
        %v10409 = vpop.f32.mrb[0].mxu0
        %v10410 = vadd.f32 0.0, %v10409
        %v10411 = vpop.f32.mrb[0].mxu0
        %v10412 = vpop.f32.mrb[0].mxu0
        %v10413 = vadd.f32 0.0, %v10412
        %v10414 = vpop.f32.mrb[0].mxu0
        %10415 = vmatprep.mubr.bf16.mxu0 0
        %10416 = vmatmul.mubr.bf16.gmra.mrb[0].mxu0 %v10261
        %v10417 = vpop.f32.mrb[0].mxu0
        %v10418 = vadd.f32 0.0, %v10417
        %v10419 = vpop.f32.mrb[0].mxu0
        %v10420 = vpop.f32.mrb[0].mxu0
        %v10421 = vadd.f32 0.0, %v10420
        %v10422 = vpop.f32.mrb[0].mxu0
        %10423 = vmatprep.mubr.bf16.mxu0 0
        %10424 = vmatmul.mubr.bf16.gmra.mrb[0].mxu0 %v10262
        %v10425 = vpop.f32.mrb[0].mxu0
        %v10426 = vadd.f32 0.0, %v10425
        %v10427 = vpop.f32.mrb[0].mxu0
        %v10428 = vpop.f32.mrb[0].mxu0
        %v10429 = vadd.f32 0.0, %v10428
        %v10430 = vpop.f32.mrb[0].mxu0
        %10431 = vmatprep.mubr.bf16.mxu0 0
        %10432 = vmatmul.mubr.bf16.gmra.mrb[0].mxu0 %v10263
        %v10433 = vpop.f32.mrb[0].mxu0
        %v10434 = vadd.f32 0.0, %v10433
        %v10435 = vpop.f32.mrb[0].mxu0
        %v10436 = vpop.f32.mrb[0].mxu0
        %v10437 = vadd.f32 0.0, %v10436
        %v10438 = vpop.f32.mrb[0].mxu0
        %10439 = vmatprep.mubr.bf16.mxu0 0
        %10440 = vmatmul.mubr.bf16.gmra.mrb[0].mxu0 %v10264
        %v10441 = vpop.f32.mrb[0].mxu0
        %v10442 = vadd.f32 0.0, %v10441
        %v10443 = vpop.f32.mrb[0].mxu0
        %v10444 = vpop.f32.mrb[0].mxu0
        %v10445 = vadd.f32 0.0, %v10444
        %v10446 = vpop.f32.mrb[0].mxu0
        %10447 = vmatprep.mubr.bf16.mxu0 0
        %10448 = vmatmul.mubr.bf16.gmra.mrb[0].mxu0 %v10265
        %v10449 = vpop.f32.mrb[0].mxu0
        %v10450 = vadd.f32 0.0, %v10449
        %v10451 = vpop.f32.mrb[0].mxu0
        %v10452 = vpop.f32.mrb[0].mxu0
        %v10453 = vadd.f32 0.0, %v10452
        %v10454 = vpop.f32.mrb[0].mxu0
        %10455 = vmatprep.mubr.bf16.mxu0 0
        %10456 = vmatmul.mubr.bf16.gmra.mrb[0].mxu0 %v10266
        %v10457 = vpop.f32.mrb[0].mxu0
        %v10458 = vadd.f32 0.0, %v10457
        %v10459 = vpop.f32.mrb[0].mxu0
        %v10460 = vpop.f32.mrb[0].mxu0
        %v10461 = vadd.f32 0.0, %v10460
        %v10462 = vpop.f32.mrb[0].mxu0
        %10463 = vmatprep.mubr.bf16.mxu0 0
        %10464 = vmatmul.mubr.bf16.gmra.mrb[0].mxu0 %v10267
        %v10465 = vpop.f32.mrb[0].mxu0
        %v10466 = vadd.f32 0.0, %v10465
        %v10467 = vpop.f32.mrb[0].mxu0
        %v10468 = vpop.f32.mrb[0].mxu0
        %v10469 = vadd.f32 0.0, %v10468
        %v10470 = vpop.f32.mrb[0].mxu0
        %10471 = vmatprep.mubr.bf16.mxu0 0
        %10472 = vmatmul.mubr.bf16.gmra.mrb[0].mxu0 %v10268
        %v10473 = vpop.f32.mrb[0].mxu0
        %v10474 = vadd.f32 0.0, %v10473
        %v10475 = vpop.f32.mrb[0].mxu0
        %v10476 = vpop.f32.mrb[0].mxu0
        %v10477 = vadd.f32 0.0, %v10476
        %v10478 = vpop.f32.mrb[0].mxu0
        %10479 = vmatprep.mubr.bf16.mxu0 0
        %10480 = vmatmul.mubr.bf16.gmra.mrb[0].mxu0 %v10269
        %v10481 = vpop.f32.mrb[0].mxu0
        %v10482 = vadd.f32 0.0, %v10481
        %v10483 = vpop.f32.mrb[0].mxu0
        %v10484 = vpop.f32.mrb[0].mxu0
        %v10485 = vadd.f32 0.0, %v10484
        %v10486 = vpop.f32.mrb[0].mxu0
        %10487 = vmatprep.mubr.bf16.mxu0 0
        %10488 = vmatmul.mubr.bf16.gmra.mrb[0].mxu0 %v10270
        %v10489 = vpop.f32.mrb[0].mxu0
        %v10490 = vadd.f32 0.0, %v10489
        %v10491 = vpop.f32.mrb[0].mxu0
        %v10492 = vpop.f32.mrb[0].mxu0
        %v10493 = vadd.f32 0.0, %v10492
        %v10494 = vpop.f32.mrb[0].mxu0
        %10495 = vdwg.mxu0
        %v10496 = vadd.f32 %v9742, %v10370
        %v10497 = vadd.f32 %v9743, %v10373
        %v10498 = vadd.f32 %v9744, %v10378
        %v10499 = vadd.f32 %v9745, %v10381
        %v10500 = vadd.f32 %v9746, %v10386
        %v10501 = vadd.f32 %v9747, %v10389
        %v10502 = vadd.f32 %v9748, %v10394
        %v10503 = vadd.f32 %v9749, %v10397
        %v10504 = vadd.f32 %v9750, %v10402
        %v10505 = vadd.f32 %v9751, %v10405
        %v10506 = vadd.f32 %v9752, %v10410
        %v10507 = vadd.f32 %v9753, %v10413
        %v10508 = vadd.f32 %v9754, %v10418
        %v10509 = vadd.f32 %v9755, %v10421
        %v10510 = vadd.f32 %v9756, %v10426
        %v10511 = vadd.f32 %v9757, %v10429
        %v10512 = vadd.f32 %v9758, %v10434
        %v10513 = vadd.f32 %v9759, %v10437
        %v10514 = vadd.f32 %v9760, %v10442
        %v10515 = vadd.f32 %v9761, %v10445
        %v10516 = vadd.f32 %v9762, %v10450
        %v10517 = vadd.f32 %v9763, %v10453
        %v10518 = vadd.f32 %v9764, %v10458
        %v10519 = vadd.f32 %v9765, %v10461
        %v10520 = vadd.f32 %v9766, %v10466
        %v10521 = vadd.f32 %v9767, %v10469
        %v10522 = vadd.f32 %v9768, %v10474
        %v10523 = vadd.f32 %v9769, %v10477
        %v10524 = vadd.f32 %v9770, %v10482
        %v10525 = vadd.f32 %v9771, %v10485
        %v10526 = vadd.f32 %v9772, %v10490
        %v10527 = vadd.f32 %v9773, %v10493
        %v10528 = vld [vmem:[%s3939] sm:$0xe]
        %v10529 = vld [vmem:[%s3939 + $0xc] sm:$0xe]
        %v10530 = vld [vmem:[%s3939 + $0x18] sm:$0xe]
        %v10531 = vld [vmem:[%s3939 + $0x24] sm:$0xe]
        %v10532 = vld [vmem:[%s3939 + $0x30] sm:$0xe]
        %v10533 = vld [vmem:[%s3939 + $0x3c] sm:$0xe]
        %v10534 = vld [vmem:[%s3939 + $0x48] sm:$0xe]
        %v10535 = vld [vmem:[%s3939 + $0x54] sm:$0xe]
        %v10536 = vld [vmem:[%s3939 + $0x60] sm:$0xe]
        %v10537 = vld [vmem:[%s3939 + $0x6c] sm:$0xe]
        %v10538 = vld [vmem:[%s3939 + $0x78] sm:$0xe]
        %v10539 = vld [vmem:[%s3939 + $0x84] sm:$0xe]
        %v10540 = vld [vmem:[%s3939 + $0x90] sm:$0xe]
        %v10541 = vld [vmem:[%s3939 + $0x9c] sm:$0xe]
        %v10542 = vld [vmem:[%s3939 + $0xa8] sm:$0xe]
        %v10543 = vld [vmem:[%s3939 + $0xb4] sm:$0xe]
        %v10592 = vrot.slane %v10528, 5
        %v10593 = vrot.slane %v10592, 4
        %v10594 = vrot.slane %v9775, 5
        %v10595 = vsel %vm1866, %v10593, %v10594
        %v10596 = vrot.slane %v10594, 4
        %v10597 = vrot.slane %v9776, 5
        %v10598 = vsel %vm1866, %v10596, %v10597
        %v10599 = vrot.slane %v10529, 5
        %v10600 = vrot.slane %v10599, 4
        %v10601 = vrot.slane %v9778, 5
        %v10602 = vsel %vm1866, %v10600, %v10601
        %v10603 = vrot.slane %v10601, 4
        %v10604 = vrot.slane %v9779, 5
        %v10605 = vsel %vm1866, %v10603, %v10604
        %v10606 = vrot.slane %v10530, 5
        %v10607 = vrot.slane %v10606, 4
        %v10608 = vrot.slane %v9781, 5
        %v10609 = vsel %vm1866, %v10607, %v10608
        %v10610 = vrot.slane %v10608, 4
        %v10611 = vrot.slane %v9782, 5
        %v10612 = vsel %vm1866, %v10610, %v10611
        %v10613 = vrot.slane %v10531, 5
        %v10614 = vrot.slane %v10613, 4
        %v10615 = vrot.slane %v9784, 5
        %v10616 = vsel %vm1866, %v10614, %v10615
        %v10617 = vrot.slane %v10615, 4
        %v10618 = vrot.slane %v9785, 5
        %v10619 = vsel %vm1866, %v10617, %v10618
        %v10620 = vrot.slane %v10532, 5
        %v10621 = vrot.slane %v10620, 4
        %v10622 = vrot.slane %v9787, 5
        %v10623 = vsel %vm1866, %v10621, %v10622
        %v10624 = vrot.slane %v10622, 4
        %v10625 = vrot.slane %v9788, 5
        %v10626 = vsel %vm1866, %v10624, %v10625
        %v10627 = vrot.slane %v10533, 5
        %v10628 = vrot.slane %v10627, 4
        %v10629 = vrot.slane %v9790, 5
        %v10630 = vsel %vm1866, %v10628, %v10629
        %v10631 = vrot.slane %v10629, 4
        %v10632 = vrot.slane %v9791, 5
        %v10633 = vsel %vm1866, %v10631, %v10632
        %v10634 = vrot.slane %v10534, 5
        %v10635 = vrot.slane %v10634, 4
        %v10636 = vrot.slane %v9793, 5
        %v10637 = vsel %vm1866, %v10635, %v10636
        %v10638 = vrot.slane %v10636, 4
        %v10639 = vrot.slane %v9794, 5
        %v10640 = vsel %vm1866, %v10638, %v10639
        %v10641 = vrot.slane %v10535, 5
        %v10642 = vrot.slane %v10641, 4
        %v10643 = vrot.slane %v9796, 5
        %v10644 = vsel %vm1866, %v10642, %v10643
        %v10645 = vrot.slane %v10643, 4
        %v10646 = vrot.slane %v9797, 5
        %v10647 = vsel %vm1866, %v10645, %v10646
        %v10648 = vrot.slane %v10536, 5
        %v10649 = vrot.slane %v10648, 4
        %v10650 = vrot.slane %v9799, 5
        %v10651 = vsel %vm1866, %v10649, %v10650
        %v10652 = vrot.slane %v10650, 4
        %v10653 = vrot.slane %v9800, 5
        %v10654 = vsel %vm1866, %v10652, %v10653
        %v10655 = vrot.slane %v10537, 5
        %v10656 = vrot.slane %v10655, 4
        %v10657 = vrot.slane %v9802, 5
        %v10658 = vsel %vm1866, %v10656, %v10657
        %v10659 = vrot.slane %v10657, 4
        %v10660 = vrot.slane %v9803, 5
        %v10661 = vsel %vm1866, %v10659, %v10660
        %v10662 = vrot.slane %v10538, 5
        %v10663 = vrot.slane %v10662, 4
        %v10664 = vrot.slane %v9805, 5
        %v10665 = vsel %vm1866, %v10663, %v10664
        %v10666 = vrot.slane %v10664, 4
        %v10667 = vrot.slane %v9806, 5
        %v10668 = vsel %vm1866, %v10666, %v10667
        %v10669 = vrot.slane %v10539, 5
        %v10670 = vrot.slane %v10669, 4
        %v10671 = vrot.slane %v9808, 5
        %v10672 = vsel %vm1866, %v10670, %v10671
        %v10673 = vrot.slane %v10671, 4
        %v10674 = vrot.slane %v9809, 5
        %v10675 = vsel %vm1866, %v10673, %v10674
        %v10676 = vrot.slane %v10540, 5
        %v10677 = vrot.slane %v10676, 4
        %v10678 = vrot.slane %v9811, 5
        %v10679 = vsel %vm1866, %v10677, %v10678
        %v10680 = vrot.slane %v10678, 4
        %v10681 = vrot.slane %v9812, 5
        %v10682 = vsel %vm1866, %v10680, %v10681
        %v10683 = vrot.slane %v10541, 5
        %v10684 = vrot.slane %v10683, 4
        %v10685 = vrot.slane %v9814, 5
        %v10686 = vsel %vm1866, %v10684, %v10685
        %v10687 = vrot.slane %v10685, 4
        %v10688 = vrot.slane %v9815, 5
        %v10689 = vsel %vm1866, %v10687, %v10688
        %v10690 = vrot.slane %v10542, 5
        %v10691 = vrot.slane %v10690, 4
        %v10692 = vrot.slane %v9817, 5
        %v10693 = vsel %vm1866, %v10691, %v10692
        %v10694 = vrot.slane %v10692, 4
        %v10695 = vrot.slane %v9818, 5
        %v10696 = vsel %vm1866, %v10694, %v10695
        %v10697 = vrot.slane %v10543, 5
        %v10698 = vrot.slane %v10697, 4
        %v10699 = vrot.slane %v9820, 5
        %v10700 = vsel %vm1866, %v10698, %v10699
        %v10701 = vrot.slane %v10699, 4
        %v10702 = vrot.slane %v9821, 5
        %v10703 = vsel %vm1866, %v10701, %v10702
        %s10704 = scalar_lea.vmem [#allocation8], 512
        %v10705 = vld [vmem:[%s10704] sm:$0xf]
        %v10706 = vld [vmem:[%s10704 + $0x4] sm:$0xf]
        %v10707 = vld [vmem:[%s10704 + $0x8] sm:$0xf]
        %v10708 = vld [vmem:[%s10704 + $0xc] sm:$0xf]
        %v10709 = vld [vmem:[%s10704 + $0x10] sm:$0xf]
        %v10710 = vld [vmem:[%s10704 + $0x14] sm:$0xf]
        %v10711 = vld [vmem:[%s10704 + $0x18] sm:$0xf]
        %v10712 = vld [vmem:[%s10704 + $0x1c] sm:$0xf]
        %v10713 = vld [vmem:[%s10704 + $0x20] sm:$0xf]
        %v10714 = vld [vmem:[%s10704 + $0x24] sm:$0xf]
        %v10715 = vld [vmem:[%s10704 + $0x28] sm:$0xf]
        %v10716 = vld [vmem:[%s10704 + $0x2c] sm:$0xf]
        %v10717 = vld [vmem:[%s10704 + $0x30] sm:$0xf]
        %v10718 = vld [vmem:[%s10704 + $0x34] sm:$0xf]
        %v10719 = vld [vmem:[%s10704 + $0x38] sm:$0xf]
        %v10720 = vld [vmem:[%s10704 + $0x3c] sm:$0xf]
        %v10721 = vunpack.c.l.b16 %v10595
        %v10722 = vunpack.c.l.b16 %v10598
        %v10723 = vunpack.c.l.b16 %v10602
        %v10724 = vunpack.c.l.b16 %v10605
        %v10725 = vunpack.c.l.b16 %v10609
        %v10726 = vunpack.c.l.b16 %v10612
        %v10727 = vunpack.c.l.b16 %v10616
        %v10728 = vunpack.c.l.b16 %v10619
        %v10729 = vunpack.c.l.b16 %v10623
        %v10730 = vunpack.c.l.b16 %v10626
        %v10731 = vunpack.c.l.b16 %v10630
        %v10732 = vunpack.c.l.b16 %v10633
        %v10733 = vunpack.c.l.b16 %v10637
        %v10734 = vunpack.c.l.b16 %v10640
        %v10735 = vunpack.c.l.b16 %v10644
        %v10736 = vunpack.c.l.b16 %v10647
        %v10737 = vunpack.c.l.b16 %v10651
        %v10738 = vunpack.c.l.b16 %v10654
        %v10739 = vunpack.c.l.b16 %v10658
        %v10740 = vunpack.c.l.b16 %v10661
        %v10741 = vunpack.c.l.b16 %v10665
        %v10742 = vunpack.c.l.b16 %v10668
        %v10743 = vunpack.c.l.b16 %v10672
        %v10744 = vunpack.c.l.b16 %v10675
        %v10745 = vunpack.c.l.b16 %v10679
        %v10746 = vunpack.c.l.b16 %v10682
        %v10747 = vunpack.c.l.b16 %v10686
        %v10748 = vunpack.c.l.b16 %v10689
        %v10749 = vunpack.c.l.b16 %v10693
        %v10750 = vunpack.c.l.b16 %v10696
        %v10751 = vunpack.c.l.b16 %v10700
        %v10752 = vunpack.c.l.b16 %v10703
        %v10753 = vpack.c.b16 %v10722, %v10721
        %v10754 = vpack.c.b16 %v10724, %v10723
        %v10755 = vpack.c.b16 %v10726, %v10725
        %v10756 = vpack.c.b16 %v10728, %v10727
        %v10757 = vpack.c.b16 %v10730, %v10729
        %v10758 = vpack.c.b16 %v10732, %v10731
        %v10759 = vpack.c.b16 %v10734, %v10733
        %v10760 = vpack.c.b16 %v10736, %v10735
        %v10761 = vpack.c.b16 %v10738, %v10737
        %v10762 = vpack.c.b16 %v10740, %v10739
        %v10763 = vpack.c.b16 %v10742, %v10741
        %v10764 = vpack.c.b16 %v10744, %v10743
        %v10765 = vpack.c.b16 %v10746, %v10745
        %v10766 = vpack.c.b16 %v10748, %v10747
        %v10767 = vpack.c.b16 %v10750, %v10749
        %v10768 = vpack.c.b16 %v10752, %v10751
        %v10801 = vunpack.c.l.b16 %v10705
        %v10802 = vunpack.c.l.b16 %v10706
        %v10803 = vunpack.c.l.b16 %v10707
        %v10804 = vunpack.c.l.b16 %v10708
        %v10805 = vunpack.c.l.b16 %v10709
        %v10806 = vunpack.c.l.b16 %v10710
        %v10807 = vunpack.c.l.b16 %v10711
        %v10808 = vunpack.c.l.b16 %v10712
        %v10809 = vunpack.c.l.b16 %v10713
        %v10810 = vunpack.c.l.b16 %v10714
        %v10811 = vunpack.c.l.b16 %v10715
        %v10812 = vunpack.c.l.b16 %v10716
        %v10813 = vunpack.c.l.b16 %v10717
        %v10814 = vunpack.c.l.b16 %v10718
        %v10815 = vunpack.c.l.b16 %v10719
        %v10816 = vunpack.c.l.b16 %v10720
        %v10817 = vpack.c.b16 %v10802, %v10801
        %v10818 = vpack.c.b16 %v10804, %v10803
        %v10819 = vpack.c.b16 %v10806, %v10805
        %v10820 = vpack.c.b16 %v10808, %v10807
        %v10821 = vpack.c.b16 %v10810, %v10809
        %v10822 = vpack.c.b16 %v10812, %v10811
        %v10823 = vpack.c.b16 %v10814, %v10813
        %v10824 = vpack.c.b16 %v10816, %v10815
        %10833 = vmatprep.subr.bf16.mxu0 0
        %10834 = vmatpush1.bf16.msra.mxu0 %v10817
        %10835 = vmatprep.subr.bf16.mxu0 0
        %10836 = vmatpush1.bf16.msra.mxu0 %v10818
        %10837 = vmatprep.subr.bf16.mxu0 0
        %10838 = vmatpush1.bf16.msra.mxu0 %v10819
        %10839 = vmatprep.subr.bf16.mxu0 0
        %10840 = vmatpush1.bf16.msra.mxu0 %v10820
        %10841 = vmatprep.subr.bf16.mxu0 0
        %10842 = vmatpush1.bf16.msra.mxu0 %v10821
        %10843 = vmatprep.subr.bf16.mxu0 0
        %10844 = vmatpush1.bf16.msra.mxu0 %v10822
        %10845 = vmatprep.subr.bf16.mxu0 0
        %10846 = vmatpush1.bf16.msra.mxu0 %v10823
        %10847 = vmatprep.subr.bf16.mxu0 0
        %10848 = vmatpush1.bf16.msra.mxu0 %v10824
        %10849 = vmatprep.subr.bf16.mxu0 0
        %10850 = vmatpush1.bf16.msra.mxu0 0
        %10851 = vmatprep.subr.bf16.mxu0 0
        %10852 = vmatpush1.bf16.msra.mxu0 0
        %10853 = vmatprep.subr.bf16.mxu0 0
        %10854 = vmatpush1.bf16.msra.mxu0 0
        %10855 = vmatprep.subr.bf16.mxu0 0
        %10856 = vmatpush1.bf16.msra.mxu0 0
        %10857 = vmatprep.subr.bf16.mxu0 0
        %10858 = vmatpush1.bf16.msra.mxu0 0
        %10859 = vmatprep.subr.bf16.mxu0 0
        %10860 = vmatpush1.bf16.msra.mxu0 0
        %10861 = vmatprep.subr.bf16.mxu0 0
        %10862 = vmatpush1.bf16.msra.mxu0 0
        %10863 = vmatprep.subr.bf16.mxu0 0
        %10864 = vmatpush1.bf16.msra.mxu0 0
        %10865 = vmatprep.mubr.bf16.mxu0 0
        %10866 = vmatmul.mubr.bf16.gmra.mrb[0].mxu0 %v10753
        %v10867 = vpop.f32.mrb[0].mxu0
        %v10868 = vadd.f32 0.0, %v10867
        %v10869 = vpop.f32.mrb[0].mxu0
        %v10870 = vpop.f32.mrb[0].mxu0
        %v10871 = vadd.f32 0.0, %v10870
        %v10872 = vpop.f32.mrb[0].mxu0
        %10873 = vmatprep.mubr.bf16.mxu0 0
        %10874 = vmatmul.mubr.bf16.gmra.mrb[0].mxu0 %v10754
        %v10875 = vpop.f32.mrb[0].mxu0
        %v10876 = vadd.f32 0.0, %v10875
        %v10877 = vpop.f32.mrb[0].mxu0
        %v10878 = vpop.f32.mrb[0].mxu0
        %v10879 = vadd.f32 0.0, %v10878
        %v10880 = vpop.f32.mrb[0].mxu0
        %10881 = vmatprep.mubr.bf16.mxu0 0
        %10882 = vmatmul.mubr.bf16.gmra.mrb[0].mxu0 %v10755
        %v10883 = vpop.f32.mrb[0].mxu0
        %v10884 = vadd.f32 0.0, %v10883
        %v10885 = vpop.f32.mrb[0].mxu0
        %v10886 = vpop.f32.mrb[0].mxu0
        %v10887 = vadd.f32 0.0, %v10886
        %v10888 = vpop.f32.mrb[0].mxu0
        %10889 = vmatprep.mubr.bf16.mxu0 0
        %10890 = vmatmul.mubr.bf16.gmra.mrb[0].mxu0 %v10756
        %v10891 = vpop.f32.mrb[0].mxu0
        %v10892 = vadd.f32 0.0, %v10891
        %v10893 = vpop.f32.mrb[0].mxu0
        %v10894 = vpop.f32.mrb[0].mxu0
        %v10895 = vadd.f32 0.0, %v10894
        %v10896 = vpop.f32.mrb[0].mxu0
        %10897 = vmatprep.mubr.bf16.mxu0 0
        %10898 = vmatmul.mubr.bf16.gmra.mrb[0].mxu0 %v10757
        %v10899 = vpop.f32.mrb[0].mxu0
        %v10900 = vadd.f32 0.0, %v10899
        %v10901 = vpop.f32.mrb[0].mxu0
        %v10902 = vpop.f32.mrb[0].mxu0
        %v10903 = vadd.f32 0.0, %v10902
        %v10904 = vpop.f32.mrb[0].mxu0
        %10905 = vmatprep.mubr.bf16.mxu0 0
        %10906 = vmatmul.mubr.bf16.gmra.mrb[0].mxu0 %v10758
        %v10907 = vpop.f32.mrb[0].mxu0
        %v10908 = vadd.f32 0.0, %v10907
        %v10909 = vpop.f32.mrb[0].mxu0
        %v10910 = vpop.f32.mrb[0].mxu0
        %v10911 = vadd.f32 0.0, %v10910
        %v10912 = vpop.f32.mrb[0].mxu0
        %10913 = vmatprep.mubr.bf16.mxu0 0
        %10914 = vmatmul.mubr.bf16.gmra.mrb[0].mxu0 %v10759
        %v10915 = vpop.f32.mrb[0].mxu0
        %v10916 = vadd.f32 0.0, %v10915
        %v10917 = vpop.f32.mrb[0].mxu0
        %v10918 = vpop.f32.mrb[0].mxu0
        %v10919 = vadd.f32 0.0, %v10918
        %v10920 = vpop.f32.mrb[0].mxu0
        %10921 = vmatprep.mubr.bf16.mxu0 0
        %10922 = vmatmul.mubr.bf16.gmra.mrb[0].mxu0 %v10760
        %v10923 = vpop.f32.mrb[0].mxu0
        %v10924 = vadd.f32 0.0, %v10923
        %v10925 = vpop.f32.mrb[0].mxu0
        %v10926 = vpop.f32.mrb[0].mxu0
        %v10927 = vadd.f32 0.0, %v10926
        %v10928 = vpop.f32.mrb[0].mxu0
        %10929 = vmatprep.mubr.bf16.mxu0 0
        %10930 = vmatmul.mubr.bf16.gmra.mrb[0].mxu0 %v10761
        %v10931 = vpop.f32.mrb[0].mxu0
        %v10932 = vadd.f32 0.0, %v10931
        %v10933 = vpop.f32.mrb[0].mxu0
        %v10934 = vpop.f32.mrb[0].mxu0
        %v10935 = vadd.f32 0.0, %v10934
        %v10936 = vpop.f32.mrb[0].mxu0
        %10937 = vmatprep.mubr.bf16.mxu0 0
        %10938 = vmatmul.mubr.bf16.gmra.mrb[0].mxu0 %v10762
        %v10939 = vpop.f32.mrb[0].mxu0
        %v10940 = vadd.f32 0.0, %v10939
        %v10941 = vpop.f32.mrb[0].mxu0
        %v10942 = vpop.f32.mrb[0].mxu0
        %v10943 = vadd.f32 0.0, %v10942
        %v10944 = vpop.f32.mrb[0].mxu0
        %10945 = vmatprep.mubr.bf16.mxu0 0
        %10946 = vmatmul.mubr.bf16.gmra.mrb[0].mxu0 %v10763
        %v10947 = vpop.f32.mrb[0].mxu0
        %v10948 = vadd.f32 0.0, %v10947
        %v10949 = vpop.f32.mrb[0].mxu0
        %v10950 = vpop.f32.mrb[0].mxu0
        %v10951 = vadd.f32 0.0, %v10950
        %v10952 = vpop.f32.mrb[0].mxu0
        %10953 = vmatprep.mubr.bf16.mxu0 0
        %10954 = vmatmul.mubr.bf16.gmra.mrb[0].mxu0 %v10764
        %v10955 = vpop.f32.mrb[0].mxu0
        %v10956 = vadd.f32 0.0, %v10955
        %v10957 = vpop.f32.mrb[0].mxu0
        %v10958 = vpop.f32.mrb[0].mxu0
        %v10959 = vadd.f32 0.0, %v10958
        %v10960 = vpop.f32.mrb[0].mxu0
        %10961 = vmatprep.mubr.bf16.mxu0 0
        %10962 = vmatmul.mubr.bf16.gmra.mrb[0].mxu0 %v10765
        %v10963 = vpop.f32.mrb[0].mxu0
        %v10964 = vadd.f32 0.0, %v10963
        %v10965 = vpop.f32.mrb[0].mxu0
        %v10966 = vpop.f32.mrb[0].mxu0
        %v10967 = vadd.f32 0.0, %v10966
        %v10968 = vpop.f32.mrb[0].mxu0
        %10969 = vmatprep.mubr.bf16.mxu0 0
        %10970 = vmatmul.mubr.bf16.gmra.mrb[0].mxu0 %v10766
        %v10971 = vpop.f32.mrb[0].mxu0
        %v10972 = vadd.f32 0.0, %v10971
        %v10973 = vpop.f32.mrb[0].mxu0
        %v10974 = vpop.f32.mrb[0].mxu0
        %v10975 = vadd.f32 0.0, %v10974
        %v10976 = vpop.f32.mrb[0].mxu0
        %10977 = vmatprep.mubr.bf16.mxu0 0
        %10978 = vmatmul.mubr.bf16.gmra.mrb[0].mxu0 %v10767
        %v10979 = vpop.f32.mrb[0].mxu0
        %v10980 = vadd.f32 0.0, %v10979
        %v10981 = vpop.f32.mrb[0].mxu0
        %v10982 = vpop.f32.mrb[0].mxu0
        %v10983 = vadd.f32 0.0, %v10982
        %v10984 = vpop.f32.mrb[0].mxu0
        %10985 = vmatprep.mubr.bf16.mxu0 0
        %10986 = vmatmul.mubr.bf16.gmra.mrb[0].mxu0 %v10768
        %v10987 = vpop.f32.mrb[0].mxu0
        %v10988 = vadd.f32 0.0, %v10987
        %v10989 = vpop.f32.mrb[0].mxu0
        %v10990 = vpop.f32.mrb[0].mxu0
        %v10991 = vadd.f32 0.0, %v10990
        %v10992 = vpop.f32.mrb[0].mxu0
        %10993 = vdwg.mxu0
        %v10994 = vadd.f32 %v10496, %v10868
        %v10995 = vadd.f32 %v10497, %v10871
        %v10996 = vadd.f32 %v10498, %v10876
        %v10997 = vadd.f32 %v10499, %v10879
        %v10998 = vadd.f32 %v10500, %v10884
        %v10999 = vadd.f32 %v10501, %v10887
        %v11000 = vadd.f32 %v10502, %v10892
        %v11001 = vadd.f32 %v10503, %v10895
        %v11002 = vadd.f32 %v10504, %v10900
        %v11003 = vadd.f32 %v10505, %v10903
        %v11004 = vadd.f32 %v10506, %v10908
        %v11005 = vadd.f32 %v10507, %v10911
        %v11006 = vadd.f32 %v10508, %v10916
        %v11007 = vadd.f32 %v10509, %v10919
        %v11008 = vadd.f32 %v10510, %v10924
        %v11009 = vadd.f32 %v10511, %v10927
        %v11010 = vadd.f32 %v10512, %v10932
        %v11011 = vadd.f32 %v10513, %v10935
        %v11012 = vadd.f32 %v10514, %v10940
        %v11013 = vadd.f32 %v10515, %v10943
        %v11014 = vadd.f32 %v10516, %v10948
        %v11015 = vadd.f32 %v10517, %v10951
        %v11016 = vadd.f32 %v10518, %v10956
        %v11017 = vadd.f32 %v10519, %v10959
        %v11018 = vadd.f32 %v10520, %v10964
        %v11019 = vadd.f32 %v10521, %v10967
        %v11020 = vadd.f32 %v10522, %v10972
        %v11021 = vadd.f32 %v10523, %v10975
        %v11022 = vadd.f32 %v10524, %v10980
        %v11023 = vadd.f32 %v10525, %v10983
        %v11024 = vadd.f32 %v10526, %v10988
        %v11025 = vadd.f32 %v10527, %v10991
        %v11026 = vlaneseq
        %v11027 = vshrl.u32 %v11026, 7
        %v11028 = vsub.s32 3, %v11027
        %v11029 = vrot.slane %v246, %v11028
        %v11030 = vadd.f32 %v10994, %v11029
        %v11031 = vadd.f32 %v10995, %v11029
        %v11032 = vadd.f32 %v10996, %v11029
        %v11033 = vadd.f32 %v10997, %v11029
        %v11034 = vadd.f32 %v10998, %v11029
        %v11035 = vadd.f32 %v10999, %v11029
        %v11036 = vadd.f32 %v11000, %v11029
        %v11037 = vadd.f32 %v11001, %v11029
        %v11038 = vadd.f32 %v11002, %v11029
        %v11039 = vadd.f32 %v11003, %v11029
        %v11040 = vadd.f32 %v11004, %v11029
        %v11041 = vadd.f32 %v11005, %v11029
        %v11042 = vadd.f32 %v11006, %v11029
        %v11043 = vadd.f32 %v11007, %v11029
        %v11044 = vadd.f32 %v11008, %v11029
        %v11045 = vadd.f32 %v11009, %v11029
        %v11046 = vadd.f32 %v11010, %v11029
        %v11047 = vadd.f32 %v11011, %v11029
        %v11048 = vadd.f32 %v11012, %v11029
        %v11049 = vadd.f32 %v11013, %v11029
        %v11050 = vadd.f32 %v11014, %v11029
        %v11051 = vadd.f32 %v11015, %v11029
        %v11052 = vadd.f32 %v11016, %v11029
        %v11053 = vadd.f32 %v11017, %v11029
        %v11054 = vadd.f32 %v11018, %v11029
        %v11055 = vadd.f32 %v11019, %v11029
        %v11056 = vadd.f32 %v11020, %v11029
        %v11057 = vadd.f32 %v11021, %v11029
        %v11058 = vadd.f32 %v11022, %v11029
        %v11059 = vadd.f32 %v11023, %v11029
        %v11060 = vadd.f32 %v11024, %v11029
        %v11061 = vadd.f32 %v11025, %v11029
        %v11062 = vld [vmem:[%s212] sm:$0xf]
        %v11063 = vld [vmem:[%s212 + $0x4] sm:$0xf]
        %v11064 = vld [vmem:[%s212 + $0x8] sm:$0xf]
        %v11065 = vld [vmem:[%s212 + $0xc] sm:$0xf]
        %v11066 = vld [vmem:[%s212 + $0x10] sm:$0xf]
        %v11067 = vld [vmem:[%s212 + $0x14] sm:$0xf]
        %v11068 = vld [vmem:[%s212 + $0x18] sm:$0xf]
        %v11069 = vld [vmem:[%s212 + $0x1c] sm:$0xf]
        %v11070 = vld [vmem:[%s212 + $0x20] sm:$0xf]
        %v11071 = vld [vmem:[%s212 + $0x24] sm:$0xf]
        %v11072 = vld [vmem:[%s212 + $0x28] sm:$0xf]
        %v11073 = vld [vmem:[%s212 + $0x2c] sm:$0xf]
        %v11074 = vld [vmem:[%s212 + $0x30] sm:$0xf]
        %v11075 = vld [vmem:[%s212 + $0x34] sm:$0xf]
        %v11076 = vld [vmem:[%s212 + $0x38] sm:$0xf]
        %v11077 = vld [vmem:[%s212 + $0x3c] sm:$0xf]
        %v11078 = vld [vmem:[%s212 + $0x40] sm:$0xf]
        %v11079 = vld [vmem:[%s212 + $0x44] sm:$0xf]
        %v11080 = vld [vmem:[%s212 + $0x48] sm:$0xf]
        %v11081 = vld [vmem:[%s212 + $0x4c] sm:$0xf]
        %v11082 = vld [vmem:[%s212 + $0x50] sm:$0xf]
        %v11083 = vld [vmem:[%s212 + $0x54] sm:$0xf]
        %v11084 = vld [vmem:[%s212 + $0x58] sm:$0xf]
        %v11085 = vld [vmem:[%s212 + $0x5c] sm:$0xf]
        %v11086 = vld [vmem:[%s212 + $0x60] sm:$0xf]
        %v11087 = vld [vmem:[%s212 + $0x64] sm:$0xf]
        %v11088 = vld [vmem:[%s212 + $0x68] sm:$0xf]
        %v11089 = vld [vmem:[%s212 + $0x6c] sm:$0xf]
        %v11090 = vld [vmem:[%s212 + $0x70] sm:$0xf]
        %v11091 = vld [vmem:[%s212 + $0x74] sm:$0xf]
        %v11092 = vld [vmem:[%s212 + $0x78] sm:$0xf]
        %v11093 = vld [vmem:[%s212 + $0x7c] sm:$0xf]
        %v11094 = vunpack.c.l.bf16 %v11062
        %v11095 = vunpack.c.l.bf16 %v11063
        %v11096 = vunpack.c.l.bf16 %v11064
        %v11097 = vunpack.c.l.bf16 %v11065
        %v11098 = vunpack.c.l.bf16 %v11066
        %v11099 = vunpack.c.l.bf16 %v11067
        %v11100 = vunpack.c.l.bf16 %v11068
        %v11101 = vunpack.c.l.bf16 %v11069
        %v11102 = vunpack.c.l.bf16 %v11070
        %v11103 = vunpack.c.l.bf16 %v11071
        %v11104 = vunpack.c.l.bf16 %v11072
        %v11105 = vunpack.c.l.bf16 %v11073
        %v11106 = vunpack.c.l.bf16 %v11074
        %v11107 = vunpack.c.l.bf16 %v11075
        %v11108 = vunpack.c.l.bf16 %v11076
        %v11109 = vunpack.c.l.bf16 %v11077
        %v11110 = vunpack.c.l.bf16 %v11078
        %v11111 = vunpack.c.l.bf16 %v11079
        %v11112 = vunpack.c.l.bf16 %v11080
        %v11113 = vunpack.c.l.bf16 %v11081
        %v11114 = vunpack.c.l.bf16 %v11082
        %v11115 = vunpack.c.l.bf16 %v11083
        %v11116 = vunpack.c.l.bf16 %v11084
        %v11117 = vunpack.c.l.bf16 %v11085
        %v11118 = vunpack.c.l.bf16 %v11086
        %v11119 = vunpack.c.l.bf16 %v11087
        %v11120 = vunpack.c.l.bf16 %v11088
        %v11121 = vunpack.c.l.bf16 %v11089
        %v11122 = vunpack.c.l.bf16 %v11090
        %v11123 = vunpack.c.l.bf16 %v11091
        %v11124 = vunpack.c.l.bf16 %v11092
        %v11125 = vunpack.c.l.bf16 %v11093
        %v11126 = vadd.f32 %v11030, %v11094
        %v11127 = vadd.f32 %v11031, %v11095
        %v11128 = vadd.f32 %v11032, %v11096
        %v11129 = vadd.f32 %v11033, %v11097
        %v11130 = vadd.f32 %v11034, %v11098
        %v11131 = vadd.f32 %v11035, %v11099
        %v11132 = vadd.f32 %v11036, %v11100
        %v11133 = vadd.f32 %v11037, %v11101
        %v11134 = vadd.f32 %v11038, %v11102
        %v11135 = vadd.f32 %v11039, %v11103
        %v11136 = vadd.f32 %v11040, %v11104
        %v11137 = vadd.f32 %v11041, %v11105
        %v11138 = vadd.f32 %v11042, %v11106
        %v11139 = vadd.f32 %v11043, %v11107
        %v11140 = vadd.f32 %v11044, %v11108
        %v11141 = vadd.f32 %v11045, %v11109
        %v11142 = vadd.f32 %v11046, %v11110
        %v11143 = vadd.f32 %v11047, %v11111
        %v11144 = vadd.f32 %v11048, %v11112
        %v11145 = vadd.f32 %v11049, %v11113
        %v11146 = vadd.f32 %v11050, %v11114
        %v11147 = vadd.f32 %v11051, %v11115
        %v11148 = vadd.f32 %v11052, %v11116
        %v11149 = vadd.f32 %v11053, %v11117
        %v11150 = vadd.f32 %v11054, %v11118
        %v11151 = vadd.f32 %v11055, %v11119
        %v11152 = vadd.f32 %v11056, %v11120
        %v11153 = vadd.f32 %v11057, %v11121
        %v11154 = vadd.f32 %v11058, %v11122
        %v11155 = vadd.f32 %v11059, %v11123
        %v11156 = vadd.f32 %v11060, %v11124
        %v11157 = vadd.f32 %v11061, %v11125
        %v11158 = vmax.f32 %v11126, 0.0
        %v11159 = vmax.f32 %v11127, 0.0
        %v11160 = vmax.f32 %v11128, 0.0
        %v11161 = vmax.f32 %v11129, 0.0
        %v11162 = vmax.f32 %v11130, 0.0
        %v11163 = vmax.f32 %v11131, 0.0
        %v11164 = vmax.f32 %v11132, 0.0
        %v11165 = vmax.f32 %v11133, 0.0
        %v11166 = vmax.f32 %v11134, 0.0
        %v11167 = vmax.f32 %v11135, 0.0
        %v11168 = vmax.f32 %v11136, 0.0
        %v11169 = vmax.f32 %v11137, 0.0
        %v11170 = vmax.f32 %v11138, 0.0
        %v11171 = vmax.f32 %v11139, 0.0
        %v11172 = vmax.f32 %v11140, 0.0
        %v11173 = vmax.f32 %v11141, 0.0
        %v11174 = vmax.f32 %v11142, 0.0
        %v11175 = vmax.f32 %v11143, 0.0
        %v11176 = vmax.f32 %v11144, 0.0
        %v11177 = vmax.f32 %v11145, 0.0
        %v11178 = vmax.f32 %v11146, 0.0
        %v11179 = vmax.f32 %v11147, 0.0
        %v11180 = vmax.f32 %v11148, 0.0
        %v11181 = vmax.f32 %v11149, 0.0
        %v11182 = vmax.f32 %v11150, 0.0
        %v11183 = vmax.f32 %v11151, 0.0
        %v11184 = vmax.f32 %v11152, 0.0
        %v11185 = vmax.f32 %v11153, 0.0
        %v11186 = vmax.f32 %v11154, 0.0
        %v11187 = vmax.f32 %v11155, 0.0
        %v11188 = vmax.f32 %v11156, 0.0
        %v11189 = vmax.f32 %v11157, 0.0
        %v11190 = vpack.c.bf16 %v11159, %v11158
        %v11191 = vpack.c.bf16 %v11161, %v11160
        %v11192 = vpack.c.bf16 %v11163, %v11162
        %v11193 = vpack.c.bf16 %v11165, %v11164
        %v11194 = vpack.c.bf16 %v11167, %v11166
        %v11195 = vpack.c.bf16 %v11169, %v11168
        %v11196 = vpack.c.bf16 %v11171, %v11170
        %v11197 = vpack.c.bf16 %v11173, %v11172
        %v11198 = vpack.c.bf16 %v11175, %v11174
        %v11199 = vpack.c.bf16 %v11177, %v11176
        %v11200 = vpack.c.bf16 %v11179, %v11178
        %v11201 = vpack.c.bf16 %v11181, %v11180
        %v11202 = vpack.c.bf16 %v11183, %v11182
        %v11203 = vpack.c.bf16 %v11185, %v11184
        %v11204 = vpack.c.bf16 %v11187, %v11186
        %v11205 = vpack.c.bf16 %v11189, %v11188
        %v11222 = vunpack.c.l.b16 %v11190
        %v11223 = vunpack.c.h.b16 %v11190
        %v11224 = vunpack.c.l.b16 %v11191
        %v11225 = vunpack.c.h.b16 %v11191
        %v11226 = vunpack.c.l.b16 %v11192
        %v11227 = vunpack.c.h.b16 %v11192
        %v11228 = vunpack.c.l.b16 %v11193
        %v11229 = vunpack.c.h.b16 %v11193
        %v11230 = vunpack.c.l.b16 %v11194
        %v11231 = vunpack.c.h.b16 %v11194
        %v11232 = vunpack.c.l.b16 %v11195
        %v11233 = vunpack.c.h.b16 %v11195
        %v11234 = vunpack.c.l.b16 %v11196
        %v11235 = vunpack.c.h.b16 %v11196
        %v11236 = vunpack.c.l.b16 %v11197
        %v11237 = vunpack.c.h.b16 %v11197
        %v11238 = vunpack.c.l.b16 %v11198
        %v11239 = vunpack.c.h.b16 %v11198
        %v11240 = vunpack.c.l.b16 %v11199
        %v11241 = vunpack.c.h.b16 %v11199
        %v11242 = vunpack.c.l.b16 %v11200
        %v11243 = vunpack.c.h.b16 %v11200
        %v11244 = vunpack.c.l.b16 %v11201
        %v11245 = vunpack.c.h.b16 %v11201
        %v11246 = vunpack.c.l.b16 %v11202
        %v11247 = vunpack.c.h.b16 %v11202
        %v11248 = vunpack.c.l.b16 %v11203
        %v11249 = vunpack.c.h.b16 %v11203
        %v11250 = vunpack.c.l.b16 %v11204
        %v11251 = vunpack.c.h.b16 %v11204
        %v11252 = vunpack.c.l.b16 %v11205
        %v11253 = vunpack.c.h.b16 %v11205
        %v11254 = vpack.c.b16 %v11222, %v11222
        %v11255 = vpack.c.b16 %v11223, %v11223
        %v11256 = vpack.c.b16 %v11224, %v11224
        %v11257 = vpack.c.b16 %v11225, %v11225
        %v11258 = vpack.c.b16 %v11226, %v11226
        %v11259 = vpack.c.b16 %v11227, %v11227
        %v11260 = vpack.c.b16 %v11228, %v11228
        %v11261 = vpack.c.b16 %v11229, %v11229
        %v11262 = vpack.c.b16 %v11230, %v11230
        %v11263 = vpack.c.b16 %v11231, %v11231
        %v11264 = vpack.c.b16 %v11232, %v11232
        %v11265 = vpack.c.b16 %v11233, %v11233
        %v11266 = vpack.c.b16 %v11234, %v11234
        %v11267 = vpack.c.b16 %v11235, %v11235
        %v11268 = vpack.c.b16 %v11236, %v11236
        %v11269 = vpack.c.b16 %v11237, %v11237
        %v11270 = vpack.c.b16 %v11238, %v11238
        %v11271 = vpack.c.b16 %v11239, %v11239
        %v11272 = vpack.c.b16 %v11240, %v11240
        %v11273 = vpack.c.b16 %v11241, %v11241
        %v11274 = vpack.c.b16 %v11242, %v11242
        %v11275 = vpack.c.b16 %v11243, %v11243
        %v11276 = vpack.c.b16 %v11244, %v11244
        %v11277 = vpack.c.b16 %v11245, %v11245
        %v11278 = vpack.c.b16 %v11246, %v11246
        %v11279 = vpack.c.b16 %v11247, %v11247
        %v11280 = vpack.c.b16 %v11248, %v11248
        %v11281 = vpack.c.b16 %v11249, %v11249
        %v11282 = vpack.c.b16 %v11250, %v11250
        %v11283 = vpack.c.b16 %v11251, %v11251
        %v11284 = vpack.c.b16 %v11252, %v11252
        %v11285 = vpack.c.b16 %v11253, %v11253
        %11318 = vst [vmem:[%s244] sm:$0xf] %v11254
        %11319 = vst [vmem:[%s244 + $0x4] sm:$0xf] %v11255
        %11320 = vst [vmem:[%s244 + $0x8] sm:$0xf] %v11256
        %11321 = vst [vmem:[%s244 + $0xc] sm:$0xf] %v11257
        %11322 = vst [vmem:[%s244 + $0x10] sm:$0xf] %v11258
        %11323 = vst [vmem:[%s244 + $0x14] sm:$0xf] %v11259
        %11324 = vst [vmem:[%s244 + $0x18] sm:$0xf] %v11260
        %11325 = vst [vmem:[%s244 + $0x1c] sm:$0xf] %v11261
        %11326 = vst [vmem:[%s244 + $0x20] sm:$0xf] %v11262
        %11327 = vst [vmem:[%s244 + $0x24] sm:$0xf] %v11263
        %11328 = vst [vmem:[%s244 + $0x28] sm:$0xf] %v11264
        %11329 = vst [vmem:[%s244 + $0x2c] sm:$0xf] %v11265
        %11330 = vst [vmem:[%s244 + $0x30] sm:$0xf] %v11266
        %11331 = vst [vmem:[%s244 + $0x34] sm:$0xf] %v11267
        %11332 = vst [vmem:[%s244 + $0x38] sm:$0xf] %v11268
        %11333 = vst [vmem:[%s244 + $0x3c] sm:$0xf] %v11269
        %11334 = vst [vmem:[%s244 + $0x40] sm:$0xf] %v11270
        %11335 = vst [vmem:[%s244 + $0x44] sm:$0xf] %v11271
        %11336 = vst [vmem:[%s244 + $0x48] sm:$0xf] %v11272
        %11337 = vst [vmem:[%s244 + $0x4c] sm:$0xf] %v11273
        %11338 = vst [vmem:[%s244 + $0x50] sm:$0xf] %v11274
        %11339 = vst [vmem:[%s244 + $0x54] sm:$0xf] %v11275
        %11340 = vst [vmem:[%s244 + $0x58] sm:$0xf] %v11276
        %11341 = vst [vmem:[%s244 + $0x5c] sm:$0xf] %v11277
        %11342 = vst [vmem:[%s244 + $0x60] sm:$0xf] %v11278
        %11343 = vst [vmem:[%s244 + $0x64] sm:$0xf] %v11279
        %11344 = vst [vmem:[%s244 + $0x68] sm:$0xf] %v11280
        %11345 = vst [vmem:[%s244 + $0x6c] sm:$0xf] %v11281
        %11346 = vst [vmem:[%s244 + $0x70] sm:$0xf] %v11282
        %11347 = vst [vmem:[%s244 + $0x74] sm:$0xf] %v11283
        %11348 = vst [vmem:[%s244 + $0x78] sm:$0xf] %v11284
        %11349 = vst [vmem:[%s244 + $0x7c] sm:$0xf] %v11285
        %s11350 = sand.u32 %s119, 1
        %s11351 = scalar_lea.sflag [#allocation5], %s11350
        %s11352 = sand.u32 %s119, 1
        %s11353 = smul.addr %s11352, 128
        %s11354 = scalar_lea.vmem [#allocation9], %s11353
        // Predicated region
        $region49: #{tpu_custom_call.1} parent=35 // pred_check
          %p11355 = pneg %p129
        $region50: #{tpu_custom_call.1} parent=35 // pred_check_branch
          %11357 = sbr.rel (%p11355) target = $region52
        $region51: #{tpu_custom_call.1} parent=35 // pred_region
          %s11359 = ssub.s32 2048, 2048
          %11360 = vsyncadd %s11351, %s11359
          %s11361 = smul.addr %s22, 32
          %s11362 = smul.addr %s11361, 64
          %s11363 = scalar_lea.hbm %s4, %s11362
          %s11364 = sshll.u32 %s11354, 4
          %s11365 = int_to_ptr.vmem [resolvable:$true] %s11364
          %11370 = dma.vmem_to_hbm [thread:$0]  %s11365, 2048, %s11363, %s11351, 64, 64, 4
        $region52: #{tpu_custom_call.1} parent=35 // pred_fallthru
          _
      $region36: #{tpu_custom_call.1} parent=5 // pred_fallthru
        _
      %p11371 = scmp.le.s32.totalorder 2, %s17
      // Predicated region
      $region53: #{tpu_custom_call.1} parent=5 // pred_check
        %p11372 = pneg %p11371
      $region54: #{tpu_custom_call.1} parent=5 // pred_check_branch
        %11374 = sbr.rel (%p11372) target = $region56
      $region55: #{tpu_custom_call.1} parent=5 // pred_region
        %s11375 = ssub.s32 %s17, 2
        // Predicated region
        $region57: #{tpu_custom_call.1} parent=55 // pred_check
          %p11376 = pneg %p135
        $region58: #{tpu_custom_call.1} parent=55 // pred_check_branch
          %11378 = sbr.rel (%p11376) target = $region60
        $region59: #{tpu_custom_call.1} parent=55 // pred_region
          %s11379 = sand.u32 %s120, 1
          %s11380 = scalar_lea.sflag [#allocation5], %s11379
          %s11381 = sand.u32 %s120, 1
          %s11382 = smul.addr %s11381, 128
          %s11383 = scalar_lea.vmem [#allocation9], %s11382
          %11384 = dma.done %s11380, 2048
        $region60: #{tpu_custom_call.1} parent=55 // pred_fallthru
          _
      $region56: #{tpu_custom_call.1} parent=5 // pred_fallthru
        _
    $region6: #{tpu_custom_call.1} parent=1 // loop_footer
      %s21 = sadd.s32 1, %s17
    $region7: #{tpu_custom_call.1} parent=1 // loop_footer_branch
      %16 = sbr.rel target = $region3
    $region8: #{tpu_custom_call.1} parent=1 // loop_exit
      _
    %11385 = vsyncpa [#allocation4], 1
    %s11386 = scalar_lea.sflag [#allocation4], 1
    %11387 = vsyncpa %s11386, 1
    %11388 = vsyncpa [#allocation7], 1
    %11389 = vsyncpa [#allocation5], 1
    %s11390 = scalar_lea.sflag [#allocation5], 1
    %11391 = vsyncpa %s11390, 1

</llo_original>
